<compile_context>
chip_gen: v7x
topology: tpu7x:2x2x1
jax: 0.10.0
libtpu: 0.0.40
codegen_flags: <defaults>
</compile_context>

<pallas_src>
import jax
import jax.numpy as jnp
from jax.experimental import pallas as pl
from jax.experimental.pallas import tpu as pltpu


# ----------------------------------------------------------------------------
# Pallas kernels
# ----------------------------------------------------------------------------
def _make_mm_kernel(leaky: bool, has_skip: bool):
    """y = act(X @ W + b) [+ skip]  for one batch element, (T, C_out) output."""
    neg = 0.2

    if has_skip:
        def kernel(x_ref, w_ref, b_ref, s_ref, o_ref):
            y = jnp.dot(x_ref[0], w_ref[...],
                        preferred_element_type=jnp.float32) + b_ref[...]
            if leaky:
                y = jnp.where(y >= 0, y, neg * y)
            o_ref[0] = y + s_ref[0]
    else:
        def kernel(x_ref, w_ref, b_ref, o_ref):
            y = jnp.dot(x_ref[0], w_ref[...],
                        preferred_element_type=jnp.float32) + b_ref[...]
            if leaky:
                y = jnp.where(y >= 0, y, neg * y)
            o_ref[0] = y
    return kernel


def _make_up_kernel(has_skip: bool):
    """Polyphase ConvTranspose1d(k=4,s=2,p=1) + bias + LeakyReLU(0.2) [+ skip].

    xe = [x | x_prev] @ W_even -> even output samples
    xo = [x | x_next] @ W_odd  -> odd  output samples
    """
    neg = 0.2

    if has_skip:
        def kernel(xe_ref, xo_ref, we_ref, wo_ref, b_ref, se_ref, so_ref,
                   oe_ref, oo_ref):
            ye = jnp.dot(xe_ref[0], we_ref[...],
                         preferred_element_type=jnp.float32) + b_ref[...]
            yo = jnp.dot(xo_ref[0], wo_ref[...],
                         preferred_element_type=jnp.float32) + b_ref[...]
            ye = jnp.where(ye >= 0, ye, neg * ye)
            yo = jnp.where(yo >= 0, yo, neg * yo)
            oe_ref[0] = ye + se_ref[0]
            oo_ref[0] = yo + so_ref[0]
    else:
        def kernel(xe_ref, xo_ref, we_ref, wo_ref, b_ref, oe_ref, oo_ref):
            ye = jnp.dot(xe_ref[0], we_ref[...],
                         preferred_element_type=jnp.float32) + b_ref[...]
            yo = jnp.dot(xo_ref[0], wo_ref[...],
                         preferred_element_type=jnp.float32) + b_ref[...]
            oe_ref[0] = jnp.where(ye >= 0, ye, neg * ye)
            oo_ref[0] = jnp.where(yo >= 0, yo, neg * yo)
    return kernel


# ----------------------------------------------------------------------------
# Pallas wrappers
# ----------------------------------------------------------------------------
def matmul_bias_act(x, w, b, *, leaky=False, skip=None):
    """x: (B, T, CK) ; w: (CK, C_out) bf16 ; b: (C_out,) f32 ; skip: (B|1, T, C_out)."""
    B, T, CK = x.shape
    C_out = w.shape[1]
    b2 = b.reshape(1, C_out)
    xb = x.astype(jnp.bfloat16)

    kernel = _make_mm_kernel(leaky, skip is not None)

    in_specs = [
        pl.BlockSpec((1, T, CK), lambda i: (i, 0, 0)),
        pl.BlockSpec((CK, C_out), lambda i: (0, 0)),
        pl.BlockSpec((1, C_out), lambda i: (0, 0)),
    ]
    args = [xb, w, b2]
    if skip is not None:
        if skip.shape[0] == B:
            in_specs.append(pl.BlockSpec((1, T, C_out), lambda i: (i, 0, 0)))
        else:  # broadcast skip (positional embedding with batch dim 1)
            in_specs.append(pl.BlockSpec((1, T, C_out), lambda i: (0, 0, 0)))
        args.append(skip)

    return pl.pallas_call(
        kernel,
        out_shape=jax.ShapeDtypeStruct((B, T, C_out), jnp.float32),
        grid=(B,),
        in_specs=in_specs,
        out_specs=pl.BlockSpec((1, T, C_out), lambda i: (i, 0, 0)),
        compiler_params=pltpu.CompilerParams(dimension_semantics=("parallel",)),
    )(*args)


def conv_transpose_up(x, w_even, w_odd, b, *, skip=None):
    """Polyphase ConvTranspose1d(C, C, 4, 2, 1) + LeakyReLU(0.2) [+ skip-add].

    x: (B, Tin, C) f32  ->  (B, 2*Tin, C) f32.
    out[2m]   = x[m] @ W1 + x[m-1] @ W3   (W_even = [W1; W3])
    out[2m+1] = x[m] @ W2 + x[m+1] @ W0   (W_odd  = [W2; W0])
    """
    B, Tin, C = x.shape
    C_out = w_even.shape[1]
    b2 = b.reshape(1, C_out)

    xb = x.astype(jnp.bfloat16)
    zero = jnp.zeros((B, 1, C), xb.dtype)
    x_prev = jnp.concatenate([zero, xb[:, :-1, :]], axis=1)
    x_next = jnp.concatenate([xb[:, 1:, :], zero], axis=1)
    xe = jnp.concatenate([xb, x_prev], axis=-1)   # (B, Tin, 2C)
    xo = jnp.concatenate([xb, x_next], axis=-1)   # (B, Tin, 2C)

    in_specs = [
        pl.BlockSpec((1, Tin, 2 * C), lambda i: (i, 0, 0)),
        pl.BlockSpec((1, Tin, 2 * C), lambda i: (i, 0, 0)),
        pl.BlockSpec((2 * C, C_out), lambda i: (0, 0)),
        pl.BlockSpec((2 * C, C_out), lambda i: (0, 0)),
        pl.BlockSpec((1, C_out), lambda i: (0, 0)),
    ]
    args = [xe, xo, w_even, w_odd, b2]

    if skip is not None:
        skip_r = skip.reshape(B, Tin, 2, C_out)
        se = skip_r[:, :, 0, :]                   # even output rows of the skip
        so = skip_r[:, :, 1, :]                   # odd output rows of the skip
        in_specs += [pl.BlockSpec((1, Tin, C_out), lambda i: (i, 0, 0)),
                     pl.BlockSpec((1, Tin, C_out), lambda i: (i, 0, 0))]
        args += [se, so]

    ye, yo = pl.pallas_call(
        _make_up_kernel(skip is not None),
        out_shape=(jax.ShapeDtypeStruct((B, Tin, C_out), jnp.float32),
                   jax.ShapeDtypeStruct((B, Tin, C_out), jnp.float32)),
        grid=(B,),
        in_specs=in_specs,
        out_specs=(pl.BlockSpec((1, Tin, C_out), lambda i: (i, 0, 0)),
                   pl.BlockSpec((1, Tin, C_out), lambda i: (i, 0, 0))),
        compiler_params=pltpu.CompilerParams(dimension_semantics=("parallel",)),
    )(*args)

    # interleave even / odd time samples -> (B, 2*Tin, C_out)
    return jnp.stack([ye, yo], axis=2).reshape(B, 2 * Tin, C_out)


# ----------------------------------------------------------------------------
# Plain-JAX glue
# ----------------------------------------------------------------------------
def im2col_down(x):
    """Conv1d(k=3, s=2, p=1) patches in lane-dense layout.

    x: (B, T, C) f32 -> (B, T//2, 3*C) bf16 with column layout [tap0|tap1|tap2]."""
    B, T, C = x.shape
    T_out = T // 2
    xb = x.astype(jnp.bfloat16)
    xp = jnp.pad(xb, ((0, 0), (1, 1), (0, 0)))
    idx = 2 * jnp.arange(T_out)[:, None] + jnp.arange(3)[None, :]   # (T_out, 3)
    cols = xp[:, idx, :]                                            # (B, T_out, 3, C)
    return cols.reshape(B, T_out, 3 * C)                            # contiguous merge


def weight_norm_eff(v, g):
    """PyTorch weight_norm (dim=0): w = g * v / ||v||, norm over dims (1, 2)."""
    norm = jnp.sqrt(jnp.sum(v * v, axis=(1, 2), keepdims=True))
    return g.reshape(-1, 1, 1) * v / norm


# ----------------------------------------------------------------------------
# Parameter construction (deterministic, synthetic)
# ----------------------------------------------------------------------------
def init_params(key, C, T0, weight_init=0.02):
    keys = iter(jax.random.split(key, 64))
    nrm = lambda shape: jax.random.normal(next(keys), shape, jnp.float32) * weight_init
    uni = lambda shape, lo, hi: jax.random.uniform(next(keys), shape, jnp.float32, lo, hi)
    bf16 = jnp.bfloat16

    # embed_spec = Conv1d(C, C, 1): torch weight (C_out, C_in) -> (C_in, C_out)
    embed_w = nrm((C, C))
    embed_b = nrm((C,))
    pos = uni((1, C, T0), -0.01, 0.01)          # torch layout (1, C, T)

    params = {
        "embed_wt": embed_w.T.astype(bf16),     # (C_in, C_out), bf16 matmul weight
        "embed_b": embed_b,
        "pos_t": pos.transpose(0, 2, 1),        # (1, T0, C) f32
        "down": [],
        "up": [],
    }

    for _ in range(5):  # down: weight_norm(Conv1d(C, C, 3, 2, 1))
        v = nrm((C, C, 3))                      # (C_out, C_in, 3)
        g = uni((C,), 0.5, 1.5)
        b = nrm((C,))
        w_eff = weight_norm_eff(v, g)           # (C_out, C_in, 3)
        # matmul weight (3*C_in, C_out):  W[k*C + ci, co] = w_eff[co, ci, k]
        w_mm = w_eff.transpose(2, 1, 0).reshape(3 * C, C).astype(bf16)
        params["down"].append((w_mm, b))

    for _ in range(5):  # up: weight_norm(ConvTranspose1d(C, C, 4, 2, 1))
        v = nrm((C, C, 4))                      # torch layout (C_in, C_out, 4)
        g = uni((C,), 0.5, 1.5)
        b = nrm((C,))
        w_eff = weight_norm_eff(v, g)           # (C_in, C_out, 4)
        # polyphase taps:  even = x@W1 + x_prev@W3 ;  odd = x@W2 + x_next@W0
        w_even = jnp.concatenate([w_eff[:, :, 1], w_eff[:, :, 3]], axis=0).astype(bf16)
        w_odd = jnp.concatenate([w_eff[:, :, 2], w_eff[:, :, 0]], axis=0).astype(bf16)
        params["up"].append((w_even, w_odd, b))

    # final: proj(x) - bias(x) == (Wp - Wb) x + (bp - bb)  -> one fused matmul
    bias_w = nrm((4 * C, C)); bias_b = nrm((4 * C,))
    proj_w = nrm((4 * C, C)); proj_b = nrm((4 * C,))
    params["final_wt"] = (proj_w - bias_w).T.astype(bf16)   # (C, 4C)
    params["final_b"] = proj_b - bias_b                     # (4C,)
    return params


# ----------------------------------------------------------------------------
# UNet forward
# ----------------------------------------------------------------------------
@jax.jit
def unet_forward(x, params):
    """x: (B, C, T0) spectrogram-like input (the stft branch is bypassed)."""
    B, C, T0 = x.shape
    x = x.transpose(0, 2, 1)                    # internal lane-dense (B, T, C)

    # embed_spec (1x1 conv) fused with `x + pos`
    x = matmul_bias_act(x, params["embed_wt"], params["embed_b"],
                        leaky=False, skip=params["pos_t"])

    # down path: 5 x [Dropout(id), weight_norm Conv1d(k3,s2,p1), LeakyReLU(0.2)]
    context = {}
    for (w, b) in params["down"]:
        xc = im2col_down(x)                     # (B, T//2, 3C) bf16
        x = matmul_bias_act(xc, w, b, leaky=True)
        context[x.shape[1]] = x

    # up path: 5 x [Dropout(id), weight_norm ConvTranspose1d(k4,s2,p1), LeakyReLU(0.2)]
    # with skip-add when a matching resolution exists in `context`.
    for (we, wo, b) in params["up"]:
        t_out = 2 * x.shape[1]
        skip = context.get(t_out, None)
        x = conv_transpose_up(x, we, wo, b, skip=skip)

    # final fused proj(x) - bias(x): single 1x1 conv C -> 4C
    out = matmul_bias_act(x, params["final_wt"], params["final_b"], leaky=False)
    return out.transpose(0, 2, 1)               # back to PyTorch NCL (B, 4C, T0)


# ----------------------------------------------------------------------------
if __name__ == "__main__":
    # Small-shape stand-in for the real model (channels=1024, T=128):
    # channels C=128, time T0=128 (divisible by 2**5 for the 5 down layers).
    B, C, T0 = 2, 128, 128

    key = jax.random.PRNGKey(0)
    k_x, k_p = jax.random.split(key)
    x = jax.random.normal(k_x, (B, C, T0), jnp.float32)
    params = init_params(k_p, C, T0)

    out = unet_forward(x, params)
    out = jax.block_until_ready(out)

    assert out.shape == (B, 4 * C, T0), out.shape
    print("KERNEL_OK")
</pallas_src>

<mosaic_0001>
module attributes {stable_mosaic.version = 11 : i64} {
  func.func @kernel(%arg0: i32, %arg1: memref<1x128x128xbf16, #tpu.memory_space<vmem>>, %arg2: memref<128x128xbf16, #tpu.memory_space<vmem>>, %arg3: memref<1x128xf32, #tpu.memory_space<vmem>>, %arg4: memref<1x128x128xf32, #tpu.memory_space<vmem>>, %arg5: memref<1x128x128xf32, #tpu.memory_space<vmem>>) attributes {dimension_semantics = [#tpu.dimension_semantics<parallel>], iteration_bounds = array<i64: 2>, scalar_prefetch = 0 : i64, scratch_operands = 0 : i64, tpu.core_type = #tpu.core_type<tc>, window_params = [{transform_indices = @transform_0, window_bounds = array<i64: 1, 128, 128>}, {pipeline_mode = #tpu.pipeline_mode<synchronous>, transform_indices = @transform_1, window_bounds = array<i64: 128, 128>}, {pipeline_mode = #tpu.pipeline_mode<synchronous>, transform_indices = @transform_2, window_bounds = array<i64: 1, 128>}, {pipeline_mode = #tpu.pipeline_mode<synchronous>, transform_indices = @transform_3, window_bounds = array<i64: 1, 128, 128>}, {transform_indices = @transform_4, window_bounds = array<i64: 1, 128, 128>}]} {
    %c0 = arith.constant 0 : index
    %c0_0 = arith.constant 0 : index
    %c0_1 = arith.constant 0 : index
    %0 = vector.load %arg1[%c0, %c0_0, %c0_1] : memref<1x128x128xbf16, #tpu.memory_space<vmem>>, vector<1x128x128xbf16>
    %1 = vector.shape_cast %0 : vector<1x128x128xbf16> to vector<128x128xbf16>
    %c0_2 = arith.constant 0 : index
    %c0_3 = arith.constant 0 : index
    %2 = vector.load %arg2[%c0_2, %c0_3] : memref<128x128xbf16, #tpu.memory_space<vmem>>, vector<128x128xbf16>
    %cst = arith.constant dense<0.000000e+00> : vector<128x128xf32>
    %3 = tpu.matmul %1, %2, %cst {dimension_numbers = #tpu.dot_dimension_numbers<[1], [0], [0], [1], [0, 0, 1, 1], [], []>} : vector<128x128xbf16>, vector<128x128xbf16>, vector<128x128xf32> -> vector<128x128xf32>
    %c0_4 = arith.constant 0 : index
    %c0_5 = arith.constant 0 : index
    %4 = vector.load %arg3[%c0_4, %c0_5] : memref<1x128xf32, #tpu.memory_space<vmem>>, vector<1x128xf32>
    %5 = vector.broadcast %4 : vector<1x128xf32> to vector<128x128xf32>
    %6 = arith.addf %3, %5 : vector<128x128xf32>
    %c0_6 = arith.constant 0 : index
    %c0_7 = arith.constant 0 : index
    %c0_8 = arith.constant 0 : index
    %7 = vector.load %arg4[%c0_6, %c0_7, %c0_8] : memref<1x128x128xf32, #tpu.memory_space<vmem>>, vector<1x128x128xf32>
    %8 = vector.shape_cast %7 : vector<1x128x128xf32> to vector<128x128xf32>
    %9 = arith.addf %6, %8 : vector<128x128xf32>
    %c0_9 = arith.constant 0 : index
    %c0_10 = arith.constant 0 : index
    %c0_11 = arith.constant 0 : index
    %10 = vector.load %arg5[%c0_9, %c0_10, %c0_11] : memref<1x128x128xf32, #tpu.memory_space<vmem>>, vector<1x128x128xf32>
    %11 = vector.shape_cast %10 : vector<1x128x128xf32> to vector<128x128xf32>
    %12 = vector.shape_cast %9 : vector<128x128xf32> to vector<1x128x128xf32>
    tpu.vector_store %arg5[%c0_9, %c0_10, %c0_11], %12 {strides = array<i32>} : memref<1x128x128xf32, #tpu.memory_space<vmem>>, vector<1x128x128xf32>,
    return
  }
  func.func @transform_0(%arg0: i32) -> (i32, i32, i32) {
    %c0_i32 = arith.constant 0 : i32
    %c0_i32_0 = arith.constant 0 : i32
    %c0_i32_1 = arith.constant 0 : i32
    return %arg0, %c0_i32, %c0_i32_0 : i32, i32, i32
  }
  func.func @transform_1(%arg0: i32) -> (i32, i32) {
    %c0_i32 = arith.constant 0 : i32
    %c0_i32_0 = arith.constant 0 : i32
    %c0_i32_1 = arith.constant 0 : i32
    return %c0_i32, %c0_i32_0 : i32, i32
  }
  func.func @transform_2(%arg0: i32) -> (i32, i32) {
    %c0_i32 = arith.constant 0 : i32
    %c0_i32_0 = arith.constant 0 : i32
    %c0_i32_1 = arith.constant 0 : i32
    return %c0_i32, %c0_i32_0 : i32, i32
  }
  func.func @transform_3(%arg0: i32) -> (i32, i32, i32) {
    %c0_i32 = arith.constant 0 : i32
    %c0_i32_0 = arith.constant 0 : i32
    %c0_i32_1 = arith.constant 0 : i32
    %c0_i32_2 = arith.constant 0 : i32
    return %c0_i32, %c0_i32_0, %c0_i32_1 : i32, i32, i32
  }
  func.func @transform_4(%arg0: i32) -> (i32, i32, i32) {
    %c0_i32 = arith.constant 0 : i32
    %c0_i32_0 = arith.constant 0 : i32
    %c0_i32_1 = arith.constant 0 : i32
    return %arg0, %c0_i32, %c0_i32_0 : i32, i32, i32
  }
}

module attributes {stable_mosaic.version = 11 : i64} {
  func.func @kernel(%arg0: i32, %arg1: memref<1x64x384xbf16, #tpu.memory_space<vmem>>, %arg2: memref<384x128xbf16, #tpu.memory_space<vmem>>, %arg3: memref<1x128xf32, #tpu.memory_space<vmem>>, %arg4: memref<1x64x128xf32, #tpu.memory_space<vmem>>) attributes {dimension_semantics = [#tpu.dimension_semantics<parallel>], iteration_bounds = array<i64: 2>, scalar_prefetch = 0 : i64, scratch_operands = 0 : i64, tpu.core_type = #tpu.core_type<tc>, window_params = [{transform_indices = @transform_0, window_bounds = array<i64: 1, 64, 384>}, {pipeline_mode = #tpu.pipeline_mode<synchronous>, transform_indices = @transform_1, window_bounds = array<i64: 384, 128>}, {pipeline_mode = #tpu.pipeline_mode<synchronous>, transform_indices = @transform_2, window_bounds = array<i64: 1, 128>}, {transform_indices = @transform_3, window_bounds = array<i64: 1, 64, 128>}]} {
    %c0 = arith.constant 0 : index
    %c0_0 = arith.constant 0 : index
    %c0_1 = arith.constant 0 : index
    %0 = vector.load %arg1[%c0, %c0_0, %c0_1] : memref<1x64x384xbf16, #tpu.memory_space<vmem>>, vector<1x64x384xbf16>
    %1 = vector.shape_cast %0 : vector<1x64x384xbf16> to vector<64x384xbf16>
    %c0_2 = arith.constant 0 : index
    %c0_3 = arith.constant 0 : index
    %2 = vector.load %arg2[%c0_2, %c0_3] : memref<384x128xbf16, #tpu.memory_space<vmem>>, vector<384x128xbf16>
    %cst = arith.constant dense<0.000000e+00> : vector<64x128xf32>
    %3 = tpu.matmul %1, %2, %cst {dimension_numbers = #tpu.dot_dimension_numbers<[1], [0], [0], [1], [0, 0, 1, 1], [], []>} : vector<64x384xbf16>, vector<384x128xbf16>, vector<64x128xf32> -> vector<64x128xf32>
    %c0_4 = arith.constant 0 : index
    %c0_5 = arith.constant 0 : index
    %4 = vector.load %arg3[%c0_4, %c0_5] : memref<1x128xf32, #tpu.memory_space<vmem>>, vector<1x128xf32>
    %5 = vector.broadcast %4 : vector<1x128xf32> to vector<64x128xf32>
    %6 = arith.addf %3, %5 : vector<64x128xf32>
    %cst_6 = arith.constant 0.000000e+00 : f32
    %7 = vector.broadcast %cst_6 : f32 to vector<64x128xf32>
    %8 = arith.cmpf oge, %6, %7 : vector<64x128xf32>
    %cst_7 = arith.constant 2.000000e-01 : f32
    %9 = vector.broadcast %cst_7 : f32 to vector<64x128xf32>
    %10 = arith.mulf %9, %6 : vector<64x128xf32>
    %11 = arith.select %8, %6, %10 : vector<64x128xi1>, vector<64x128xf32>
    %c0_8 = arith.constant 0 : index
    %c0_9 = arith.constant 0 : index
    %c0_10 = arith.constant 0 : index
    %12 = vector.load %arg4[%c0_8, %c0_9, %c0_10] : memref<1x64x128xf32, #tpu.memory_space<vmem>>, vector<1x64x128xf32>
    %13 = vector.shape_cast %12 : vector<1x64x128xf32> to vector<64x128xf32>
    %14 = vector.shape_cast %11 : vector<64x128xf32> to vector<1x64x128xf32>
    tpu.vector_store %arg4[%c0_8, %c0_9, %c0_10], %14 {strides = array<i32>} : memref<1x64x128xf32, #tpu.memory_space<vmem>>, vector<1x64x128xf32>,
    return
  }
  func.func @transform_0(%arg0: i32) -> (i32, i32, i32) {
    %c0_i32 = arith.constant 0 : i32
    %c0_i32_0 = arith.constant 0 : i32
    %c0_i32_1 = arith.constant 0 : i32
    return %arg0, %c0_i32, %c0_i32_0 : i32, i32, i32
  }
  func.func @transform_1(%arg0: i32) -> (i32, i32) {
    %c0_i32 = arith.constant 0 : i32
    %c0_i32_0 = arith.constant 0 : i32
    %c0_i32_1 = arith.constant 0 : i32
    return %c0_i32, %c0_i32_0 : i32, i32
  }
  func.func @transform_2(%arg0: i32) -> (i32, i32) {
    %c0_i32 = arith.constant 0 : i32
    %c0_i32_0 = arith.constant 0 : i32
    %c0_i32_1 = arith.constant 0 : i32
    return %c0_i32, %c0_i32_0 : i32, i32
  }
  func.func @transform_3(%arg0: i32) -> (i32, i32, i32) {
    %c0_i32 = arith.constant 0 : i32
    %c0_i32_0 = arith.constant 0 : i32
    %c0_i32_1 = arith.constant 0 : i32
    return %arg0, %c0_i32, %c0_i32_0 : i32, i32, i32
  }
}

module attributes {stable_mosaic.version = 11 : i64} {
  func.func @kernel(%arg0: i32, %arg1: memref<1x32x384xbf16, #tpu.memory_space<vmem>>, %arg2: memref<384x128xbf16, #tpu.memory_space<vmem>>, %arg3: memref<1x128xf32, #tpu.memory_space<vmem>>, %arg4: memref<1x32x128xf32, #tpu.memory_space<vmem>>) attributes {dimension_semantics = [#tpu.dimension_semantics<parallel>], iteration_bounds = array<i64: 2>, scalar_prefetch = 0 : i64, scratch_operands = 0 : i64, tpu.core_type = #tpu.core_type<tc>, window_params = [{transform_indices = @transform_0, window_bounds = array<i64: 1, 32, 384>}, {pipeline_mode = #tpu.pipeline_mode<synchronous>, transform_indices = @transform_1, window_bounds = array<i64: 384, 128>}, {pipeline_mode = #tpu.pipeline_mode<synchronous>, transform_indices = @transform_2, window_bounds = array<i64: 1, 128>}, {transform_indices = @transform_3, window_bounds = array<i64: 1, 32, 128>}]} {
    %c0 = arith.constant 0 : index
    %c0_0 = arith.constant 0 : index
    %c0_1 = arith.constant 0 : index
    %0 = vector.load %arg1[%c0, %c0_0, %c0_1] : memref<1x32x384xbf16, #tpu.memory_space<vmem>>, vector<1x32x384xbf16>
    %1 = vector.shape_cast %0 : vector<1x32x384xbf16> to vector<32x384xbf16>
    %c0_2 = arith.constant 0 : index
    %c0_3 = arith.constant 0 : index
    %2 = vector.load %arg2[%c0_2, %c0_3] : memref<384x128xbf16, #tpu.memory_space<vmem>>, vector<384x128xbf16>
    %cst = arith.constant dense<0.000000e+00> : vector<32x128xf32>
    %3 = tpu.matmul %1, %2, %cst {dimension_numbers = #tpu.dot_dimension_numbers<[1], [0], [0], [1], [0, 0, 1, 1], [], []>} : vector<32x384xbf16>, vector<384x128xbf16>, vector<32x128xf32> -> vector<32x128xf32>
    %c0_4 = arith.constant 0 : index
    %c0_5 = arith.constant 0 : index
    %4 = vector.load %arg3[%c0_4, %c0_5] : memref<1x128xf32, #tpu.memory_space<vmem>>, vector<1x128xf32>
    %5 = vector.broadcast %4 : vector<1x128xf32> to vector<32x128xf32>
    %6 = arith.addf %3, %5 : vector<32x128xf32>
    %cst_6 = arith.constant 0.000000e+00 : f32
    %7 = vector.broadcast %cst_6 : f32 to vector<32x128xf32>
    %8 = arith.cmpf oge, %6, %7 : vector<32x128xf32>
    %cst_7 = arith.constant 2.000000e-01 : f32
    %9 = vector.broadcast %cst_7 : f32 to vector<32x128xf32>
    %10 = arith.mulf %9, %6 : vector<32x128xf32>
    %11 = arith.select %8, %6, %10 : vector<32x128xi1>, vector<32x128xf32>
    %c0_8 = arith.constant 0 : index
    %c0_9 = arith.constant 0 : index
    %c0_10 = arith.constant 0 : index
    %12 = vector.load %arg4[%c0_8, %c0_9, %c0_10] : memref<1x32x128xf32, #tpu.memory_space<vmem>>, vector<1x32x128xf32>
    %13 = vector.shape_cast %12 : vector<1x32x128xf32> to vector<32x128xf32>
    %14 = vector.shape_cast %11 : vector<32x128xf32> to vector<1x32x128xf32>
    tpu.vector_store %arg4[%c0_8, %c0_9, %c0_10], %14 {strides = array<i32>} : memref<1x32x128xf32, #tpu.memory_space<vmem>>, vector<1x32x128xf32>,
    return
  }
  func.func @transform_0(%arg0: i32) -> (i32, i32, i32) {
    %c0_i32 = arith.constant 0 : i32
    %c0_i32_0 = arith.constant 0 : i32
    %c0_i32_1 = arith.constant 0 : i32
    return %arg0, %c0_i32, %c0_i32_0 : i32, i32, i32
  }
  func.func @transform_1(%arg0: i32) -> (i32, i32) {
    %c0_i32 = arith.constant 0 : i32
    %c0_i32_0 = arith.constant 0 : i32
    %c0_i32_1 = arith.constant 0 : i32
    return %c0_i32, %c0_i32_0 : i32, i32
  }
  func.func @transform_2(%arg0: i32) -> (i32, i32) {
    %c0_i32 = arith.constant 0 : i32
    %c0_i32_0 = arith.constant 0 : i32
    %c0_i32_1 = arith.constant 0 : i32
    return %c0_i32, %c0_i32_0 : i32, i32
  }
  func.func @transform_3(%arg0: i32) -> (i32, i32, i32) {
    %c0_i32 = arith.constant 0 : i32
    %c0_i32_0 = arith.constant 0 : i32
    %c0_i32_1 = arith.constant 0 : i32
    return %arg0, %c0_i32, %c0_i32_0 : i32, i32, i32
  }
}

module attributes {stable_mosaic.version = 11 : i64} {
  func.func @kernel(%arg0: i32, %arg1: memref<1x16x384xbf16, #tpu.memory_space<vmem>>, %arg2: memref<384x128xbf16, #tpu.memory_space<vmem>>, %arg3: memref<1x128xf32, #tpu.memory_space<vmem>>, %arg4: memref<1x16x128xf32, #tpu.memory_space<vmem>>) attributes {dimension_semantics = [#tpu.dimension_semantics<parallel>], iteration_bounds = array<i64: 2>, scalar_prefetch = 0 : i64, scratch_operands = 0 : i64, tpu.core_type = #tpu.core_type<tc>, window_params = [{transform_indices = @transform_0, window_bounds = array<i64: 1, 16, 384>}, {pipeline_mode = #tpu.pipeline_mode<synchronous>, transform_indices = @transform_1, window_bounds = array<i64: 384, 128>}, {pipeline_mode = #tpu.pipeline_mode<synchronous>, transform_indices = @transform_2, window_bounds = array<i64: 1, 128>}, {transform_indices = @transform_3, window_bounds = array<i64: 1, 16, 128>}]} {
    %c0 = arith.constant 0 : index
    %c0_0 = arith.constant 0 : index
    %c0_1 = arith.constant 0 : index
    %0 = vector.load %arg1[%c0, %c0_0, %c0_1] : memref<1x16x384xbf16, #tpu.memory_space<vmem>>, vector<1x16x384xbf16>
    %1 = vector.shape_cast %0 : vector<1x16x384xbf16> to vector<16x384xbf16>
    %c0_2 = arith.constant 0 : index
    %c0_3 = arith.constant 0 : index
    %2 = vector.load %arg2[%c0_2, %c0_3] : memref<384x128xbf16, #tpu.memory_space<vmem>>, vector<384x128xbf16>
    %cst = arith.constant dense<0.000000e+00> : vector<16x128xf32>
    %3 = tpu.matmul %1, %2, %cst {dimension_numbers = #tpu.dot_dimension_numbers<[1], [0], [0], [1], [0, 0, 1, 1], [], []>} : vector<16x384xbf16>, vector<384x128xbf16>, vector<16x128xf32> -> vector<16x128xf32>
    %c0_4 = arith.constant 0 : index
    %c0_5 = arith.constant 0 : index
    %4 = vector.load %arg3[%c0_4, %c0_5] : memref<1x128xf32, #tpu.memory_space<vmem>>, vector<1x128xf32>
    %5 = vector.broadcast %4 : vector<1x128xf32> to vector<16x128xf32>
    %6 = arith.addf %3, %5 : vector<16x128xf32>
    %cst_6 = arith.constant 0.000000e+00 : f32
    %7 = vector.broadcast %cst_6 : f32 to vector<16x128xf32>
    %8 = arith.cmpf oge, %6, %7 : vector<16x128xf32>
    %cst_7 = arith.constant 2.000000e-01 : f32
    %9 = vector.broadcast %cst_7 : f32 to vector<16x128xf32>
    %10 = arith.mulf %9, %6 : vector<16x128xf32>
    %11 = arith.select %8, %6, %10 : vector<16x128xi1>, vector<16x128xf32>
    %c0_8 = arith.constant 0 : index
    %c0_9 = arith.constant 0 : index
    %c0_10 = arith.constant 0 : index
    %12 = vector.load %arg4[%c0_8, %c0_9, %c0_10] : memref<1x16x128xf32, #tpu.memory_space<vmem>>, vector<1x16x128xf32>
    %13 = vector.shape_cast %12 : vector<1x16x128xf32> to vector<16x128xf32>
    %14 = vector.shape_cast %11 : vector<16x128xf32> to vector<1x16x128xf32>
    tpu.vector_store %arg4[%c0_8, %c0_9, %c0_10], %14 {strides = array<i32>} : memref<1x16x128xf32, #tpu.memory_space<vmem>>, vector<1x16x128xf32>,
    return
  }
  func.func @transform_0(%arg0: i32) -> (i32, i32, i32) {
    %c0_i32 = arith.constant 0 : i32
    %c0_i32_0 = arith.constant 0 : i32
    %c0_i32_1 = arith.constant 0 : i32
    return %arg0, %c0_i32, %c0_i32_0 : i32, i32, i32
  }
  func.func @transform_1(%arg0: i32) -> (i32, i32) {
    %c0_i32 = arith.constant 0 : i32
    %c0_i32_0 = arith.constant 0 : i32
    %c0_i32_1 = arith.constant 0 : i32
    return %c0_i32, %c0_i32_0 : i32, i32
  }
  func.func @transform_2(%arg0: i32) -> (i32, i32) {
    %c0_i32 = arith.constant 0 : i32
    %c0_i32_0 = arith.constant 0 : i32
    %c0_i32_1 = arith.constant 0 : i32
    return %c0_i32, %c0_i32_0 : i32, i32
  }
  func.func @transform_3(%arg0: i32) -> (i32, i32, i32) {
    %c0_i32 = arith.constant 0 : i32
    %c0_i32_0 = arith.constant 0 : i32
    %c0_i32_1 = arith.constant 0 : i32
    return %arg0, %c0_i32, %c0_i32_0 : i32, i32, i32
  }
}

module attributes {stable_mosaic.version = 11 : i64} {
  func.func @kernel(%arg0: i32, %arg1: memref<1x8x384xbf16, #tpu.memory_space<vmem>>, %arg2: memref<384x128xbf16, #tpu.memory_space<vmem>>, %arg3: memref<1x128xf32, #tpu.memory_space<vmem>>, %arg4: memref<1x8x128xf32, #tpu.memory_space<vmem>>) attributes {dimension_semantics = [#tpu.dimension_semantics<parallel>], iteration_bounds = array<i64: 2>, scalar_prefetch = 0 : i64, scratch_operands = 0 : i64, tpu.core_type = #tpu.core_type<tc>, window_params = [{transform_indices = @transform_0, window_bounds = array<i64: 1, 8, 384>}, {pipeline_mode = #tpu.pipeline_mode<synchronous>, transform_indices = @transform_1, window_bounds = array<i64: 384, 128>}, {pipeline_mode = #tpu.pipeline_mode<synchronous>, transform_indices = @transform_2, window_bounds = array<i64: 1, 128>}, {transform_indices = @transform_3, window_bounds = array<i64: 1, 8, 128>}]} {
    %c0 = arith.constant 0 : index
    %c0_0 = arith.constant 0 : index
    %c0_1 = arith.constant 0 : index
    %0 = vector.load %arg1[%c0, %c0_0, %c0_1] : memref<1x8x384xbf16, #tpu.memory_space<vmem>>, vector<1x8x384xbf16>
    %1 = vector.shape_cast %0 : vector<1x8x384xbf16> to vector<8x384xbf16>
    %c0_2 = arith.constant 0 : index
    %c0_3 = arith.constant 0 : index
    %2 = vector.load %arg2[%c0_2, %c0_3] : memref<384x128xbf16, #tpu.memory_space<vmem>>, vector<384x128xbf16>
    %cst = arith.constant dense<0.000000e+00> : vector<8x128xf32>
    %3 = tpu.matmul %1, %2, %cst {dimension_numbers = #tpu.dot_dimension_numbers<[1], [0], [0], [1], [0, 0, 1, 1], [], []>} : vector<8x384xbf16>, vector<384x128xbf16>, vector<8x128xf32> -> vector<8x128xf32>
    %c0_4 = arith.constant 0 : index
    %c0_5 = arith.constant 0 : index
    %4 = vector.load %arg3[%c0_4, %c0_5] : memref<1x128xf32, #tpu.memory_space<vmem>>, vector<1x128xf32>
    %5 = vector.broadcast %4 : vector<1x128xf32> to vector<8x128xf32>
    %6 = arith.addf %3, %5 : vector<8x128xf32>
    %cst_6 = arith.constant 0.000000e+00 : f32
    %7 = vector.broadcast %cst_6 : f32 to vector<8x128xf32>
    %8 = arith.cmpf oge, %6, %7 : vector<8x128xf32>
    %cst_7 = arith.constant 2.000000e-01 : f32
    %9 = vector.broadcast %cst_7 : f32 to vector<8x128xf32>
    %10 = arith.mulf %9, %6 : vector<8x128xf32>
    %11 = arith.select %8, %6, %10 : vector<8x128xi1>, vector<8x128xf32>
    %c0_8 = arith.constant 0 : index
    %c0_9 = arith.constant 0 : index
    %c0_10 = arith.constant 0 : index
    %12 = vector.load %arg4[%c0_8, %c0_9, %c0_10] : memref<1x8x128xf32, #tpu.memory_space<vmem>>, vector<1x8x128xf32>
    %13 = vector.shape_cast %12 : vector<1x8x128xf32> to vector<8x128xf32>
    %14 = vector.shape_cast %11 : vector<8x128xf32> to vector<1x8x128xf32>
    tpu.vector_store %arg4[%c0_8, %c0_9, %c0_10], %14 {strides = array<i32>} : memref<1x8x128xf32, #tpu.memory_space<vmem>>, vector<1x8x128xf32>,
    return
  }
  func.func @transform_0(%arg0: i32) -> (i32, i32, i32) {
    %c0_i32 = arith.constant 0 : i32
    %c0_i32_0 = arith.constant 0 : i32
    %c0_i32_1 = arith.constant 0 : i32
    return %arg0, %c0_i32, %c0_i32_0 : i32, i32, i32
  }
  func.func @transform_1(%arg0: i32) -> (i32, i32) {
    %c0_i32 = arith.constant 0 : i32
    %c0_i32_0 = arith.constant 0 : i32
    %c0_i32_1 = arith.constant 0 : i32
    return %c0_i32, %c0_i32_0 : i32, i32
  }
  func.func @transform_2(%arg0: i32) -> (i32, i32) {
    %c0_i32 = arith.constant 0 : i32
    %c0_i32_0 = arith.constant 0 : i32
    %c0_i32_1 = arith.constant 0 : i32
    return %c0_i32, %c0_i32_0 : i32, i32
  }
  func.func @transform_3(%arg0: i32) -> (i32, i32, i32) {
    %c0_i32 = arith.constant 0 : i32
    %c0_i32_0 = arith.constant 0 : i32
    %c0_i32_1 = arith.constant 0 : i32
    return %arg0, %c0_i32, %c0_i32_0 : i32, i32, i32
  }
}

module attributes {stable_mosaic.version = 11 : i64} {
  func.func @kernel(%arg0: i32, %arg1: memref<1x4x384xbf16, #tpu.memory_space<vmem>>, %arg2: memref<384x128xbf16, #tpu.memory_space<vmem>>, %arg3: memref<1x128xf32, #tpu.memory_space<vmem>>, %arg4: memref<1x4x128xf32, #tpu.memory_space<vmem>>) attributes {dimension_semantics = [#tpu.dimension_semantics<parallel>], iteration_bounds = array<i64: 2>, scalar_prefetch = 0 : i64, scratch_operands = 0 : i64, tpu.core_type = #tpu.core_type<tc>, window_params = [{transform_indices = @transform_0, window_bounds = array<i64: 1, 4, 384>}, {pipeline_mode = #tpu.pipeline_mode<synchronous>, transform_indices = @transform_1, window_bounds = array<i64: 384, 128>}, {pipeline_mode = #tpu.pipeline_mode<synchronous>, transform_indices = @transform_2, window_bounds = array<i64: 1, 128>}, {transform_indices = @transform_3, window_bounds = array<i64: 1, 4, 128>}]} {
    %c0 = arith.constant 0 : index
    %c0_0 = arith.constant 0 : index
    %c0_1 = arith.constant 0 : index
    %0 = vector.load %arg1[%c0, %c0_0, %c0_1] : memref<1x4x384xbf16, #tpu.memory_space<vmem>>, vector<1x4x384xbf16>
    %1 = vector.shape_cast %0 : vector<1x4x384xbf16> to vector<4x384xbf16>
    %c0_2 = arith.constant 0 : index
    %c0_3 = arith.constant 0 : index
    %2 = vector.load %arg2[%c0_2, %c0_3] : memref<384x128xbf16, #tpu.memory_space<vmem>>, vector<384x128xbf16>
    %cst = arith.constant dense<0.000000e+00> : vector<4x128xf32>
    %3 = tpu.matmul %1, %2, %cst {dimension_numbers = #tpu.dot_dimension_numbers<[1], [0], [0], [1], [0, 0, 1, 1], [], []>} : vector<4x384xbf16>, vector<384x128xbf16>, vector<4x128xf32> -> vector<4x128xf32>
    %c0_4 = arith.constant 0 : index
    %c0_5 = arith.constant 0 : index
    %4 = vector.load %arg3[%c0_4, %c0_5] : memref<1x128xf32, #tpu.memory_space<vmem>>, vector<1x128xf32>
    %5 = vector.broadcast %4 : vector<1x128xf32> to vector<4x128xf32>
    %6 = arith.addf %3, %5 : vector<4x128xf32>
    %cst_6 = arith.constant 0.000000e+00 : f32
    %7 = vector.broadcast %cst_6 : f32 to vector<4x128xf32>
    %8 = arith.cmpf oge, %6, %7 : vector<4x128xf32>
    %cst_7 = arith.constant 2.000000e-01 : f32
    %9 = vector.broadcast %cst_7 : f32 to vector<4x128xf32>
    %10 = arith.mulf %9, %6 : vector<4x128xf32>
    %11 = arith.select %8, %6, %10 : vector<4x128xi1>, vector<4x128xf32>
    %c0_8 = arith.constant 0 : index
    %c0_9 = arith.constant 0 : index
    %c0_10 = arith.constant 0 : index
    %12 = vector.load %arg4[%c0_8, %c0_9, %c0_10] : memref<1x4x128xf32, #tpu.memory_space<vmem>>, vector<1x4x128xf32>
    %13 = vector.shape_cast %12 : vector<1x4x128xf32> to vector<4x128xf32>
    %14 = vector.shape_cast %11 : vector<4x128xf32> to vector<1x4x128xf32>
    tpu.vector_store %arg4[%c0_8, %c0_9, %c0_10], %14 {strides = array<i32>} : memref<1x4x128xf32, #tpu.memory_space<vmem>>, vector<1x4x128xf32>,
    return
  }
  func.func @transform_0(%arg0: i32) -> (i32, i32, i32) {
    %c0_i32 = arith.constant 0 : i32
    %c0_i32_0 = arith.constant 0 : i32
    %c0_i32_1 = arith.constant 0 : i32
    return %arg0, %c0_i32, %c0_i32_0 : i32, i32, i32
  }
  func.func @transform_1(%arg0: i32) -> (i32, i32) {
    %c0_i32 = arith.constant 0 : i32
    %c0_i32_0 = arith.constant 0 : i32
    %c0_i32_1 = arith.constant 0 : i32
    return %c0_i32, %c0_i32_0 : i32, i32
  }
  func.func @transform_2(%arg0: i32) -> (i32, i32) {
    %c0_i32 = arith.constant 0 : i32
    %c0_i32_0 = arith.constant 0 : i32
    %c0_i32_1 = arith.constant 0 : i32
    return %c0_i32, %c0_i32_0 : i32, i32
  }
  func.func @transform_3(%arg0: i32) -> (i32, i32, i32) {
    %c0_i32 = arith.constant 0 : i32
    %c0_i32_0 = arith.constant 0 : i32
    %c0_i32_1 = arith.constant 0 : i32
    return %arg0, %c0_i32, %c0_i32_0 : i32, i32, i32
  }
}

module attributes {stable_mosaic.version = 11 : i64} {
  func.func @kernel(%arg0: i32, %arg1: memref<1x4x256xbf16, #tpu.memory_space<vmem>>, %arg2: memref<1x4x256xbf16, #tpu.memory_space<vmem>>, %arg3: memref<256x128xbf16, #tpu.memory_space<vmem>>, %arg4: memref<256x128xbf16, #tpu.memory_space<vmem>>, %arg5: memref<1x128xf32, #tpu.memory_space<vmem>>, %arg6: memref<1x4x128xf32, #tpu.memory_space<vmem>>, %arg7: memref<1x4x128xf32, #tpu.memory_space<vmem>>, %arg8: memref<1x4x128xf32, #tpu.memory_space<vmem>>, %arg9: memref<1x4x128xf32, #tpu.memory_space<vmem>>) attributes {dimension_semantics = [#tpu.dimension_semantics<parallel>], iteration_bounds = array<i64: 2>, scalar_prefetch = 0 : i64, scratch_operands = 0 : i64, tpu.core_type = #tpu.core_type<tc>, window_params = [{transform_indices = @transform_0, window_bounds = array<i64: 1, 4, 256>}, {transform_indices = @transform_1, window_bounds = array<i64: 1, 4, 256>}, {pipeline_mode = #tpu.pipeline_mode<synchronous>, transform_indices = @transform_2, window_bounds = array<i64: 256, 128>}, {pipeline_mode = #tpu.pipeline_mode<synchronous>, transform_indices = @transform_3, window_bounds = array<i64: 256, 128>}, {pipeline_mode = #tpu.pipeline_mode<synchronous>, transform_indices = @transform_4, window_bounds = array<i64: 1, 128>}, {transform_indices = @transform_5, window_bounds = array<i64: 1, 4, 128>}, {transform_indices = @transform_6, window_bounds = array<i64: 1, 4, 128>}, {transform_indices = @transform_7, window_bounds = array<i64: 1, 4, 128>}, {transform_indices = @transform_8, window_bounds = array<i64: 1, 4, 128>}]} {
    %c0 = arith.constant 0 : index
    %c0_0 = arith.constant 0 : index
    %c0_1 = arith.constant 0 : index
    %0 = vector.load %arg1[%c0, %c0_0, %c0_1] : memref<1x4x256xbf16, #tpu.memory_space<vmem>>, vector<1x4x256xbf16>
    %1 = vector.shape_cast %0 : vector<1x4x256xbf16> to vector<4x256xbf16>
    %c0_2 = arith.constant 0 : index
    %c0_3 = arith.constant 0 : index
    %2 = vector.load %arg3[%c0_2, %c0_3] : memref<256x128xbf16, #tpu.memory_space<vmem>>, vector<256x128xbf16>
    %cst = arith.constant dense<0.000000e+00> : vector<4x128xf32>
    %3 = tpu.matmul %1, %2, %cst {dimension_numbers = #tpu.dot_dimension_numbers<[1], [0], [0], [1], [0, 0, 1, 1], [], []>} : vector<4x256xbf16>, vector<256x128xbf16>, vector<4x128xf32> -> vector<4x128xf32>
    %c0_4 = arith.constant 0 : index
    %c0_5 = arith.constant 0 : index
    %4 = vector.load %arg5[%c0_4, %c0_5] : memref<1x128xf32, #tpu.memory_space<vmem>>, vector<1x128xf32>
    %5 = vector.broadcast %4 : vector<1x128xf32> to vector<4x128xf32>
    %6 = arith.addf %3, %5 : vector<4x128xf32>
    %c0_6 = arith.constant 0 : index
    %c0_7 = arith.constant 0 : index
    %c0_8 = arith.constant 0 : index
    %7 = vector.load %arg2[%c0_6, %c0_7, %c0_8] : memref<1x4x256xbf16, #tpu.memory_space<vmem>>, vector<1x4x256xbf16>
    %8 = vector.shape_cast %7 : vector<1x4x256xbf16> to vector<4x256xbf16>
    %c0_9 = arith.constant 0 : index
    %c0_10 = arith.constant 0 : index
    %9 = vector.load %arg4[%c0_9, %c0_10] : memref<256x128xbf16, #tpu.memory_space<vmem>>, vector<256x128xbf16>
    %cst_11 = arith.constant dense<0.000000e+00> : vector<4x128xf32>
    %10 = tpu.matmul %8, %9, %cst_11 {dimension_numbers = #tpu.dot_dimension_numbers<[1], [0], [0], [1], [0, 0, 1, 1], [], []>} : vector<4x256xbf16>, vector<256x128xbf16>, vector<4x128xf32> -> vector<4x128xf32>
    %c0_12 = arith.constant 0 : index
    %c0_13 = arith.constant 0 : index
    %11 = vector.load %arg5[%c0_12, %c0_13] : memref<1x128xf32, #tpu.memory_space<vmem>>, vector<1x128xf32>
    %12 = vector.broadcast %11 : vector<1x128xf32> to vector<4x128xf32>
    %13 = arith.addf %10, %12 : vector<4x128xf32>
    %cst_14 = arith.constant 0.000000e+00 : f32
    %14 = vector.broadcast %cst_14 : f32 to vector<4x128xf32>
    %15 = arith.cmpf oge, %6, %14 : vector<4x128xf32>
    %cst_15 = arith.constant 2.000000e-01 : f32
    %16 = vector.broadcast %cst_15 : f32 to vector<4x128xf32>
    %17 = arith.mulf %16, %6 : vector<4x128xf32>
    %18 = arith.select %15, %6, %17 : vector<4x128xi1>, vector<4x128xf32>
    %cst_16 = arith.constant 0.000000e+00 : f32
    %19 = vector.broadcast %cst_16 : f32 to vector<4x128xf32>
    %20 = arith.cmpf oge, %13, %19 : vector<4x128xf32>
    %cst_17 = arith.constant 2.000000e-01 : f32
    %21 = vector.broadcast %cst_17 : f32 to vector<4x128xf32>
    %22 = arith.mulf %21, %13 : vector<4x128xf32>
    %23 = arith.select %20, %13, %22 : vector<4x128xi1>, vector<4x128xf32>
    %c0_18 = arith.constant 0 : index
    %c0_19 = arith.constant 0 : index
    %c0_20 = arith.constant 0 : index
    %24 = vector.load %arg6[%c0_18, %c0_19, %c0_20] : memref<1x4x128xf32, #tpu.memory_space<vmem>>, vector<1x4x128xf32>
    %25 = vector.shape_cast %24 : vector<1x4x128xf32> to vector<4x128xf32>
    %26 = arith.addf %18, %25 : vector<4x128xf32>
    %c0_21 = arith.constant 0 : index
    %c0_22 = arith.constant 0 : index
    %c0_23 = arith.constant 0 : index
    %27 = vector.load %arg8[%c0_21, %c0_22, %c0_23] : memref<1x4x128xf32, #tpu.memory_space<vmem>>, vector<1x4x128xf32>
    %28 = vector.shape_cast %27 : vector<1x4x128xf32> to vector<4x128xf32>
    %29 = vector.shape_cast %26 : vector<4x128xf32> to vector<1x4x128xf32>
    tpu.vector_store %arg8[%c0_21, %c0_22, %c0_23], %29 {strides = array<i32>} : memref<1x4x128xf32, #tpu.memory_space<vmem>>, vector<1x4x128xf32>,
    %c0_24 = arith.constant 0 : index
    %c0_25 = arith.constant 0 : index
    %c0_26 = arith.constant 0 : index
    %30 = vector.load %arg7[%c0_24, %c0_25, %c0_26] : memref<1x4x128xf32, #tpu.memory_space<vmem>>, vector<1x4x128xf32>
    %31 = vector.shape_cast %30 : vector<1x4x128xf32> to vector<4x128xf32>
    %32 = arith.addf %23, %31 : vector<4x128xf32>
    %c0_27 = arith.constant 0 : index
    %c0_28 = arith.constant 0 : index
    %c0_29 = arith.constant 0 : index
    %33 = vector.load %arg9[%c0_27, %c0_28, %c0_29] : memref<1x4x128xf32, #tpu.memory_space<vmem>>, vector<1x4x128xf32>
    %34 = vector.shape_cast %33 : vector<1x4x128xf32> to vector<4x128xf32>
    %35 = vector.shape_cast %32 : vector<4x128xf32> to vector<1x4x128xf32>
    tpu.vector_store %arg9[%c0_27, %c0_28, %c0_29], %35 {strides = array<i32>} : memref<1x4x128xf32, #tpu.memory_space<vmem>>, vector<1x4x128xf32>,
    return
  }
  func.func @transform_0(%arg0: i32) -> (i32, i32, i32) {
    %c0_i32 = arith.constant 0 : i32
    %c0_i32_0 = arith.constant 0 : i32
    %c0_i32_1 = arith.constant 0 : i32
    return %arg0, %c0_i32, %c0_i32_0 : i32, i32, i32
  }
  func.func @transform_1(%arg0: i32) -> (i32, i32, i32) {
    %c0_i32 = arith.constant 0 : i32
    %c0_i32_0 = arith.constant 0 : i32
    %c0_i32_1 = arith.constant 0 : i32
    return %arg0, %c0_i32, %c0_i32_0 : i32, i32, i32
  }
  func.func @transform_2(%arg0: i32) -> (i32, i32) {
    %c0_i32 = arith.constant 0 : i32
    %c0_i32_0 = arith.constant 0 : i32
    %c0_i32_1 = arith.constant 0 : i32
    return %c0_i32, %c0_i32_0 : i32, i32
  }
  func.func @transform_3(%arg0: i32) -> (i32, i32) {
    %c0_i32 = arith.constant 0 : i32
    %c0_i32_0 = arith.constant 0 : i32
    %c0_i32_1 = arith.constant 0 : i32
    return %c0_i32, %c0_i32_0 : i32, i32
  }
  func.func @transform_4(%arg0: i32) -> (i32, i32) {
    %c0_i32 = arith.constant 0 : i32
    %c0_i32_0 = arith.constant 0 : i32
    %c0_i32_1 = arith.constant 0 : i32
    return %c0_i32, %c0_i32_0 : i32, i32
  }
  func.func @transform_5(%arg0: i32) -> (i32, i32, i32) {
    %c0_i32 = arith.constant 0 : i32
    %c0_i32_0 = arith.constant 0 : i32
    %c0_i32_1 = arith.constant 0 : i32
    return %arg0, %c0_i32, %c0_i32_0 : i32, i32, i32
  }
  func.func @transform_6(%arg0: i32) -> (i32, i32, i32) {
    %c0_i32 = arith.constant 0 : i32
    %c0_i32_0 = arith.constant 0 : i32
    %c0_i32_1 = arith.constant 0 : i32
    return %arg0, %c0_i32, %c0_i32_0 : i32, i32, i32
  }
  func.func @transform_7(%arg0: i32) -> (i32, i32, i32) {
    %c0_i32 = arith.constant 0 : i32
    %c0_i32_0 = arith.constant 0 : i32
    %c0_i32_1 = arith.constant 0 : i32
    return %arg0, %c0_i32, %c0_i32_0 : i32, i32, i32
  }
  func.func @transform_8(%arg0: i32) -> (i32, i32, i32) {
    %c0_i32 = arith.constant 0 : i32
    %c0_i32_0 = arith.constant 0 : i32
    %c0_i32_1 = arith.constant 0 : i32
    return %arg0, %c0_i32, %c0_i32_0 : i32, i32, i32
  }
}

module attributes {stable_mosaic.version = 11 : i64} {
  func.func @kernel(%arg0: i32, %arg1: memref<1x8x256xbf16, #tpu.memory_space<vmem>>, %arg2: memref<1x8x256xbf16, #tpu.memory_space<vmem>>, %arg3: memref<256x128xbf16, #tpu.memory_space<vmem>>, %arg4: memref<256x128xbf16, #tpu.memory_space<vmem>>, %arg5: memref<1x128xf32, #tpu.memory_space<vmem>>, %arg6: memref<1x8x128xf32, #tpu.memory_space<vmem>>, %arg7: memref<1x8x128xf32, #tpu.memory_space<vmem>>, %arg8: memref<1x8x128xf32, #tpu.memory_space<vmem>>, %arg9: memref<1x8x128xf32, #tpu.memory_space<vmem>>) attributes {dimension_semantics = [#tpu.dimension_semantics<parallel>], iteration_bounds = array<i64: 2>, scalar_prefetch = 0 : i64, scratch_operands = 0 : i64, tpu.core_type = #tpu.core_type<tc>, window_params = [{transform_indices = @transform_0, window_bounds = array<i64: 1, 8, 256>}, {transform_indices = @transform_1, window_bounds = array<i64: 1, 8, 256>}, {pipeline_mode = #tpu.pipeline_mode<synchronous>, transform_indices = @transform_2, window_bounds = array<i64: 256, 128>}, {pipeline_mode = #tpu.pipeline_mode<synchronous>, transform_indices = @transform_3, window_bounds = array<i64: 256, 128>}, {pipeline_mode = #tpu.pipeline_mode<synchronous>, transform_indices = @transform_4, window_bounds = array<i64: 1, 128>}, {transform_indices = @transform_5, window_bounds = array<i64: 1, 8, 128>}, {transform_indices = @transform_6, window_bounds = array<i64: 1, 8, 128>}, {transform_indices = @transform_7, window_bounds = array<i64: 1, 8, 128>}, {transform_indices = @transform_8, window_bounds = array<i64: 1, 8, 128>}]} {
    %c0 = arith.constant 0 : index
    %c0_0 = arith.constant 0 : index
    %c0_1 = arith.constant 0 : index
    %0 = vector.load %arg1[%c0, %c0_0, %c0_1] : memref<1x8x256xbf16, #tpu.memory_space<vmem>>, vector<1x8x256xbf16>
    %1 = vector.shape_cast %0 : vector<1x8x256xbf16> to vector<8x256xbf16>
    %c0_2 = arith.constant 0 : index
    %c0_3 = arith.constant 0 : index
    %2 = vector.load %arg3[%c0_2, %c0_3] : memref<256x128xbf16, #tpu.memory_space<vmem>>, vector<256x128xbf16>
    %cst = arith.constant dense<0.000000e+00> : vector<8x128xf32>
    %3 = tpu.matmul %1, %2, %cst {dimension_numbers = #tpu.dot_dimension_numbers<[1], [0], [0], [1], [0, 0, 1, 1], [], []>} : vector<8x256xbf16>, vector<256x128xbf16>, vector<8x128xf32> -> vector<8x128xf32>
    %c0_4 = arith.constant 0 : index
    %c0_5 = arith.constant 0 : index
    %4 = vector.load %arg5[%c0_4, %c0_5] : memref<1x128xf32, #tpu.memory_space<vmem>>, vector<1x128xf32>
    %5 = vector.broadcast %4 : vector<1x128xf32> to vector<8x128xf32>
    %6 = arith.addf %3, %5 : vector<8x128xf32>
    %c0_6 = arith.constant 0 : index
    %c0_7 = arith.constant 0 : index
    %c0_8 = arith.constant 0 : index
    %7 = vector.load %arg2[%c0_6, %c0_7, %c0_8] : memref<1x8x256xbf16, #tpu.memory_space<vmem>>, vector<1x8x256xbf16>
    %8 = vector.shape_cast %7 : vector<1x8x256xbf16> to vector<8x256xbf16>
    %c0_9 = arith.constant 0 : index
    %c0_10 = arith.constant 0 : index
    %9 = vector.load %arg4[%c0_9, %c0_10] : memref<256x128xbf16, #tpu.memory_space<vmem>>, vector<256x128xbf16>
    %cst_11 = arith.constant dense<0.000000e+00> : vector<8x128xf32>
    %10 = tpu.matmul %8, %9, %cst_11 {dimension_numbers = #tpu.dot_dimension_numbers<[1], [0], [0], [1], [0, 0, 1, 1], [], []>} : vector<8x256xbf16>, vector<256x128xbf16>, vector<8x128xf32> -> vector<8x128xf32>
    %c0_12 = arith.constant 0 : index
    %c0_13 = arith.constant 0 : index
    %11 = vector.load %arg5[%c0_12, %c0_13] : memref<1x128xf32, #tpu.memory_space<vmem>>, vector<1x128xf32>
    %12 = vector.broadcast %11 : vector<1x128xf32> to vector<8x128xf32>
    %13 = arith.addf %10, %12 : vector<8x128xf32>
    %cst_14 = arith.constant 0.000000e+00 : f32
    %14 = vector.broadcast %cst_14 : f32 to vector<8x128xf32>
    %15 = arith.cmpf oge, %6, %14 : vector<8x128xf32>
    %cst_15 = arith.constant 2.000000e-01 : f32
    %16 = vector.broadcast %cst_15 : f32 to vector<8x128xf32>
    %17 = arith.mulf %16, %6 : vector<8x128xf32>
    %18 = arith.select %15, %6, %17 : vector<8x128xi1>, vector<8x128xf32>
    %cst_16 = arith.constant 0.000000e+00 : f32
    %19 = vector.broadcast %cst_16 : f32 to vector<8x128xf32>
    %20 = arith.cmpf oge, %13, %19 : vector<8x128xf32>
    %cst_17 = arith.constant 2.000000e-01 : f32
    %21 = vector.broadcast %cst_17 : f32 to vector<8x128xf32>
    %22 = arith.mulf %21, %13 : vector<8x128xf32>
    %23 = arith.select %20, %13, %22 : vector<8x128xi1>, vector<8x128xf32>
    %c0_18 = arith.constant 0 : index
    %c0_19 = arith.constant 0 : index
    %c0_20 = arith.constant 0 : index
    %24 = vector.load %arg6[%c0_18, %c0_19, %c0_20] : memref<1x8x128xf32, #tpu.memory_space<vmem>>, vector<1x8x128xf32>
    %25 = vector.shape_cast %24 : vector<1x8x128xf32> to vector<8x128xf32>
    %26 = arith.addf %18, %25 : vector<8x128xf32>
    %c0_21 = arith.constant 0 : index
    %c0_22 = arith.constant 0 : index
    %c0_23 = arith.constant 0 : index
    %27 = vector.load %arg8[%c0_21, %c0_22, %c0_23] : memref<1x8x128xf32, #tpu.memory_space<vmem>>, vector<1x8x128xf32>
    %28 = vector.shape_cast %27 : vector<1x8x128xf32> to vector<8x128xf32>
    %29 = vector.shape_cast %26 : vector<8x128xf32> to vector<1x8x128xf32>
    tpu.vector_store %arg8[%c0_21, %c0_22, %c0_23], %29 {strides = array<i32>} : memref<1x8x128xf32, #tpu.memory_space<vmem>>, vector<1x8x128xf32>,
    %c0_24 = arith.constant 0 : index
    %c0_25 = arith.constant 0 : index
    %c0_26 = arith.constant 0 : index
    %30 = vector.load %arg7[%c0_24, %c0_25, %c0_26] : memref<1x8x128xf32, #tpu.memory_space<vmem>>, vector<1x8x128xf32>
    %31 = vector.shape_cast %30 : vector<1x8x128xf32> to vector<8x128xf32>
    %32 = arith.addf %23, %31 : vector<8x128xf32>
    %c0_27 = arith.constant 0 : index
    %c0_28 = arith.constant 0 : index
    %c0_29 = arith.constant 0 : index
    %33 = vector.load %arg9[%c0_27, %c0_28, %c0_29] : memref<1x8x128xf32, #tpu.memory_space<vmem>>, vector<1x8x128xf32>
    %34 = vector.shape_cast %33 : vector<1x8x128xf32> to vector<8x128xf32>
    %35 = vector.shape_cast %32 : vector<8x128xf32> to vector<1x8x128xf32>
    tpu.vector_store %arg9[%c0_27, %c0_28, %c0_29], %35 {strides = array<i32>} : memref<1x8x128xf32, #tpu.memory_space<vmem>>, vector<1x8x128xf32>,
    return
  }
  func.func @transform_0(%arg0: i32) -> (i32, i32, i32) {
    %c0_i32 = arith.constant 0 : i32
    %c0_i32_0 = arith.constant 0 : i32
    %c0_i32_1 = arith.constant 0 : i32
    return %arg0, %c0_i32, %c0_i32_0 : i32, i32, i32
  }
  func.func @transform_1(%arg0: i32) -> (i32, i32, i32) {
    %c0_i32 = arith.constant 0 : i32
    %c0_i32_0 = arith.constant 0 : i32
    %c0_i32_1 = arith.constant 0 : i32
    return %arg0, %c0_i32, %c0_i32_0 : i32, i32, i32
  }
  func.func @transform_2(%arg0: i32) -> (i32, i32) {
    %c0_i32 = arith.constant 0 : i32
    %c0_i32_0 = arith.constant 0 : i32
    %c0_i32_1 = arith.constant 0 : i32
    return %c0_i32, %c0_i32_0 : i32, i32
  }
  func.func @transform_3(%arg0: i32) -> (i32, i32) {
    %c0_i32 = arith.constant 0 : i32
    %c0_i32_0 = arith.constant 0 : i32
    %c0_i32_1 = arith.constant 0 : i32
    return %c0_i32, %c0_i32_0 : i32, i32
  }
  func.func @transform_4(%arg0: i32) -> (i32, i32) {
    %c0_i32 = arith.constant 0 : i32
    %c0_i32_0 = arith.constant 0 : i32
    %c0_i32_1 = arith.constant 0 : i32
    return %c0_i32, %c0_i32_0 : i32, i32
  }
  func.func @transform_5(%arg0: i32) -> (i32, i32, i32) {
    %c0_i32 = arith.constant 0 : i32
    %c0_i32_0 = arith.constant 0 : i32
    %c0_i32_1 = arith.constant 0 : i32
    return %arg0, %c0_i32, %c0_i32_0 : i32, i32, i32
  }
  func.func @transform_6(%arg0: i32) -> (i32, i32, i32) {
    %c0_i32 = arith.constant 0 : i32
    %c0_i32_0 = arith.constant 0 : i32
    %c0_i32_1 = arith.constant 0 : i32
    return %arg0, %c0_i32, %c0_i32_0 : i32, i32, i32
  }
  func.func @transform_7(%arg0: i32) -> (i32, i32, i32) {
    %c0_i32 = arith.constant 0 : i32
    %c0_i32_0 = arith.constant 0 : i32
    %c0_i32_1 = arith.constant 0 : i32
    return %arg0, %c0_i32, %c0_i32_0 : i32, i32, i32
  }
  func.func @transform_8(%arg0: i32) -> (i32, i32, i32) {
    %c0_i32 = arith.constant 0 : i32
    %c0_i32_0 = arith.constant 0 : i32
    %c0_i32_1 = arith.constant 0 : i32
    return %arg0, %c0_i32, %c0_i32_0 : i32, i32, i32
  }
}

module attributes {stable_mosaic.version = 11 : i64} {
  func.func @kernel(%arg0: i32, %arg1: memref<1x16x256xbf16, #tpu.memory_space<vmem>>, %arg2: memref<1x16x256xbf16, #tpu.memory_space<vmem>>, %arg3: memref<256x128xbf16, #tpu.memory_space<vmem>>, %arg4: memref<256x128xbf16, #tpu.memory_space<vmem>>, %arg5: memref<1x128xf32, #tpu.memory_space<vmem>>, %arg6: memref<1x16x128xf32, #tpu.memory_space<vmem>>, %arg7: memref<1x16x128xf32, #tpu.memory_space<vmem>>, %arg8: memref<1x16x128xf32, #tpu.memory_space<vmem>>, %arg9: memref<1x16x128xf32, #tpu.memory_space<vmem>>) attributes {dimension_semantics = [#tpu.dimension_semantics<parallel>], iteration_bounds = array<i64: 2>, scalar_prefetch = 0 : i64, scratch_operands = 0 : i64, tpu.core_type = #tpu.core_type<tc>, window_params = [{transform_indices = @transform_0, window_bounds = array<i64: 1, 16, 256>}, {transform_indices = @transform_1, window_bounds = array<i64: 1, 16, 256>}, {pipeline_mode = #tpu.pipeline_mode<synchronous>, transform_indices = @transform_2, window_bounds = array<i64: 256, 128>}, {pipeline_mode = #tpu.pipeline_mode<synchronous>, transform_indices = @transform_3, window_bounds = array<i64: 256, 128>}, {pipeline_mode = #tpu.pipeline_mode<synchronous>, transform_indices = @transform_4, window_bounds = array<i64: 1, 128>}, {transform_indices = @transform_5, window_bounds = array<i64: 1, 16, 128>}, {transform_indices = @transform_6, window_bounds = array<i64: 1, 16, 128>}, {transform_indices = @transform_7, window_bounds = array<i64: 1, 16, 128>}, {transform_indices = @transform_8, window_bounds = array<i64: 1, 16, 128>}]} {
    %c0 = arith.constant 0 : index
    %c0_0 = arith.constant 0 : index
    %c0_1 = arith.constant 0 : index
    %0 = vector.load %arg1[%c0, %c0_0, %c0_1] : memref<1x16x256xbf16, #tpu.memory_space<vmem>>, vector<1x16x256xbf16>
    %1 = vector.shape_cast %0 : vector<1x16x256xbf16> to vector<16x256xbf16>
    %c0_2 = arith.constant 0 : index
    %c0_3 = arith.constant 0 : index
    %2 = vector.load %arg3[%c0_2, %c0_3] : memref<256x128xbf16, #tpu.memory_space<vmem>>, vector<256x128xbf16>
    %cst = arith.constant dense<0.000000e+00> : vector<16x128xf32>
    %3 = tpu.matmul %1, %2, %cst {dimension_numbers = #tpu.dot_dimension_numbers<[1], [0], [0], [1], [0, 0, 1, 1], [], []>} : vector<16x256xbf16>, vector<256x128xbf16>, vector<16x128xf32> -> vector<16x128xf32>
    %c0_4 = arith.constant 0 : index
    %c0_5 = arith.constant 0 : index
    %4 = vector.load %arg5[%c0_4, %c0_5] : memref<1x128xf32, #tpu.memory_space<vmem>>, vector<1x128xf32>
    %5 = vector.broadcast %4 : vector<1x128xf32> to vector<16x128xf32>
    %6 = arith.addf %3, %5 : vector<16x128xf32>
    %c0_6 = arith.constant 0 : index
    %c0_7 = arith.constant 0 : index
    %c0_8 = arith.constant 0 : index
    %7 = vector.load %arg2[%c0_6, %c0_7, %c0_8] : memref<1x16x256xbf16, #tpu.memory_space<vmem>>, vector<1x16x256xbf16>
    %8 = vector.shape_cast %7 : vector<1x16x256xbf16> to vector<16x256xbf16>
    %c0_9 = arith.constant 0 : index
    %c0_10 = arith.constant 0 : index
    %9 = vector.load %arg4[%c0_9, %c0_10] : memref<256x128xbf16, #tpu.memory_space<vmem>>, vector<256x128xbf16>
    %cst_11 = arith.constant dense<0.000000e+00> : vector<16x128xf32>
    %10 = tpu.matmul %8, %9, %cst_11 {dimension_numbers = #tpu.dot_dimension_numbers<[1], [0], [0], [1], [0, 0, 1, 1], [], []>} : vector<16x256xbf16>, vector<256x128xbf16>, vector<16x128xf32> -> vector<16x128xf32>
    %c0_12 = arith.constant 0 : index
    %c0_13 = arith.constant 0 : index
    %11 = vector.load %arg5[%c0_12, %c0_13] : memref<1x128xf32, #tpu.memory_space<vmem>>, vector<1x128xf32>
    %12 = vector.broadcast %11 : vector<1x128xf32> to vector<16x128xf32>
    %13 = arith.addf %10, %12 : vector<16x128xf32>
    %cst_14 = arith.constant 0.000000e+00 : f32
    %14 = vector.broadcast %cst_14 : f32 to vector<16x128xf32>
    %15 = arith.cmpf oge, %6, %14 : vector<16x128xf32>
    %cst_15 = arith.constant 2.000000e-01 : f32
    %16 = vector.broadcast %cst_15 : f32 to vector<16x128xf32>
    %17 = arith.mulf %16, %6 : vector<16x128xf32>
    %18 = arith.select %15, %6, %17 : vector<16x128xi1>, vector<16x128xf32>
    %cst_16 = arith.constant 0.000000e+00 : f32
    %19 = vector.broadcast %cst_16 : f32 to vector<16x128xf32>
    %20 = arith.cmpf oge, %13, %19 : vector<16x128xf32>
    %cst_17 = arith.constant 2.000000e-01 : f32
    %21 = vector.broadcast %cst_17 : f32 to vector<16x128xf32>
    %22 = arith.mulf %21, %13 : vector<16x128xf32>
    %23 = arith.select %20, %13, %22 : vector<16x128xi1>, vector<16x128xf32>
    %c0_18 = arith.constant 0 : index
    %c0_19 = arith.constant 0 : index
    %c0_20 = arith.constant 0 : index
    %24 = vector.load %arg6[%c0_18, %c0_19, %c0_20] : memref<1x16x128xf32, #tpu.memory_space<vmem>>, vector<1x16x128xf32>
    %25 = vector.shape_cast %24 : vector<1x16x128xf32> to vector<16x128xf32>
    %26 = arith.addf %18, %25 : vector<16x128xf32>
    %c0_21 = arith.constant 0 : index
    %c0_22 = arith.constant 0 : index
    %c0_23 = arith.constant 0 : index
    %27 = vector.load %arg8[%c0_21, %c0_22, %c0_23] : memref<1x16x128xf32, #tpu.memory_space<vmem>>, vector<1x16x128xf32>
    %28 = vector.shape_cast %27 : vector<1x16x128xf32> to vector<16x128xf32>
    %29 = vector.shape_cast %26 : vector<16x128xf32> to vector<1x16x128xf32>
    tpu.vector_store %arg8[%c0_21, %c0_22, %c0_23], %29 {strides = array<i32>} : memref<1x16x128xf32, #tpu.memory_space<vmem>>, vector<1x16x128xf32>,
    %c0_24 = arith.constant 0 : index
    %c0_25 = arith.constant 0 : index
    %c0_26 = arith.constant 0 : index
    %30 = vector.load %arg7[%c0_24, %c0_25, %c0_26] : memref<1x16x128xf32, #tpu.memory_space<vmem>>, vector<1x16x128xf32>
    %31 = vector.shape_cast %30 : vector<1x16x128xf32> to vector<16x128xf32>
    %32 = arith.addf %23, %31 : vector<16x128xf32>
    %c0_27 = arith.constant 0 : index
    %c0_28 = arith.constant 0 : index
    %c0_29 = arith.constant 0 : index
    %33 = vector.load %arg9[%c0_27, %c0_28, %c0_29] : memref<1x16x128xf32, #tpu.memory_space<vmem>>, vector<1x16x128xf32>
    %34 = vector.shape_cast %33 : vector<1x16x128xf32> to vector<16x128xf32>
    %35 = vector.shape_cast %32 : vector<16x128xf32> to vector<1x16x128xf32>
    tpu.vector_store %arg9[%c0_27, %c0_28, %c0_29], %35 {strides = array<i32>} : memref<1x16x128xf32, #tpu.memory_space<vmem>>, vector<1x16x128xf32>,
    return
  }
  func.func @transform_0(%arg0: i32) -> (i32, i32, i32) {
    %c0_i32 = arith.constant 0 : i32
    %c0_i32_0 = arith.constant 0 : i32
    %c0_i32_1 = arith.constant 0 : i32
    return %arg0, %c0_i32, %c0_i32_0 : i32, i32, i32
  }
  func.func @transform_1(%arg0: i32) -> (i32, i32, i32) {
    %c0_i32 = arith.constant 0 : i32
    %c0_i32_0 = arith.constant 0 : i32
    %c0_i32_1 = arith.constant 0 : i32
    return %arg0, %c0_i32, %c0_i32_0 : i32, i32, i32
  }
  func.func @transform_2(%arg0: i32) -> (i32, i32) {
    %c0_i32 = arith.constant 0 : i32
    %c0_i32_0 = arith.constant 0 : i32
    %c0_i32_1 = arith.constant 0 : i32
    return %c0_i32, %c0_i32_0 : i32, i32
  }
  func.func @transform_3(%arg0: i32) -> (i32, i32) {
    %c0_i32 = arith.constant 0 : i32
    %c0_i32_0 = arith.constant 0 : i32
    %c0_i32_1 = arith.constant 0 : i32
    return %c0_i32, %c0_i32_0 : i32, i32
  }
  func.func @transform_4(%arg0: i32) -> (i32, i32) {
    %c0_i32 = arith.constant 0 : i32
    %c0_i32_0 = arith.constant 0 : i32
    %c0_i32_1 = arith.constant 0 : i32
    return %c0_i32, %c0_i32_0 : i32, i32
  }
  func.func @transform_5(%arg0: i32) -> (i32, i32, i32) {
    %c0_i32 = arith.constant 0 : i32
    %c0_i32_0 = arith.constant 0 : i32
    %c0_i32_1 = arith.constant 0 : i32
    return %arg0, %c0_i32, %c0_i32_0 : i32, i32, i32
  }
  func.func @transform_6(%arg0: i32) -> (i32, i32, i32) {
    %c0_i32 = arith.constant 0 : i32
    %c0_i32_0 = arith.constant 0 : i32
    %c0_i32_1 = arith.constant 0 : i32
    return %arg0, %c0_i32, %c0_i32_0 : i32, i32, i32
  }
  func.func @transform_7(%arg0: i32) -> (i32, i32, i32) {
    %c0_i32 = arith.constant 0 : i32
    %c0_i32_0 = arith.constant 0 : i32
    %c0_i32_1 = arith.constant 0 : i32
    return %arg0, %c0_i32, %c0_i32_0 : i32, i32, i32
  }
  func.func @transform_8(%arg0: i32) -> (i32, i32, i32) {
    %c0_i32 = arith.constant 0 : i32
    %c0_i32_0 = arith.constant 0 : i32
    %c0_i32_1 = arith.constant 0 : i32
    return %arg0, %c0_i32, %c0_i32_0 : i32, i32, i32
  }
}

module attributes {stable_mosaic.version = 11 : i64} {
  func.func @kernel(%arg0: i32, %arg1: memref<1x32x256xbf16, #tpu.memory_space<vmem>>, %arg2: memref<1x32x256xbf16, #tpu.memory_space<vmem>>, %arg3: memref<256x128xbf16, #tpu.memory_space<vmem>>, %arg4: memref<256x128xbf16, #tpu.memory_space<vmem>>, %arg5: memref<1x128xf32, #tpu.memory_space<vmem>>, %arg6: memref<1x32x128xf32, #tpu.memory_space<vmem>>, %arg7: memref<1x32x128xf32, #tpu.memory_space<vmem>>, %arg8: memref<1x32x128xf32, #tpu.memory_space<vmem>>, %arg9: memref<1x32x128xf32, #tpu.memory_space<vmem>>) attributes {dimension_semantics = [#tpu.dimension_semantics<parallel>], iteration_bounds = array<i64: 2>, scalar_prefetch = 0 : i64, scratch_operands = 0 : i64, tpu.core_type = #tpu.core_type<tc>, window_params = [{transform_indices = @transform_0, window_bounds = array<i64: 1, 32, 256>}, {transform_indices = @transform_1, window_bounds = array<i64: 1, 32, 256>}, {pipeline_mode = #tpu.pipeline_mode<synchronous>, transform_indices = @transform_2, window_bounds = array<i64: 256, 128>}, {pipeline_mode = #tpu.pipeline_mode<synchronous>, transform_indices = @transform_3, window_bounds = array<i64: 256, 128>}, {pipeline_mode = #tpu.pipeline_mode<synchronous>, transform_indices = @transform_4, window_bounds = array<i64: 1, 128>}, {transform_indices = @transform_5, window_bounds = array<i64: 1, 32, 128>}, {transform_indices = @transform_6, window_bounds = array<i64: 1, 32, 128>}, {transform_indices = @transform_7, window_bounds = array<i64: 1, 32, 128>}, {transform_indices = @transform_8, window_bounds = array<i64: 1, 32, 128>}]} {
    %c0 = arith.constant 0 : index
    %c0_0 = arith.constant 0 : index
    %c0_1 = arith.constant 0 : index
    %0 = vector.load %arg1[%c0, %c0_0, %c0_1] : memref<1x32x256xbf16, #tpu.memory_space<vmem>>, vector<1x32x256xbf16>
    %1 = vector.shape_cast %0 : vector<1x32x256xbf16> to vector<32x256xbf16>
    %c0_2 = arith.constant 0 : index
    %c0_3 = arith.constant 0 : index
    %2 = vector.load %arg3[%c0_2, %c0_3] : memref<256x128xbf16, #tpu.memory_space<vmem>>, vector<256x128xbf16>
    %cst = arith.constant dense<0.000000e+00> : vector<32x128xf32>
    %3 = tpu.matmul %1, %2, %cst {dimension_numbers = #tpu.dot_dimension_numbers<[1], [0], [0], [1], [0, 0, 1, 1], [], []>} : vector<32x256xbf16>, vector<256x128xbf16>, vector<32x128xf32> -> vector<32x128xf32>
    %c0_4 = arith.constant 0 : index
    %c0_5 = arith.constant 0 : index
    %4 = vector.load %arg5[%c0_4, %c0_5] : memref<1x128xf32, #tpu.memory_space<vmem>>, vector<1x128xf32>
    %5 = vector.broadcast %4 : vector<1x128xf32> to vector<32x128xf32>
    %6 = arith.addf %3, %5 : vector<32x128xf32>
    %c0_6 = arith.constant 0 : index
    %c0_7 = arith.constant 0 : index
    %c0_8 = arith.constant 0 : index
    %7 = vector.load %arg2[%c0_6, %c0_7, %c0_8] : memref<1x32x256xbf16, #tpu.memory_space<vmem>>, vector<1x32x256xbf16>
    %8 = vector.shape_cast %7 : vector<1x32x256xbf16> to vector<32x256xbf16>
    %c0_9 = arith.constant 0 : index
    %c0_10 = arith.constant 0 : index
    %9 = vector.load %arg4[%c0_9, %c0_10] : memref<256x128xbf16, #tpu.memory_space<vmem>>, vector<256x128xbf16>
    %cst_11 = arith.constant dense<0.000000e+00> : vector<32x128xf32>
    %10 = tpu.matmul %8, %9, %cst_11 {dimension_numbers = #tpu.dot_dimension_numbers<[1], [0], [0], [1], [0, 0, 1, 1], [], []>} : vector<32x256xbf16>, vector<256x128xbf16>, vector<32x128xf32> -> vector<32x128xf32>
    %c0_12 = arith.constant 0 : index
    %c0_13 = arith.constant 0 : index
    %11 = vector.load %arg5[%c0_12, %c0_13] : memref<1x128xf32, #tpu.memory_space<vmem>>, vector<1x128xf32>
    %12 = vector.broadcast %11 : vector<1x128xf32> to vector<32x128xf32>
    %13 = arith.addf %10, %12 : vector<32x128xf32>
    %cst_14 = arith.constant 0.000000e+00 : f32
    %14 = vector.broadcast %cst_14 : f32 to vector<32x128xf32>
    %15 = arith.cmpf oge, %6, %14 : vector<32x128xf32>
    %cst_15 = arith.constant 2.000000e-01 : f32
    %16 = vector.broadcast %cst_15 : f32 to vector<32x128xf32>
    %17 = arith.mulf %16, %6 : vector<32x128xf32>
    %18 = arith.select %15, %6, %17 : vector<32x128xi1>, vector<32x128xf32>
    %cst_16 = arith.constant 0.000000e+00 : f32
    %19 = vector.broadcast %cst_16 : f32 to vector<32x128xf32>
    %20 = arith.cmpf oge, %13, %19 : vector<32x128xf32>
    %cst_17 = arith.constant 2.000000e-01 : f32
    %21 = vector.broadcast %cst_17 : f32 to vector<32x128xf32>
    %22 = arith.mulf %21, %13 : vector<32x128xf32>
    %23 = arith.select %20, %13, %22 : vector<32x128xi1>, vector<32x128xf32>
    %c0_18 = arith.constant 0 : index
    %c0_19 = arith.constant 0 : index
    %c0_20 = arith.constant 0 : index
    %24 = vector.load %arg6[%c0_18, %c0_19, %c0_20] : memref<1x32x128xf32, #tpu.memory_space<vmem>>, vector<1x32x128xf32>
    %25 = vector.shape_cast %24 : vector<1x32x128xf32> to vector<32x128xf32>
    %26 = arith.addf %18, %25 : vector<32x128xf32>
    %c0_21 = arith.constant 0 : index
    %c0_22 = arith.constant 0 : index
    %c0_23 = arith.constant 0 : index
    %27 = vector.load %arg8[%c0_21, %c0_22, %c0_23] : memref<1x32x128xf32, #tpu.memory_space<vmem>>, vector<1x32x128xf32>
    %28 = vector.shape_cast %27 : vector<1x32x128xf32> to vector<32x128xf32>
    %29 = vector.shape_cast %26 : vector<32x128xf32> to vector<1x32x128xf32>
    tpu.vector_store %arg8[%c0_21, %c0_22, %c0_23], %29 {strides = array<i32>} : memref<1x32x128xf32, #tpu.memory_space<vmem>>, vector<1x32x128xf32>,
    %c0_24 = arith.constant 0 : index
    %c0_25 = arith.constant 0 : index
    %c0_26 = arith.constant 0 : index
    %30 = vector.load %arg7[%c0_24, %c0_25, %c0_26] : memref<1x32x128xf32, #tpu.memory_space<vmem>>, vector<1x32x128xf32>
    %31 = vector.shape_cast %30 : vector<1x32x128xf32> to vector<32x128xf32>
    %32 = arith.addf %23, %31 : vector<32x128xf32>
    %c0_27 = arith.constant 0 : index
    %c0_28 = arith.constant 0 : index
    %c0_29 = arith.constant 0 : index
    %33 = vector.load %arg9[%c0_27, %c0_28, %c0_29] : memref<1x32x128xf32, #tpu.memory_space<vmem>>, vector<1x32x128xf32>
    %34 = vector.shape_cast %33 : vector<1x32x128xf32> to vector<32x128xf32>
    %35 = vector.shape_cast %32 : vector<32x128xf32> to vector<1x32x128xf32>
    tpu.vector_store %arg9[%c0_27, %c0_28, %c0_29], %35 {strides = array<i32>} : memref<1x32x128xf32, #tpu.memory_space<vmem>>, vector<1x32x128xf32>,
    return
  }
  func.func @transform_0(%arg0: i32) -> (i32, i32, i32) {
    %c0_i32 = arith.constant 0 : i32
    %c0_i32_0 = arith.constant 0 : i32
    %c0_i32_1 = arith.constant 0 : i32
    return %arg0, %c0_i32, %c0_i32_0 : i32, i32, i32
  }
  func.func @transform_1(%arg0: i32) -> (i32, i32, i32) {
    %c0_i32 = arith.constant 0 : i32
    %c0_i32_0 = arith.constant 0 : i32
    %c0_i32_1 = arith.constant 0 : i32
    return %arg0, %c0_i32, %c0_i32_0 : i32, i32, i32
  }
  func.func @transform_2(%arg0: i32) -> (i32, i32) {
    %c0_i32 = arith.constant 0 : i32
    %c0_i32_0 = arith.constant 0 : i32
    %c0_i32_1 = arith.constant 0 : i32
    return %c0_i32, %c0_i32_0 : i32, i32
  }
  func.func @transform_3(%arg0: i32) -> (i32, i32) {
    %c0_i32 = arith.constant 0 : i32
    %c0_i32_0 = arith.constant 0 : i32
    %c0_i32_1 = arith.constant 0 : i32
    return %c0_i32, %c0_i32_0 : i32, i32
  }
  func.func @transform_4(%arg0: i32) -> (i32, i32) {
    %c0_i32 = arith.constant 0 : i32
    %c0_i32_0 = arith.constant 0 : i32
    %c0_i32_1 = arith.constant 0 : i32
    return %c0_i32, %c0_i32_0 : i32, i32
  }
  func.func @transform_5(%arg0: i32) -> (i32, i32, i32) {
    %c0_i32 = arith.constant 0 : i32
    %c0_i32_0 = arith.constant 0 : i32
    %c0_i32_1 = arith.constant 0 : i32
    return %arg0, %c0_i32, %c0_i32_0 : i32, i32, i32
  }
  func.func @transform_6(%arg0: i32) -> (i32, i32, i32) {
    %c0_i32 = arith.constant 0 : i32
    %c0_i32_0 = arith.constant 0 : i32
    %c0_i32_1 = arith.constant 0 : i32
    return %arg0, %c0_i32, %c0_i32_0 : i32, i32, i32
  }
  func.func @transform_7(%arg0: i32) -> (i32, i32, i32) {
    %c0_i32 = arith.constant 0 : i32
    %c0_i32_0 = arith.constant 0 : i32
    %c0_i32_1 = arith.constant 0 : i32
    return %arg0, %c0_i32, %c0_i32_0 : i32, i32, i32
  }
  func.func @transform_8(%arg0: i32) -> (i32, i32, i32) {
    %c0_i32 = arith.constant 0 : i32
    %c0_i32_0 = arith.constant 0 : i32
    %c0_i32_1 = arith.constant 0 : i32
    return %arg0, %c0_i32, %c0_i32_0 : i32, i32, i32
  }
}

module attributes {stable_mosaic.version = 11 : i64} {
  func.func @kernel(%arg0: i32, %arg1: memref<1x128x128xbf16, #tpu.memory_space<vmem>>, %arg2: memref<128x512xbf16, #tpu.memory_space<vmem>>, %arg3: memref<1x512xf32, #tpu.memory_space<vmem>>, %arg4: memref<1x128x512xf32, #tpu.memory_space<vmem>>) attributes {dimension_semantics = [#tpu.dimension_semantics<parallel>], iteration_bounds = array<i64: 2>, scalar_prefetch = 0 : i64, scratch_operands = 0 : i64, tpu.core_type = #tpu.core_type<tc>, window_params = [{transform_indices = @transform_0, window_bounds = array<i64: 1, 128, 128>}, {pipeline_mode = #tpu.pipeline_mode<synchronous>, transform_indices = @transform_1, window_bounds = array<i64: 128, 512>}, {pipeline_mode = #tpu.pipeline_mode<synchronous>, transform_indices = @transform_2, window_bounds = array<i64: 1, 512>}, {transform_indices = @transform_3, window_bounds = array<i64: 1, 128, 512>}]} {
    %c0 = arith.constant 0 : index
    %c0_0 = arith.constant 0 : index
    %c0_1 = arith.constant 0 : index
    %0 = vector.load %arg1[%c0, %c0_0, %c0_1] : memref<1x128x128xbf16, #tpu.memory_space<vmem>>, vector<1x128x128xbf16>
    %1 = vector.shape_cast %0 : vector<1x128x128xbf16> to vector<128x128xbf16>
    %c0_2 = arith.constant 0 : index
    %c0_3 = arith.constant 0 : index
    %2 = vector.load %arg2[%c0_2, %c0_3] : memref<128x512xbf16, #tpu.memory_space<vmem>>, vector<128x512xbf16>
    %cst = arith.constant dense<0.000000e+00> : vector<128x512xf32>
    %3 = tpu.matmul %1, %2, %cst {dimension_numbers = #tpu.dot_dimension_numbers<[1], [0], [0], [1], [0, 0, 1, 1], [], []>} : vector<128x128xbf16>, vector<128x512xbf16>, vector<128x512xf32> -> vector<128x512xf32>
    %c0_4 = arith.constant 0 : index
    %c0_5 = arith.constant 0 : index
    %4 = vector.load %arg3[%c0_4, %c0_5] : memref<1x512xf32, #tpu.memory_space<vmem>>, vector<1x512xf32>
    %5 = vector.broadcast %4 : vector<1x512xf32> to vector<128x512xf32>
    %6 = arith.addf %3, %5 : vector<128x512xf32>
    %c0_6 = arith.constant 0 : index
    %c0_7 = arith.constant 0 : index
    %c0_8 = arith.constant 0 : index
    %7 = vector.load %arg4[%c0_6, %c0_7, %c0_8] : memref<1x128x512xf32, #tpu.memory_space<vmem>>, vector<1x128x512xf32>
    %8 = vector.shape_cast %7 : vector<1x128x512xf32> to vector<128x512xf32>
    %9 = vector.shape_cast %6 : vector<128x512xf32> to vector<1x128x512xf32>
    tpu.vector_store %arg4[%c0_6, %c0_7, %c0_8], %9 {strides = array<i32>} : memref<1x128x512xf32, #tpu.memory_space<vmem>>, vector<1x128x512xf32>,
    return
  }
  func.func @transform_0(%arg0: i32) -> (i32, i32, i32) {
    %c0_i32 = arith.constant 0 : i32
    %c0_i32_0 = arith.constant 0 : i32
    %c0_i32_1 = arith.constant 0 : i32
    return %arg0, %c0_i32, %c0_i32_0 : i32, i32, i32
  }
  func.func @transform_1(%arg0: i32) -> (i32, i32) {
    %c0_i32 = arith.constant 0 : i32
    %c0_i32_0 = arith.constant 0 : i32
    %c0_i32_1 = arith.constant 0 : i32
    return %c0_i32, %c0_i32_0 : i32, i32
  }
  func.func @transform_2(%arg0: i32) -> (i32, i32) {
    %c0_i32 = arith.constant 0 : i32
    %c0_i32_0 = arith.constant 0 : i32
    %c0_i32_1 = arith.constant 0 : i32
    return %c0_i32, %c0_i32_0 : i32, i32
  }
  func.func @transform_3(%arg0: i32) -> (i32, i32, i32) {
    %c0_i32 = arith.constant 0 : i32
    %c0_i32_0 = arith.constant 0 : i32
    %c0_i32_1 = arith.constant 0 : i32
    return %arg0, %c0_i32, %c0_i32_0 : i32, i32, i32
  }
}

module attributes {stable_mosaic.version = 11 : i64} {
  func.func @kernel(%arg0: i32, %arg1: memref<1x64x256xbf16, #tpu.memory_space<vmem>>, %arg2: memref<1x64x256xbf16, #tpu.memory_space<vmem>>, %arg3: memref<256x128xbf16, #tpu.memory_space<vmem>>, %arg4: memref<256x128xbf16, #tpu.memory_space<vmem>>, %arg5: memref<1x128xf32, #tpu.memory_space<vmem>>, %arg6: memref<1x64x128xf32, #tpu.memory_space<vmem>>, %arg7: memref<1x64x128xf32, #tpu.memory_space<vmem>>) attributes {dimension_semantics = [#tpu.dimension_semantics<parallel>], iteration_bounds = array<i64: 2>, scalar_prefetch = 0 : i64, scratch_operands = 0 : i64, tpu.core_type = #tpu.core_type<tc>, window_params = [{transform_indices = @transform_0, window_bounds = array<i64: 1, 64, 256>}, {transform_indices = @transform_1, window_bounds = array<i64: 1, 64, 256>}, {pipeline_mode = #tpu.pipeline_mode<synchronous>, transform_indices = @transform_2, window_bounds = array<i64: 256, 128>}, {pipeline_mode = #tpu.pipeline_mode<synchronous>, transform_indices = @transform_3, window_bounds = array<i64: 256, 128>}, {pipeline_mode = #tpu.pipeline_mode<synchronous>, transform_indices = @transform_4, window_bounds = array<i64: 1, 128>}, {transform_indices = @transform_5, window_bounds = array<i64: 1, 64, 128>}, {transform_indices = @transform_6, window_bounds = array<i64: 1, 64, 128>}]} {
    %c0 = arith.constant 0 : index
    %c0_0 = arith.constant 0 : index
    %c0_1 = arith.constant 0 : index
    %0 = vector.load %arg1[%c0, %c0_0, %c0_1] : memref<1x64x256xbf16, #tpu.memory_space<vmem>>, vector<1x64x256xbf16>
    %1 = vector.shape_cast %0 : vector<1x64x256xbf16> to vector<64x256xbf16>
    %c0_2 = arith.constant 0 : index
    %c0_3 = arith.constant 0 : index
    %2 = vector.load %arg3[%c0_2, %c0_3] : memref<256x128xbf16, #tpu.memory_space<vmem>>, vector<256x128xbf16>
    %cst = arith.constant dense<0.000000e+00> : vector<64x128xf32>
    %3 = tpu.matmul %1, %2, %cst {dimension_numbers = #tpu.dot_dimension_numbers<[1], [0], [0], [1], [0, 0, 1, 1], [], []>} : vector<64x256xbf16>, vector<256x128xbf16>, vector<64x128xf32> -> vector<64x128xf32>
    %c0_4 = arith.constant 0 : index
    %c0_5 = arith.constant 0 : index
    %4 = vector.load %arg5[%c0_4, %c0_5] : memref<1x128xf32, #tpu.memory_space<vmem>>, vector<1x128xf32>
    %5 = vector.broadcast %4 : vector<1x128xf32> to vector<64x128xf32>
    %6 = arith.addf %3, %5 : vector<64x128xf32>
    %c0_6 = arith.constant 0 : index
    %c0_7 = arith.constant 0 : index
    %c0_8 = arith.constant 0 : index
    %7 = vector.load %arg2[%c0_6, %c0_7, %c0_8] : memref<1x64x256xbf16, #tpu.memory_space<vmem>>, vector<1x64x256xbf16>
    %8 = vector.shape_cast %7 : vector<1x64x256xbf16> to vector<64x256xbf16>
    %c0_9 = arith.constant 0 : index
    %c0_10 = arith.constant 0 : index
    %9 = vector.load %arg4[%c0_9, %c0_10] : memref<256x128xbf16, #tpu.memory_space<vmem>>, vector<256x128xbf16>
    %cst_11 = arith.constant dense<0.000000e+00> : vector<64x128xf32>
    %10 = tpu.matmul %8, %9, %cst_11 {dimension_numbers = #tpu.dot_dimension_numbers<[1], [0], [0], [1], [0, 0, 1, 1], [], []>} : vector<64x256xbf16>, vector<256x128xbf16>, vector<64x128xf32> -> vector<64x128xf32>
    %c0_12 = arith.constant 0 : index
    %c0_13 = arith.constant 0 : index
    %11 = vector.load %arg5[%c0_12, %c0_13] : memref<1x128xf32, #tpu.memory_space<vmem>>, vector<1x128xf32>
    %12 = vector.broadcast %11 : vector<1x128xf32> to vector<64x128xf32>
    %13 = arith.addf %10, %12 : vector<64x128xf32>
    %cst_14 = arith.constant 0.000000e+00 : f32
    %14 = vector.broadcast %cst_14 : f32 to vector<64x128xf32>
    %15 = arith.cmpf oge, %6, %14 : vector<64x128xf32>
    %cst_15 = arith.constant 2.000000e-01 : f32
    %16 = vector.broadcast %cst_15 : f32 to vector<64x128xf32>
    %17 = arith.mulf %16, %6 : vector<64x128xf32>
    %18 = arith.select %15, %6, %17 : vector<64x128xi1>, vector<64x128xf32>
    %c0_16 = arith.constant 0 : index
    %c0_17 = arith.constant 0 : index
    %c0_18 = arith.constant 0 : index
    %19 = vector.load %arg6[%c0_16, %c0_17, %c0_18] : memref<1x64x128xf32, #tpu.memory_space<vmem>>, vector<1x64x128xf32>
    %20 = vector.shape_cast %19 : vector<1x64x128xf32> to vector<64x128xf32>
    %21 = vector.shape_cast %18 : vector<64x128xf32> to vector<1x64x128xf32>
    tpu.vector_store %arg6[%c0_16, %c0_17, %c0_18], %21 {strides = array<i32>} : memref<1x64x128xf32, #tpu.memory_space<vmem>>, vector<1x64x128xf32>,
    %cst_19 = arith.constant 0.000000e+00 : f32
    %22 = vector.broadcast %cst_19 : f32 to vector<64x128xf32>
    %23 = arith.cmpf oge, %13, %22 : vector<64x128xf32>
    %cst_20 = arith.constant 2.000000e-01 : f32
    %24 = vector.broadcast %cst_20 : f32 to vector<64x128xf32>
    %25 = arith.mulf %24, %13 : vector<64x128xf32>
    %26 = arith.select %23, %13, %25 : vector<64x128xi1>, vector<64x128xf32>
    %c0_21 = arith.constant 0 : index
    %c0_22 = arith.constant 0 : index
    %c0_23 = arith.constant 0 : index
    %27 = vector.load %arg7[%c0_21, %c0_22, %c0_23] : memref<1x64x128xf32, #tpu.memory_space<vmem>>, vector<1x64x128xf32>
    %28 = vector.shape_cast %27 : vector<1x64x128xf32> to vector<64x128xf32>
    %29 = vector.shape_cast %26 : vector<64x128xf32> to vector<1x64x128xf32>
    tpu.vector_store %arg7[%c0_21, %c0_22, %c0_23], %29 {strides = array<i32>} : memref<1x64x128xf32, #tpu.memory_space<vmem>>, vector<1x64x128xf32>,
    return
  }
  func.func @transform_0(%arg0: i32) -> (i32, i32, i32) {
    %c0_i32 = arith.constant 0 : i32
    %c0_i32_0 = arith.constant 0 : i32
    %c0_i32_1 = arith.constant 0 : i32
    return %arg0, %c0_i32, %c0_i32_0 : i32, i32, i32
  }
  func.func @transform_1(%arg0: i32) -> (i32, i32, i32) {
    %c0_i32 = arith.constant 0 : i32
    %c0_i32_0 = arith.constant 0 : i32
    %c0_i32_1 = arith.constant 0 : i32
    return %arg0, %c0_i32, %c0_i32_0 : i32, i32, i32
  }
  func.func @transform_2(%arg0: i32) -> (i32, i32) {
    %c0_i32 = arith.constant 0 : i32
    %c0_i32_0 = arith.constant 0 : i32
    %c0_i32_1 = arith.constant 0 : i32
    return %c0_i32, %c0_i32_0 : i32, i32
  }
  func.func @transform_3(%arg0: i32) -> (i32, i32) {
    %c0_i32 = arith.constant 0 : i32
    %c0_i32_0 = arith.constant 0 : i32
    %c0_i32_1 = arith.constant 0 : i32
    return %c0_i32, %c0_i32_0 : i32, i32
  }
  func.func @transform_4(%arg0: i32) -> (i32, i32) {
    %c0_i32 = arith.constant 0 : i32
    %c0_i32_0 = arith.constant 0 : i32
    %c0_i32_1 = arith.constant 0 : i32
    return %c0_i32, %c0_i32_0 : i32, i32
  }
  func.func @transform_5(%arg0: i32) -> (i32, i32, i32) {
    %c0_i32 = arith.constant 0 : i32
    %c0_i32_0 = arith.constant 0 : i32
    %c0_i32_1 = arith.constant 0 : i32
    return %arg0, %c0_i32, %c0_i32_0 : i32, i32, i32
  }
  func.func @transform_6(%arg0: i32) -> (i32, i32, i32) {
    %c0_i32 = arith.constant 0 : i32
    %c0_i32_0 = arith.constant 0 : i32
    %c0_i32_1 = arith.constant 0 : i32
    return %arg0, %c0_i32, %c0_i32_0 : i32, i32, i32
  }
}

</mosaic_0001>

<llo_original>
// kernel: unet_forward.12
$region0: #{unet_forward.12}
  #allocation0 [shape = 'u32[]', space=smem, size = 0x4, offset = 0x4, fixed_abs, tag = 'smem constant byte address 0x4 - core index']
  #allocation1 [shape = 'u32[144,128]{1,0:T(1,128)}', space=vmem, size = 0x12000, scoped, tag = 'internal scratch']
  %s0 = inlined_call_operand.vmem [shape: bf16[2,128,128], index: 0, kind: input, shape index: {}]
  %s1 = inlined_call_operand.vmem [shape: bf16[128,128], index: 1, kind: input, shape index: {}]
  %s2 = inlined_call_operand.vmem [shape: f32[1,128], index: 2, kind: input, shape index: {}]
  %s3 = inlined_call_operand.vmem [shape: f32[1,128,128], index: 3, kind: input, shape index: {}]
  %s4 = inlined_call_operand.vmem [shape: f32[2,128,128], index: 4, kind: output, shape index: {}]
  %s5 = sld [smem:[#allocation0]]
  $region49: #{unet_forward.12} parent=0
    _
  %s7 = ssub.s32 1, %s5
  %s8 = scalar_select 0, %s7, %s5
  loop: start=0, step=1, limit=4
  $region2: #{unet_forward.12} parent=0 // loop_pre_header
    _
  $region3: #{unet_forward.12} parent=0 // loop_header
    %s10 = sphi 0, %s14
    %p11 = scmp.ge.s32.totalorder %s10, 4
    %s20 = sphi 0, %s22
    %s23 = sphi 0, %s20
    %s24 = sphi 0, %s23
    %s40 = sphi 0, %s24
    %s44 = sphi 0, %s44
    %s46 = sphi 0, %s44
    %s47 = sphi 0, %s46
    %s61 = sphi 0, %s47
    %s65 = sphi 0, %s65
    %s67 = sphi 0, %s65
    %s68 = sphi 0, %s67
    %s82 = sphi 0, %s68
    %s86 = sphi 0, %s86
    %s88 = sphi 0, %s86
    %s89 = sphi 0, %s88
    %s103 = sphi 0, %s89
    %s109 = sphi 0, %s111
    %s112 = sphi 0, %s109
    %s113 = sphi 0, %s112
    %s129 = sphi 0, %s113
  $region4: #{unet_forward.12} parent=0 // loop_header_branch
    %13 = sbr.rel (%p11) target = $region8
  $region5: #{unet_forward.12} parent=0 // loop_body
    %s15 = ssub.s32 %s10, 1
    %s16 = ssub.s32 %s10, 2
    %s17 = sadd.s32 %s10, 1
    %s18 = ssub.s32 %s10, %s17
    %p19 = scmp.eq.s32.totalorder %s18, 0
    %s21 = sadd.s32 %s20, 1
    %s22 = scalar_select %p19, %s20, %s21
    %p25 = pneg %p19
    %p26 = scmp.eq.s32.totalorder %s10, 1
    %p27 = por %p25, %p26
    %p28 = scmp.ne.s32.totalorder %s20, %s23
    %p29 = scmp.eq.s32.totalorder %s10, 0
    %p30 = por %p28, %p29
    %p31 = scmp.ne.s32.totalorder %s20, %s23
    %p32 = scmp.eq.s32.totalorder %s15, 1
    %p33 = por %p31, %p32
    %p34 = scmp.ne.s32.totalorder %s23, %s24
    %p35 = scmp.eq.s32.totalorder %s15, 0
    %p36 = por %p34, %p35
    %p37 = scmp.ne.s32.totalorder %s23, %s24
    %p38 = scmp.eq.s32.totalorder %s16, 1
    %p39 = por %p37, %p38
    %p41 = scmp.ne.s32.totalorder %s24, %s40
    %p42 = scmp.eq.s32.totalorder %s16, 0
    %p43 = por %p41, %p42
    %s45 = sadd.s32 %s44, 1
    %p48 = scmp.eq.s32.totalorder %s10, 1
    %p49 = scmp.ne.s32.totalorder %s44, %s46
    %p50 = scmp.eq.s32.totalorder %s10, 0
    %p51 = por %p49, %p50
    %p52 = scmp.ne.s32.totalorder %s44, %s46
    %p53 = scmp.eq.s32.totalorder %s15, 1
    %p54 = por %p52, %p53
    %p55 = scmp.ne.s32.totalorder %s46, %s47
    %p56 = scmp.eq.s32.totalorder %s15, 0
    %p57 = por %p55, %p56
    %p58 = scmp.ne.s32.totalorder %s46, %s47
    %p59 = scmp.eq.s32.totalorder %s16, 1
    %p60 = por %p58, %p59
    %p62 = scmp.ne.s32.totalorder %s47, %s61
    %p63 = scmp.eq.s32.totalorder %s16, 0
    %p64 = por %p62, %p63
    %s66 = sadd.s32 %s65, 1
    %p69 = scmp.eq.s32.totalorder %s10, 1
    %p70 = scmp.ne.s32.totalorder %s65, %s67
    %p71 = scmp.eq.s32.totalorder %s10, 0
    %p72 = por %p70, %p71
    %p73 = scmp.ne.s32.totalorder %s65, %s67
    %p74 = scmp.eq.s32.totalorder %s15, 1
    %p75 = por %p73, %p74
    %p76 = scmp.ne.s32.totalorder %s67, %s68
    %p77 = scmp.eq.s32.totalorder %s15, 0
    %p78 = por %p76, %p77
    %p79 = scmp.ne.s32.totalorder %s67, %s68
    %p80 = scmp.eq.s32.totalorder %s16, 1
    %p81 = por %p79, %p80
    %p83 = scmp.ne.s32.totalorder %s68, %s82
    %p84 = scmp.eq.s32.totalorder %s16, 0
    %p85 = por %p83, %p84
    %s87 = sadd.s32 %s86, 1
    %p90 = scmp.eq.s32.totalorder %s10, 1
    %p91 = scmp.ne.s32.totalorder %s86, %s88
    %p92 = scmp.eq.s32.totalorder %s10, 0
    %p93 = por %p91, %p92
    %p94 = scmp.ne.s32.totalorder %s86, %s88
    %p95 = scmp.eq.s32.totalorder %s15, 1
    %p96 = por %p94, %p95
    %p97 = scmp.ne.s32.totalorder %s88, %s89
    %p98 = scmp.eq.s32.totalorder %s15, 0
    %p99 = por %p97, %p98
    %p100 = scmp.ne.s32.totalorder %s88, %s89
    %p101 = scmp.eq.s32.totalorder %s16, 1
    %p102 = por %p100, %p101
    %p104 = scmp.ne.s32.totalorder %s89, %s103
    %p105 = scmp.eq.s32.totalorder %s16, 0
    %p106 = por %p104, %p105
    %s107 = ssub.s32 %s10, %s17
    %p108 = scmp.eq.s32.totalorder %s107, 0
    %s110 = sadd.s32 %s109, 1
    %s111 = scalar_select %p108, %s109, %s110
    %p114 = pneg %p108
    %p115 = scmp.eq.s32.totalorder %s10, 1
    %p116 = por %p114, %p115
    %p117 = scmp.ne.s32.totalorder %s109, %s112
    %p118 = scmp.eq.s32.totalorder %s10, 0
    %p119 = por %p117, %p118
    %p120 = scmp.ne.s32.totalorder %s109, %s112
    %p121 = scmp.eq.s32.totalorder %s15, 1
    %p122 = por %p120, %p121
    %p123 = scmp.ne.s32.totalorder %s112, %s113
    %p124 = scmp.eq.s32.totalorder %s15, 0
    %p125 = por %p123, %p124
    %p126 = scmp.ne.s32.totalorder %s112, %s113
    %p127 = scmp.eq.s32.totalorder %s16, 1
    %p128 = por %p126, %p127
    %p130 = scmp.ne.s32.totalorder %s113, %s129
    %p131 = scmp.eq.s32.totalorder %s16, 0
    %p132 = por %p130, %p131
    %p133 = scmp.le.s32.totalorder 1, %s10
    %p134 = scmp.lt.s32.totalorder %s10, 3
    %p135 = pnand %p133, %p134
    %p136 = pneg %p135
    // Predicated region
    $region9: #{unet_forward.12} parent=5 // pred_check
      _
    $region10: #{unet_forward.12} parent=5 // pred_check_branch
      %138 = sbr.rel (%p135) target = $region12
    $region11: #{unet_forward.12} parent=5 // pred_region
      %s139 = ssub.s32 %s10, 1
      // Predicated region
      $region13: #{unet_forward.12} parent=11 // pred_check
        %p140 = pneg %p57
      $region14: #{unet_forward.12} parent=11 // pred_check_branch
        %142 = sbr.rel (%p140) target = $region16
      $region15: #{unet_forward.12} parent=11 // pred_region
        _
      $region16: #{unet_forward.12} parent=11 // pred_fallthru
        _
      // Predicated region
      $region17: #{unet_forward.12} parent=11 // pred_check
        %p143 = pneg %p78
      $region18: #{unet_forward.12} parent=11 // pred_check_branch
        %145 = sbr.rel (%p143) target = $region20
      $region19: #{unet_forward.12} parent=11 // pred_region
        _
      $region20: #{unet_forward.12} parent=11 // pred_fallthru
        _
      // Predicated region
      $region21: #{unet_forward.12} parent=11 // pred_check
        %p146 = pneg %p99
      $region22: #{unet_forward.12} parent=11 // pred_check_branch
        %148 = sbr.rel (%p146) target = $region24
      $region23: #{unet_forward.12} parent=11 // pred_region
        _
      $region24: #{unet_forward.12} parent=11 // pred_fallthru
        _
    $region12: #{unet_forward.12} parent=5 // pred_fallthru
      _
    %p149 = scmp.lt.s32.totalorder %s10, 2
    // Predicated region
    $region25: #{unet_forward.12} parent=5 // pred_check
      %p150 = pneg %p149
    $region26: #{unet_forward.12} parent=5 // pred_check_branch
      %152 = sbr.rel (%p150) target = $region28
    $region27: #{unet_forward.12} parent=5 // pred_region
      // Predicated region
      $region29: #{unet_forward.12} parent=27 // pred_check
        %p153 = pneg %p30
      $region30: #{unet_forward.12} parent=27 // pred_check_branch
        %155 = sbr.rel (%p153) target = $region32
      $region31: #{unet_forward.12} parent=27 // pred_region
        %p156 = scmp.lt.s32.totalorder %s10, 1
        %s157 = scalar_select %p156, %s10, 1
        %s158 = smul.addr %s157, 16
        %s159 = smul.addr %s158, 4
        %s160 = scalar_lea.vmem %s0, %s159
      $region32: #{unet_forward.12} parent=27 // pred_fallthru
        _
    $region28: #{unet_forward.12} parent=5 // pred_fallthru
      _
    %p161 = scmp.le.s32.totalorder 1, %s10
    %p162 = scmp.lt.s32.totalorder %s10, 3
    %p163 = pnand %p161, %p162
    %p164 = pneg %p163
    // Predicated region
    $region33: #{unet_forward.12} parent=5 // pred_check
      _
    $region34: #{unet_forward.12} parent=5 // pred_check_branch
      %166 = sbr.rel (%p163) target = $region36
    $region35: #{unet_forward.12} parent=5 // pred_region
      %s167 = ssub.s32 %s10, 1
      %p168 = scmp.lt.s32.totalorder %s15, 1
      %s169 = scalar_select %p168, %s15, 1
      %s170 = smul.addr %s169, 16
      %s171 = smul.addr %s170, 4
      %s172 = scalar_lea.vmem %s0, %s171
      %p173 = pneg %p36
      %p174 = pneg %p33
      %p175 = pneg %p57
      %p176 = pneg %p54
      %p177 = pneg %p78
      %p178 = pneg %p75
      %p179 = pneg %p99
      %p180 = pneg %p96
      %p181 = pneg %p125
      %p182 = pneg %p122
      %p183 = scmp.lt.s32.totalorder %s15, 1
      %s184 = scalar_select %p183, %s15, 1
      %s185 = smul.addr %s184, 16
      %s186 = smul.addr %s185, 8
      %s187 = scalar_lea.vmem %s4, %s186
      %p188 = scmp.lt.s32.totalorder %s15, 1
      %s189 = scalar_select %p188, %s15, 1
      %s190 = smul.addr %s189, 16
      %s191 = smul.addr %s190, 4
      %s192 = scalar_lea.vmem %s0, %s191
      %p193 = scmp.lt.s32.totalorder %s15, 1
      %s194 = scalar_select %p193, %s15, 1
      %s195 = smul.addr %s194, 16
      %s196 = smul.addr %s195, 8
      %s197 = scalar_lea.vmem %s4, %s196
      %v199 = vld [vmem:[%s192] sm:$0xf]
      %v200 = vld [vmem:[%s192 + $0x4] sm:$0xf]
      %v201 = vld [vmem:[%s192 + $0x8] sm:$0xf]
      %v202 = vld [vmem:[%s192 + $0xc] sm:$0xf]
      %v203 = vld [vmem:[%s192 + $0x10] sm:$0xf]
      %v204 = vld [vmem:[%s192 + $0x14] sm:$0xf]
      %v205 = vld [vmem:[%s192 + $0x18] sm:$0xf]
      %v206 = vld [vmem:[%s192 + $0x1c] sm:$0xf]
      %v207 = vld [vmem:[%s192 + $0x20] sm:$0xf]
      %v208 = vld [vmem:[%s192 + $0x24] sm:$0xf]
      %v209 = vld [vmem:[%s192 + $0x28] sm:$0xf]
      %v210 = vld [vmem:[%s192 + $0x2c] sm:$0xf]
      %v211 = vld [vmem:[%s192 + $0x30] sm:$0xf]
      %v212 = vld [vmem:[%s192 + $0x34] sm:$0xf]
      %v213 = vld [vmem:[%s192 + $0x38] sm:$0xf]
      %v214 = vld [vmem:[%s192 + $0x3c] sm:$0xf]
      %v215 = vld [vmem:[%s1] sm:$0xf]
      %v216 = vld [vmem:[%s1 + $0x4] sm:$0xf]
      %v217 = vld [vmem:[%s1 + $0x8] sm:$0xf]
      %v218 = vld [vmem:[%s1 + $0xc] sm:$0xf]
      %v219 = vld [vmem:[%s1 + $0x10] sm:$0xf]
      %v220 = vld [vmem:[%s1 + $0x14] sm:$0xf]
      %v221 = vld [vmem:[%s1 + $0x18] sm:$0xf]
      %v222 = vld [vmem:[%s1 + $0x1c] sm:$0xf]
      %v223 = vld [vmem:[%s1 + $0x20] sm:$0xf]
      %v224 = vld [vmem:[%s1 + $0x24] sm:$0xf]
      %v225 = vld [vmem:[%s1 + $0x28] sm:$0xf]
      %v226 = vld [vmem:[%s1 + $0x2c] sm:$0xf]
      %v227 = vld [vmem:[%s1 + $0x30] sm:$0xf]
      %v228 = vld [vmem:[%s1 + $0x34] sm:$0xf]
      %v229 = vld [vmem:[%s1 + $0x38] sm:$0xf]
      %v230 = vld [vmem:[%s1 + $0x3c] sm:$0xf]
      %v231 = vld [vmem:[%s2] sm:$0x1]
      %v233 = vlaneseq
      %v234 = vshrl.u32 %v233, 7
      %v235 = vsub.s32 0, %v234
      %v236 = vrot.slane %v231, %v235
      %v254 = vunpack.c.l.b16 %v199
      %v255 = vunpack.c.l.b16 %v200
      %v256 = vunpack.c.l.b16 %v201
      %v257 = vunpack.c.l.b16 %v202
      %v258 = vunpack.c.l.b16 %v203
      %v259 = vunpack.c.l.b16 %v204
      %v260 = vunpack.c.l.b16 %v205
      %v261 = vunpack.c.l.b16 %v206
      %v262 = vunpack.c.l.b16 %v207
      %v263 = vunpack.c.l.b16 %v208
      %v264 = vunpack.c.l.b16 %v209
      %v265 = vunpack.c.l.b16 %v210
      %v266 = vunpack.c.l.b16 %v211
      %v267 = vunpack.c.l.b16 %v212
      %v268 = vunpack.c.l.b16 %v213
      %v269 = vunpack.c.l.b16 %v214
      %v270 = vpack.c.b16 %v255, %v254
      %v271 = vpack.c.b16 %v257, %v256
      %v272 = vpack.c.b16 %v259, %v258
      %v273 = vpack.c.b16 %v261, %v260
      %v274 = vpack.c.b16 %v263, %v262
      %v275 = vpack.c.b16 %v265, %v264
      %v276 = vpack.c.b16 %v267, %v266
      %v277 = vpack.c.b16 %v269, %v268
      %v302 = vunpack.c.l.b16 %v215
      %v303 = vunpack.c.l.b16 %v216
      %v304 = vunpack.c.l.b16 %v217
      %v305 = vunpack.c.l.b16 %v218
      %v306 = vunpack.c.l.b16 %v219
      %v307 = vunpack.c.l.b16 %v220
      %v308 = vunpack.c.l.b16 %v221
      %v309 = vunpack.c.l.b16 %v222
      %v310 = vunpack.c.l.b16 %v223
      %v311 = vunpack.c.l.b16 %v224
      %v312 = vunpack.c.l.b16 %v225
      %v313 = vunpack.c.l.b16 %v226
      %v314 = vunpack.c.l.b16 %v227
      %v315 = vunpack.c.l.b16 %v228
      %v316 = vunpack.c.l.b16 %v229
      %v317 = vunpack.c.l.b16 %v230
      %v318 = vpack.c.b16 %v303, %v302
      %v319 = vpack.c.b16 %v305, %v304
      %v320 = vpack.c.b16 %v307, %v306
      %v321 = vpack.c.b16 %v309, %v308
      %v322 = vpack.c.b16 %v311, %v310
      %v323 = vpack.c.b16 %v313, %v312
      %v324 = vpack.c.b16 %v315, %v314
      %v325 = vpack.c.b16 %v317, %v316
      %334 = vmatprep.subr.bf16.mxu0 0
      %335 = vmatpush1.bf16.msra.mxu0 %v318
      %336 = vmatprep.subr.bf16.mxu0 0
      %337 = vmatpush1.bf16.msra.mxu0 %v319
      %338 = vmatprep.subr.bf16.mxu0 0
      %339 = vmatpush1.bf16.msra.mxu0 %v320
      %340 = vmatprep.subr.bf16.mxu0 0
      %341 = vmatpush1.bf16.msra.mxu0 %v321
      %342 = vmatprep.subr.bf16.mxu0 0
      %343 = vmatpush1.bf16.msra.mxu0 %v322
      %344 = vmatprep.subr.bf16.mxu0 0
      %345 = vmatpush1.bf16.msra.mxu0 %v323
      %346 = vmatprep.subr.bf16.mxu0 0
      %347 = vmatpush1.bf16.msra.mxu0 %v324
      %348 = vmatprep.subr.bf16.mxu0 0
      %349 = vmatpush1.bf16.msra.mxu0 %v325
      %350 = vmatprep.subr.bf16.mxu0 0
      %351 = vmatpush1.bf16.msra.mxu0 0
      %352 = vmatprep.subr.bf16.mxu0 0
      %353 = vmatpush1.bf16.msra.mxu0 0
      %354 = vmatprep.subr.bf16.mxu0 0
      %355 = vmatpush1.bf16.msra.mxu0 0
      %356 = vmatprep.subr.bf16.mxu0 0
      %357 = vmatpush1.bf16.msra.mxu0 0
      %358 = vmatprep.subr.bf16.mxu0 0
      %359 = vmatpush1.bf16.msra.mxu0 0
      %360 = vmatprep.subr.bf16.mxu0 0
      %361 = vmatpush1.bf16.msra.mxu0 0
      %362 = vmatprep.subr.bf16.mxu0 0
      %363 = vmatpush1.bf16.msra.mxu0 0
      %364 = vmatprep.subr.bf16.mxu0 0
      %365 = vmatpush1.bf16.msra.mxu0 0
      %366 = vmatprep.mubr.bf16.mxu0 0
      %367 = vmatmul.mubr.bf16.gmra.mrb[0].mxu0 %v270
      %v368 = vpop.f32.mrb[0].mxu0
      %v369 = vadd.f32 %v236, %v368
      %v370 = vpop.f32.mrb[0].mxu0
      %v371 = vpop.f32.mrb[0].mxu0
      %v372 = vadd.f32 %v236, %v371
      %v373 = vpop.f32.mrb[0].mxu0
      %374 = vmatprep.mubr.bf16.mxu0 0
      %375 = vmatmul.mubr.bf16.gmra.mrb[0].mxu0 %v271
      %v376 = vpop.f32.mrb[0].mxu0
      %v377 = vadd.f32 %v236, %v376
      %v378 = vpop.f32.mrb[0].mxu0
      %v379 = vpop.f32.mrb[0].mxu0
      %v380 = vadd.f32 %v236, %v379
      %v381 = vpop.f32.mrb[0].mxu0
      %382 = vmatprep.mubr.bf16.mxu0 0
      %383 = vmatmul.mubr.bf16.gmra.mrb[0].mxu0 %v272
      %v384 = vpop.f32.mrb[0].mxu0
      %v385 = vadd.f32 %v236, %v384
      %v386 = vpop.f32.mrb[0].mxu0
      %v387 = vpop.f32.mrb[0].mxu0
      %v388 = vadd.f32 %v236, %v387
      %v389 = vpop.f32.mrb[0].mxu0
      %390 = vmatprep.mubr.bf16.mxu0 0
      %391 = vmatmul.mubr.bf16.gmra.mrb[0].mxu0 %v273
      %v392 = vpop.f32.mrb[0].mxu0
      %v393 = vadd.f32 %v236, %v392
      %v394 = vpop.f32.mrb[0].mxu0
      %v395 = vpop.f32.mrb[0].mxu0
      %v396 = vadd.f32 %v236, %v395
      %v397 = vpop.f32.mrb[0].mxu0
      %398 = vmatprep.mubr.bf16.mxu0 0
      %399 = vmatmul.mubr.bf16.gmra.mrb[0].mxu0 %v274
      %v400 = vpop.f32.mrb[0].mxu0
      %v401 = vadd.f32 %v236, %v400
      %v402 = vpop.f32.mrb[0].mxu0
      %v403 = vpop.f32.mrb[0].mxu0
      %v404 = vadd.f32 %v236, %v403
      %v405 = vpop.f32.mrb[0].mxu0
      %406 = vmatprep.mubr.bf16.mxu0 0
      %407 = vmatmul.mubr.bf16.gmra.mrb[0].mxu0 %v275
      %v408 = vpop.f32.mrb[0].mxu0
      %v409 = vadd.f32 %v236, %v408
      %v410 = vpop.f32.mrb[0].mxu0
      %v411 = vpop.f32.mrb[0].mxu0
      %v412 = vadd.f32 %v236, %v411
      %v413 = vpop.f32.mrb[0].mxu0
      %414 = vmatprep.mubr.bf16.mxu0 0
      %415 = vmatmul.mubr.bf16.gmra.mrb[0].mxu0 %v276
      %v416 = vpop.f32.mrb[0].mxu0
      %v417 = vadd.f32 %v236, %v416
      %v418 = vpop.f32.mrb[0].mxu0
      %v419 = vpop.f32.mrb[0].mxu0
      %v420 = vadd.f32 %v236, %v419
      %v421 = vpop.f32.mrb[0].mxu0
      %422 = vmatprep.mubr.bf16.mxu0 0
      %423 = vmatmul.mubr.bf16.gmra.mrb[0].mxu0 %v277
      %v424 = vpop.f32.mrb[0].mxu0
      %v425 = vadd.f32 %v236, %v424
      %v426 = vpop.f32.mrb[0].mxu0
      %v427 = vpop.f32.mrb[0].mxu0
      %v428 = vadd.f32 %v236, %v427
      %v429 = vpop.f32.mrb[0].mxu0
      %430 = vdwg.mxu0
      %v431 = vld [vmem:[%s3] sm:$0xff]
      %v432 = vld [vmem:[%s3 + $0x8] sm:$0xff]
      %v433 = vld [vmem:[%s3 + $0x10] sm:$0xff]
      %v434 = vld [vmem:[%s3 + $0x18] sm:$0xff]
      %v435 = vld [vmem:[%s3 + $0x20] sm:$0xff]
      %v436 = vld [vmem:[%s3 + $0x28] sm:$0xff]
      %v437 = vld [vmem:[%s3 + $0x30] sm:$0xff]
      %v438 = vld [vmem:[%s3 + $0x38] sm:$0xff]
      %v439 = vld [vmem:[%s3 + $0x40] sm:$0xff]
      %v440 = vld [vmem:[%s3 + $0x48] sm:$0xff]
      %v441 = vld [vmem:[%s3 + $0x50] sm:$0xff]
      %v442 = vld [vmem:[%s3 + $0x58] sm:$0xff]
      %v443 = vld [vmem:[%s3 + $0x60] sm:$0xff]
      %v444 = vld [vmem:[%s3 + $0x68] sm:$0xff]
      %v445 = vld [vmem:[%s3 + $0x70] sm:$0xff]
      %v446 = vld [vmem:[%s3 + $0x78] sm:$0xff]
      %v447 = vadd.f32 %v369, %v431
      %v448 = vadd.f32 %v372, %v432
      %v449 = vadd.f32 %v377, %v433
      %v450 = vadd.f32 %v380, %v434
      %v451 = vadd.f32 %v385, %v435
      %v452 = vadd.f32 %v388, %v436
      %v453 = vadd.f32 %v393, %v437
      %v454 = vadd.f32 %v396, %v438
      %v455 = vadd.f32 %v401, %v439
      %v456 = vadd.f32 %v404, %v440
      %v457 = vadd.f32 %v409, %v441
      %v458 = vadd.f32 %v412, %v442
      %v459 = vadd.f32 %v417, %v443
      %v460 = vadd.f32 %v420, %v444
      %v461 = vadd.f32 %v425, %v445
      %v462 = vadd.f32 %v428, %v446
      %463 = vst [vmem:[%s197] sm:$0xff] %v447
      %464 = vst [vmem:[%s197 + $0x8] sm:$0xff] %v448
      %465 = vst [vmem:[%s197 + $0x10] sm:$0xff] %v449
      %466 = vst [vmem:[%s197 + $0x18] sm:$0xff] %v450
      %467 = vst [vmem:[%s197 + $0x20] sm:$0xff] %v451
      %468 = vst [vmem:[%s197 + $0x28] sm:$0xff] %v452
      %469 = vst [vmem:[%s197 + $0x30] sm:$0xff] %v453
      %470 = vst [vmem:[%s197 + $0x38] sm:$0xff] %v454
      %471 = vst [vmem:[%s197 + $0x40] sm:$0xff] %v455
      %472 = vst [vmem:[%s197 + $0x48] sm:$0xff] %v456
      %473 = vst [vmem:[%s197 + $0x50] sm:$0xff] %v457
      %474 = vst [vmem:[%s197 + $0x58] sm:$0xff] %v458
      %475 = vst [vmem:[%s197 + $0x60] sm:$0xff] %v459
      %476 = vst [vmem:[%s197 + $0x68] sm:$0xff] %v460
      %477 = vst [vmem:[%s197 + $0x70] sm:$0xff] %v461
      %478 = vst [vmem:[%s197 + $0x78] sm:$0xff] %v462
      %p479 = scmp.lt.s32.totalorder %s15, 1
      %s480 = scalar_select %p479, %s15, 1
      %s481 = smul.addr %s480, 16
      %s482 = smul.addr %s481, 8
      %s483 = scalar_lea.vmem %s4, %s482
      // Predicated region
      $region37: #{unet_forward.12} parent=35 // pred_check
        %p484 = pneg %p122
      $region38: #{unet_forward.12} parent=35 // pred_check_branch
        %486 = sbr.rel (%p484) target = $region40
      $region39: #{unet_forward.12} parent=35 // pred_region
        _
      $region40: #{unet_forward.12} parent=35 // pred_fallthru
        _
    $region36: #{unet_forward.12} parent=5 // pred_fallthru
      _
    %p487 = scmp.le.s32.totalorder 2, %s10
    // Predicated region
    $region41: #{unet_forward.12} parent=5 // pred_check
      %p488 = pneg %p487
    $region42: #{unet_forward.12} parent=5 // pred_check_branch
      %490 = sbr.rel (%p488) target = $region44
    $region43: #{unet_forward.12} parent=5 // pred_region
      %s491 = ssub.s32 %s10, 2
      // Predicated region
      $region45: #{unet_forward.12} parent=43 // pred_check
        %p492 = pneg %p128
      $region46: #{unet_forward.12} parent=43 // pred_check_branch
        %494 = sbr.rel (%p492) target = $region48
      $region47: #{unet_forward.12} parent=43 // pred_region
        %p495 = scmp.lt.s32.totalorder %s16, 1
        %s496 = scalar_select %p495, %s16, 1
        %s497 = smul.addr %s496, 16
        %s498 = smul.addr %s497, 8
        %s499 = scalar_lea.vmem %s4, %s498
      $region48: #{unet_forward.12} parent=43 // pred_fallthru
        _
    $region44: #{unet_forward.12} parent=5 // pred_fallthru
      _
  $region6: #{unet_forward.12} parent=0 // loop_footer
    %s14 = sadd.s32 1, %s10
  $region7: #{unet_forward.12} parent=0 // loop_footer_branch
    %9 = sbr.rel target = $region3
  $region8: #{unet_forward.12} parent=0 // loop_exit
    _

// kernel: unet_forward.13
$region0: #{unet_forward.13}
  #allocation0 [shape = 'u32[]', space=smem, size = 0x4, offset = 0x4, fixed_abs, tag = 'smem constant byte address 0x4 - core index']
  #allocation1 [shape = 'u32[144,128]{1,0:T(1,128)}', space=vmem, size = 0x12000, scoped, tag = 'internal scratch']
  %s0 = inlined_call_operand.vmem [shape: bf16[2,64,384], index: 0, kind: input, shape index: {}]
  %s1 = inlined_call_operand.vmem [shape: bf16[384,128], index: 1, kind: input, shape index: {}]
  %s2 = inlined_call_operand.vmem [shape: f32[1,128], index: 2, kind: input, shape index: {}]
  %s3 = inlined_call_operand.vmem [shape: f32[2,64,128], index: 3, kind: output, shape index: {}]
  %s4 = sld [smem:[#allocation0]]
  $region45: #{unet_forward.13} parent=0
    _
  %s6 = ssub.s32 1, %s4
  %s7 = scalar_select 0, %s6, %s4
  loop: start=0, step=1, limit=4
  $region2: #{unet_forward.13} parent=0 // loop_pre_header
    _
  $region3: #{unet_forward.13} parent=0 // loop_header
    %s9 = sphi 0, %s13
    %p10 = scmp.ge.s32.totalorder %s9, 4
    %s19 = sphi 0, %s21
    %s22 = sphi 0, %s19
    %s23 = sphi 0, %s22
    %s39 = sphi 0, %s23
    %s43 = sphi 0, %s43
    %s45 = sphi 0, %s43
    %s46 = sphi 0, %s45
    %s60 = sphi 0, %s46
    %s64 = sphi 0, %s64
    %s66 = sphi 0, %s64
    %s67 = sphi 0, %s66
    %s81 = sphi 0, %s67
    %s87 = sphi 0, %s89
    %s90 = sphi 0, %s87
    %s91 = sphi 0, %s90
    %s107 = sphi 0, %s91
  $region4: #{unet_forward.13} parent=0 // loop_header_branch
    %12 = sbr.rel (%p10) target = $region8
  $region5: #{unet_forward.13} parent=0 // loop_body
    %s14 = ssub.s32 %s9, 1
    %s15 = ssub.s32 %s9, 2
    %s16 = sadd.s32 %s9, 1
    %s17 = ssub.s32 %s9, %s16
    %p18 = scmp.eq.s32.totalorder %s17, 0
    %s20 = sadd.s32 %s19, 1
    %s21 = scalar_select %p18, %s19, %s20
    %p24 = pneg %p18
    %p25 = scmp.eq.s32.totalorder %s9, 1
    %p26 = por %p24, %p25
    %p27 = scmp.ne.s32.totalorder %s19, %s22
    %p28 = scmp.eq.s32.totalorder %s9, 0
    %p29 = por %p27, %p28
    %p30 = scmp.ne.s32.totalorder %s19, %s22
    %p31 = scmp.eq.s32.totalorder %s14, 1
    %p32 = por %p30, %p31
    %p33 = scmp.ne.s32.totalorder %s22, %s23
    %p34 = scmp.eq.s32.totalorder %s14, 0
    %p35 = por %p33, %p34
    %p36 = scmp.ne.s32.totalorder %s22, %s23
    %p37 = scmp.eq.s32.totalorder %s15, 1
    %p38 = por %p36, %p37
    %p40 = scmp.ne.s32.totalorder %s23, %s39
    %p41 = scmp.eq.s32.totalorder %s15, 0
    %p42 = por %p40, %p41
    %s44 = sadd.s32 %s43, 1
    %p47 = scmp.eq.s32.totalorder %s9, 1
    %p48 = scmp.ne.s32.totalorder %s43, %s45
    %p49 = scmp.eq.s32.totalorder %s9, 0
    %p50 = por %p48, %p49
    %p51 = scmp.ne.s32.totalorder %s43, %s45
    %p52 = scmp.eq.s32.totalorder %s14, 1
    %p53 = por %p51, %p52
    %p54 = scmp.ne.s32.totalorder %s45, %s46
    %p55 = scmp.eq.s32.totalorder %s14, 0
    %p56 = por %p54, %p55
    %p57 = scmp.ne.s32.totalorder %s45, %s46
    %p58 = scmp.eq.s32.totalorder %s15, 1
    %p59 = por %p57, %p58
    %p61 = scmp.ne.s32.totalorder %s46, %s60
    %p62 = scmp.eq.s32.totalorder %s15, 0
    %p63 = por %p61, %p62
    %s65 = sadd.s32 %s64, 1
    %p68 = scmp.eq.s32.totalorder %s9, 1
    %p69 = scmp.ne.s32.totalorder %s64, %s66
    %p70 = scmp.eq.s32.totalorder %s9, 0
    %p71 = por %p69, %p70
    %p72 = scmp.ne.s32.totalorder %s64, %s66
    %p73 = scmp.eq.s32.totalorder %s14, 1
    %p74 = por %p72, %p73
    %p75 = scmp.ne.s32.totalorder %s66, %s67
    %p76 = scmp.eq.s32.totalorder %s14, 0
    %p77 = por %p75, %p76
    %p78 = scmp.ne.s32.totalorder %s66, %s67
    %p79 = scmp.eq.s32.totalorder %s15, 1
    %p80 = por %p78, %p79
    %p82 = scmp.ne.s32.totalorder %s67, %s81
    %p83 = scmp.eq.s32.totalorder %s15, 0
    %p84 = por %p82, %p83
    %s85 = ssub.s32 %s9, %s16
    %p86 = scmp.eq.s32.totalorder %s85, 0
    %s88 = sadd.s32 %s87, 1
    %s89 = scalar_select %p86, %s87, %s88
    %p92 = pneg %p86
    %p93 = scmp.eq.s32.totalorder %s9, 1
    %p94 = por %p92, %p93
    %p95 = scmp.ne.s32.totalorder %s87, %s90
    %p96 = scmp.eq.s32.totalorder %s9, 0
    %p97 = por %p95, %p96
    %p98 = scmp.ne.s32.totalorder %s87, %s90
    %p99 = scmp.eq.s32.totalorder %s14, 1
    %p100 = por %p98, %p99
    %p101 = scmp.ne.s32.totalorder %s90, %s91
    %p102 = scmp.eq.s32.totalorder %s14, 0
    %p103 = por %p101, %p102
    %p104 = scmp.ne.s32.totalorder %s90, %s91
    %p105 = scmp.eq.s32.totalorder %s15, 1
    %p106 = por %p104, %p105
    %p108 = scmp.ne.s32.totalorder %s91, %s107
    %p109 = scmp.eq.s32.totalorder %s15, 0
    %p110 = por %p108, %p109
    %p111 = scmp.le.s32.totalorder 1, %s9
    %p112 = scmp.lt.s32.totalorder %s9, 3
    %p113 = pnand %p111, %p112
    %p114 = pneg %p113
    // Predicated region
    $region9: #{unet_forward.13} parent=5 // pred_check
      _
    $region10: #{unet_forward.13} parent=5 // pred_check_branch
      %116 = sbr.rel (%p113) target = $region12
    $region11: #{unet_forward.13} parent=5 // pred_region
      %s117 = ssub.s32 %s9, 1
      // Predicated region
      $region13: #{unet_forward.13} parent=11 // pred_check
        %p118 = pneg %p56
      $region14: #{unet_forward.13} parent=11 // pred_check_branch
        %120 = sbr.rel (%p118) target = $region16
      $region15: #{unet_forward.13} parent=11 // pred_region
        _
      $region16: #{unet_forward.13} parent=11 // pred_fallthru
        _
      // Predicated region
      $region17: #{unet_forward.13} parent=11 // pred_check
        %p121 = pneg %p77
      $region18: #{unet_forward.13} parent=11 // pred_check_branch
        %123 = sbr.rel (%p121) target = $region20
      $region19: #{unet_forward.13} parent=11 // pred_region
        _
      $region20: #{unet_forward.13} parent=11 // pred_fallthru
        _
    $region12: #{unet_forward.13} parent=5 // pred_fallthru
      _
    %p124 = scmp.lt.s32.totalorder %s9, 2
    // Predicated region
    $region21: #{unet_forward.13} parent=5 // pred_check
      %p125 = pneg %p124
    $region22: #{unet_forward.13} parent=5 // pred_check_branch
      %127 = sbr.rel (%p125) target = $region24
    $region23: #{unet_forward.13} parent=5 // pred_region
      // Predicated region
      $region25: #{unet_forward.13} parent=23 // pred_check
        %p128 = pneg %p29
      $region26: #{unet_forward.13} parent=23 // pred_check_branch
        %130 = sbr.rel (%p128) target = $region28
      $region27: #{unet_forward.13} parent=23 // pred_region
        %p131 = scmp.lt.s32.totalorder %s9, 1
        %s132 = scalar_select %p131, %s9, 1
        %s133 = smul.addr %s132, 24
        %s134 = smul.addr %s133, 4
        %s135 = scalar_lea.vmem %s0, %s134
      $region28: #{unet_forward.13} parent=23 // pred_fallthru
        _
    $region24: #{unet_forward.13} parent=5 // pred_fallthru
      _
    %p136 = scmp.le.s32.totalorder 1, %s9
    %p137 = scmp.lt.s32.totalorder %s9, 3
    %p138 = pnand %p136, %p137
    %p139 = pneg %p138
    // Predicated region
    $region29: #{unet_forward.13} parent=5 // pred_check
      _
    $region30: #{unet_forward.13} parent=5 // pred_check_branch
      %141 = sbr.rel (%p138) target = $region32
    $region31: #{unet_forward.13} parent=5 // pred_region
      %s142 = ssub.s32 %s9, 1
      %p143 = scmp.lt.s32.totalorder %s14, 1
      %s144 = scalar_select %p143, %s14, 1
      %s145 = smul.addr %s144, 24
      %s146 = smul.addr %s145, 4
      %s147 = scalar_lea.vmem %s0, %s146
      %p148 = pneg %p35
      %p149 = pneg %p32
      %p150 = pneg %p56
      %p151 = pneg %p53
      %p152 = pneg %p77
      %p153 = pneg %p74
      %p154 = pneg %p103
      %p155 = pneg %p100
      %p156 = scmp.lt.s32.totalorder %s14, 1
      %s157 = scalar_select %p156, %s14, 1
      %s158 = smul.addr %s157, 8
      %s159 = smul.addr %s158, 8
      %s160 = scalar_lea.vmem %s3, %s159
      %p161 = scmp.lt.s32.totalorder %s14, 1
      %s162 = scalar_select %p161, %s14, 1
      %s163 = smul.addr %s162, 24
      %s164 = smul.addr %s163, 4
      %s165 = scalar_lea.vmem %s0, %s164
      %p166 = scmp.lt.s32.totalorder %s14, 1
      %s167 = scalar_select %p166, %s14, 1
      %s168 = smul.addr %s167, 8
      %s169 = smul.addr %s168, 8
      %s170 = scalar_lea.vmem %s3, %s169
      %v172 = vld [vmem:[%s165] sm:$0xff]
      %v173 = vld [vmem:[%s165 + $0x8] sm:$0xf]
      %v174 = vld [vmem:[%s165 + $0xc] sm:$0xff]
      %v175 = vld [vmem:[%s165 + $0x14] sm:$0xf]
      %v176 = vld [vmem:[%s165 + $0x18] sm:$0xff]
      %v177 = vld [vmem:[%s165 + $0x20] sm:$0xf]
      %v178 = vld [vmem:[%s165 + $0x24] sm:$0xff]
      %v179 = vld [vmem:[%s165 + $0x2c] sm:$0xf]
      %v180 = vld [vmem:[%s165 + $0x30] sm:$0xff]
      %v181 = vld [vmem:[%s165 + $0x38] sm:$0xf]
      %v182 = vld [vmem:[%s165 + $0x3c] sm:$0xff]
      %v183 = vld [vmem:[%s165 + $0x44] sm:$0xf]
      %v184 = vld [vmem:[%s165 + $0x48] sm:$0xff]
      %v185 = vld [vmem:[%s165 + $0x50] sm:$0xf]
      %v186 = vld [vmem:[%s165 + $0x54] sm:$0xff]
      %v187 = vld [vmem:[%s165 + $0x5c] sm:$0xf]
      %v188 = vld [vmem:[%s1] sm:$0xf]
      %v189 = vld [vmem:[%s1 + $0x4] sm:$0xf]
      %v190 = vld [vmem:[%s1 + $0x8] sm:$0xf]
      %v191 = vld [vmem:[%s1 + $0xc] sm:$0xf]
      %v192 = vld [vmem:[%s1 + $0x10] sm:$0xf]
      %v193 = vld [vmem:[%s1 + $0x14] sm:$0xf]
      %v194 = vld [vmem:[%s1 + $0x18] sm:$0xf]
      %v195 = vld [vmem:[%s1 + $0x1c] sm:$0xf]
      %v196 = vld [vmem:[%s1 + $0x20] sm:$0xf]
      %v197 = vld [vmem:[%s1 + $0x24] sm:$0xf]
      %v198 = vld [vmem:[%s1 + $0x28] sm:$0xf]
      %v199 = vld [vmem:[%s1 + $0x2c] sm:$0xf]
      %v200 = vld [vmem:[%s1 + $0x30] sm:$0xf]
      %v201 = vld [vmem:[%s1 + $0x34] sm:$0xf]
      %v202 = vld [vmem:[%s1 + $0x38] sm:$0xf]
      %v203 = vld [vmem:[%s1 + $0x3c] sm:$0xf]
      %v204 = vld [vmem:[%s1 + $0x40] sm:$0xf]
      %v205 = vld [vmem:[%s1 + $0x44] sm:$0xf]
      %v206 = vld [vmem:[%s1 + $0x48] sm:$0xf]
      %v207 = vld [vmem:[%s1 + $0x4c] sm:$0xf]
      %v208 = vld [vmem:[%s1 + $0x50] sm:$0xf]
      %v209 = vld [vmem:[%s1 + $0x54] sm:$0xf]
      %v210 = vld [vmem:[%s1 + $0x58] sm:$0xf]
      %v211 = vld [vmem:[%s1 + $0x5c] sm:$0xf]
      %v212 = vld [vmem:[%s1 + $0x60] sm:$0xf]
      %v213 = vld [vmem:[%s1 + $0x64] sm:$0xf]
      %v214 = vld [vmem:[%s1 + $0x68] sm:$0xf]
      %v215 = vld [vmem:[%s1 + $0x6c] sm:$0xf]
      %v216 = vld [vmem:[%s1 + $0x70] sm:$0xf]
      %v217 = vld [vmem:[%s1 + $0x74] sm:$0xf]
      %v218 = vld [vmem:[%s1 + $0x78] sm:$0xf]
      %v219 = vld [vmem:[%s1 + $0x7c] sm:$0xf]
      %v220 = vld [vmem:[%s1 + $0x80] sm:$0xf]
      %v221 = vld [vmem:[%s1 + $0x84] sm:$0xf]
      %v222 = vld [vmem:[%s1 + $0x88] sm:$0xf]
      %v223 = vld [vmem:[%s1 + $0x8c] sm:$0xf]
      %v224 = vld [vmem:[%s1 + $0x90] sm:$0xf]
      %v225 = vld [vmem:[%s1 + $0x94] sm:$0xf]
      %v226 = vld [vmem:[%s1 + $0x98] sm:$0xf]
      %v227 = vld [vmem:[%s1 + $0x9c] sm:$0xf]
      %v228 = vld [vmem:[%s1 + $0xa0] sm:$0xf]
      %v229 = vld [vmem:[%s1 + $0xa4] sm:$0xf]
      %v230 = vld [vmem:[%s1 + $0xa8] sm:$0xf]
      %v231 = vld [vmem:[%s1 + $0xac] sm:$0xf]
      %v232 = vld [vmem:[%s1 + $0xb0] sm:$0xf]
      %v233 = vld [vmem:[%s1 + $0xb4] sm:$0xf]
      %v234 = vld [vmem:[%s1 + $0xb8] sm:$0xf]
      %v235 = vld [vmem:[%s1 + $0xbc] sm:$0xf]
      %v236 = vld [vmem:[%s2] sm:$0x1]
      %v238 = vlaneseq
      %v239 = vshrl.u32 %v238, 7
      %v240 = vsub.s32 0, %v239
      %v241 = vrot.slane %v236, %v240
      %v259 = vunpack.c.l.b16 %v172
      %v260 = vunpack.c.h.b16 %v172
      %v261 = vunpack.c.l.b16 %v173
      %v262 = vunpack.c.l.b16 %v174
      %v263 = vunpack.c.h.b16 %v174
      %v264 = vunpack.c.l.b16 %v175
      %v265 = vunpack.c.l.b16 %v176
      %v266 = vunpack.c.h.b16 %v176
      %v267 = vunpack.c.l.b16 %v177
      %v268 = vunpack.c.l.b16 %v178
      %v269 = vunpack.c.h.b16 %v178
      %v270 = vunpack.c.l.b16 %v179
      %v271 = vunpack.c.l.b16 %v180
      %v272 = vunpack.c.h.b16 %v180
      %v273 = vunpack.c.l.b16 %v181
      %v274 = vunpack.c.l.b16 %v182
      %v275 = vunpack.c.h.b16 %v182
      %v276 = vunpack.c.l.b16 %v183
      %v277 = vunpack.c.l.b16 %v184
      %v278 = vunpack.c.h.b16 %v184
      %v279 = vunpack.c.l.b16 %v185
      %v280 = vunpack.c.l.b16 %v186
      %v281 = vunpack.c.h.b16 %v186
      %v282 = vunpack.c.l.b16 %v187
      %v283 = vpack.c.b16 %v262, %v259
      %v284 = vpack.c.b16 %v263, %v260
      %v285 = vpack.c.b16 %v264, %v261
      %v286 = vpack.c.b16 %v268, %v265
      %v287 = vpack.c.b16 %v269, %v266
      %v288 = vpack.c.b16 %v270, %v267
      %v289 = vpack.c.b16 %v274, %v271
      %v290 = vpack.c.b16 %v275, %v272
      %v291 = vpack.c.b16 %v276, %v273
      %v292 = vpack.c.b16 %v280, %v277
      %v293 = vpack.c.b16 %v281, %v278
      %v294 = vpack.c.b16 %v282, %v279
      %v355 = vunpack.c.l.b16 %v188
      %v356 = vunpack.c.l.b16 %v189
      %v357 = vunpack.c.l.b16 %v190
      %v358 = vunpack.c.l.b16 %v191
      %v359 = vunpack.c.l.b16 %v192
      %v360 = vunpack.c.l.b16 %v193
      %v361 = vunpack.c.l.b16 %v194
      %v362 = vunpack.c.l.b16 %v195
      %v363 = vunpack.c.l.b16 %v196
      %v364 = vunpack.c.l.b16 %v197
      %v365 = vunpack.c.l.b16 %v198
      %v366 = vunpack.c.l.b16 %v199
      %v367 = vunpack.c.l.b16 %v200
      %v368 = vunpack.c.l.b16 %v201
      %v369 = vunpack.c.l.b16 %v202
      %v370 = vunpack.c.l.b16 %v203
      %v371 = vunpack.c.l.b16 %v204
      %v372 = vunpack.c.l.b16 %v205
      %v373 = vunpack.c.l.b16 %v206
      %v374 = vunpack.c.l.b16 %v207
      %v375 = vunpack.c.l.b16 %v208
      %v376 = vunpack.c.l.b16 %v209
      %v377 = vunpack.c.l.b16 %v210
      %v378 = vunpack.c.l.b16 %v211
      %v379 = vunpack.c.l.b16 %v212
      %v380 = vunpack.c.l.b16 %v213
      %v381 = vunpack.c.l.b16 %v214
      %v382 = vunpack.c.l.b16 %v215
      %v383 = vunpack.c.l.b16 %v216
      %v384 = vunpack.c.l.b16 %v217
      %v385 = vunpack.c.l.b16 %v218
      %v386 = vunpack.c.l.b16 %v219
      %v387 = vunpack.c.l.b16 %v220
      %v388 = vunpack.c.l.b16 %v221
      %v389 = vunpack.c.l.b16 %v222
      %v390 = vunpack.c.l.b16 %v223
      %v391 = vunpack.c.l.b16 %v224
      %v392 = vunpack.c.l.b16 %v225
      %v393 = vunpack.c.l.b16 %v226
      %v394 = vunpack.c.l.b16 %v227
      %v395 = vunpack.c.l.b16 %v228
      %v396 = vunpack.c.l.b16 %v229
      %v397 = vunpack.c.l.b16 %v230
      %v398 = vunpack.c.l.b16 %v231
      %v399 = vunpack.c.l.b16 %v232
      %v400 = vunpack.c.l.b16 %v233
      %v401 = vunpack.c.l.b16 %v234
      %v402 = vunpack.c.l.b16 %v235
      %v403 = vpack.c.b16 %v356, %v355
      %v404 = vpack.c.b16 %v358, %v357
      %v405 = vpack.c.b16 %v360, %v359
      %v406 = vpack.c.b16 %v362, %v361
      %v407 = vpack.c.b16 %v364, %v363
      %v408 = vpack.c.b16 %v366, %v365
      %v409 = vpack.c.b16 %v368, %v367
      %v410 = vpack.c.b16 %v370, %v369
      %v411 = vpack.c.b16 %v372, %v371
      %v412 = vpack.c.b16 %v374, %v373
      %v413 = vpack.c.b16 %v376, %v375
      %v414 = vpack.c.b16 %v378, %v377
      %v415 = vpack.c.b16 %v380, %v379
      %v416 = vpack.c.b16 %v382, %v381
      %v417 = vpack.c.b16 %v384, %v383
      %v418 = vpack.c.b16 %v386, %v385
      %v419 = vpack.c.b16 %v388, %v387
      %v420 = vpack.c.b16 %v390, %v389
      %v421 = vpack.c.b16 %v392, %v391
      %v422 = vpack.c.b16 %v394, %v393
      %v423 = vpack.c.b16 %v396, %v395
      %v424 = vpack.c.b16 %v398, %v397
      %v425 = vpack.c.b16 %v400, %v399
      %v426 = vpack.c.b16 %v402, %v401
      %451 = vmatprep.subr.bf16.mxu0 0
      %452 = vmatpush1.bf16.msra.mxu0 %v403
      %453 = vmatprep.subr.bf16.mxu0 0
      %454 = vmatpush1.bf16.msra.mxu0 %v404
      %455 = vmatprep.subr.bf16.mxu0 0
      %456 = vmatpush1.bf16.msra.mxu0 %v405
      %457 = vmatprep.subr.bf16.mxu0 0
      %458 = vmatpush1.bf16.msra.mxu0 %v406
      %459 = vmatprep.subr.bf16.mxu0 0
      %460 = vmatpush1.bf16.msra.mxu0 %v407
      %461 = vmatprep.subr.bf16.mxu0 0
      %462 = vmatpush1.bf16.msra.mxu0 %v408
      %463 = vmatprep.subr.bf16.mxu0 0
      %464 = vmatpush1.bf16.msra.mxu0 %v409
      %465 = vmatprep.subr.bf16.mxu0 0
      %466 = vmatpush1.bf16.msra.mxu0 %v410
      %467 = vmatprep.subr.bf16.mxu0 0
      %468 = vmatpush1.bf16.msra.mxu0 %v411
      %469 = vmatprep.subr.bf16.mxu0 0
      %470 = vmatpush1.bf16.msra.mxu0 %v412
      %471 = vmatprep.subr.bf16.mxu0 0
      %472 = vmatpush1.bf16.msra.mxu0 %v413
      %473 = vmatprep.subr.bf16.mxu0 0
      %474 = vmatpush1.bf16.msra.mxu0 %v414
      %475 = vmatprep.subr.bf16.mxu0 0
      %476 = vmatpush1.bf16.msra.mxu0 %v415
      %477 = vmatprep.subr.bf16.mxu0 0
      %478 = vmatpush1.bf16.msra.mxu0 %v416
      %479 = vmatprep.subr.bf16.mxu0 0
      %480 = vmatpush1.bf16.msra.mxu0 %v417
      %481 = vmatprep.subr.bf16.mxu0 0
      %482 = vmatpush1.bf16.msra.mxu0 %v418
      %483 = vmatprep.mubr.bf16.mxu0 %v284
      %484 = vmatmul.mubr.bf16.gmra.mrb[0].mxu0 %v283
      %v485 = vpop.f32.mrb[0].mxu0
      %v486 = vadd.f32 %v241, %v485
      %v487 = vpop.f32.mrb[0].mxu0
      %v488 = vpop.f32.mrb[0].mxu0
      %v489 = vadd.f32 %v241, %v488
      %v490 = vpop.f32.mrb[0].mxu0
      %491 = vmatprep.mubr.bf16.mxu0 %v287
      %492 = vmatmul.mubr.bf16.gmra.mrb[0].mxu0 %v286
      %v493 = vpop.f32.mrb[0].mxu0
      %v494 = vadd.f32 %v241, %v493
      %v495 = vpop.f32.mrb[0].mxu0
      %v496 = vpop.f32.mrb[0].mxu0
      %v497 = vadd.f32 %v241, %v496
      %v498 = vpop.f32.mrb[0].mxu0
      %499 = vmatprep.mubr.bf16.mxu0 %v290
      %500 = vmatmul.mubr.bf16.gmra.mrb[0].mxu0 %v289
      %v501 = vpop.f32.mrb[0].mxu0
      %v502 = vadd.f32 %v241, %v501
      %v503 = vpop.f32.mrb[0].mxu0
      %v504 = vpop.f32.mrb[0].mxu0
      %v505 = vadd.f32 %v241, %v504
      %v506 = vpop.f32.mrb[0].mxu0
      %507 = vmatprep.mubr.bf16.mxu0 %v293
      %508 = vmatmul.mubr.bf16.gmra.mrb[0].mxu0 %v292
      %v509 = vpop.f32.mrb[0].mxu0
      %v510 = vadd.f32 %v241, %v509
      %v511 = vpop.f32.mrb[0].mxu0
      %v512 = vpop.f32.mrb[0].mxu0
      %v513 = vadd.f32 %v241, %v512
      %v514 = vpop.f32.mrb[0].mxu0
      %515 = vdwg.mxu0
      %516 = vmatprep.subr.bf16.mxu0 0
      %517 = vmatpush1.bf16.msra.mxu0 %v419
      %518 = vmatprep.subr.bf16.mxu0 0
      %519 = vmatpush1.bf16.msra.mxu0 %v420
      %520 = vmatprep.subr.bf16.mxu0 0
      %521 = vmatpush1.bf16.msra.mxu0 %v421
      %522 = vmatprep.subr.bf16.mxu0 0
      %523 = vmatpush1.bf16.msra.mxu0 %v422
      %524 = vmatprep.subr.bf16.mxu0 0
      %525 = vmatpush1.bf16.msra.mxu0 %v423
      %526 = vmatprep.subr.bf16.mxu0 0
      %527 = vmatpush1.bf16.msra.mxu0 %v424
      %528 = vmatprep.subr.bf16.mxu0 0
      %529 = vmatpush1.bf16.msra.mxu0 %v425
      %530 = vmatprep.subr.bf16.mxu0 0
      %531 = vmatpush1.bf16.msra.mxu0 %v426
      %532 = vmatprep.subr.bf16.mxu0 0
      %533 = vmatpush1.bf16.msra.mxu0 0
      %534 = vmatprep.subr.bf16.mxu0 0
      %535 = vmatpush1.bf16.msra.mxu0 0
      %536 = vmatprep.subr.bf16.mxu0 0
      %537 = vmatpush1.bf16.msra.mxu0 0
      %538 = vmatprep.subr.bf16.mxu0 0
      %539 = vmatpush1.bf16.msra.mxu0 0
      %540 = vmatprep.subr.bf16.mxu0 0
      %541 = vmatpush1.bf16.msra.mxu0 0
      %542 = vmatprep.subr.bf16.mxu0 0
      %543 = vmatpush1.bf16.msra.mxu0 0
      %544 = vmatprep.subr.bf16.mxu0 0
      %545 = vmatpush1.bf16.msra.mxu0 0
      %546 = vmatprep.subr.bf16.mxu0 0
      %547 = vmatpush1.bf16.msra.mxu0 0
      %548 = vmatprep.mubr.bf16.mxu0 0
      %549 = vmatmul.mubr.bf16.gmra.mrb[0].mxu0 %v285
      %v550 = vpop.f32.mrb[0].mxu0
      %v551 = vadd.f32 %v486, %v550
      %v552 = vpop.f32.mrb[0].mxu0
      %v553 = vpop.f32.mrb[0].mxu0
      %v554 = vadd.f32 %v489, %v553
      %v555 = vpop.f32.mrb[0].mxu0
      %556 = vmatprep.mubr.bf16.mxu0 0
      %557 = vmatmul.mubr.bf16.gmra.mrb[0].mxu0 %v288
      %v558 = vpop.f32.mrb[0].mxu0
      %v559 = vadd.f32 %v494, %v558
      %v560 = vpop.f32.mrb[0].mxu0
      %v561 = vpop.f32.mrb[0].mxu0
      %v562 = vadd.f32 %v497, %v561
      %v563 = vpop.f32.mrb[0].mxu0
      %564 = vmatprep.mubr.bf16.mxu0 0
      %565 = vmatmul.mubr.bf16.gmra.mrb[0].mxu0 %v291
      %v566 = vpop.f32.mrb[0].mxu0
      %v567 = vadd.f32 %v502, %v566
      %v568 = vpop.f32.mrb[0].mxu0
      %v569 = vpop.f32.mrb[0].mxu0
      %v570 = vadd.f32 %v505, %v569
      %v571 = vpop.f32.mrb[0].mxu0
      %572 = vmatprep.mubr.bf16.mxu0 0
      %573 = vmatmul.mubr.bf16.gmra.mrb[0].mxu0 %v294
      %v574 = vpop.f32.mrb[0].mxu0
      %v575 = vadd.f32 %v510, %v574
      %v576 = vpop.f32.mrb[0].mxu0
      %v577 = vpop.f32.mrb[0].mxu0
      %v578 = vadd.f32 %v513, %v577
      %v579 = vpop.f32.mrb[0].mxu0
      %580 = vdwg.mxu0
      %vm581 = vcmp.ge.f32.partialorder %v551, 0.0
      %vm582 = vcmp.ge.f32.partialorder %v554, 0.0
      %vm583 = vcmp.ge.f32.partialorder %v559, 0.0
      %vm584 = vcmp.ge.f32.partialorder %v562, 0.0
      %vm585 = vcmp.ge.f32.partialorder %v567, 0.0
      %vm586 = vcmp.ge.f32.partialorder %v570, 0.0
      %vm587 = vcmp.ge.f32.partialorder %v575, 0.0
      %vm588 = vcmp.ge.f32.partialorder %v578, 0.0
      %v589 = vmul.f32 %v551, 0.2
      %v590 = vmul.f32 %v554, 0.2
      %v591 = vmul.f32 %v559, 0.2
      %v592 = vmul.f32 %v562, 0.2
      %v593 = vmul.f32 %v567, 0.2
      %v594 = vmul.f32 %v570, 0.2
      %v595 = vmul.f32 %v575, 0.2
      %v596 = vmul.f32 %v578, 0.2
      %v597 = vsel %vm581, %v551, %v589
      %v598 = vsel %vm582, %v554, %v590
      %v599 = vsel %vm583, %v559, %v591
      %v600 = vsel %vm584, %v562, %v592
      %v601 = vsel %vm585, %v567, %v593
      %v602 = vsel %vm586, %v570, %v594
      %v603 = vsel %vm587, %v575, %v595
      %v604 = vsel %vm588, %v578, %v596
      %605 = vst [vmem:[%s170] sm:$0xff] %v597
      %606 = vst [vmem:[%s170 + $0x8] sm:$0xff] %v598
      %607 = vst [vmem:[%s170 + $0x10] sm:$0xff] %v599
      %608 = vst [vmem:[%s170 + $0x18] sm:$0xff] %v600
      %609 = vst [vmem:[%s170 + $0x20] sm:$0xff] %v601
      %610 = vst [vmem:[%s170 + $0x28] sm:$0xff] %v602
      %611 = vst [vmem:[%s170 + $0x30] sm:$0xff] %v603
      %612 = vst [vmem:[%s170 + $0x38] sm:$0xff] %v604
      %p613 = scmp.lt.s32.totalorder %s14, 1
      %s614 = scalar_select %p613, %s14, 1
      %s615 = smul.addr %s614, 8
      %s616 = smul.addr %s615, 8
      %s617 = scalar_lea.vmem %s3, %s616
      // Predicated region
      $region33: #{unet_forward.13} parent=31 // pred_check
        %p618 = pneg %p100
      $region34: #{unet_forward.13} parent=31 // pred_check_branch
        %620 = sbr.rel (%p618) target = $region36
      $region35: #{unet_forward.13} parent=31 // pred_region
        _
      $region36: #{unet_forward.13} parent=31 // pred_fallthru
        _
    $region32: #{unet_forward.13} parent=5 // pred_fallthru
      _
    %p621 = scmp.le.s32.totalorder 2, %s9
    // Predicated region
    $region37: #{unet_forward.13} parent=5 // pred_check
      %p622 = pneg %p621
    $region38: #{unet_forward.13} parent=5 // pred_check_branch
      %624 = sbr.rel (%p622) target = $region40
    $region39: #{unet_forward.13} parent=5 // pred_region
      %s625 = ssub.s32 %s9, 2
      // Predicated region
      $region41: #{unet_forward.13} parent=39 // pred_check
        %p626 = pneg %p106
      $region42: #{unet_forward.13} parent=39 // pred_check_branch
        %628 = sbr.rel (%p626) target = $region44
      $region43: #{unet_forward.13} parent=39 // pred_region
        %p629 = scmp.lt.s32.totalorder %s15, 1
        %s630 = scalar_select %p629, %s15, 1
        %s631 = smul.addr %s630, 8
        %s632 = smul.addr %s631, 8
        %s633 = scalar_lea.vmem %s3, %s632
      $region44: #{unet_forward.13} parent=39 // pred_fallthru
        _
    $region40: #{unet_forward.13} parent=5 // pred_fallthru
      _
  $region6: #{unet_forward.13} parent=0 // loop_footer
    %s13 = sadd.s32 1, %s9
  $region7: #{unet_forward.13} parent=0 // loop_footer_branch
    %8 = sbr.rel target = $region3
  $region8: #{unet_forward.13} parent=0 // loop_exit
    _

// kernel: unet_forward.14
$region0: #{unet_forward.14}
  #allocation0 [shape = 'u32[]', space=smem, size = 0x4, offset = 0x4, fixed_abs, tag = 'smem constant byte address 0x4 - core index']
  #allocation1 [shape = 'u32[144,128]{1,0:T(1,128)}', space=vmem, size = 0x12000, scoped, tag = 'internal scratch']
  %s0 = inlined_call_operand.vmem [shape: bf16[2,32,384], index: 0, kind: input, shape index: {}]
  %s1 = inlined_call_operand.vmem [shape: bf16[384,128], index: 1, kind: input, shape index: {}]
  %s2 = inlined_call_operand.vmem [shape: f32[1,128], index: 2, kind: input, shape index: {}]
  %s3 = inlined_call_operand.vmem [shape: f32[2,32,128], index: 3, kind: output, shape index: {}]
  %s4 = sld [smem:[#allocation0]]
  $region45: #{unet_forward.14} parent=0
    _
  %s6 = ssub.s32 1, %s4
  %s7 = scalar_select 0, %s6, %s4
  loop: start=0, step=1, limit=4
  $region2: #{unet_forward.14} parent=0 // loop_pre_header
    _
  $region3: #{unet_forward.14} parent=0 // loop_header
    %s9 = sphi 0, %s13
    %p10 = scmp.ge.s32.totalorder %s9, 4
    %s19 = sphi 0, %s21
    %s22 = sphi 0, %s19
    %s23 = sphi 0, %s22
    %s39 = sphi 0, %s23
    %s43 = sphi 0, %s43
    %s45 = sphi 0, %s43
    %s46 = sphi 0, %s45
    %s60 = sphi 0, %s46
    %s64 = sphi 0, %s64
    %s66 = sphi 0, %s64
    %s67 = sphi 0, %s66
    %s81 = sphi 0, %s67
    %s87 = sphi 0, %s89
    %s90 = sphi 0, %s87
    %s91 = sphi 0, %s90
    %s107 = sphi 0, %s91
  $region4: #{unet_forward.14} parent=0 // loop_header_branch
    %12 = sbr.rel (%p10) target = $region8
  $region5: #{unet_forward.14} parent=0 // loop_body
    %s14 = ssub.s32 %s9, 1
    %s15 = ssub.s32 %s9, 2
    %s16 = sadd.s32 %s9, 1
    %s17 = ssub.s32 %s9, %s16
    %p18 = scmp.eq.s32.totalorder %s17, 0
    %s20 = sadd.s32 %s19, 1
    %s21 = scalar_select %p18, %s19, %s20
    %p24 = pneg %p18
    %p25 = scmp.eq.s32.totalorder %s9, 1
    %p26 = por %p24, %p25
    %p27 = scmp.ne.s32.totalorder %s19, %s22
    %p28 = scmp.eq.s32.totalorder %s9, 0
    %p29 = por %p27, %p28
    %p30 = scmp.ne.s32.totalorder %s19, %s22
    %p31 = scmp.eq.s32.totalorder %s14, 1
    %p32 = por %p30, %p31
    %p33 = scmp.ne.s32.totalorder %s22, %s23
    %p34 = scmp.eq.s32.totalorder %s14, 0
    %p35 = por %p33, %p34
    %p36 = scmp.ne.s32.totalorder %s22, %s23
    %p37 = scmp.eq.s32.totalorder %s15, 1
    %p38 = por %p36, %p37
    %p40 = scmp.ne.s32.totalorder %s23, %s39
    %p41 = scmp.eq.s32.totalorder %s15, 0
    %p42 = por %p40, %p41
    %s44 = sadd.s32 %s43, 1
    %p47 = scmp.eq.s32.totalorder %s9, 1
    %p48 = scmp.ne.s32.totalorder %s43, %s45
    %p49 = scmp.eq.s32.totalorder %s9, 0
    %p50 = por %p48, %p49
    %p51 = scmp.ne.s32.totalorder %s43, %s45
    %p52 = scmp.eq.s32.totalorder %s14, 1
    %p53 = por %p51, %p52
    %p54 = scmp.ne.s32.totalorder %s45, %s46
    %p55 = scmp.eq.s32.totalorder %s14, 0
    %p56 = por %p54, %p55
    %p57 = scmp.ne.s32.totalorder %s45, %s46
    %p58 = scmp.eq.s32.totalorder %s15, 1
    %p59 = por %p57, %p58
    %p61 = scmp.ne.s32.totalorder %s46, %s60
    %p62 = scmp.eq.s32.totalorder %s15, 0
    %p63 = por %p61, %p62
    %s65 = sadd.s32 %s64, 1
    %p68 = scmp.eq.s32.totalorder %s9, 1
    %p69 = scmp.ne.s32.totalorder %s64, %s66
    %p70 = scmp.eq.s32.totalorder %s9, 0
    %p71 = por %p69, %p70
    %p72 = scmp.ne.s32.totalorder %s64, %s66
    %p73 = scmp.eq.s32.totalorder %s14, 1
    %p74 = por %p72, %p73
    %p75 = scmp.ne.s32.totalorder %s66, %s67
    %p76 = scmp.eq.s32.totalorder %s14, 0
    %p77 = por %p75, %p76
    %p78 = scmp.ne.s32.totalorder %s66, %s67
    %p79 = scmp.eq.s32.totalorder %s15, 1
    %p80 = por %p78, %p79
    %p82 = scmp.ne.s32.totalorder %s67, %s81
    %p83 = scmp.eq.s32.totalorder %s15, 0
    %p84 = por %p82, %p83
    %s85 = ssub.s32 %s9, %s16
    %p86 = scmp.eq.s32.totalorder %s85, 0
    %s88 = sadd.s32 %s87, 1
    %s89 = scalar_select %p86, %s87, %s88
    %p92 = pneg %p86
    %p93 = scmp.eq.s32.totalorder %s9, 1
    %p94 = por %p92, %p93
    %p95 = scmp.ne.s32.totalorder %s87, %s90
    %p96 = scmp.eq.s32.totalorder %s9, 0
    %p97 = por %p95, %p96
    %p98 = scmp.ne.s32.totalorder %s87, %s90
    %p99 = scmp.eq.s32.totalorder %s14, 1
    %p100 = por %p98, %p99
    %p101 = scmp.ne.s32.totalorder %s90, %s91
    %p102 = scmp.eq.s32.totalorder %s14, 0
    %p103 = por %p101, %p102
    %p104 = scmp.ne.s32.totalorder %s90, %s91
    %p105 = scmp.eq.s32.totalorder %s15, 1
    %p106 = por %p104, %p105
    %p108 = scmp.ne.s32.totalorder %s91, %s107
    %p109 = scmp.eq.s32.totalorder %s15, 0
    %p110 = por %p108, %p109
    %p111 = scmp.le.s32.totalorder 1, %s9
    %p112 = scmp.lt.s32.totalorder %s9, 3
    %p113 = pnand %p111, %p112
    %p114 = pneg %p113
    // Predicated region
    $region9: #{unet_forward.14} parent=5 // pred_check
      _
    $region10: #{unet_forward.14} parent=5 // pred_check_branch
      %116 = sbr.rel (%p113) target = $region12
    $region11: #{unet_forward.14} parent=5 // pred_region
      %s117 = ssub.s32 %s9, 1
      // Predicated region
      $region13: #{unet_forward.14} parent=11 // pred_check
        %p118 = pneg %p56
      $region14: #{unet_forward.14} parent=11 // pred_check_branch
        %120 = sbr.rel (%p118) target = $region16
      $region15: #{unet_forward.14} parent=11 // pred_region
        _
      $region16: #{unet_forward.14} parent=11 // pred_fallthru
        _
      // Predicated region
      $region17: #{unet_forward.14} parent=11 // pred_check
        %p121 = pneg %p77
      $region18: #{unet_forward.14} parent=11 // pred_check_branch
        %123 = sbr.rel (%p121) target = $region20
      $region19: #{unet_forward.14} parent=11 // pred_region
        _
      $region20: #{unet_forward.14} parent=11 // pred_fallthru
        _
    $region12: #{unet_forward.14} parent=5 // pred_fallthru
      _
    %p124 = scmp.lt.s32.totalorder %s9, 2
    // Predicated region
    $region21: #{unet_forward.14} parent=5 // pred_check
      %p125 = pneg %p124
    $region22: #{unet_forward.14} parent=5 // pred_check_branch
      %127 = sbr.rel (%p125) target = $region24
    $region23: #{unet_forward.14} parent=5 // pred_region
      // Predicated region
      $region25: #{unet_forward.14} parent=23 // pred_check
        %p128 = pneg %p29
      $region26: #{unet_forward.14} parent=23 // pred_check_branch
        %130 = sbr.rel (%p128) target = $region28
      $region27: #{unet_forward.14} parent=23 // pred_region
        %p131 = scmp.lt.s32.totalorder %s9, 1
        %s132 = scalar_select %p131, %s9, 1
        %s133 = smul.addr %s132, 12
        %s134 = smul.addr %s133, 4
        %s135 = scalar_lea.vmem %s0, %s134
      $region28: #{unet_forward.14} parent=23 // pred_fallthru
        _
    $region24: #{unet_forward.14} parent=5 // pred_fallthru
      _
    %p136 = scmp.le.s32.totalorder 1, %s9
    %p137 = scmp.lt.s32.totalorder %s9, 3
    %p138 = pnand %p136, %p137
    %p139 = pneg %p138
    // Predicated region
    $region29: #{unet_forward.14} parent=5 // pred_check
      _
    $region30: #{unet_forward.14} parent=5 // pred_check_branch
      %141 = sbr.rel (%p138) target = $region32
    $region31: #{unet_forward.14} parent=5 // pred_region
      %s142 = ssub.s32 %s9, 1
      %p143 = scmp.lt.s32.totalorder %s14, 1
      %s144 = scalar_select %p143, %s14, 1
      %s145 = smul.addr %s144, 12
      %s146 = smul.addr %s145, 4
      %s147 = scalar_lea.vmem %s0, %s146
      %p148 = pneg %p35
      %p149 = pneg %p32
      %p150 = pneg %p56
      %p151 = pneg %p53
      %p152 = pneg %p77
      %p153 = pneg %p74
      %p154 = pneg %p103
      %p155 = pneg %p100
      %p156 = scmp.lt.s32.totalorder %s14, 1
      %s157 = scalar_select %p156, %s14, 1
      %s158 = smul.addr %s157, 4
      %s159 = smul.addr %s158, 8
      %s160 = scalar_lea.vmem %s3, %s159
      %p161 = scmp.lt.s32.totalorder %s14, 1
      %s162 = scalar_select %p161, %s14, 1
      %s163 = smul.addr %s162, 12
      %s164 = smul.addr %s163, 4
      %s165 = scalar_lea.vmem %s0, %s164
      %p166 = scmp.lt.s32.totalorder %s14, 1
      %s167 = scalar_select %p166, %s14, 1
      %s168 = smul.addr %s167, 4
      %s169 = smul.addr %s168, 8
      %s170 = scalar_lea.vmem %s3, %s169
      %v172 = vld [vmem:[%s165] sm:$0xff]
      %v173 = vld [vmem:[%s165 + $0x8] sm:$0xf]
      %v174 = vld [vmem:[%s165 + $0xc] sm:$0xff]
      %v175 = vld [vmem:[%s165 + $0x14] sm:$0xf]
      %v176 = vld [vmem:[%s165 + $0x18] sm:$0xff]
      %v177 = vld [vmem:[%s165 + $0x20] sm:$0xf]
      %v178 = vld [vmem:[%s165 + $0x24] sm:$0xff]
      %v179 = vld [vmem:[%s165 + $0x2c] sm:$0xf]
      %v180 = vld [vmem:[%s1] sm:$0xf]
      %v181 = vld [vmem:[%s1 + $0x4] sm:$0xf]
      %v182 = vld [vmem:[%s1 + $0x8] sm:$0xf]
      %v183 = vld [vmem:[%s1 + $0xc] sm:$0xf]
      %v184 = vld [vmem:[%s1 + $0x10] sm:$0xf]
      %v185 = vld [vmem:[%s1 + $0x14] sm:$0xf]
      %v186 = vld [vmem:[%s1 + $0x18] sm:$0xf]
      %v187 = vld [vmem:[%s1 + $0x1c] sm:$0xf]
      %v188 = vld [vmem:[%s1 + $0x20] sm:$0xf]
      %v189 = vld [vmem:[%s1 + $0x24] sm:$0xf]
      %v190 = vld [vmem:[%s1 + $0x28] sm:$0xf]
      %v191 = vld [vmem:[%s1 + $0x2c] sm:$0xf]
      %v192 = vld [vmem:[%s1 + $0x30] sm:$0xf]
      %v193 = vld [vmem:[%s1 + $0x34] sm:$0xf]
      %v194 = vld [vmem:[%s1 + $0x38] sm:$0xf]
      %v195 = vld [vmem:[%s1 + $0x3c] sm:$0xf]
      %v196 = vld [vmem:[%s1 + $0x40] sm:$0xf]
      %v197 = vld [vmem:[%s1 + $0x44] sm:$0xf]
      %v198 = vld [vmem:[%s1 + $0x48] sm:$0xf]
      %v199 = vld [vmem:[%s1 + $0x4c] sm:$0xf]
      %v200 = vld [vmem:[%s1 + $0x50] sm:$0xf]
      %v201 = vld [vmem:[%s1 + $0x54] sm:$0xf]
      %v202 = vld [vmem:[%s1 + $0x58] sm:$0xf]
      %v203 = vld [vmem:[%s1 + $0x5c] sm:$0xf]
      %v204 = vld [vmem:[%s1 + $0x60] sm:$0xf]
      %v205 = vld [vmem:[%s1 + $0x64] sm:$0xf]
      %v206 = vld [vmem:[%s1 + $0x68] sm:$0xf]
      %v207 = vld [vmem:[%s1 + $0x6c] sm:$0xf]
      %v208 = vld [vmem:[%s1 + $0x70] sm:$0xf]
      %v209 = vld [vmem:[%s1 + $0x74] sm:$0xf]
      %v210 = vld [vmem:[%s1 + $0x78] sm:$0xf]
      %v211 = vld [vmem:[%s1 + $0x7c] sm:$0xf]
      %v212 = vld [vmem:[%s1 + $0x80] sm:$0xf]
      %v213 = vld [vmem:[%s1 + $0x84] sm:$0xf]
      %v214 = vld [vmem:[%s1 + $0x88] sm:$0xf]
      %v215 = vld [vmem:[%s1 + $0x8c] sm:$0xf]
      %v216 = vld [vmem:[%s1 + $0x90] sm:$0xf]
      %v217 = vld [vmem:[%s1 + $0x94] sm:$0xf]
      %v218 = vld [vmem:[%s1 + $0x98] sm:$0xf]
      %v219 = vld [vmem:[%s1 + $0x9c] sm:$0xf]
      %v220 = vld [vmem:[%s1 + $0xa0] sm:$0xf]
      %v221 = vld [vmem:[%s1 + $0xa4] sm:$0xf]
      %v222 = vld [vmem:[%s1 + $0xa8] sm:$0xf]
      %v223 = vld [vmem:[%s1 + $0xac] sm:$0xf]
      %v224 = vld [vmem:[%s1 + $0xb0] sm:$0xf]
      %v225 = vld [vmem:[%s1 + $0xb4] sm:$0xf]
      %v226 = vld [vmem:[%s1 + $0xb8] sm:$0xf]
      %v227 = vld [vmem:[%s1 + $0xbc] sm:$0xf]
      %v228 = vld [vmem:[%s2] sm:$0x1]
      %v230 = vlaneseq
      %v231 = vshrl.u32 %v230, 7
      %v232 = vsub.s32 0, %v231
      %v233 = vrot.slane %v228, %v232
      %v243 = vunpack.c.l.b16 %v172
      %v244 = vunpack.c.h.b16 %v172
      %v245 = vunpack.c.l.b16 %v173
      %v246 = vunpack.c.l.b16 %v174
      %v247 = vunpack.c.h.b16 %v174
      %v248 = vunpack.c.l.b16 %v175
      %v249 = vunpack.c.l.b16 %v176
      %v250 = vunpack.c.h.b16 %v176
      %v251 = vunpack.c.l.b16 %v177
      %v252 = vunpack.c.l.b16 %v178
      %v253 = vunpack.c.h.b16 %v178
      %v254 = vunpack.c.l.b16 %v179
      %v255 = vpack.c.b16 %v246, %v243
      %v256 = vpack.c.b16 %v247, %v244
      %v257 = vpack.c.b16 %v248, %v245
      %v258 = vpack.c.b16 %v252, %v249
      %v259 = vpack.c.b16 %v253, %v250
      %v260 = vpack.c.b16 %v254, %v251
      %v315 = vunpack.c.l.b16 %v180
      %v316 = vunpack.c.l.b16 %v181
      %v317 = vunpack.c.l.b16 %v182
      %v318 = vunpack.c.l.b16 %v183
      %v319 = vunpack.c.l.b16 %v184
      %v320 = vunpack.c.l.b16 %v185
      %v321 = vunpack.c.l.b16 %v186
      %v322 = vunpack.c.l.b16 %v187
      %v323 = vunpack.c.l.b16 %v188
      %v324 = vunpack.c.l.b16 %v189
      %v325 = vunpack.c.l.b16 %v190
      %v326 = vunpack.c.l.b16 %v191
      %v327 = vunpack.c.l.b16 %v192
      %v328 = vunpack.c.l.b16 %v193
      %v329 = vunpack.c.l.b16 %v194
      %v330 = vunpack.c.l.b16 %v195
      %v331 = vunpack.c.l.b16 %v196
      %v332 = vunpack.c.l.b16 %v197
      %v333 = vunpack.c.l.b16 %v198
      %v334 = vunpack.c.l.b16 %v199
      %v335 = vunpack.c.l.b16 %v200
      %v336 = vunpack.c.l.b16 %v201
      %v337 = vunpack.c.l.b16 %v202
      %v338 = vunpack.c.l.b16 %v203
      %v339 = vunpack.c.l.b16 %v204
      %v340 = vunpack.c.l.b16 %v205
      %v341 = vunpack.c.l.b16 %v206
      %v342 = vunpack.c.l.b16 %v207
      %v343 = vunpack.c.l.b16 %v208
      %v344 = vunpack.c.l.b16 %v209
      %v345 = vunpack.c.l.b16 %v210
      %v346 = vunpack.c.l.b16 %v211
      %v347 = vunpack.c.l.b16 %v212
      %v348 = vunpack.c.l.b16 %v213
      %v349 = vunpack.c.l.b16 %v214
      %v350 = vunpack.c.l.b16 %v215
      %v351 = vunpack.c.l.b16 %v216
      %v352 = vunpack.c.l.b16 %v217
      %v353 = vunpack.c.l.b16 %v218
      %v354 = vunpack.c.l.b16 %v219
      %v355 = vunpack.c.l.b16 %v220
      %v356 = vunpack.c.l.b16 %v221
      %v357 = vunpack.c.l.b16 %v222
      %v358 = vunpack.c.l.b16 %v223
      %v359 = vunpack.c.l.b16 %v224
      %v360 = vunpack.c.l.b16 %v225
      %v361 = vunpack.c.l.b16 %v226
      %v362 = vunpack.c.l.b16 %v227
      %v363 = vpack.c.b16 %v316, %v315
      %v364 = vpack.c.b16 %v318, %v317
      %v365 = vpack.c.b16 %v320, %v319
      %v366 = vpack.c.b16 %v322, %v321
      %v367 = vpack.c.b16 %v324, %v323
      %v368 = vpack.c.b16 %v326, %v325
      %v369 = vpack.c.b16 %v328, %v327
      %v370 = vpack.c.b16 %v330, %v329
      %v371 = vpack.c.b16 %v332, %v331
      %v372 = vpack.c.b16 %v334, %v333
      %v373 = vpack.c.b16 %v336, %v335
      %v374 = vpack.c.b16 %v338, %v337
      %v375 = vpack.c.b16 %v340, %v339
      %v376 = vpack.c.b16 %v342, %v341
      %v377 = vpack.c.b16 %v344, %v343
      %v378 = vpack.c.b16 %v346, %v345
      %v379 = vpack.c.b16 %v348, %v347
      %v380 = vpack.c.b16 %v350, %v349
      %v381 = vpack.c.b16 %v352, %v351
      %v382 = vpack.c.b16 %v354, %v353
      %v383 = vpack.c.b16 %v356, %v355
      %v384 = vpack.c.b16 %v358, %v357
      %v385 = vpack.c.b16 %v360, %v359
      %v386 = vpack.c.b16 %v362, %v361
      %411 = vmatprep.subr.bf16.mxu0 0
      %412 = vmatpush1.bf16.msra.mxu0 %v363
      %413 = vmatprep.subr.bf16.mxu0 0
      %414 = vmatpush1.bf16.msra.mxu0 %v364
      %415 = vmatprep.subr.bf16.mxu0 0
      %416 = vmatpush1.bf16.msra.mxu0 %v365
      %417 = vmatprep.subr.bf16.mxu0 0
      %418 = vmatpush1.bf16.msra.mxu0 %v366
      %419 = vmatprep.subr.bf16.mxu0 0
      %420 = vmatpush1.bf16.msra.mxu0 %v367
      %421 = vmatprep.subr.bf16.mxu0 0
      %422 = vmatpush1.bf16.msra.mxu0 %v368
      %423 = vmatprep.subr.bf16.mxu0 0
      %424 = vmatpush1.bf16.msra.mxu0 %v369
      %425 = vmatprep.subr.bf16.mxu0 0
      %426 = vmatpush1.bf16.msra.mxu0 %v370
      %427 = vmatprep.subr.bf16.mxu0 0
      %428 = vmatpush1.bf16.msra.mxu0 %v371
      %429 = vmatprep.subr.bf16.mxu0 0
      %430 = vmatpush1.bf16.msra.mxu0 %v372
      %431 = vmatprep.subr.bf16.mxu0 0
      %432 = vmatpush1.bf16.msra.mxu0 %v373
      %433 = vmatprep.subr.bf16.mxu0 0
      %434 = vmatpush1.bf16.msra.mxu0 %v374
      %435 = vmatprep.subr.bf16.mxu0 0
      %436 = vmatpush1.bf16.msra.mxu0 %v375
      %437 = vmatprep.subr.bf16.mxu0 0
      %438 = vmatpush1.bf16.msra.mxu0 %v376
      %439 = vmatprep.subr.bf16.mxu0 0
      %440 = vmatpush1.bf16.msra.mxu0 %v377
      %441 = vmatprep.subr.bf16.mxu0 0
      %442 = vmatpush1.bf16.msra.mxu0 %v378
      %443 = vmatprep.mubr.bf16.mxu0 %v256
      %444 = vmatmul.mubr.bf16.gmra.mrb[0].mxu0 %v255
      %v445 = vpop.f32.mrb[0].mxu0
      %v446 = vadd.f32 %v233, %v445
      %v447 = vpop.f32.mrb[0].mxu0
      %v448 = vpop.f32.mrb[0].mxu0
      %v449 = vadd.f32 %v233, %v448
      %v450 = vpop.f32.mrb[0].mxu0
      %451 = vmatprep.mubr.bf16.mxu0 %v259
      %452 = vmatmul.mubr.bf16.gmra.mrb[0].mxu0 %v258
      %v453 = vpop.f32.mrb[0].mxu0
      %v454 = vadd.f32 %v233, %v453
      %v455 = vpop.f32.mrb[0].mxu0
      %v456 = vpop.f32.mrb[0].mxu0
      %v457 = vadd.f32 %v233, %v456
      %v458 = vpop.f32.mrb[0].mxu0
      %459 = vdwg.mxu0
      %460 = vmatprep.subr.bf16.mxu0 0
      %461 = vmatpush1.bf16.msra.mxu0 %v379
      %462 = vmatprep.subr.bf16.mxu0 0
      %463 = vmatpush1.bf16.msra.mxu0 %v380
      %464 = vmatprep.subr.bf16.mxu0 0
      %465 = vmatpush1.bf16.msra.mxu0 %v381
      %466 = vmatprep.subr.bf16.mxu0 0
      %467 = vmatpush1.bf16.msra.mxu0 %v382
      %468 = vmatprep.subr.bf16.mxu0 0
      %469 = vmatpush1.bf16.msra.mxu0 %v383
      %470 = vmatprep.subr.bf16.mxu0 0
      %471 = vmatpush1.bf16.msra.mxu0 %v384
      %472 = vmatprep.subr.bf16.mxu0 0
      %473 = vmatpush1.bf16.msra.mxu0 %v385
      %474 = vmatprep.subr.bf16.mxu0 0
      %475 = vmatpush1.bf16.msra.mxu0 %v386
      %476 = vmatprep.subr.bf16.mxu0 0
      %477 = vmatpush1.bf16.msra.mxu0 0
      %478 = vmatprep.subr.bf16.mxu0 0
      %479 = vmatpush1.bf16.msra.mxu0 0
      %480 = vmatprep.subr.bf16.mxu0 0
      %481 = vmatpush1.bf16.msra.mxu0 0
      %482 = vmatprep.subr.bf16.mxu0 0
      %483 = vmatpush1.bf16.msra.mxu0 0
      %484 = vmatprep.subr.bf16.mxu0 0
      %485 = vmatpush1.bf16.msra.mxu0 0
      %486 = vmatprep.subr.bf16.mxu0 0
      %487 = vmatpush1.bf16.msra.mxu0 0
      %488 = vmatprep.subr.bf16.mxu0 0
      %489 = vmatpush1.bf16.msra.mxu0 0
      %490 = vmatprep.subr.bf16.mxu0 0
      %491 = vmatpush1.bf16.msra.mxu0 0
      %492 = vmatprep.mubr.bf16.mxu0 0
      %493 = vmatmul.mubr.bf16.gmra.mrb[0].mxu0 %v257
      %v494 = vpop.f32.mrb[0].mxu0
      %v495 = vadd.f32 %v446, %v494
      %v496 = vpop.f32.mrb[0].mxu0
      %v497 = vpop.f32.mrb[0].mxu0
      %v498 = vadd.f32 %v449, %v497
      %v499 = vpop.f32.mrb[0].mxu0
      %500 = vmatprep.mubr.bf16.mxu0 0
      %501 = vmatmul.mubr.bf16.gmra.mrb[0].mxu0 %v260
      %v502 = vpop.f32.mrb[0].mxu0
      %v503 = vadd.f32 %v454, %v502
      %v504 = vpop.f32.mrb[0].mxu0
      %v505 = vpop.f32.mrb[0].mxu0
      %v506 = vadd.f32 %v457, %v505
      %v507 = vpop.f32.mrb[0].mxu0
      %508 = vdwg.mxu0
      %vm509 = vcmp.ge.f32.partialorder %v495, 0.0
      %vm510 = vcmp.ge.f32.partialorder %v498, 0.0
      %vm511 = vcmp.ge.f32.partialorder %v503, 0.0
      %vm512 = vcmp.ge.f32.partialorder %v506, 0.0
      %v513 = vmul.f32 %v495, 0.2
      %v514 = vmul.f32 %v498, 0.2
      %v515 = vmul.f32 %v503, 0.2
      %v516 = vmul.f32 %v506, 0.2
      %v517 = vsel %vm509, %v495, %v513
      %v518 = vsel %vm510, %v498, %v514
      %v519 = vsel %vm511, %v503, %v515
      %v520 = vsel %vm512, %v506, %v516
      %521 = vst [vmem:[%s170] sm:$0xff] %v517
      %522 = vst [vmem:[%s170 + $0x8] sm:$0xff] %v518
      %523 = vst [vmem:[%s170 + $0x10] sm:$0xff] %v519
      %524 = vst [vmem:[%s170 + $0x18] sm:$0xff] %v520
      %p525 = scmp.lt.s32.totalorder %s14, 1
      %s526 = scalar_select %p525, %s14, 1
      %s527 = smul.addr %s526, 4
      %s528 = smul.addr %s527, 8
      %s529 = scalar_lea.vmem %s3, %s528
      // Predicated region
      $region33: #{unet_forward.14} parent=31 // pred_check
        %p530 = pneg %p100
      $region34: #{unet_forward.14} parent=31 // pred_check_branch
        %532 = sbr.rel (%p530) target = $region36
      $region35: #{unet_forward.14} parent=31 // pred_region
        _
      $region36: #{unet_forward.14} parent=31 // pred_fallthru
        _
    $region32: #{unet_forward.14} parent=5 // pred_fallthru
      _
    %p533 = scmp.le.s32.totalorder 2, %s9
    // Predicated region
    $region37: #{unet_forward.14} parent=5 // pred_check
      %p534 = pneg %p533
    $region38: #{unet_forward.14} parent=5 // pred_check_branch
      %536 = sbr.rel (%p534) target = $region40
    $region39: #{unet_forward.14} parent=5 // pred_region
      %s537 = ssub.s32 %s9, 2
      // Predicated region
      $region41: #{unet_forward.14} parent=39 // pred_check
        %p538 = pneg %p106
      $region42: #{unet_forward.14} parent=39 // pred_check_branch
        %540 = sbr.rel (%p538) target = $region44
      $region43: #{unet_forward.14} parent=39 // pred_region
        %p541 = scmp.lt.s32.totalorder %s15, 1
        %s542 = scalar_select %p541, %s15, 1
        %s543 = smul.addr %s542, 4
        %s544 = smul.addr %s543, 8
        %s545 = scalar_lea.vmem %s3, %s544
      $region44: #{unet_forward.14} parent=39 // pred_fallthru
        _
    $region40: #{unet_forward.14} parent=5 // pred_fallthru
      _
  $region6: #{unet_forward.14} parent=0 // loop_footer
    %s13 = sadd.s32 1, %s9
  $region7: #{unet_forward.14} parent=0 // loop_footer_branch
    %8 = sbr.rel target = $region3
  $region8: #{unet_forward.14} parent=0 // loop_exit
    _

// kernel: unet_forward.15
$region0: #{unet_forward.15}
  #allocation0 [shape = 'u32[]', space=smem, size = 0x4, offset = 0x4, fixed_abs, tag = 'smem constant byte address 0x4 - core index']
  #allocation1 [shape = 'u32[144,128]{1,0:T(1,128)}', space=vmem, size = 0x12000, scoped, tag = 'internal scratch']
  %s0 = inlined_call_operand.vmem [shape: bf16[2,16,384], index: 0, kind: input, shape index: {}]
  %s1 = inlined_call_operand.vmem [shape: bf16[384,128], index: 1, kind: input, shape index: {}]
  %s2 = inlined_call_operand.vmem [shape: f32[1,128], index: 2, kind: input, shape index: {}]
  %s3 = inlined_call_operand.vmem [shape: f32[2,16,128], index: 3, kind: output, shape index: {}]
  %s4 = sld [smem:[#allocation0]]
  $region45: #{unet_forward.15} parent=0
    _
  %s6 = ssub.s32 1, %s4
  %s7 = scalar_select 0, %s6, %s4
  loop: start=0, step=1, limit=4
  $region2: #{unet_forward.15} parent=0 // loop_pre_header
    _
  $region3: #{unet_forward.15} parent=0 // loop_header
    %s9 = sphi 0, %s13
    %p10 = scmp.ge.s32.totalorder %s9, 4
    %s19 = sphi 0, %s21
    %s22 = sphi 0, %s19
    %s23 = sphi 0, %s22
    %s39 = sphi 0, %s23
    %s43 = sphi 0, %s43
    %s45 = sphi 0, %s43
    %s46 = sphi 0, %s45
    %s60 = sphi 0, %s46
    %s64 = sphi 0, %s64
    %s66 = sphi 0, %s64
    %s67 = sphi 0, %s66
    %s81 = sphi 0, %s67
    %s87 = sphi 0, %s89
    %s90 = sphi 0, %s87
    %s91 = sphi 0, %s90
    %s107 = sphi 0, %s91
  $region4: #{unet_forward.15} parent=0 // loop_header_branch
    %12 = sbr.rel (%p10) target = $region8
  $region5: #{unet_forward.15} parent=0 // loop_body
    %s14 = ssub.s32 %s9, 1
    %s15 = ssub.s32 %s9, 2
    %s16 = sadd.s32 %s9, 1
    %s17 = ssub.s32 %s9, %s16
    %p18 = scmp.eq.s32.totalorder %s17, 0
    %s20 = sadd.s32 %s19, 1
    %s21 = scalar_select %p18, %s19, %s20
    %p24 = pneg %p18
    %p25 = scmp.eq.s32.totalorder %s9, 1
    %p26 = por %p24, %p25
    %p27 = scmp.ne.s32.totalorder %s19, %s22
    %p28 = scmp.eq.s32.totalorder %s9, 0
    %p29 = por %p27, %p28
    %p30 = scmp.ne.s32.totalorder %s19, %s22
    %p31 = scmp.eq.s32.totalorder %s14, 1
    %p32 = por %p30, %p31
    %p33 = scmp.ne.s32.totalorder %s22, %s23
    %p34 = scmp.eq.s32.totalorder %s14, 0
    %p35 = por %p33, %p34
    %p36 = scmp.ne.s32.totalorder %s22, %s23
    %p37 = scmp.eq.s32.totalorder %s15, 1
    %p38 = por %p36, %p37
    %p40 = scmp.ne.s32.totalorder %s23, %s39
    %p41 = scmp.eq.s32.totalorder %s15, 0
    %p42 = por %p40, %p41
    %s44 = sadd.s32 %s43, 1
    %p47 = scmp.eq.s32.totalorder %s9, 1
    %p48 = scmp.ne.s32.totalorder %s43, %s45
    %p49 = scmp.eq.s32.totalorder %s9, 0
    %p50 = por %p48, %p49
    %p51 = scmp.ne.s32.totalorder %s43, %s45
    %p52 = scmp.eq.s32.totalorder %s14, 1
    %p53 = por %p51, %p52
    %p54 = scmp.ne.s32.totalorder %s45, %s46
    %p55 = scmp.eq.s32.totalorder %s14, 0
    %p56 = por %p54, %p55
    %p57 = scmp.ne.s32.totalorder %s45, %s46
    %p58 = scmp.eq.s32.totalorder %s15, 1
    %p59 = por %p57, %p58
    %p61 = scmp.ne.s32.totalorder %s46, %s60
    %p62 = scmp.eq.s32.totalorder %s15, 0
    %p63 = por %p61, %p62
    %s65 = sadd.s32 %s64, 1
    %p68 = scmp.eq.s32.totalorder %s9, 1
    %p69 = scmp.ne.s32.totalorder %s64, %s66
    %p70 = scmp.eq.s32.totalorder %s9, 0
    %p71 = por %p69, %p70
    %p72 = scmp.ne.s32.totalorder %s64, %s66
    %p73 = scmp.eq.s32.totalorder %s14, 1
    %p74 = por %p72, %p73
    %p75 = scmp.ne.s32.totalorder %s66, %s67
    %p76 = scmp.eq.s32.totalorder %s14, 0
    %p77 = por %p75, %p76
    %p78 = scmp.ne.s32.totalorder %s66, %s67
    %p79 = scmp.eq.s32.totalorder %s15, 1
    %p80 = por %p78, %p79
    %p82 = scmp.ne.s32.totalorder %s67, %s81
    %p83 = scmp.eq.s32.totalorder %s15, 0
    %p84 = por %p82, %p83
    %s85 = ssub.s32 %s9, %s16
    %p86 = scmp.eq.s32.totalorder %s85, 0
    %s88 = sadd.s32 %s87, 1
    %s89 = scalar_select %p86, %s87, %s88
    %p92 = pneg %p86
    %p93 = scmp.eq.s32.totalorder %s9, 1
    %p94 = por %p92, %p93
    %p95 = scmp.ne.s32.totalorder %s87, %s90
    %p96 = scmp.eq.s32.totalorder %s9, 0
    %p97 = por %p95, %p96
    %p98 = scmp.ne.s32.totalorder %s87, %s90
    %p99 = scmp.eq.s32.totalorder %s14, 1
    %p100 = por %p98, %p99
    %p101 = scmp.ne.s32.totalorder %s90, %s91
    %p102 = scmp.eq.s32.totalorder %s14, 0
    %p103 = por %p101, %p102
    %p104 = scmp.ne.s32.totalorder %s90, %s91
    %p105 = scmp.eq.s32.totalorder %s15, 1
    %p106 = por %p104, %p105
    %p108 = scmp.ne.s32.totalorder %s91, %s107
    %p109 = scmp.eq.s32.totalorder %s15, 0
    %p110 = por %p108, %p109
    %p111 = scmp.le.s32.totalorder 1, %s9
    %p112 = scmp.lt.s32.totalorder %s9, 3
    %p113 = pnand %p111, %p112
    %p114 = pneg %p113
    // Predicated region
    $region9: #{unet_forward.15} parent=5 // pred_check
      _
    $region10: #{unet_forward.15} parent=5 // pred_check_branch
      %116 = sbr.rel (%p113) target = $region12
    $region11: #{unet_forward.15} parent=5 // pred_region
      %s117 = ssub.s32 %s9, 1
      // Predicated region
      $region13: #{unet_forward.15} parent=11 // pred_check
        %p118 = pneg %p56
      $region14: #{unet_forward.15} parent=11 // pred_check_branch
        %120 = sbr.rel (%p118) target = $region16
      $region15: #{unet_forward.15} parent=11 // pred_region
        _
      $region16: #{unet_forward.15} parent=11 // pred_fallthru
        _
      // Predicated region
      $region17: #{unet_forward.15} parent=11 // pred_check
        %p121 = pneg %p77
      $region18: #{unet_forward.15} parent=11 // pred_check_branch
        %123 = sbr.rel (%p121) target = $region20
      $region19: #{unet_forward.15} parent=11 // pred_region
        _
      $region20: #{unet_forward.15} parent=11 // pred_fallthru
        _
    $region12: #{unet_forward.15} parent=5 // pred_fallthru
      _
    %p124 = scmp.lt.s32.totalorder %s9, 2
    // Predicated region
    $region21: #{unet_forward.15} parent=5 // pred_check
      %p125 = pneg %p124
    $region22: #{unet_forward.15} parent=5 // pred_check_branch
      %127 = sbr.rel (%p125) target = $region24
    $region23: #{unet_forward.15} parent=5 // pred_region
      // Predicated region
      $region25: #{unet_forward.15} parent=23 // pred_check
        %p128 = pneg %p29
      $region26: #{unet_forward.15} parent=23 // pred_check_branch
        %130 = sbr.rel (%p128) target = $region28
      $region27: #{unet_forward.15} parent=23 // pred_region
        %p131 = scmp.lt.s32.totalorder %s9, 1
        %s132 = scalar_select %p131, %s9, 1
        %s133 = smul.addr %s132, 6
        %s134 = smul.addr %s133, 4
        %s135 = scalar_lea.vmem %s0, %s134
      $region28: #{unet_forward.15} parent=23 // pred_fallthru
        _
    $region24: #{unet_forward.15} parent=5 // pred_fallthru
      _
    %p136 = scmp.le.s32.totalorder 1, %s9
    %p137 = scmp.lt.s32.totalorder %s9, 3
    %p138 = pnand %p136, %p137
    %p139 = pneg %p138
    // Predicated region
    $region29: #{unet_forward.15} parent=5 // pred_check
      _
    $region30: #{unet_forward.15} parent=5 // pred_check_branch
      %141 = sbr.rel (%p138) target = $region32
    $region31: #{unet_forward.15} parent=5 // pred_region
      %s142 = ssub.s32 %s9, 1
      %p143 = scmp.lt.s32.totalorder %s14, 1
      %s144 = scalar_select %p143, %s14, 1
      %s145 = smul.addr %s144, 6
      %s146 = smul.addr %s145, 4
      %s147 = scalar_lea.vmem %s0, %s146
      %p148 = pneg %p35
      %p149 = pneg %p32
      %p150 = pneg %p56
      %p151 = pneg %p53
      %p152 = pneg %p77
      %p153 = pneg %p74
      %p154 = pneg %p103
      %p155 = pneg %p100
      %p156 = scmp.lt.s32.totalorder %s14, 1
      %s157 = scalar_select %p156, %s14, 1
      %s158 = smul.addr %s157, 2
      %s159 = smul.addr %s158, 8
      %s160 = scalar_lea.vmem %s3, %s159
      %p161 = scmp.lt.s32.totalorder %s14, 1
      %s162 = scalar_select %p161, %s14, 1
      %s163 = smul.addr %s162, 6
      %s164 = smul.addr %s163, 4
      %s165 = scalar_lea.vmem %s0, %s164
      %p166 = scmp.lt.s32.totalorder %s14, 1
      %s167 = scalar_select %p166, %s14, 1
      %s168 = smul.addr %s167, 2
      %s169 = smul.addr %s168, 8
      %s170 = scalar_lea.vmem %s3, %s169
      %v172 = vld [vmem:[%s165] sm:$0xff]
      %v173 = vld [vmem:[%s165 + $0x8] sm:$0xf]
      %v174 = vld [vmem:[%s165 + $0xc] sm:$0xff]
      %v175 = vld [vmem:[%s165 + $0x14] sm:$0xf]
      %v176 = vld [vmem:[%s1] sm:$0xf]
      %v177 = vld [vmem:[%s1 + $0x4] sm:$0xf]
      %v178 = vld [vmem:[%s1 + $0x8] sm:$0xf]
      %v179 = vld [vmem:[%s1 + $0xc] sm:$0xf]
      %v180 = vld [vmem:[%s1 + $0x10] sm:$0xf]
      %v181 = vld [vmem:[%s1 + $0x14] sm:$0xf]
      %v182 = vld [vmem:[%s1 + $0x18] sm:$0xf]
      %v183 = vld [vmem:[%s1 + $0x1c] sm:$0xf]
      %v184 = vld [vmem:[%s1 + $0x20] sm:$0xf]
      %v185 = vld [vmem:[%s1 + $0x24] sm:$0xf]
      %v186 = vld [vmem:[%s1 + $0x28] sm:$0xf]
      %v187 = vld [vmem:[%s1 + $0x2c] sm:$0xf]
      %v188 = vld [vmem:[%s1 + $0x30] sm:$0xf]
      %v189 = vld [vmem:[%s1 + $0x34] sm:$0xf]
      %v190 = vld [vmem:[%s1 + $0x38] sm:$0xf]
      %v191 = vld [vmem:[%s1 + $0x3c] sm:$0xf]
      %v192 = vld [vmem:[%s1 + $0x40] sm:$0xf]
      %v193 = vld [vmem:[%s1 + $0x44] sm:$0xf]
      %v194 = vld [vmem:[%s1 + $0x48] sm:$0xf]
      %v195 = vld [vmem:[%s1 + $0x4c] sm:$0xf]
      %v196 = vld [vmem:[%s1 + $0x50] sm:$0xf]
      %v197 = vld [vmem:[%s1 + $0x54] sm:$0xf]
      %v198 = vld [vmem:[%s1 + $0x58] sm:$0xf]
      %v199 = vld [vmem:[%s1 + $0x5c] sm:$0xf]
      %v200 = vld [vmem:[%s1 + $0x60] sm:$0xf]
      %v201 = vld [vmem:[%s1 + $0x64] sm:$0xf]
      %v202 = vld [vmem:[%s1 + $0x68] sm:$0xf]
      %v203 = vld [vmem:[%s1 + $0x6c] sm:$0xf]
      %v204 = vld [vmem:[%s1 + $0x70] sm:$0xf]
      %v205 = vld [vmem:[%s1 + $0x74] sm:$0xf]
      %v206 = vld [vmem:[%s1 + $0x78] sm:$0xf]
      %v207 = vld [vmem:[%s1 + $0x7c] sm:$0xf]
      %v208 = vld [vmem:[%s1 + $0x80] sm:$0xf]
      %v209 = vld [vmem:[%s1 + $0x84] sm:$0xf]
      %v210 = vld [vmem:[%s1 + $0x88] sm:$0xf]
      %v211 = vld [vmem:[%s1 + $0x8c] sm:$0xf]
      %v212 = vld [vmem:[%s1 + $0x90] sm:$0xf]
      %v213 = vld [vmem:[%s1 + $0x94] sm:$0xf]
      %v214 = vld [vmem:[%s1 + $0x98] sm:$0xf]
      %v215 = vld [vmem:[%s1 + $0x9c] sm:$0xf]
      %v216 = vld [vmem:[%s1 + $0xa0] sm:$0xf]
      %v217 = vld [vmem:[%s1 + $0xa4] sm:$0xf]
      %v218 = vld [vmem:[%s1 + $0xa8] sm:$0xf]
      %v219 = vld [vmem:[%s1 + $0xac] sm:$0xf]
      %v220 = vld [vmem:[%s1 + $0xb0] sm:$0xf]
      %v221 = vld [vmem:[%s1 + $0xb4] sm:$0xf]
      %v222 = vld [vmem:[%s1 + $0xb8] sm:$0xf]
      %v223 = vld [vmem:[%s1 + $0xbc] sm:$0xf]
      %v224 = vld [vmem:[%s2] sm:$0x1]
      %v226 = vlaneseq
      %v227 = vshrl.u32 %v226, 7
      %v228 = vsub.s32 0, %v227
      %v229 = vrot.slane %v224, %v228
      %v235 = vunpack.c.l.b16 %v172
      %v236 = vunpack.c.h.b16 %v172
      %v237 = vunpack.c.l.b16 %v173
      %v238 = vunpack.c.l.b16 %v174
      %v239 = vunpack.c.h.b16 %v174
      %v240 = vunpack.c.l.b16 %v175
      %v241 = vpack.c.b16 %v238, %v235
      %v242 = vpack.c.b16 %v239, %v236
      %v243 = vpack.c.b16 %v240, %v237
      %v295 = vunpack.c.l.b16 %v176
      %v296 = vunpack.c.l.b16 %v177
      %v297 = vunpack.c.l.b16 %v178
      %v298 = vunpack.c.l.b16 %v179
      %v299 = vunpack.c.l.b16 %v180
      %v300 = vunpack.c.l.b16 %v181
      %v301 = vunpack.c.l.b16 %v182
      %v302 = vunpack.c.l.b16 %v183
      %v303 = vunpack.c.l.b16 %v184
      %v304 = vunpack.c.l.b16 %v185
      %v305 = vunpack.c.l.b16 %v186
      %v306 = vunpack.c.l.b16 %v187
      %v307 = vunpack.c.l.b16 %v188
      %v308 = vunpack.c.l.b16 %v189
      %v309 = vunpack.c.l.b16 %v190
      %v310 = vunpack.c.l.b16 %v191
      %v311 = vunpack.c.l.b16 %v192
      %v312 = vunpack.c.l.b16 %v193
      %v313 = vunpack.c.l.b16 %v194
      %v314 = vunpack.c.l.b16 %v195
      %v315 = vunpack.c.l.b16 %v196
      %v316 = vunpack.c.l.b16 %v197
      %v317 = vunpack.c.l.b16 %v198
      %v318 = vunpack.c.l.b16 %v199
      %v319 = vunpack.c.l.b16 %v200
      %v320 = vunpack.c.l.b16 %v201
      %v321 = vunpack.c.l.b16 %v202
      %v322 = vunpack.c.l.b16 %v203
      %v323 = vunpack.c.l.b16 %v204
      %v324 = vunpack.c.l.b16 %v205
      %v325 = vunpack.c.l.b16 %v206
      %v326 = vunpack.c.l.b16 %v207
      %v327 = vunpack.c.l.b16 %v208
      %v328 = vunpack.c.l.b16 %v209
      %v329 = vunpack.c.l.b16 %v210
      %v330 = vunpack.c.l.b16 %v211
      %v331 = vunpack.c.l.b16 %v212
      %v332 = vunpack.c.l.b16 %v213
      %v333 = vunpack.c.l.b16 %v214
      %v334 = vunpack.c.l.b16 %v215
      %v335 = vunpack.c.l.b16 %v216
      %v336 = vunpack.c.l.b16 %v217
      %v337 = vunpack.c.l.b16 %v218
      %v338 = vunpack.c.l.b16 %v219
      %v339 = vunpack.c.l.b16 %v220
      %v340 = vunpack.c.l.b16 %v221
      %v341 = vunpack.c.l.b16 %v222
      %v342 = vunpack.c.l.b16 %v223
      %v343 = vpack.c.b16 %v296, %v295
      %v344 = vpack.c.b16 %v298, %v297
      %v345 = vpack.c.b16 %v300, %v299
      %v346 = vpack.c.b16 %v302, %v301
      %v347 = vpack.c.b16 %v304, %v303
      %v348 = vpack.c.b16 %v306, %v305
      %v349 = vpack.c.b16 %v308, %v307
      %v350 = vpack.c.b16 %v310, %v309
      %v351 = vpack.c.b16 %v312, %v311
      %v352 = vpack.c.b16 %v314, %v313
      %v353 = vpack.c.b16 %v316, %v315
      %v354 = vpack.c.b16 %v318, %v317
      %v355 = vpack.c.b16 %v320, %v319
      %v356 = vpack.c.b16 %v322, %v321
      %v357 = vpack.c.b16 %v324, %v323
      %v358 = vpack.c.b16 %v326, %v325
      %v359 = vpack.c.b16 %v328, %v327
      %v360 = vpack.c.b16 %v330, %v329
      %v361 = vpack.c.b16 %v332, %v331
      %v362 = vpack.c.b16 %v334, %v333
      %v363 = vpack.c.b16 %v336, %v335
      %v364 = vpack.c.b16 %v338, %v337
      %v365 = vpack.c.b16 %v340, %v339
      %v366 = vpack.c.b16 %v342, %v341
      %391 = vmatprep.subr.bf16.mxu0 0
      %392 = vmatpush1.bf16.msra.mxu0 %v343
      %393 = vmatprep.subr.bf16.mxu0 0
      %394 = vmatpush1.bf16.msra.mxu0 %v344
      %395 = vmatprep.subr.bf16.mxu0 0
      %396 = vmatpush1.bf16.msra.mxu0 %v345
      %397 = vmatprep.subr.bf16.mxu0 0
      %398 = vmatpush1.bf16.msra.mxu0 %v346
      %399 = vmatprep.subr.bf16.mxu0 0
      %400 = vmatpush1.bf16.msra.mxu0 %v347
      %401 = vmatprep.subr.bf16.mxu0 0
      %402 = vmatpush1.bf16.msra.mxu0 %v348
      %403 = vmatprep.subr.bf16.mxu0 0
      %404 = vmatpush1.bf16.msra.mxu0 %v349
      %405 = vmatprep.subr.bf16.mxu0 0
      %406 = vmatpush1.bf16.msra.mxu0 %v350
      %407 = vmatprep.subr.bf16.mxu0 0
      %408 = vmatpush1.bf16.msra.mxu0 %v351
      %409 = vmatprep.subr.bf16.mxu0 0
      %410 = vmatpush1.bf16.msra.mxu0 %v352
      %411 = vmatprep.subr.bf16.mxu0 0
      %412 = vmatpush1.bf16.msra.mxu0 %v353
      %413 = vmatprep.subr.bf16.mxu0 0
      %414 = vmatpush1.bf16.msra.mxu0 %v354
      %415 = vmatprep.subr.bf16.mxu0 0
      %416 = vmatpush1.bf16.msra.mxu0 %v355
      %417 = vmatprep.subr.bf16.mxu0 0
      %418 = vmatpush1.bf16.msra.mxu0 %v356
      %419 = vmatprep.subr.bf16.mxu0 0
      %420 = vmatpush1.bf16.msra.mxu0 %v357
      %421 = vmatprep.subr.bf16.mxu0 0
      %422 = vmatpush1.bf16.msra.mxu0 %v358
      %423 = vmatprep.mubr.bf16.mxu0 %v242
      %424 = vmatmul.mubr.bf16.gmra.mrb[0].mxu0 %v241
      %v425 = vpop.f32.mrb[0].mxu0
      %v426 = vadd.f32 %v229, %v425
      %v427 = vpop.f32.mrb[0].mxu0
      %v428 = vpop.f32.mrb[0].mxu0
      %v429 = vadd.f32 %v229, %v428
      %v430 = vpop.f32.mrb[0].mxu0
      %431 = vdwg.mxu0
      %432 = vmatprep.subr.bf16.mxu0 0
      %433 = vmatpush1.bf16.msra.mxu0 %v359
      %434 = vmatprep.subr.bf16.mxu0 0
      %435 = vmatpush1.bf16.msra.mxu0 %v360
      %436 = vmatprep.subr.bf16.mxu0 0
      %437 = vmatpush1.bf16.msra.mxu0 %v361
      %438 = vmatprep.subr.bf16.mxu0 0
      %439 = vmatpush1.bf16.msra.mxu0 %v362
      %440 = vmatprep.subr.bf16.mxu0 0
      %441 = vmatpush1.bf16.msra.mxu0 %v363
      %442 = vmatprep.subr.bf16.mxu0 0
      %443 = vmatpush1.bf16.msra.mxu0 %v364
      %444 = vmatprep.subr.bf16.mxu0 0
      %445 = vmatpush1.bf16.msra.mxu0 %v365
      %446 = vmatprep.subr.bf16.mxu0 0
      %447 = vmatpush1.bf16.msra.mxu0 %v366
      %448 = vmatprep.subr.bf16.mxu0 0
      %449 = vmatpush1.bf16.msra.mxu0 0
      %450 = vmatprep.subr.bf16.mxu0 0
      %451 = vmatpush1.bf16.msra.mxu0 0
      %452 = vmatprep.subr.bf16.mxu0 0
      %453 = vmatpush1.bf16.msra.mxu0 0
      %454 = vmatprep.subr.bf16.mxu0 0
      %455 = vmatpush1.bf16.msra.mxu0 0
      %456 = vmatprep.subr.bf16.mxu0 0
      %457 = vmatpush1.bf16.msra.mxu0 0
      %458 = vmatprep.subr.bf16.mxu0 0
      %459 = vmatpush1.bf16.msra.mxu0 0
      %460 = vmatprep.subr.bf16.mxu0 0
      %461 = vmatpush1.bf16.msra.mxu0 0
      %462 = vmatprep.subr.bf16.mxu0 0
      %463 = vmatpush1.bf16.msra.mxu0 0
      %464 = vmatprep.mubr.bf16.mxu0 0
      %465 = vmatmul.mubr.bf16.gmra.mrb[0].mxu0 %v243
      %v466 = vpop.f32.mrb[0].mxu0
      %v467 = vadd.f32 %v426, %v466
      %v468 = vpop.f32.mrb[0].mxu0
      %v469 = vpop.f32.mrb[0].mxu0
      %v470 = vadd.f32 %v429, %v469
      %v471 = vpop.f32.mrb[0].mxu0
      %472 = vdwg.mxu0
      %vm473 = vcmp.ge.f32.partialorder %v467, 0.0
      %vm474 = vcmp.ge.f32.partialorder %v470, 0.0
      %v475 = vmul.f32 %v467, 0.2
      %v476 = vmul.f32 %v470, 0.2
      %v477 = vsel %vm473, %v467, %v475
      %v478 = vsel %vm474, %v470, %v476
      %479 = vst [vmem:[%s170] sm:$0xff] %v477
      %480 = vst [vmem:[%s170 + $0x8] sm:$0xff] %v478
      %p481 = scmp.lt.s32.totalorder %s14, 1
      %s482 = scalar_select %p481, %s14, 1
      %s483 = smul.addr %s482, 2
      %s484 = smul.addr %s483, 8
      %s485 = scalar_lea.vmem %s3, %s484
      // Predicated region
      $region33: #{unet_forward.15} parent=31 // pred_check
        %p486 = pneg %p100
      $region34: #{unet_forward.15} parent=31 // pred_check_branch
        %488 = sbr.rel (%p486) target = $region36
      $region35: #{unet_forward.15} parent=31 // pred_region
        _
      $region36: #{unet_forward.15} parent=31 // pred_fallthru
        _
    $region32: #{unet_forward.15} parent=5 // pred_fallthru
      _
    %p489 = scmp.le.s32.totalorder 2, %s9
    // Predicated region
    $region37: #{unet_forward.15} parent=5 // pred_check
      %p490 = pneg %p489
    $region38: #{unet_forward.15} parent=5 // pred_check_branch
      %492 = sbr.rel (%p490) target = $region40
    $region39: #{unet_forward.15} parent=5 // pred_region
      %s493 = ssub.s32 %s9, 2
      // Predicated region
      $region41: #{unet_forward.15} parent=39 // pred_check
        %p494 = pneg %p106
      $region42: #{unet_forward.15} parent=39 // pred_check_branch
        %496 = sbr.rel (%p494) target = $region44
      $region43: #{unet_forward.15} parent=39 // pred_region
        %p497 = scmp.lt.s32.totalorder %s15, 1
        %s498 = scalar_select %p497, %s15, 1
        %s499 = smul.addr %s498, 2
        %s500 = smul.addr %s499, 8
        %s501 = scalar_lea.vmem %s3, %s500
      $region44: #{unet_forward.15} parent=39 // pred_fallthru
        _
    $region40: #{unet_forward.15} parent=5 // pred_fallthru
      _
  $region6: #{unet_forward.15} parent=0 // loop_footer
    %s13 = sadd.s32 1, %s9
  $region7: #{unet_forward.15} parent=0 // loop_footer_branch
    %8 = sbr.rel target = $region3
  $region8: #{unet_forward.15} parent=0 // loop_exit
    _

// kernel: unet_forward.16
$region0: #{unet_forward.16}
  #allocation0 [shape = 'u32[]', space=smem, size = 0x4, offset = 0x4, fixed_abs, tag = 'smem constant byte address 0x4 - core index']
  #allocation1 [shape = 'u32[144,128]{1,0:T(1,128)}', space=vmem, size = 0x12000, scoped, tag = 'internal scratch']
  %s0 = inlined_call_operand.vmem [shape: bf16[2,8,384], index: 0, kind: input, shape index: {}]
  %s1 = inlined_call_operand.vmem [shape: bf16[384,128], index: 1, kind: input, shape index: {}]
  %s2 = inlined_call_operand.vmem [shape: f32[1,128], index: 2, kind: input, shape index: {}]
  %s3 = inlined_call_operand.vmem [shape: f32[2,8,128], index: 3, kind: output, shape index: {}]
  %s4 = sld [smem:[#allocation0]]
  $region45: #{unet_forward.16} parent=0
    _
  %s6 = ssub.s32 1, %s4
  %s7 = scalar_select 0, %s6, %s4
  loop: start=0, step=1, limit=4
  $region2: #{unet_forward.16} parent=0 // loop_pre_header
    _
  $region3: #{unet_forward.16} parent=0 // loop_header
    %s9 = sphi 0, %s13
    %p10 = scmp.ge.s32.totalorder %s9, 4
    %s19 = sphi 0, %s21
    %s22 = sphi 0, %s19
    %s23 = sphi 0, %s22
    %s39 = sphi 0, %s23
    %s43 = sphi 0, %s43
    %s45 = sphi 0, %s43
    %s46 = sphi 0, %s45
    %s60 = sphi 0, %s46
    %s64 = sphi 0, %s64
    %s66 = sphi 0, %s64
    %s67 = sphi 0, %s66
    %s81 = sphi 0, %s67
    %s87 = sphi 0, %s89
    %s90 = sphi 0, %s87
    %s91 = sphi 0, %s90
    %s107 = sphi 0, %s91
  $region4: #{unet_forward.16} parent=0 // loop_header_branch
    %12 = sbr.rel (%p10) target = $region8
  $region5: #{unet_forward.16} parent=0 // loop_body
    %s14 = ssub.s32 %s9, 1
    %s15 = ssub.s32 %s9, 2
    %s16 = sadd.s32 %s9, 1
    %s17 = ssub.s32 %s9, %s16
    %p18 = scmp.eq.s32.totalorder %s17, 0
    %s20 = sadd.s32 %s19, 1
    %s21 = scalar_select %p18, %s19, %s20
    %p24 = pneg %p18
    %p25 = scmp.eq.s32.totalorder %s9, 1
    %p26 = por %p24, %p25
    %p27 = scmp.ne.s32.totalorder %s19, %s22
    %p28 = scmp.eq.s32.totalorder %s9, 0
    %p29 = por %p27, %p28
    %p30 = scmp.ne.s32.totalorder %s19, %s22
    %p31 = scmp.eq.s32.totalorder %s14, 1
    %p32 = por %p30, %p31
    %p33 = scmp.ne.s32.totalorder %s22, %s23
    %p34 = scmp.eq.s32.totalorder %s14, 0
    %p35 = por %p33, %p34
    %p36 = scmp.ne.s32.totalorder %s22, %s23
    %p37 = scmp.eq.s32.totalorder %s15, 1
    %p38 = por %p36, %p37
    %p40 = scmp.ne.s32.totalorder %s23, %s39
    %p41 = scmp.eq.s32.totalorder %s15, 0
    %p42 = por %p40, %p41
    %s44 = sadd.s32 %s43, 1
    %p47 = scmp.eq.s32.totalorder %s9, 1
    %p48 = scmp.ne.s32.totalorder %s43, %s45
    %p49 = scmp.eq.s32.totalorder %s9, 0
    %p50 = por %p48, %p49
    %p51 = scmp.ne.s32.totalorder %s43, %s45
    %p52 = scmp.eq.s32.totalorder %s14, 1
    %p53 = por %p51, %p52
    %p54 = scmp.ne.s32.totalorder %s45, %s46
    %p55 = scmp.eq.s32.totalorder %s14, 0
    %p56 = por %p54, %p55
    %p57 = scmp.ne.s32.totalorder %s45, %s46
    %p58 = scmp.eq.s32.totalorder %s15, 1
    %p59 = por %p57, %p58
    %p61 = scmp.ne.s32.totalorder %s46, %s60
    %p62 = scmp.eq.s32.totalorder %s15, 0
    %p63 = por %p61, %p62
    %s65 = sadd.s32 %s64, 1
    %p68 = scmp.eq.s32.totalorder %s9, 1
    %p69 = scmp.ne.s32.totalorder %s64, %s66
    %p70 = scmp.eq.s32.totalorder %s9, 0
    %p71 = por %p69, %p70
    %p72 = scmp.ne.s32.totalorder %s64, %s66
    %p73 = scmp.eq.s32.totalorder %s14, 1
    %p74 = por %p72, %p73
    %p75 = scmp.ne.s32.totalorder %s66, %s67
    %p76 = scmp.eq.s32.totalorder %s14, 0
    %p77 = por %p75, %p76
    %p78 = scmp.ne.s32.totalorder %s66, %s67
    %p79 = scmp.eq.s32.totalorder %s15, 1
    %p80 = por %p78, %p79
    %p82 = scmp.ne.s32.totalorder %s67, %s81
    %p83 = scmp.eq.s32.totalorder %s15, 0
    %p84 = por %p82, %p83
    %s85 = ssub.s32 %s9, %s16
    %p86 = scmp.eq.s32.totalorder %s85, 0
    %s88 = sadd.s32 %s87, 1
    %s89 = scalar_select %p86, %s87, %s88
    %p92 = pneg %p86
    %p93 = scmp.eq.s32.totalorder %s9, 1
    %p94 = por %p92, %p93
    %p95 = scmp.ne.s32.totalorder %s87, %s90
    %p96 = scmp.eq.s32.totalorder %s9, 0
    %p97 = por %p95, %p96
    %p98 = scmp.ne.s32.totalorder %s87, %s90
    %p99 = scmp.eq.s32.totalorder %s14, 1
    %p100 = por %p98, %p99
    %p101 = scmp.ne.s32.totalorder %s90, %s91
    %p102 = scmp.eq.s32.totalorder %s14, 0
    %p103 = por %p101, %p102
    %p104 = scmp.ne.s32.totalorder %s90, %s91
    %p105 = scmp.eq.s32.totalorder %s15, 1
    %p106 = por %p104, %p105
    %p108 = scmp.ne.s32.totalorder %s91, %s107
    %p109 = scmp.eq.s32.totalorder %s15, 0
    %p110 = por %p108, %p109
    %p111 = scmp.le.s32.totalorder 1, %s9
    %p112 = scmp.lt.s32.totalorder %s9, 3
    %p113 = pnand %p111, %p112
    %p114 = pneg %p113
    // Predicated region
    $region9: #{unet_forward.16} parent=5 // pred_check
      _
    $region10: #{unet_forward.16} parent=5 // pred_check_branch
      %116 = sbr.rel (%p113) target = $region12
    $region11: #{unet_forward.16} parent=5 // pred_region
      %s117 = ssub.s32 %s9, 1
      // Predicated region
      $region13: #{unet_forward.16} parent=11 // pred_check
        %p118 = pneg %p56
      $region14: #{unet_forward.16} parent=11 // pred_check_branch
        %120 = sbr.rel (%p118) target = $region16
      $region15: #{unet_forward.16} parent=11 // pred_region
        _
      $region16: #{unet_forward.16} parent=11 // pred_fallthru
        _
      // Predicated region
      $region17: #{unet_forward.16} parent=11 // pred_check
        %p121 = pneg %p77
      $region18: #{unet_forward.16} parent=11 // pred_check_branch
        %123 = sbr.rel (%p121) target = $region20
      $region19: #{unet_forward.16} parent=11 // pred_region
        _
      $region20: #{unet_forward.16} parent=11 // pred_fallthru
        _
    $region12: #{unet_forward.16} parent=5 // pred_fallthru
      _
    %p124 = scmp.lt.s32.totalorder %s9, 2
    // Predicated region
    $region21: #{unet_forward.16} parent=5 // pred_check
      %p125 = pneg %p124
    $region22: #{unet_forward.16} parent=5 // pred_check_branch
      %127 = sbr.rel (%p125) target = $region24
    $region23: #{unet_forward.16} parent=5 // pred_region
      // Predicated region
      $region25: #{unet_forward.16} parent=23 // pred_check
        %p128 = pneg %p29
      $region26: #{unet_forward.16} parent=23 // pred_check_branch
        %130 = sbr.rel (%p128) target = $region28
      $region27: #{unet_forward.16} parent=23 // pred_region
        %p131 = scmp.lt.s32.totalorder %s9, 1
        %s132 = scalar_select %p131, %s9, 1
        %s133 = smul.addr %s132, 3
        %s134 = smul.addr %s133, 4
        %s135 = scalar_lea.vmem %s0, %s134
      $region28: #{unet_forward.16} parent=23 // pred_fallthru
        _
    $region24: #{unet_forward.16} parent=5 // pred_fallthru
      _
    %p136 = scmp.le.s32.totalorder 1, %s9
    %p137 = scmp.lt.s32.totalorder %s9, 3
    %p138 = pnand %p136, %p137
    %p139 = pneg %p138
    // Predicated region
    $region29: #{unet_forward.16} parent=5 // pred_check
      _
    $region30: #{unet_forward.16} parent=5 // pred_check_branch
      %141 = sbr.rel (%p138) target = $region32
    $region31: #{unet_forward.16} parent=5 // pred_region
      %s142 = ssub.s32 %s9, 1
      %p143 = scmp.lt.s32.totalorder %s14, 1
      %s144 = scalar_select %p143, %s14, 1
      %s145 = smul.addr %s144, 3
      %s146 = smul.addr %s145, 4
      %s147 = scalar_lea.vmem %s0, %s146
      %p148 = pneg %p35
      %p149 = pneg %p32
      %p150 = pneg %p56
      %p151 = pneg %p53
      %p152 = pneg %p77
      %p153 = pneg %p74
      %p154 = pneg %p103
      %p155 = pneg %p100
      %p156 = scmp.lt.s32.totalorder %s14, 1
      %s157 = scalar_select %p156, %s14, 1
      %s158 = smul.addr %s157, 8
      %s159 = scalar_lea.vmem %s3, %s158
      %p160 = scmp.lt.s32.totalorder %s14, 1
      %s161 = scalar_select %p160, %s14, 1
      %s162 = smul.addr %s161, 3
      %s163 = smul.addr %s162, 4
      %s164 = scalar_lea.vmem %s0, %s163
      %p165 = scmp.lt.s32.totalorder %s14, 1
      %s166 = scalar_select %p165, %s14, 1
      %s167 = smul.addr %s166, 8
      %s168 = scalar_lea.vmem %s3, %s167
      %v170 = vld [vmem:[%s164] sm:$0xff]
      %v171 = vld [vmem:[%s164 + $0x8] sm:$0xf]
      %v172 = vld [vmem:[%s1] sm:$0xf]
      %v173 = vld [vmem:[%s1 + $0x4] sm:$0xf]
      %v174 = vld [vmem:[%s1 + $0x8] sm:$0xf]
      %v175 = vld [vmem:[%s1 + $0xc] sm:$0xf]
      %v176 = vld [vmem:[%s1 + $0x10] sm:$0xf]
      %v177 = vld [vmem:[%s1 + $0x14] sm:$0xf]
      %v178 = vld [vmem:[%s1 + $0x18] sm:$0xf]
      %v179 = vld [vmem:[%s1 + $0x1c] sm:$0xf]
      %v180 = vld [vmem:[%s1 + $0x20] sm:$0xf]
      %v181 = vld [vmem:[%s1 + $0x24] sm:$0xf]
      %v182 = vld [vmem:[%s1 + $0x28] sm:$0xf]
      %v183 = vld [vmem:[%s1 + $0x2c] sm:$0xf]
      %v184 = vld [vmem:[%s1 + $0x30] sm:$0xf]
      %v185 = vld [vmem:[%s1 + $0x34] sm:$0xf]
      %v186 = vld [vmem:[%s1 + $0x38] sm:$0xf]
      %v187 = vld [vmem:[%s1 + $0x3c] sm:$0xf]
      %v188 = vld [vmem:[%s1 + $0x40] sm:$0xf]
      %v189 = vld [vmem:[%s1 + $0x44] sm:$0xf]
      %v190 = vld [vmem:[%s1 + $0x48] sm:$0xf]
      %v191 = vld [vmem:[%s1 + $0x4c] sm:$0xf]
      %v192 = vld [vmem:[%s1 + $0x50] sm:$0xf]
      %v193 = vld [vmem:[%s1 + $0x54] sm:$0xf]
      %v194 = vld [vmem:[%s1 + $0x58] sm:$0xf]
      %v195 = vld [vmem:[%s1 + $0x5c] sm:$0xf]
      %v196 = vld [vmem:[%s1 + $0x60] sm:$0xf]
      %v197 = vld [vmem:[%s1 + $0x64] sm:$0xf]
      %v198 = vld [vmem:[%s1 + $0x68] sm:$0xf]
      %v199 = vld [vmem:[%s1 + $0x6c] sm:$0xf]
      %v200 = vld [vmem:[%s1 + $0x70] sm:$0xf]
      %v201 = vld [vmem:[%s1 + $0x74] sm:$0xf]
      %v202 = vld [vmem:[%s1 + $0x78] sm:$0xf]
      %v203 = vld [vmem:[%s1 + $0x7c] sm:$0xf]
      %v204 = vld [vmem:[%s1 + $0x80] sm:$0xf]
      %v205 = vld [vmem:[%s1 + $0x84] sm:$0xf]
      %v206 = vld [vmem:[%s1 + $0x88] sm:$0xf]
      %v207 = vld [vmem:[%s1 + $0x8c] sm:$0xf]
      %v208 = vld [vmem:[%s1 + $0x90] sm:$0xf]
      %v209 = vld [vmem:[%s1 + $0x94] sm:$0xf]
      %v210 = vld [vmem:[%s1 + $0x98] sm:$0xf]
      %v211 = vld [vmem:[%s1 + $0x9c] sm:$0xf]
      %v212 = vld [vmem:[%s1 + $0xa0] sm:$0xf]
      %v213 = vld [vmem:[%s1 + $0xa4] sm:$0xf]
      %v214 = vld [vmem:[%s1 + $0xa8] sm:$0xf]
      %v215 = vld [vmem:[%s1 + $0xac] sm:$0xf]
      %v216 = vld [vmem:[%s1 + $0xb0] sm:$0xf]
      %v217 = vld [vmem:[%s1 + $0xb4] sm:$0xf]
      %v218 = vld [vmem:[%s1 + $0xb8] sm:$0xf]
      %v219 = vld [vmem:[%s1 + $0xbc] sm:$0xf]
      %v220 = vld [vmem:[%s2] sm:$0x1]
      %v222 = vlaneseq
      %v223 = vshrl.u32 %v222, 7
      %v224 = vsub.s32 0, %v223
      %v225 = vrot.slane %v220, %v224
      %v229 = vunpack.c.l.b16 %v170
      %v230 = vunpack.c.h.b16 %v170
      %v231 = vunpack.c.l.b16 %v171
      %v232 = vpack.c.b16 %v229, %v229
      %v233 = vpack.c.b16 %v230, %v230
      %v234 = vpack.c.b16 %v231, %v231
      %v286 = vunpack.c.l.b16 %v172
      %v287 = vunpack.c.l.b16 %v173
      %v288 = vunpack.c.l.b16 %v174
      %v289 = vunpack.c.l.b16 %v175
      %v290 = vunpack.c.l.b16 %v176
      %v291 = vunpack.c.l.b16 %v177
      %v292 = vunpack.c.l.b16 %v178
      %v293 = vunpack.c.l.b16 %v179
      %v294 = vunpack.c.l.b16 %v180
      %v295 = vunpack.c.l.b16 %v181
      %v296 = vunpack.c.l.b16 %v182
      %v297 = vunpack.c.l.b16 %v183
      %v298 = vunpack.c.l.b16 %v184
      %v299 = vunpack.c.l.b16 %v185
      %v300 = vunpack.c.l.b16 %v186
      %v301 = vunpack.c.l.b16 %v187
      %v302 = vunpack.c.l.b16 %v188
      %v303 = vunpack.c.l.b16 %v189
      %v304 = vunpack.c.l.b16 %v190
      %v305 = vunpack.c.l.b16 %v191
      %v306 = vunpack.c.l.b16 %v192
      %v307 = vunpack.c.l.b16 %v193
      %v308 = vunpack.c.l.b16 %v194
      %v309 = vunpack.c.l.b16 %v195
      %v310 = vunpack.c.l.b16 %v196
      %v311 = vunpack.c.l.b16 %v197
      %v312 = vunpack.c.l.b16 %v198
      %v313 = vunpack.c.l.b16 %v199
      %v314 = vunpack.c.l.b16 %v200
      %v315 = vunpack.c.l.b16 %v201
      %v316 = vunpack.c.l.b16 %v202
      %v317 = vunpack.c.l.b16 %v203
      %v318 = vunpack.c.l.b16 %v204
      %v319 = vunpack.c.l.b16 %v205
      %v320 = vunpack.c.l.b16 %v206
      %v321 = vunpack.c.l.b16 %v207
      %v322 = vunpack.c.l.b16 %v208
      %v323 = vunpack.c.l.b16 %v209
      %v324 = vunpack.c.l.b16 %v210
      %v325 = vunpack.c.l.b16 %v211
      %v326 = vunpack.c.l.b16 %v212
      %v327 = vunpack.c.l.b16 %v213
      %v328 = vunpack.c.l.b16 %v214
      %v329 = vunpack.c.l.b16 %v215
      %v330 = vunpack.c.l.b16 %v216
      %v331 = vunpack.c.l.b16 %v217
      %v332 = vunpack.c.l.b16 %v218
      %v333 = vunpack.c.l.b16 %v219
      %v334 = vpack.c.b16 %v287, %v286
      %v335 = vpack.c.b16 %v289, %v288
      %v336 = vpack.c.b16 %v291, %v290
      %v337 = vpack.c.b16 %v293, %v292
      %v338 = vpack.c.b16 %v295, %v294
      %v339 = vpack.c.b16 %v297, %v296
      %v340 = vpack.c.b16 %v299, %v298
      %v341 = vpack.c.b16 %v301, %v300
      %v342 = vpack.c.b16 %v303, %v302
      %v343 = vpack.c.b16 %v305, %v304
      %v344 = vpack.c.b16 %v307, %v306
      %v345 = vpack.c.b16 %v309, %v308
      %v346 = vpack.c.b16 %v311, %v310
      %v347 = vpack.c.b16 %v313, %v312
      %v348 = vpack.c.b16 %v315, %v314
      %v349 = vpack.c.b16 %v317, %v316
      %v350 = vpack.c.b16 %v319, %v318
      %v351 = vpack.c.b16 %v321, %v320
      %v352 = vpack.c.b16 %v323, %v322
      %v353 = vpack.c.b16 %v325, %v324
      %v354 = vpack.c.b16 %v327, %v326
      %v355 = vpack.c.b16 %v329, %v328
      %v356 = vpack.c.b16 %v331, %v330
      %v357 = vpack.c.b16 %v333, %v332
      %382 = vmatprep.subr.bf16.mxu0 0
      %383 = vmatpush1.bf16.msra.mxu0 %v334
      %384 = vmatprep.subr.bf16.mxu0 0
      %385 = vmatpush1.bf16.msra.mxu0 %v335
      %386 = vmatprep.subr.bf16.mxu0 0
      %387 = vmatpush1.bf16.msra.mxu0 %v336
      %388 = vmatprep.subr.bf16.mxu0 0
      %389 = vmatpush1.bf16.msra.mxu0 %v337
      %390 = vmatprep.subr.bf16.mxu0 0
      %391 = vmatpush1.bf16.msra.mxu0 %v338
      %392 = vmatprep.subr.bf16.mxu0 0
      %393 = vmatpush1.bf16.msra.mxu0 %v339
      %394 = vmatprep.subr.bf16.mxu0 0
      %395 = vmatpush1.bf16.msra.mxu0 %v340
      %396 = vmatprep.subr.bf16.mxu0 0
      %397 = vmatpush1.bf16.msra.mxu0 %v341
      %398 = vmatprep.subr.bf16.mxu0 0
      %399 = vmatpush1.bf16.msra.mxu0 %v342
      %400 = vmatprep.subr.bf16.mxu0 0
      %401 = vmatpush1.bf16.msra.mxu0 %v343
      %402 = vmatprep.subr.bf16.mxu0 0
      %403 = vmatpush1.bf16.msra.mxu0 %v344
      %404 = vmatprep.subr.bf16.mxu0 0
      %405 = vmatpush1.bf16.msra.mxu0 %v345
      %406 = vmatprep.subr.bf16.mxu0 0
      %407 = vmatpush1.bf16.msra.mxu0 %v346
      %408 = vmatprep.subr.bf16.mxu0 0
      %409 = vmatpush1.bf16.msra.mxu0 %v347
      %410 = vmatprep.subr.bf16.mxu0 0
      %411 = vmatpush1.bf16.msra.mxu0 %v348
      %412 = vmatprep.subr.bf16.mxu0 0
      %413 = vmatpush1.bf16.msra.mxu0 %v349
      %414 = vmatprep.mubr.bf16.mxu0 %v233
      %415 = vmatmul.mubr.bf16.gmra.mrb[0].mxu0 %v232
      %v416 = vpop.f32.mrb[0].mxu0
      %v417 = vadd.f32 %v225, %v416
      %v418 = vpop.f32.mrb[0].mxu0
      %v419 = vpop.f32.mrb[0].mxu0
      %v420 = vpop.f32.mrb[0].mxu0
      %421 = vdwg.mxu0
      %422 = vmatprep.subr.bf16.mxu0 0
      %423 = vmatpush1.bf16.msra.mxu0 %v350
      %424 = vmatprep.subr.bf16.mxu0 0
      %425 = vmatpush1.bf16.msra.mxu0 %v351
      %426 = vmatprep.subr.bf16.mxu0 0
      %427 = vmatpush1.bf16.msra.mxu0 %v352
      %428 = vmatprep.subr.bf16.mxu0 0
      %429 = vmatpush1.bf16.msra.mxu0 %v353
      %430 = vmatprep.subr.bf16.mxu0 0
      %431 = vmatpush1.bf16.msra.mxu0 %v354
      %432 = vmatprep.subr.bf16.mxu0 0
      %433 = vmatpush1.bf16.msra.mxu0 %v355
      %434 = vmatprep.subr.bf16.mxu0 0
      %435 = vmatpush1.bf16.msra.mxu0 %v356
      %436 = vmatprep.subr.bf16.mxu0 0
      %437 = vmatpush1.bf16.msra.mxu0 %v357
      %438 = vmatprep.subr.bf16.mxu0 0
      %439 = vmatpush1.bf16.msra.mxu0 0
      %440 = vmatprep.subr.bf16.mxu0 0
      %441 = vmatpush1.bf16.msra.mxu0 0
      %442 = vmatprep.subr.bf16.mxu0 0
      %443 = vmatpush1.bf16.msra.mxu0 0
      %444 = vmatprep.subr.bf16.mxu0 0
      %445 = vmatpush1.bf16.msra.mxu0 0
      %446 = vmatprep.subr.bf16.mxu0 0
      %447 = vmatpush1.bf16.msra.mxu0 0
      %448 = vmatprep.subr.bf16.mxu0 0
      %449 = vmatpush1.bf16.msra.mxu0 0
      %450 = vmatprep.subr.bf16.mxu0 0
      %451 = vmatpush1.bf16.msra.mxu0 0
      %452 = vmatprep.subr.bf16.mxu0 0
      %453 = vmatpush1.bf16.msra.mxu0 0
      %454 = vmatprep.mubr.bf16.mxu0 0
      %455 = vmatmul.mubr.bf16.gmra.mrb[0].mxu0 %v234
      %v456 = vpop.f32.mrb[0].mxu0
      %v457 = vadd.f32 %v417, %v456
      %v458 = vpop.f32.mrb[0].mxu0
      %v459 = vpop.f32.mrb[0].mxu0
      %v460 = vpop.f32.mrb[0].mxu0
      %461 = vdwg.mxu0
      %vm462 = vcmp.ge.f32.partialorder %v457, 0.0
      %v463 = vmul.f32 %v457, 0.2
      %v464 = vsel %vm462, %v457, %v463
      %465 = vst [vmem:[%s168] sm:$0xff] %v464
      %p466 = scmp.lt.s32.totalorder %s14, 1
      %s467 = scalar_select %p466, %s14, 1
      %s468 = smul.addr %s467, 8
      %s469 = scalar_lea.vmem %s3, %s468
      // Predicated region
      $region33: #{unet_forward.16} parent=31 // pred_check
        %p470 = pneg %p100
      $region34: #{unet_forward.16} parent=31 // pred_check_branch
        %472 = sbr.rel (%p470) target = $region36
      $region35: #{unet_forward.16} parent=31 // pred_region
        _
      $region36: #{unet_forward.16} parent=31 // pred_fallthru
        _
    $region32: #{unet_forward.16} parent=5 // pred_fallthru
      _
    %p473 = scmp.le.s32.totalorder 2, %s9
    // Predicated region
    $region37: #{unet_forward.16} parent=5 // pred_check
      %p474 = pneg %p473
    $region38: #{unet_forward.16} parent=5 // pred_check_branch
      %476 = sbr.rel (%p474) target = $region40
    $region39: #{unet_forward.16} parent=5 // pred_region
      %s477 = ssub.s32 %s9, 2
      // Predicated region
      $region41: #{unet_forward.16} parent=39 // pred_check
        %p478 = pneg %p106
      $region42: #{unet_forward.16} parent=39 // pred_check_branch
        %480 = sbr.rel (%p478) target = $region44
      $region43: #{unet_forward.16} parent=39 // pred_region
        %p481 = scmp.lt.s32.totalorder %s15, 1
        %s482 = scalar_select %p481, %s15, 1
        %s483 = smul.addr %s482, 8
        %s484 = scalar_lea.vmem %s3, %s483
      $region44: #{unet_forward.16} parent=39 // pred_fallthru
        _
    $region40: #{unet_forward.16} parent=5 // pred_fallthru
      _
  $region6: #{unet_forward.16} parent=0 // loop_footer
    %s13 = sadd.s32 1, %s9
  $region7: #{unet_forward.16} parent=0 // loop_footer_branch
    %8 = sbr.rel target = $region3
  $region8: #{unet_forward.16} parent=0 // loop_exit
    _

// kernel: unet_forward.17
$region0: #{unet_forward.17}
  #allocation0 [shape = 'u32[]', space=smem, size = 0x4, offset = 0x4, fixed_abs, tag = 'smem constant byte address 0x4 - core index']
  #allocation1 [shape = 'u32[144,128]{1,0:T(1,128)}', space=vmem, size = 0x12000, scoped, tag = 'internal scratch']
  %s0 = inlined_call_operand.vmem [shape: bf16[2,4,384], index: 0, kind: input, shape index: {}]
  %s1 = inlined_call_operand.vmem [shape: bf16[384,128], index: 1, kind: input, shape index: {}]
  %s2 = inlined_call_operand.vmem [shape: f32[1,128], index: 2, kind: input, shape index: {}]
  %s3 = inlined_call_operand.vmem [shape: f32[2,4,128], index: 3, kind: output, shape index: {}]
  %s4 = sld [smem:[#allocation0]]
  $region45: #{unet_forward.17} parent=0
    _
  %s6 = ssub.s32 1, %s4
  %s7 = scalar_select 0, %s6, %s4
  loop: start=0, step=1, limit=4
  $region2: #{unet_forward.17} parent=0 // loop_pre_header
    _
  $region3: #{unet_forward.17} parent=0 // loop_header
    %s9 = sphi 0, %s13
    %p10 = scmp.ge.s32.totalorder %s9, 4
    %s19 = sphi 0, %s21
    %s22 = sphi 0, %s19
    %s23 = sphi 0, %s22
    %s39 = sphi 0, %s23
    %s43 = sphi 0, %s43
    %s45 = sphi 0, %s43
    %s46 = sphi 0, %s45
    %s60 = sphi 0, %s46
    %s64 = sphi 0, %s64
    %s66 = sphi 0, %s64
    %s67 = sphi 0, %s66
    %s81 = sphi 0, %s67
    %s87 = sphi 0, %s89
    %s90 = sphi 0, %s87
    %s91 = sphi 0, %s90
    %s107 = sphi 0, %s91
  $region4: #{unet_forward.17} parent=0 // loop_header_branch
    %12 = sbr.rel (%p10) target = $region8
  $region5: #{unet_forward.17} parent=0 // loop_body
    %s14 = ssub.s32 %s9, 1
    %s15 = ssub.s32 %s9, 2
    %s16 = sadd.s32 %s9, 1
    %s17 = ssub.s32 %s9, %s16
    %p18 = scmp.eq.s32.totalorder %s17, 0
    %s20 = sadd.s32 %s19, 1
    %s21 = scalar_select %p18, %s19, %s20
    %p24 = pneg %p18
    %p25 = scmp.eq.s32.totalorder %s9, 1
    %p26 = por %p24, %p25
    %p27 = scmp.ne.s32.totalorder %s19, %s22
    %p28 = scmp.eq.s32.totalorder %s9, 0
    %p29 = por %p27, %p28
    %p30 = scmp.ne.s32.totalorder %s19, %s22
    %p31 = scmp.eq.s32.totalorder %s14, 1
    %p32 = por %p30, %p31
    %p33 = scmp.ne.s32.totalorder %s22, %s23
    %p34 = scmp.eq.s32.totalorder %s14, 0
    %p35 = por %p33, %p34
    %p36 = scmp.ne.s32.totalorder %s22, %s23
    %p37 = scmp.eq.s32.totalorder %s15, 1
    %p38 = por %p36, %p37
    %p40 = scmp.ne.s32.totalorder %s23, %s39
    %p41 = scmp.eq.s32.totalorder %s15, 0
    %p42 = por %p40, %p41
    %s44 = sadd.s32 %s43, 1
    %p47 = scmp.eq.s32.totalorder %s9, 1
    %p48 = scmp.ne.s32.totalorder %s43, %s45
    %p49 = scmp.eq.s32.totalorder %s9, 0
    %p50 = por %p48, %p49
    %p51 = scmp.ne.s32.totalorder %s43, %s45
    %p52 = scmp.eq.s32.totalorder %s14, 1
    %p53 = por %p51, %p52
    %p54 = scmp.ne.s32.totalorder %s45, %s46
    %p55 = scmp.eq.s32.totalorder %s14, 0
    %p56 = por %p54, %p55
    %p57 = scmp.ne.s32.totalorder %s45, %s46
    %p58 = scmp.eq.s32.totalorder %s15, 1
    %p59 = por %p57, %p58
    %p61 = scmp.ne.s32.totalorder %s46, %s60
    %p62 = scmp.eq.s32.totalorder %s15, 0
    %p63 = por %p61, %p62
    %s65 = sadd.s32 %s64, 1
    %p68 = scmp.eq.s32.totalorder %s9, 1
    %p69 = scmp.ne.s32.totalorder %s64, %s66
    %p70 = scmp.eq.s32.totalorder %s9, 0
    %p71 = por %p69, %p70
    %p72 = scmp.ne.s32.totalorder %s64, %s66
    %p73 = scmp.eq.s32.totalorder %s14, 1
    %p74 = por %p72, %p73
    %p75 = scmp.ne.s32.totalorder %s66, %s67
    %p76 = scmp.eq.s32.totalorder %s14, 0
    %p77 = por %p75, %p76
    %p78 = scmp.ne.s32.totalorder %s66, %s67
    %p79 = scmp.eq.s32.totalorder %s15, 1
    %p80 = por %p78, %p79
    %p82 = scmp.ne.s32.totalorder %s67, %s81
    %p83 = scmp.eq.s32.totalorder %s15, 0
    %p84 = por %p82, %p83
    %s85 = ssub.s32 %s9, %s16
    %p86 = scmp.eq.s32.totalorder %s85, 0
    %s88 = sadd.s32 %s87, 1
    %s89 = scalar_select %p86, %s87, %s88
    %p92 = pneg %p86
    %p93 = scmp.eq.s32.totalorder %s9, 1
    %p94 = por %p92, %p93
    %p95 = scmp.ne.s32.totalorder %s87, %s90
    %p96 = scmp.eq.s32.totalorder %s9, 0
    %p97 = por %p95, %p96
    %p98 = scmp.ne.s32.totalorder %s87, %s90
    %p99 = scmp.eq.s32.totalorder %s14, 1
    %p100 = por %p98, %p99
    %p101 = scmp.ne.s32.totalorder %s90, %s91
    %p102 = scmp.eq.s32.totalorder %s14, 0
    %p103 = por %p101, %p102
    %p104 = scmp.ne.s32.totalorder %s90, %s91
    %p105 = scmp.eq.s32.totalorder %s15, 1
    %p106 = por %p104, %p105
    %p108 = scmp.ne.s32.totalorder %s91, %s107
    %p109 = scmp.eq.s32.totalorder %s15, 0
    %p110 = por %p108, %p109
    %p111 = scmp.le.s32.totalorder 1, %s9
    %p112 = scmp.lt.s32.totalorder %s9, 3
    %p113 = pnand %p111, %p112
    %p114 = pneg %p113
    // Predicated region
    $region9: #{unet_forward.17} parent=5 // pred_check
      _
    $region10: #{unet_forward.17} parent=5 // pred_check_branch
      %116 = sbr.rel (%p113) target = $region12
    $region11: #{unet_forward.17} parent=5 // pred_region
      %s117 = ssub.s32 %s9, 1
      // Predicated region
      $region13: #{unet_forward.17} parent=11 // pred_check
        %p118 = pneg %p56
      $region14: #{unet_forward.17} parent=11 // pred_check_branch
        %120 = sbr.rel (%p118) target = $region16
      $region15: #{unet_forward.17} parent=11 // pred_region
        _
      $region16: #{unet_forward.17} parent=11 // pred_fallthru
        _
      // Predicated region
      $region17: #{unet_forward.17} parent=11 // pred_check
        %p121 = pneg %p77
      $region18: #{unet_forward.17} parent=11 // pred_check_branch
        %123 = sbr.rel (%p121) target = $region20
      $region19: #{unet_forward.17} parent=11 // pred_region
        _
      $region20: #{unet_forward.17} parent=11 // pred_fallthru
        _
    $region12: #{unet_forward.17} parent=5 // pred_fallthru
      _
    %p124 = scmp.lt.s32.totalorder %s9, 2
    // Predicated region
    $region21: #{unet_forward.17} parent=5 // pred_check
      %p125 = pneg %p124
    $region22: #{unet_forward.17} parent=5 // pred_check_branch
      %127 = sbr.rel (%p125) target = $region24
    $region23: #{unet_forward.17} parent=5 // pred_region
      // Predicated region
      $region25: #{unet_forward.17} parent=23 // pred_check
        %p128 = pneg %p29
      $region26: #{unet_forward.17} parent=23 // pred_check_branch
        %130 = sbr.rel (%p128) target = $region28
      $region27: #{unet_forward.17} parent=23 // pred_region
        %p131 = scmp.lt.s32.totalorder %s9, 1
        %s132 = scalar_select %p131, %s9, 1
        %s133 = smul.addr %s132, 3
        %s134 = smul.addr %s133, 2
        %s135 = scalar_lea.vmem %s0, %s134
      $region28: #{unet_forward.17} parent=23 // pred_fallthru
        _
    $region24: #{unet_forward.17} parent=5 // pred_fallthru
      _
    %p136 = scmp.le.s32.totalorder 1, %s9
    %p137 = scmp.lt.s32.totalorder %s9, 3
    %p138 = pnand %p136, %p137
    %p139 = pneg %p138
    // Predicated region
    $region29: #{unet_forward.17} parent=5 // pred_check
      _
    $region30: #{unet_forward.17} parent=5 // pred_check_branch
      %141 = sbr.rel (%p138) target = $region32
    $region31: #{unet_forward.17} parent=5 // pred_region
      %s142 = ssub.s32 %s9, 1
      %p143 = scmp.lt.s32.totalorder %s14, 1
      %s144 = scalar_select %p143, %s14, 1
      %s145 = smul.addr %s144, 3
      %s146 = smul.addr %s145, 2
      %s147 = scalar_lea.vmem %s0, %s146
      %p148 = pneg %p35
      %p149 = pneg %p32
      %p150 = pneg %p56
      %p151 = pneg %p53
      %p152 = pneg %p77
      %p153 = pneg %p74
      %p154 = pneg %p103
      %p155 = pneg %p100
      %p156 = scmp.lt.s32.totalorder %s14, 1
      %s157 = scalar_select %p156, %s14, 1
      %s158 = smul.addr %s157, 4
      %s159 = scalar_lea.vmem %s3, %s158
      %p160 = scmp.lt.s32.totalorder %s14, 1
      %s161 = scalar_select %p160, %s14, 1
      %s162 = smul.addr %s161, 3
      %s163 = smul.addr %s162, 2
      %s164 = scalar_lea.vmem %s0, %s163
      %p165 = scmp.lt.s32.totalorder %s14, 1
      %s166 = scalar_select %p165, %s14, 1
      %s167 = smul.addr %s166, 4
      %s168 = scalar_lea.vmem %s3, %s167
      %v170 = vld [vmem:[%s164] sm:$0x3f]
      %v171 = vld [vmem:[%s1] sm:$0xf]
      %v172 = vld [vmem:[%s1 + $0x4] sm:$0xf]
      %v173 = vld [vmem:[%s1 + $0x8] sm:$0xf]
      %v174 = vld [vmem:[%s1 + $0xc] sm:$0xf]
      %v175 = vld [vmem:[%s1 + $0x10] sm:$0xf]
      %v176 = vld [vmem:[%s1 + $0x14] sm:$0xf]
      %v177 = vld [vmem:[%s1 + $0x18] sm:$0xf]
      %v178 = vld [vmem:[%s1 + $0x1c] sm:$0xf]
      %v179 = vld [vmem:[%s1 + $0x20] sm:$0xf]
      %v180 = vld [vmem:[%s1 + $0x24] sm:$0xf]
      %v181 = vld [vmem:[%s1 + $0x28] sm:$0xf]
      %v182 = vld [vmem:[%s1 + $0x2c] sm:$0xf]
      %v183 = vld [vmem:[%s1 + $0x30] sm:$0xf]
      %v184 = vld [vmem:[%s1 + $0x34] sm:$0xf]
      %v185 = vld [vmem:[%s1 + $0x38] sm:$0xf]
      %v186 = vld [vmem:[%s1 + $0x3c] sm:$0xf]
      %v187 = vld [vmem:[%s1 + $0x40] sm:$0xf]
      %v188 = vld [vmem:[%s1 + $0x44] sm:$0xf]
      %v189 = vld [vmem:[%s1 + $0x48] sm:$0xf]
      %v190 = vld [vmem:[%s1 + $0x4c] sm:$0xf]
      %v191 = vld [vmem:[%s1 + $0x50] sm:$0xf]
      %v192 = vld [vmem:[%s1 + $0x54] sm:$0xf]
      %v193 = vld [vmem:[%s1 + $0x58] sm:$0xf]
      %v194 = vld [vmem:[%s1 + $0x5c] sm:$0xf]
      %v195 = vld [vmem:[%s1 + $0x60] sm:$0xf]
      %v196 = vld [vmem:[%s1 + $0x64] sm:$0xf]
      %v197 = vld [vmem:[%s1 + $0x68] sm:$0xf]
      %v198 = vld [vmem:[%s1 + $0x6c] sm:$0xf]
      %v199 = vld [vmem:[%s1 + $0x70] sm:$0xf]
      %v200 = vld [vmem:[%s1 + $0x74] sm:$0xf]
      %v201 = vld [vmem:[%s1 + $0x78] sm:$0xf]
      %v202 = vld [vmem:[%s1 + $0x7c] sm:$0xf]
      %v203 = vld [vmem:[%s1 + $0x80] sm:$0xf]
      %v204 = vld [vmem:[%s1 + $0x84] sm:$0xf]
      %v205 = vld [vmem:[%s1 + $0x88] sm:$0xf]
      %v206 = vld [vmem:[%s1 + $0x8c] sm:$0xf]
      %v207 = vld [vmem:[%s1 + $0x90] sm:$0xf]
      %v208 = vld [vmem:[%s1 + $0x94] sm:$0xf]
      %v209 = vld [vmem:[%s1 + $0x98] sm:$0xf]
      %v210 = vld [vmem:[%s1 + $0x9c] sm:$0xf]
      %v211 = vld [vmem:[%s1 + $0xa0] sm:$0xf]
      %v212 = vld [vmem:[%s1 + $0xa4] sm:$0xf]
      %v213 = vld [vmem:[%s1 + $0xa8] sm:$0xf]
      %v214 = vld [vmem:[%s1 + $0xac] sm:$0xf]
      %v215 = vld [vmem:[%s1 + $0xb0] sm:$0xf]
      %v216 = vld [vmem:[%s1 + $0xb4] sm:$0xf]
      %v217 = vld [vmem:[%s1 + $0xb8] sm:$0xf]
      %v218 = vld [vmem:[%s1 + $0xbc] sm:$0xf]
      %v219 = vld [vmem:[%s2] sm:$0x1]
      %v221 = vlaneseq
      %v222 = vshrl.u32 %v221, 7
      %v223 = vsub.s32 0, %v222
      %v224 = vrot.slane %v219, %v223
      %v227 = vcombine.high %v170, %v170
      %v229 = vunpack.c.l.s4 1983009808
      %v230 = vunpack.c.0.s8 %v229
      %v231 = vlaneseq
      %v232 = vshrl.u32 %v231, 7
      %v233 = vsub.s32 %v230, %v232
      %v234 = vrot.slane %v170, %v233
      %v236 = vunpack.c.l.s4 1983009808
      %v237 = vunpack.c.0.s8 %v236
      %v238 = vlaneseq
      %v239 = vshrl.u32 %v238, 7
      %v240 = vsub.s32 %v237, %v239
      %v241 = vrot.slane %v227, %v240
      %v242 = vcombine.high %v234, %v234
      %v294 = vunpack.c.l.b16 %v171
      %v295 = vunpack.c.l.b16 %v172
      %v296 = vunpack.c.l.b16 %v173
      %v297 = vunpack.c.l.b16 %v174
      %v298 = vunpack.c.l.b16 %v175
      %v299 = vunpack.c.l.b16 %v176
      %v300 = vunpack.c.l.b16 %v177
      %v301 = vunpack.c.l.b16 %v178
      %v302 = vunpack.c.l.b16 %v179
      %v303 = vunpack.c.l.b16 %v180
      %v304 = vunpack.c.l.b16 %v181
      %v305 = vunpack.c.l.b16 %v182
      %v306 = vunpack.c.l.b16 %v183
      %v307 = vunpack.c.l.b16 %v184
      %v308 = vunpack.c.l.b16 %v185
      %v309 = vunpack.c.l.b16 %v186
      %v310 = vunpack.c.l.b16 %v187
      %v311 = vunpack.c.l.b16 %v188
      %v312 = vunpack.c.l.b16 %v189
      %v313 = vunpack.c.l.b16 %v190
      %v314 = vunpack.c.l.b16 %v191
      %v315 = vunpack.c.l.b16 %v192
      %v316 = vunpack.c.l.b16 %v193
      %v317 = vunpack.c.l.b16 %v194
      %v318 = vunpack.c.l.b16 %v195
      %v319 = vunpack.c.l.b16 %v196
      %v320 = vunpack.c.l.b16 %v197
      %v321 = vunpack.c.l.b16 %v198
      %v322 = vunpack.c.l.b16 %v199
      %v323 = vunpack.c.l.b16 %v200
      %v324 = vunpack.c.l.b16 %v201
      %v325 = vunpack.c.l.b16 %v202
      %v326 = vunpack.c.l.b16 %v203
      %v327 = vunpack.c.l.b16 %v204
      %v328 = vunpack.c.l.b16 %v205
      %v329 = vunpack.c.l.b16 %v206
      %v330 = vunpack.c.l.b16 %v207
      %v331 = vunpack.c.l.b16 %v208
      %v332 = vunpack.c.l.b16 %v209
      %v333 = vunpack.c.l.b16 %v210
      %v334 = vunpack.c.l.b16 %v211
      %v335 = vunpack.c.l.b16 %v212
      %v336 = vunpack.c.l.b16 %v213
      %v337 = vunpack.c.l.b16 %v214
      %v338 = vunpack.c.l.b16 %v215
      %v339 = vunpack.c.l.b16 %v216
      %v340 = vunpack.c.l.b16 %v217
      %v341 = vunpack.c.l.b16 %v218
      %v342 = vpack.c.b16 %v295, %v294
      %v343 = vpack.c.b16 %v297, %v296
      %v344 = vpack.c.b16 %v299, %v298
      %v345 = vpack.c.b16 %v301, %v300
      %v346 = vpack.c.b16 %v303, %v302
      %v347 = vpack.c.b16 %v305, %v304
      %v348 = vpack.c.b16 %v307, %v306
      %v349 = vpack.c.b16 %v309, %v308
      %v350 = vpack.c.b16 %v311, %v310
      %v351 = vpack.c.b16 %v313, %v312
      %v352 = vpack.c.b16 %v315, %v314
      %v353 = vpack.c.b16 %v317, %v316
      %v354 = vpack.c.b16 %v319, %v318
      %v355 = vpack.c.b16 %v321, %v320
      %v356 = vpack.c.b16 %v323, %v322
      %v357 = vpack.c.b16 %v325, %v324
      %v358 = vpack.c.b16 %v327, %v326
      %v359 = vpack.c.b16 %v329, %v328
      %v360 = vpack.c.b16 %v331, %v330
      %v361 = vpack.c.b16 %v333, %v332
      %v362 = vpack.c.b16 %v335, %v334
      %v363 = vpack.c.b16 %v337, %v336
      %v364 = vpack.c.b16 %v339, %v338
      %v365 = vpack.c.b16 %v341, %v340
      %390 = vmatprep.subr.bf16.mxu0 0
      %391 = vmatpush1.bf16.msra.mxu0 %v342
      %392 = vmatprep.subr.bf16.mxu0 0
      %393 = vmatpush1.bf16.msra.mxu0 %v343
      %394 = vmatprep.subr.bf16.mxu0 0
      %395 = vmatpush1.bf16.msra.mxu0 %v344
      %396 = vmatprep.subr.bf16.mxu0 0
      %397 = vmatpush1.bf16.msra.mxu0 %v345
      %398 = vmatprep.subr.bf16.mxu0 0
      %399 = vmatpush1.bf16.msra.mxu0 %v346
      %400 = vmatprep.subr.bf16.mxu0 0
      %401 = vmatpush1.bf16.msra.mxu0 %v347
      %402 = vmatprep.subr.bf16.mxu0 0
      %403 = vmatpush1.bf16.msra.mxu0 %v348
      %404 = vmatprep.subr.bf16.mxu0 0
      %405 = vmatpush1.bf16.msra.mxu0 %v349
      %406 = vmatprep.subr.bf16.mxu0 0
      %407 = vmatpush1.bf16.msra.mxu0 %v350
      %408 = vmatprep.subr.bf16.mxu0 0
      %409 = vmatpush1.bf16.msra.mxu0 %v351
      %410 = vmatprep.subr.bf16.mxu0 0
      %411 = vmatpush1.bf16.msra.mxu0 %v352
      %412 = vmatprep.subr.bf16.mxu0 0
      %413 = vmatpush1.bf16.msra.mxu0 %v353
      %414 = vmatprep.subr.bf16.mxu0 0
      %415 = vmatpush1.bf16.msra.mxu0 %v354
      %416 = vmatprep.subr.bf16.mxu0 0
      %417 = vmatpush1.bf16.msra.mxu0 %v355
      %418 = vmatprep.subr.bf16.mxu0 0
      %419 = vmatpush1.bf16.msra.mxu0 %v356
      %420 = vmatprep.subr.bf16.mxu0 0
      %421 = vmatpush1.bf16.msra.mxu0 %v357
      %422 = vmatprep.mubr.bf16.mxu0 %v242
      %423 = vmatmul.mubr.bf16.gmra.mrb[0].mxu0 %v234
      %v424 = vpop.f32.mrb[0].mxu0
      %v425 = vadd.f32 %v224, %v424
      %v426 = vpop.f32.mrb[0].mxu0
      %v427 = vpop.f32.mrb[0].mxu0
      %v428 = vpop.f32.mrb[0].mxu0
      %429 = vdwg.mxu0
      %430 = vmatprep.subr.bf16.mxu0 0
      %431 = vmatpush1.bf16.msra.mxu0 %v358
      %432 = vmatprep.subr.bf16.mxu0 0
      %433 = vmatpush1.bf16.msra.mxu0 %v359
      %434 = vmatprep.subr.bf16.mxu0 0
      %435 = vmatpush1.bf16.msra.mxu0 %v360
      %436 = vmatprep.subr.bf16.mxu0 0
      %437 = vmatpush1.bf16.msra.mxu0 %v361
      %438 = vmatprep.subr.bf16.mxu0 0
      %439 = vmatpush1.bf16.msra.mxu0 %v362
      %440 = vmatprep.subr.bf16.mxu0 0
      %441 = vmatpush1.bf16.msra.mxu0 %v363
      %442 = vmatprep.subr.bf16.mxu0 0
      %443 = vmatpush1.bf16.msra.mxu0 %v364
      %444 = vmatprep.subr.bf16.mxu0 0
      %445 = vmatpush1.bf16.msra.mxu0 %v365
      %446 = vmatprep.subr.bf16.mxu0 0
      %447 = vmatpush1.bf16.msra.mxu0 0
      %448 = vmatprep.subr.bf16.mxu0 0
      %449 = vmatpush1.bf16.msra.mxu0 0
      %450 = vmatprep.subr.bf16.mxu0 0
      %451 = vmatpush1.bf16.msra.mxu0 0
      %452 = vmatprep.subr.bf16.mxu0 0
      %453 = vmatpush1.bf16.msra.mxu0 0
      %454 = vmatprep.subr.bf16.mxu0 0
      %455 = vmatpush1.bf16.msra.mxu0 0
      %456 = vmatprep.subr.bf16.mxu0 0
      %457 = vmatpush1.bf16.msra.mxu0 0
      %458 = vmatprep.subr.bf16.mxu0 0
      %459 = vmatpush1.bf16.msra.mxu0 0
      %460 = vmatprep.subr.bf16.mxu0 0
      %461 = vmatpush1.bf16.msra.mxu0 0
      %462 = vmatprep.mubr.bf16.mxu0 0
      %463 = vmatmul.mubr.bf16.gmra.mrb[0].mxu0 %v241
      %v464 = vpop.f32.mrb[0].mxu0
      %v465 = vadd.f32 %v425, %v464
      %v466 = vpop.f32.mrb[0].mxu0
      %v467 = vpop.f32.mrb[0].mxu0
      %v468 = vpop.f32.mrb[0].mxu0
      %469 = vdwg.mxu0
      %vm470 = vcmp.ge.f32.partialorder %v465, 0.0
      %v471 = vmul.f32 %v465, 0.2
      %v472 = vsel %vm470, %v465, %v471
      %473 = vst [vmem:[%s168] sm:$0xf] %v472
      %p474 = scmp.lt.s32.totalorder %s14, 1
      %s475 = scalar_select %p474, %s14, 1
      %s476 = smul.addr %s475, 4
      %s477 = scalar_lea.vmem %s3, %s476
      // Predicated region
      $region33: #{unet_forward.17} parent=31 // pred_check
        %p478 = pneg %p100
      $region34: #{unet_forward.17} parent=31 // pred_check_branch
        %480 = sbr.rel (%p478) target = $region36
      $region35: #{unet_forward.17} parent=31 // pred_region
        _
      $region36: #{unet_forward.17} parent=31 // pred_fallthru
        _
    $region32: #{unet_forward.17} parent=5 // pred_fallthru
      _
    %p481 = scmp.le.s32.totalorder 2, %s9
    // Predicated region
    $region37: #{unet_forward.17} parent=5 // pred_check
      %p482 = pneg %p481
    $region38: #{unet_forward.17} parent=5 // pred_check_branch
      %484 = sbr.rel (%p482) target = $region40
    $region39: #{unet_forward.17} parent=5 // pred_region
      %s485 = ssub.s32 %s9, 2
      // Predicated region
      $region41: #{unet_forward.17} parent=39 // pred_check
        %p486 = pneg %p106
      $region42: #{unet_forward.17} parent=39 // pred_check_branch
        %488 = sbr.rel (%p486) target = $region44
      $region43: #{unet_forward.17} parent=39 // pred_region
        %p489 = scmp.lt.s32.totalorder %s15, 1
        %s490 = scalar_select %p489, %s15, 1
        %s491 = smul.addr %s490, 4
        %s492 = scalar_lea.vmem %s3, %s491
      $region44: #{unet_forward.17} parent=39 // pred_fallthru
        _
    $region40: #{unet_forward.17} parent=5 // pred_fallthru
      _
  $region6: #{unet_forward.17} parent=0 // loop_footer
    %s13 = sadd.s32 1, %s9
  $region7: #{unet_forward.17} parent=0 // loop_footer_branch
    %8 = sbr.rel target = $region3
  $region8: #{unet_forward.17} parent=0 // loop_exit
    _

// kernel: unet_forward.18
$region0: #{unet_forward.18}
  #allocation0 [shape = 'u32[]', space=smem, size = 0x4, offset = 0x4, fixed_abs, tag = 'smem constant byte address 0x4 - core index']
  #allocation1 [shape = 'u32[144,128]{1,0:T(1,128)}', space=vmem, size = 0x12000, scoped, tag = 'internal scratch']
  %s0 = inlined_call_operand.vmem [shape: bf16[2,4,256], index: 0, kind: input, shape index: {}]
  %s1 = inlined_call_operand.vmem [shape: bf16[2,4,256], index: 1, kind: input, shape index: {}]
  %s2 = inlined_call_operand.vmem [shape: bf16[256,128], index: 2, kind: input, shape index: {}]
  %s3 = inlined_call_operand.vmem [shape: bf16[256,128], index: 3, kind: input, shape index: {}]
  %s4 = inlined_call_operand.vmem [shape: f32[1,128], index: 4, kind: input, shape index: {}]
  %s5 = inlined_call_operand.vmem [shape: f32[2,4,128], index: 5, kind: input, shape index: {}]
  %s6 = inlined_call_operand.vmem [shape: f32[2,4,128], index: 6, kind: input, shape index: {}]
  %s7 = inlined_call_operand.vmem [shape: f32[2,4,128], index: 7, kind: output, shape index: {0}]
  %s8 = inlined_call_operand.vmem [shape: f32[2,4,128], index: 8, kind: output, shape index: {1}]
  %9 = xla_tuple %s7, %s8
  %s10 = sld [smem:[#allocation0]]
  $region69: #{unet_forward.18} parent=0
    _
  %s12 = ssub.s32 1, %s10
  %s13 = scalar_select 0, %s12, %s10
  loop: start=0, step=1, limit=4
  $region2: #{unet_forward.18} parent=0 // loop_pre_header
    _
  $region3: #{unet_forward.18} parent=0 // loop_header
    %s15 = sphi 0, %s19
    %p16 = scmp.ge.s32.totalorder %s15, 4
    %s25 = sphi 0, %s27
    %s28 = sphi 0, %s25
    %s29 = sphi 0, %s28
    %s45 = sphi 0, %s29
    %s51 = sphi 0, %s53
    %s54 = sphi 0, %s51
    %s55 = sphi 0, %s54
    %s71 = sphi 0, %s55
    %s75 = sphi 0, %s75
    %s77 = sphi 0, %s75
    %s78 = sphi 0, %s77
    %s92 = sphi 0, %s78
    %s96 = sphi 0, %s96
    %s98 = sphi 0, %s96
    %s99 = sphi 0, %s98
    %s113 = sphi 0, %s99
    %s117 = sphi 0, %s117
    %s119 = sphi 0, %s117
    %s120 = sphi 0, %s119
    %s134 = sphi 0, %s120
    %s140 = sphi 0, %s142
    %s143 = sphi 0, %s140
    %s144 = sphi 0, %s143
    %s160 = sphi 0, %s144
    %s166 = sphi 0, %s168
    %s169 = sphi 0, %s166
    %s170 = sphi 0, %s169
    %s186 = sphi 0, %s170
    %s192 = sphi 0, %s194
    %s195 = sphi 0, %s192
    %s196 = sphi 0, %s195
    %s212 = sphi 0, %s196
    %s218 = sphi 0, %s220
    %s221 = sphi 0, %s218
    %s222 = sphi 0, %s221
    %s238 = sphi 0, %s222
  $region4: #{unet_forward.18} parent=0 // loop_header_branch
    %18 = sbr.rel (%p16) target = $region8
  $region5: #{unet_forward.18} parent=0 // loop_body
    %s20 = ssub.s32 %s15, 1
    %s21 = ssub.s32 %s15, 2
    %s22 = sadd.s32 %s15, 1
    %s23 = ssub.s32 %s15, %s22
    %p24 = scmp.eq.s32.totalorder %s23, 0
    %s26 = sadd.s32 %s25, 1
    %s27 = scalar_select %p24, %s25, %s26
    %p30 = pneg %p24
    %p31 = scmp.eq.s32.totalorder %s15, 1
    %p32 = por %p30, %p31
    %p33 = scmp.ne.s32.totalorder %s25, %s28
    %p34 = scmp.eq.s32.totalorder %s15, 0
    %p35 = por %p33, %p34
    %p36 = scmp.ne.s32.totalorder %s25, %s28
    %p37 = scmp.eq.s32.totalorder %s20, 1
    %p38 = por %p36, %p37
    %p39 = scmp.ne.s32.totalorder %s28, %s29
    %p40 = scmp.eq.s32.totalorder %s20, 0
    %p41 = por %p39, %p40
    %p42 = scmp.ne.s32.totalorder %s28, %s29
    %p43 = scmp.eq.s32.totalorder %s21, 1
    %p44 = por %p42, %p43
    %p46 = scmp.ne.s32.totalorder %s29, %s45
    %p47 = scmp.eq.s32.totalorder %s21, 0
    %p48 = por %p46, %p47
    %s49 = ssub.s32 %s15, %s22
    %p50 = scmp.eq.s32.totalorder %s49, 0
    %s52 = sadd.s32 %s51, 1
    %s53 = scalar_select %p50, %s51, %s52
    %p56 = pneg %p50
    %p57 = scmp.eq.s32.totalorder %s15, 1
    %p58 = por %p56, %p57
    %p59 = scmp.ne.s32.totalorder %s51, %s54
    %p60 = scmp.eq.s32.totalorder %s15, 0
    %p61 = por %p59, %p60
    %p62 = scmp.ne.s32.totalorder %s51, %s54
    %p63 = scmp.eq.s32.totalorder %s20, 1
    %p64 = por %p62, %p63
    %p65 = scmp.ne.s32.totalorder %s54, %s55
    %p66 = scmp.eq.s32.totalorder %s20, 0
    %p67 = por %p65, %p66
    %p68 = scmp.ne.s32.totalorder %s54, %s55
    %p69 = scmp.eq.s32.totalorder %s21, 1
    %p70 = por %p68, %p69
    %p72 = scmp.ne.s32.totalorder %s55, %s71
    %p73 = scmp.eq.s32.totalorder %s21, 0
    %p74 = por %p72, %p73
    %s76 = sadd.s32 %s75, 1
    %p79 = scmp.eq.s32.totalorder %s15, 1
    %p80 = scmp.ne.s32.totalorder %s75, %s77
    %p81 = scmp.eq.s32.totalorder %s15, 0
    %p82 = por %p80, %p81
    %p83 = scmp.ne.s32.totalorder %s75, %s77
    %p84 = scmp.eq.s32.totalorder %s20, 1
    %p85 = por %p83, %p84
    %p86 = scmp.ne.s32.totalorder %s77, %s78
    %p87 = scmp.eq.s32.totalorder %s20, 0
    %p88 = por %p86, %p87
    %p89 = scmp.ne.s32.totalorder %s77, %s78
    %p90 = scmp.eq.s32.totalorder %s21, 1
    %p91 = por %p89, %p90
    %p93 = scmp.ne.s32.totalorder %s78, %s92
    %p94 = scmp.eq.s32.totalorder %s21, 0
    %p95 = por %p93, %p94
    %s97 = sadd.s32 %s96, 1
    %p100 = scmp.eq.s32.totalorder %s15, 1
    %p101 = scmp.ne.s32.totalorder %s96, %s98
    %p102 = scmp.eq.s32.totalorder %s15, 0
    %p103 = por %p101, %p102
    %p104 = scmp.ne.s32.totalorder %s96, %s98
    %p105 = scmp.eq.s32.totalorder %s20, 1
    %p106 = por %p104, %p105
    %p107 = scmp.ne.s32.totalorder %s98, %s99
    %p108 = scmp.eq.s32.totalorder %s20, 0
    %p109 = por %p107, %p108
    %p110 = scmp.ne.s32.totalorder %s98, %s99
    %p111 = scmp.eq.s32.totalorder %s21, 1
    %p112 = por %p110, %p111
    %p114 = scmp.ne.s32.totalorder %s99, %s113
    %p115 = scmp.eq.s32.totalorder %s21, 0
    %p116 = por %p114, %p115
    %s118 = sadd.s32 %s117, 1
    %p121 = scmp.eq.s32.totalorder %s15, 1
    %p122 = scmp.ne.s32.totalorder %s117, %s119
    %p123 = scmp.eq.s32.totalorder %s15, 0
    %p124 = por %p122, %p123
    %p125 = scmp.ne.s32.totalorder %s117, %s119
    %p126 = scmp.eq.s32.totalorder %s20, 1
    %p127 = por %p125, %p126
    %p128 = scmp.ne.s32.totalorder %s119, %s120
    %p129 = scmp.eq.s32.totalorder %s20, 0
    %p130 = por %p128, %p129
    %p131 = scmp.ne.s32.totalorder %s119, %s120
    %p132 = scmp.eq.s32.totalorder %s21, 1
    %p133 = por %p131, %p132
    %p135 = scmp.ne.s32.totalorder %s120, %s134
    %p136 = scmp.eq.s32.totalorder %s21, 0
    %p137 = por %p135, %p136
    %s138 = ssub.s32 %s15, %s22
    %p139 = scmp.eq.s32.totalorder %s138, 0
    %s141 = sadd.s32 %s140, 1
    %s142 = scalar_select %p139, %s140, %s141
    %p145 = pneg %p139
    %p146 = scmp.eq.s32.totalorder %s15, 1
    %p147 = por %p145, %p146
    %p148 = scmp.ne.s32.totalorder %s140, %s143
    %p149 = scmp.eq.s32.totalorder %s15, 0
    %p150 = por %p148, %p149
    %p151 = scmp.ne.s32.totalorder %s140, %s143
    %p152 = scmp.eq.s32.totalorder %s20, 1
    %p153 = por %p151, %p152
    %p154 = scmp.ne.s32.totalorder %s143, %s144
    %p155 = scmp.eq.s32.totalorder %s20, 0
    %p156 = por %p154, %p155
    %p157 = scmp.ne.s32.totalorder %s143, %s144
    %p158 = scmp.eq.s32.totalorder %s21, 1
    %p159 = por %p157, %p158
    %p161 = scmp.ne.s32.totalorder %s144, %s160
    %p162 = scmp.eq.s32.totalorder %s21, 0
    %p163 = por %p161, %p162
    %s164 = ssub.s32 %s15, %s22
    %p165 = scmp.eq.s32.totalorder %s164, 0
    %s167 = sadd.s32 %s166, 1
    %s168 = scalar_select %p165, %s166, %s167
    %p171 = pneg %p165
    %p172 = scmp.eq.s32.totalorder %s15, 1
    %p173 = por %p171, %p172
    %p174 = scmp.ne.s32.totalorder %s166, %s169
    %p175 = scmp.eq.s32.totalorder %s15, 0
    %p176 = por %p174, %p175
    %p177 = scmp.ne.s32.totalorder %s166, %s169
    %p178 = scmp.eq.s32.totalorder %s20, 1
    %p179 = por %p177, %p178
    %p180 = scmp.ne.s32.totalorder %s169, %s170
    %p181 = scmp.eq.s32.totalorder %s20, 0
    %p182 = por %p180, %p181
    %p183 = scmp.ne.s32.totalorder %s169, %s170
    %p184 = scmp.eq.s32.totalorder %s21, 1
    %p185 = por %p183, %p184
    %p187 = scmp.ne.s32.totalorder %s170, %s186
    %p188 = scmp.eq.s32.totalorder %s21, 0
    %p189 = por %p187, %p188
    %s190 = ssub.s32 %s15, %s22
    %p191 = scmp.eq.s32.totalorder %s190, 0
    %s193 = sadd.s32 %s192, 1
    %s194 = scalar_select %p191, %s192, %s193
    %p197 = pneg %p191
    %p198 = scmp.eq.s32.totalorder %s15, 1
    %p199 = por %p197, %p198
    %p200 = scmp.ne.s32.totalorder %s192, %s195
    %p201 = scmp.eq.s32.totalorder %s15, 0
    %p202 = por %p200, %p201
    %p203 = scmp.ne.s32.totalorder %s192, %s195
    %p204 = scmp.eq.s32.totalorder %s20, 1
    %p205 = por %p203, %p204
    %p206 = scmp.ne.s32.totalorder %s195, %s196
    %p207 = scmp.eq.s32.totalorder %s20, 0
    %p208 = por %p206, %p207
    %p209 = scmp.ne.s32.totalorder %s195, %s196
    %p210 = scmp.eq.s32.totalorder %s21, 1
    %p211 = por %p209, %p210
    %p213 = scmp.ne.s32.totalorder %s196, %s212
    %p214 = scmp.eq.s32.totalorder %s21, 0
    %p215 = por %p213, %p214
    %s216 = ssub.s32 %s15, %s22
    %p217 = scmp.eq.s32.totalorder %s216, 0
    %s219 = sadd.s32 %s218, 1
    %s220 = scalar_select %p217, %s218, %s219
    %p223 = pneg %p217
    %p224 = scmp.eq.s32.totalorder %s15, 1
    %p225 = por %p223, %p224
    %p226 = scmp.ne.s32.totalorder %s218, %s221
    %p227 = scmp.eq.s32.totalorder %s15, 0
    %p228 = por %p226, %p227
    %p229 = scmp.ne.s32.totalorder %s218, %s221
    %p230 = scmp.eq.s32.totalorder %s20, 1
    %p231 = por %p229, %p230
    %p232 = scmp.ne.s32.totalorder %s221, %s222
    %p233 = scmp.eq.s32.totalorder %s20, 0
    %p234 = por %p232, %p233
    %p235 = scmp.ne.s32.totalorder %s221, %s222
    %p236 = scmp.eq.s32.totalorder %s21, 1
    %p237 = por %p235, %p236
    %p239 = scmp.ne.s32.totalorder %s222, %s238
    %p240 = scmp.eq.s32.totalorder %s21, 0
    %p241 = por %p239, %p240
    %p242 = scmp.le.s32.totalorder 1, %s15
    %p243 = scmp.lt.s32.totalorder %s15, 3
    %p244 = pnand %p242, %p243
    %p245 = pneg %p244
    // Predicated region
    $region9: #{unet_forward.18} parent=5 // pred_check
      _
    $region10: #{unet_forward.18} parent=5 // pred_check_branch
      %247 = sbr.rel (%p244) target = $region12
    $region11: #{unet_forward.18} parent=5 // pred_region
      %s248 = ssub.s32 %s15, 1
      // Predicated region
      $region13: #{unet_forward.18} parent=11 // pred_check
        %p249 = pneg %p88
      $region14: #{unet_forward.18} parent=11 // pred_check_branch
        %251 = sbr.rel (%p249) target = $region16
      $region15: #{unet_forward.18} parent=11 // pred_region
        _
      $region16: #{unet_forward.18} parent=11 // pred_fallthru
        _
      // Predicated region
      $region17: #{unet_forward.18} parent=11 // pred_check
        %p252 = pneg %p109
      $region18: #{unet_forward.18} parent=11 // pred_check_branch
        %254 = sbr.rel (%p252) target = $region20
      $region19: #{unet_forward.18} parent=11 // pred_region
        _
      $region20: #{unet_forward.18} parent=11 // pred_fallthru
        _
      // Predicated region
      $region21: #{unet_forward.18} parent=11 // pred_check
        %p255 = pneg %p130
      $region22: #{unet_forward.18} parent=11 // pred_check_branch
        %257 = sbr.rel (%p255) target = $region24
      $region23: #{unet_forward.18} parent=11 // pred_region
        _
      $region24: #{unet_forward.18} parent=11 // pred_fallthru
        _
    $region12: #{unet_forward.18} parent=5 // pred_fallthru
      _
    %p258 = scmp.lt.s32.totalorder %s15, 2
    // Predicated region
    $region25: #{unet_forward.18} parent=5 // pred_check
      %p259 = pneg %p258
    $region26: #{unet_forward.18} parent=5 // pred_check_branch
      %261 = sbr.rel (%p259) target = $region28
    $region27: #{unet_forward.18} parent=5 // pred_region
      // Predicated region
      $region29: #{unet_forward.18} parent=27 // pred_check
        %p262 = pneg %p35
      $region30: #{unet_forward.18} parent=27 // pred_check_branch
        %264 = sbr.rel (%p262) target = $region32
      $region31: #{unet_forward.18} parent=27 // pred_region
        %p265 = scmp.lt.s32.totalorder %s15, 1
        %s266 = scalar_select %p265, %s15, 1
        %s267 = smul.addr %s266, 2
        %s268 = smul.addr %s267, 2
        %s269 = scalar_lea.vmem %s0, %s268
      $region32: #{unet_forward.18} parent=27 // pred_fallthru
        _
      // Predicated region
      $region33: #{unet_forward.18} parent=27 // pred_check
        %p270 = pneg %p61
      $region34: #{unet_forward.18} parent=27 // pred_check_branch
        %272 = sbr.rel (%p270) target = $region36
      $region35: #{unet_forward.18} parent=27 // pred_region
        %p273 = scmp.lt.s32.totalorder %s15, 1
        %s274 = scalar_select %p273, %s15, 1
        %s275 = smul.addr %s274, 2
        %s276 = smul.addr %s275, 2
        %s277 = scalar_lea.vmem %s1, %s276
      $region36: #{unet_forward.18} parent=27 // pred_fallthru
        _
      // Predicated region
      $region37: #{unet_forward.18} parent=27 // pred_check
        %p278 = pneg %p150
      $region38: #{unet_forward.18} parent=27 // pred_check_branch
        %280 = sbr.rel (%p278) target = $region40
      $region39: #{unet_forward.18} parent=27 // pred_region
        %p281 = scmp.lt.s32.totalorder %s15, 1
        %s282 = scalar_select %p281, %s15, 1
        %s283 = smul.addr %s282, 4
        %s284 = scalar_lea.vmem %s5, %s283
      $region40: #{unet_forward.18} parent=27 // pred_fallthru
        _
      // Predicated region
      $region41: #{unet_forward.18} parent=27 // pred_check
        %p285 = pneg %p176
      $region42: #{unet_forward.18} parent=27 // pred_check_branch
        %287 = sbr.rel (%p285) target = $region44
      $region43: #{unet_forward.18} parent=27 // pred_region
        %p288 = scmp.lt.s32.totalorder %s15, 1
        %s289 = scalar_select %p288, %s15, 1
        %s290 = smul.addr %s289, 4
        %s291 = scalar_lea.vmem %s6, %s290
      $region44: #{unet_forward.18} parent=27 // pred_fallthru
        _
    $region28: #{unet_forward.18} parent=5 // pred_fallthru
      _
    %p292 = scmp.le.s32.totalorder 1, %s15
    %p293 = scmp.lt.s32.totalorder %s15, 3
    %p294 = pnand %p292, %p293
    %p295 = pneg %p294
    // Predicated region
    $region45: #{unet_forward.18} parent=5 // pred_check
      _
    $region46: #{unet_forward.18} parent=5 // pred_check_branch
      %297 = sbr.rel (%p294) target = $region48
    $region47: #{unet_forward.18} parent=5 // pred_region
      %s298 = ssub.s32 %s15, 1
      %p299 = scmp.lt.s32.totalorder %s20, 1
      %s300 = scalar_select %p299, %s20, 1
      %s301 = smul.addr %s300, 2
      %s302 = smul.addr %s301, 2
      %s303 = scalar_lea.vmem %s0, %s302
      %p304 = pneg %p41
      %p305 = pneg %p38
      %p306 = scmp.lt.s32.totalorder %s20, 1
      %s307 = scalar_select %p306, %s20, 1
      %s308 = smul.addr %s307, 2
      %s309 = smul.addr %s308, 2
      %s310 = scalar_lea.vmem %s1, %s309
      %p311 = pneg %p67
      %p312 = pneg %p64
      %p313 = pneg %p88
      %p314 = pneg %p85
      %p315 = pneg %p109
      %p316 = pneg %p106
      %p317 = pneg %p130
      %p318 = pneg %p127
      %p319 = scmp.lt.s32.totalorder %s20, 1
      %s320 = scalar_select %p319, %s20, 1
      %s321 = smul.addr %s320, 4
      %s322 = scalar_lea.vmem %s5, %s321
      %p323 = pneg %p156
      %p324 = pneg %p153
      %p325 = scmp.lt.s32.totalorder %s20, 1
      %s326 = scalar_select %p325, %s20, 1
      %s327 = smul.addr %s326, 4
      %s328 = scalar_lea.vmem %s6, %s327
      %p329 = pneg %p182
      %p330 = pneg %p179
      %p331 = pneg %p208
      %p332 = pneg %p205
      %p333 = scmp.lt.s32.totalorder %s20, 1
      %s334 = scalar_select %p333, %s20, 1
      %s335 = smul.addr %s334, 4
      %s336 = scalar_lea.vmem %s7, %s335
      %p337 = pneg %p234
      %p338 = pneg %p231
      %p339 = scmp.lt.s32.totalorder %s20, 1
      %s340 = scalar_select %p339, %s20, 1
      %s341 = smul.addr %s340, 4
      %s342 = scalar_lea.vmem %s8, %s341
      %p343 = scmp.lt.s32.totalorder %s20, 1
      %s344 = scalar_select %p343, %s20, 1
      %s345 = smul.addr %s344, 2
      %s346 = smul.addr %s345, 2
      %s347 = scalar_lea.vmem %s0, %s346
      %p348 = scmp.lt.s32.totalorder %s20, 1
      %s349 = scalar_select %p348, %s20, 1
      %s350 = smul.addr %s349, 2
      %s351 = smul.addr %s350, 2
      %s352 = scalar_lea.vmem %s1, %s351
      %p353 = scmp.lt.s32.totalorder %s20, 1
      %s354 = scalar_select %p353, %s20, 1
      %s355 = smul.addr %s354, 4
      %s356 = scalar_lea.vmem %s5, %s355
      %p357 = scmp.lt.s32.totalorder %s20, 1
      %s358 = scalar_select %p357, %s20, 1
      %s359 = smul.addr %s358, 4
      %s360 = scalar_lea.vmem %s6, %s359
      %p361 = scmp.lt.s32.totalorder %s20, 1
      %s362 = scalar_select %p361, %s20, 1
      %s363 = smul.addr %s362, 4
      %s364 = scalar_lea.vmem %s7, %s363
      %p365 = scmp.lt.s32.totalorder %s20, 1
      %s366 = scalar_select %p365, %s20, 1
      %s367 = smul.addr %s366, 4
      %s368 = scalar_lea.vmem %s8, %s367
      %v370 = vld [vmem:[%s347] sm:$0xf]
      %v371 = vld [vmem:[%s2] sm:$0xf]
      %v372 = vld [vmem:[%s2 + $0x4] sm:$0xf]
      %v373 = vld [vmem:[%s2 + $0x8] sm:$0xf]
      %v374 = vld [vmem:[%s2 + $0xc] sm:$0xf]
      %v375 = vld [vmem:[%s2 + $0x10] sm:$0xf]
      %v376 = vld [vmem:[%s2 + $0x14] sm:$0xf]
      %v377 = vld [vmem:[%s2 + $0x18] sm:$0xf]
      %v378 = vld [vmem:[%s2 + $0x1c] sm:$0xf]
      %v379 = vld [vmem:[%s2 + $0x20] sm:$0xf]
      %v380 = vld [vmem:[%s2 + $0x24] sm:$0xf]
      %v381 = vld [vmem:[%s2 + $0x28] sm:$0xf]
      %v382 = vld [vmem:[%s2 + $0x2c] sm:$0xf]
      %v383 = vld [vmem:[%s2 + $0x30] sm:$0xf]
      %v384 = vld [vmem:[%s2 + $0x34] sm:$0xf]
      %v385 = vld [vmem:[%s2 + $0x38] sm:$0xf]
      %v386 = vld [vmem:[%s2 + $0x3c] sm:$0xf]
      %v387 = vld [vmem:[%s2 + $0x40] sm:$0xf]
      %v388 = vld [vmem:[%s2 + $0x44] sm:$0xf]
      %v389 = vld [vmem:[%s2 + $0x48] sm:$0xf]
      %v390 = vld [vmem:[%s2 + $0x4c] sm:$0xf]
      %v391 = vld [vmem:[%s2 + $0x50] sm:$0xf]
      %v392 = vld [vmem:[%s2 + $0x54] sm:$0xf]
      %v393 = vld [vmem:[%s2 + $0x58] sm:$0xf]
      %v394 = vld [vmem:[%s2 + $0x5c] sm:$0xf]
      %v395 = vld [vmem:[%s2 + $0x60] sm:$0xf]
      %v396 = vld [vmem:[%s2 + $0x64] sm:$0xf]
      %v397 = vld [vmem:[%s2 + $0x68] sm:$0xf]
      %v398 = vld [vmem:[%s2 + $0x6c] sm:$0xf]
      %v399 = vld [vmem:[%s2 + $0x70] sm:$0xf]
      %v400 = vld [vmem:[%s2 + $0x74] sm:$0xf]
      %v401 = vld [vmem:[%s2 + $0x78] sm:$0xf]
      %v402 = vld [vmem:[%s2 + $0x7c] sm:$0xf]
      %v403 = vld [vmem:[%s4] sm:$0x1]
      %v405 = vlaneseq
      %v406 = vshrl.u32 %v405, 7
      %v407 = vsub.s32 0, %v406
      %v408 = vrot.slane %v403, %v407
      %v412 = vunpack.c.l.s4 1983009808
      %v413 = vunpack.c.0.s8 %v412
      %v414 = vlaneseq
      %v415 = vshrl.u32 %v414, 7
      %v416 = vsub.s32 %v413, %v415
      %v417 = vrot.slane %v370, %v416
      %v418 = vcombine.high %v417, %v417
      %v453 = vunpack.c.l.b16 %v371
      %v454 = vunpack.c.l.b16 %v372
      %v455 = vunpack.c.l.b16 %v373
      %v456 = vunpack.c.l.b16 %v374
      %v457 = vunpack.c.l.b16 %v375
      %v458 = vunpack.c.l.b16 %v376
      %v459 = vunpack.c.l.b16 %v377
      %v460 = vunpack.c.l.b16 %v378
      %v461 = vunpack.c.l.b16 %v379
      %v462 = vunpack.c.l.b16 %v380
      %v463 = vunpack.c.l.b16 %v381
      %v464 = vunpack.c.l.b16 %v382
      %v465 = vunpack.c.l.b16 %v383
      %v466 = vunpack.c.l.b16 %v384
      %v467 = vunpack.c.l.b16 %v385
      %v468 = vunpack.c.l.b16 %v386
      %v469 = vunpack.c.l.b16 %v387
      %v470 = vunpack.c.l.b16 %v388
      %v471 = vunpack.c.l.b16 %v389
      %v472 = vunpack.c.l.b16 %v390
      %v473 = vunpack.c.l.b16 %v391
      %v474 = vunpack.c.l.b16 %v392
      %v475 = vunpack.c.l.b16 %v393
      %v476 = vunpack.c.l.b16 %v394
      %v477 = vunpack.c.l.b16 %v395
      %v478 = vunpack.c.l.b16 %v396
      %v479 = vunpack.c.l.b16 %v397
      %v480 = vunpack.c.l.b16 %v398
      %v481 = vunpack.c.l.b16 %v399
      %v482 = vunpack.c.l.b16 %v400
      %v483 = vunpack.c.l.b16 %v401
      %v484 = vunpack.c.l.b16 %v402
      %v485 = vpack.c.b16 %v454, %v453
      %v486 = vpack.c.b16 %v456, %v455
      %v487 = vpack.c.b16 %v458, %v457
      %v488 = vpack.c.b16 %v460, %v459
      %v489 = vpack.c.b16 %v462, %v461
      %v490 = vpack.c.b16 %v464, %v463
      %v491 = vpack.c.b16 %v466, %v465
      %v492 = vpack.c.b16 %v468, %v467
      %v493 = vpack.c.b16 %v470, %v469
      %v494 = vpack.c.b16 %v472, %v471
      %v495 = vpack.c.b16 %v474, %v473
      %v496 = vpack.c.b16 %v476, %v475
      %v497 = vpack.c.b16 %v478, %v477
      %v498 = vpack.c.b16 %v480, %v479
      %v499 = vpack.c.b16 %v482, %v481
      %v500 = vpack.c.b16 %v484, %v483
      %517 = vmatprep.subr.bf16.mxu0 0
      %518 = vmatpush1.bf16.msra.mxu0 %v485
      %519 = vmatprep.subr.bf16.mxu0 0
      %520 = vmatpush1.bf16.msra.mxu0 %v486
      %521 = vmatprep.subr.bf16.mxu0 0
      %522 = vmatpush1.bf16.msra.mxu0 %v487
      %523 = vmatprep.subr.bf16.mxu0 0
      %524 = vmatpush1.bf16.msra.mxu0 %v488
      %525 = vmatprep.subr.bf16.mxu0 0
      %526 = vmatpush1.bf16.msra.mxu0 %v489
      %527 = vmatprep.subr.bf16.mxu0 0
      %528 = vmatpush1.bf16.msra.mxu0 %v490
      %529 = vmatprep.subr.bf16.mxu0 0
      %530 = vmatpush1.bf16.msra.mxu0 %v491
      %531 = vmatprep.subr.bf16.mxu0 0
      %532 = vmatpush1.bf16.msra.mxu0 %v492
      %533 = vmatprep.subr.bf16.mxu0 0
      %534 = vmatpush1.bf16.msra.mxu0 %v493
      %535 = vmatprep.subr.bf16.mxu0 0
      %536 = vmatpush1.bf16.msra.mxu0 %v494
      %537 = vmatprep.subr.bf16.mxu0 0
      %538 = vmatpush1.bf16.msra.mxu0 %v495
      %539 = vmatprep.subr.bf16.mxu0 0
      %540 = vmatpush1.bf16.msra.mxu0 %v496
      %541 = vmatprep.subr.bf16.mxu0 0
      %542 = vmatpush1.bf16.msra.mxu0 %v497
      %543 = vmatprep.subr.bf16.mxu0 0
      %544 = vmatpush1.bf16.msra.mxu0 %v498
      %545 = vmatprep.subr.bf16.mxu0 0
      %546 = vmatpush1.bf16.msra.mxu0 %v499
      %547 = vmatprep.subr.bf16.mxu0 0
      %548 = vmatpush1.bf16.msra.mxu0 %v500
      %549 = vmatprep.mubr.bf16.mxu0 %v418
      %550 = vmatmul.mubr.bf16.gmra.mrb[0].mxu0 %v417
      %v551 = vpop.f32.mrb[0].mxu0
      %v552 = vadd.f32 %v408, %v551
      %v553 = vpop.f32.mrb[0].mxu0
      %v554 = vpop.f32.mrb[0].mxu0
      %v555 = vpop.f32.mrb[0].mxu0
      %556 = vdwg.mxu0
      %v557 = vld [vmem:[%s352] sm:$0xf]
      %v558 = vld [vmem:[%s3] sm:$0xf]
      %v559 = vld [vmem:[%s3 + $0x4] sm:$0xf]
      %v560 = vld [vmem:[%s3 + $0x8] sm:$0xf]
      %v561 = vld [vmem:[%s3 + $0xc] sm:$0xf]
      %v562 = vld [vmem:[%s3 + $0x10] sm:$0xf]
      %v563 = vld [vmem:[%s3 + $0x14] sm:$0xf]
      %v564 = vld [vmem:[%s3 + $0x18] sm:$0xf]
      %v565 = vld [vmem:[%s3 + $0x1c] sm:$0xf]
      %v566 = vld [vmem:[%s3 + $0x20] sm:$0xf]
      %v567 = vld [vmem:[%s3 + $0x24] sm:$0xf]
      %v568 = vld [vmem:[%s3 + $0x28] sm:$0xf]
      %v569 = vld [vmem:[%s3 + $0x2c] sm:$0xf]
      %v570 = vld [vmem:[%s3 + $0x30] sm:$0xf]
      %v571 = vld [vmem:[%s3 + $0x34] sm:$0xf]
      %v572 = vld [vmem:[%s3 + $0x38] sm:$0xf]
      %v573 = vld [vmem:[%s3 + $0x3c] sm:$0xf]
      %v574 = vld [vmem:[%s3 + $0x40] sm:$0xf]
      %v575 = vld [vmem:[%s3 + $0x44] sm:$0xf]
      %v576 = vld [vmem:[%s3 + $0x48] sm:$0xf]
      %v577 = vld [vmem:[%s3 + $0x4c] sm:$0xf]
      %v578 = vld [vmem:[%s3 + $0x50] sm:$0xf]
      %v579 = vld [vmem:[%s3 + $0x54] sm:$0xf]
      %v580 = vld [vmem:[%s3 + $0x58] sm:$0xf]
      %v581 = vld [vmem:[%s3 + $0x5c] sm:$0xf]
      %v582 = vld [vmem:[%s3 + $0x60] sm:$0xf]
      %v583 = vld [vmem:[%s3 + $0x64] sm:$0xf]
      %v584 = vld [vmem:[%s3 + $0x68] sm:$0xf]
      %v585 = vld [vmem:[%s3 + $0x6c] sm:$0xf]
      %v586 = vld [vmem:[%s3 + $0x70] sm:$0xf]
      %v587 = vld [vmem:[%s3 + $0x74] sm:$0xf]
      %v588 = vld [vmem:[%s3 + $0x78] sm:$0xf]
      %v589 = vld [vmem:[%s3 + $0x7c] sm:$0xf]
      %v592 = vunpack.c.l.s4 1983009808
      %v593 = vunpack.c.0.s8 %v592
      %v594 = vlaneseq
      %v595 = vshrl.u32 %v594, 7
      %v596 = vsub.s32 %v593, %v595
      %v597 = vrot.slane %v557, %v596
      %v598 = vcombine.high %v597, %v597
      %v633 = vunpack.c.l.b16 %v558
      %v634 = vunpack.c.l.b16 %v559
      %v635 = vunpack.c.l.b16 %v560
      %v636 = vunpack.c.l.b16 %v561
      %v637 = vunpack.c.l.b16 %v562
      %v638 = vunpack.c.l.b16 %v563
      %v639 = vunpack.c.l.b16 %v564
      %v640 = vunpack.c.l.b16 %v565
      %v641 = vunpack.c.l.b16 %v566
      %v642 = vunpack.c.l.b16 %v567
      %v643 = vunpack.c.l.b16 %v568
      %v644 = vunpack.c.l.b16 %v569
      %v645 = vunpack.c.l.b16 %v570
      %v646 = vunpack.c.l.b16 %v571
      %v647 = vunpack.c.l.b16 %v572
      %v648 = vunpack.c.l.b16 %v573
      %v649 = vunpack.c.l.b16 %v574
      %v650 = vunpack.c.l.b16 %v575
      %v651 = vunpack.c.l.b16 %v576
      %v652 = vunpack.c.l.b16 %v577
      %v653 = vunpack.c.l.b16 %v578
      %v654 = vunpack.c.l.b16 %v579
      %v655 = vunpack.c.l.b16 %v580
      %v656 = vunpack.c.l.b16 %v581
      %v657 = vunpack.c.l.b16 %v582
      %v658 = vunpack.c.l.b16 %v583
      %v659 = vunpack.c.l.b16 %v584
      %v660 = vunpack.c.l.b16 %v585
      %v661 = vunpack.c.l.b16 %v586
      %v662 = vunpack.c.l.b16 %v587
      %v663 = vunpack.c.l.b16 %v588
      %v664 = vunpack.c.l.b16 %v589
      %v665 = vpack.c.b16 %v634, %v633
      %v666 = vpack.c.b16 %v636, %v635
      %v667 = vpack.c.b16 %v638, %v637
      %v668 = vpack.c.b16 %v640, %v639
      %v669 = vpack.c.b16 %v642, %v641
      %v670 = vpack.c.b16 %v644, %v643
      %v671 = vpack.c.b16 %v646, %v645
      %v672 = vpack.c.b16 %v648, %v647
      %v673 = vpack.c.b16 %v650, %v649
      %v674 = vpack.c.b16 %v652, %v651
      %v675 = vpack.c.b16 %v654, %v653
      %v676 = vpack.c.b16 %v656, %v655
      %v677 = vpack.c.b16 %v658, %v657
      %v678 = vpack.c.b16 %v660, %v659
      %v679 = vpack.c.b16 %v662, %v661
      %v680 = vpack.c.b16 %v664, %v663
      %697 = vmatprep.subr.bf16.mxu0 0
      %698 = vmatpush1.bf16.msra.mxu0 %v665
      %699 = vmatprep.subr.bf16.mxu0 0
      %700 = vmatpush1.bf16.msra.mxu0 %v666
      %701 = vmatprep.subr.bf16.mxu0 0
      %702 = vmatpush1.bf16.msra.mxu0 %v667
      %703 = vmatprep.subr.bf16.mxu0 0
      %704 = vmatpush1.bf16.msra.mxu0 %v668
      %705 = vmatprep.subr.bf16.mxu0 0
      %706 = vmatpush1.bf16.msra.mxu0 %v669
      %707 = vmatprep.subr.bf16.mxu0 0
      %708 = vmatpush1.bf16.msra.mxu0 %v670
      %709 = vmatprep.subr.bf16.mxu0 0
      %710 = vmatpush1.bf16.msra.mxu0 %v671
      %711 = vmatprep.subr.bf16.mxu0 0
      %712 = vmatpush1.bf16.msra.mxu0 %v672
      %713 = vmatprep.subr.bf16.mxu0 0
      %714 = vmatpush1.bf16.msra.mxu0 %v673
      %715 = vmatprep.subr.bf16.mxu0 0
      %716 = vmatpush1.bf16.msra.mxu0 %v674
      %717 = vmatprep.subr.bf16.mxu0 0
      %718 = vmatpush1.bf16.msra.mxu0 %v675
      %719 = vmatprep.subr.bf16.mxu0 0
      %720 = vmatpush1.bf16.msra.mxu0 %v676
      %721 = vmatprep.subr.bf16.mxu0 0
      %722 = vmatpush1.bf16.msra.mxu0 %v677
      %723 = vmatprep.subr.bf16.mxu0 0
      %724 = vmatpush1.bf16.msra.mxu0 %v678
      %725 = vmatprep.subr.bf16.mxu0 0
      %726 = vmatpush1.bf16.msra.mxu0 %v679
      %727 = vmatprep.subr.bf16.mxu0 0
      %728 = vmatpush1.bf16.msra.mxu0 %v680
      %729 = vmatprep.mubr.bf16.mxu0 %v598
      %730 = vmatmul.mubr.bf16.gmra.mrb[0].mxu0 %v597
      %v731 = vpop.f32.mrb[0].mxu0
      %v732 = vadd.f32 %v408, %v731
      %v733 = vpop.f32.mrb[0].mxu0
      %v734 = vpop.f32.mrb[0].mxu0
      %v735 = vpop.f32.mrb[0].mxu0
      %736 = vdwg.mxu0
      %vm737 = vcmp.ge.f32.partialorder %v552, 0.0
      %v738 = vmul.f32 %v552, 0.2
      %v739 = vsel %vm737, %v552, %v738
      %vm740 = vcmp.ge.f32.partialorder %v732, 0.0
      %v741 = vmul.f32 %v732, 0.2
      %v742 = vsel %vm740, %v732, %v741
      %v743 = vld [vmem:[%s356] sm:$0xf]
      %v744 = vadd.f32 %v739, %v743
      %745 = vst [vmem:[%s364] sm:$0xf] %v744
      %v746 = vld [vmem:[%s360] sm:$0xf]
      %v747 = vadd.f32 %v742, %v746
      %748 = vst [vmem:[%s368] sm:$0xf] %v747
      %p749 = scmp.lt.s32.totalorder %s20, 1
      %s750 = scalar_select %p749, %s20, 1
      %s751 = smul.addr %s750, 4
      %s752 = scalar_lea.vmem %s7, %s751
      %p753 = scmp.lt.s32.totalorder %s20, 1
      %s754 = scalar_select %p753, %s20, 1
      %s755 = smul.addr %s754, 4
      %s756 = scalar_lea.vmem %s8, %s755
      // Predicated region
      $region49: #{unet_forward.18} parent=47 // pred_check
        %p757 = pneg %p205
      $region50: #{unet_forward.18} parent=47 // pred_check_branch
        %759 = sbr.rel (%p757) target = $region52
      $region51: #{unet_forward.18} parent=47 // pred_region
        _
      $region52: #{unet_forward.18} parent=47 // pred_fallthru
        _
      // Predicated region
      $region53: #{unet_forward.18} parent=47 // pred_check
        %p760 = pneg %p231
      $region54: #{unet_forward.18} parent=47 // pred_check_branch
        %762 = sbr.rel (%p760) target = $region56
      $region55: #{unet_forward.18} parent=47 // pred_region
        _
      $region56: #{unet_forward.18} parent=47 // pred_fallthru
        _
    $region48: #{unet_forward.18} parent=5 // pred_fallthru
      _
    %p763 = scmp.le.s32.totalorder 2, %s15
    // Predicated region
    $region57: #{unet_forward.18} parent=5 // pred_check
      %p764 = pneg %p763
    $region58: #{unet_forward.18} parent=5 // pred_check_branch
      %766 = sbr.rel (%p764) target = $region60
    $region59: #{unet_forward.18} parent=5 // pred_region
      %s767 = ssub.s32 %s15, 2
      // Predicated region
      $region61: #{unet_forward.18} parent=59 // pred_check
        %p768 = pneg %p211
      $region62: #{unet_forward.18} parent=59 // pred_check_branch
        %770 = sbr.rel (%p768) target = $region64
      $region63: #{unet_forward.18} parent=59 // pred_region
        %p771 = scmp.lt.s32.totalorder %s21, 1
        %s772 = scalar_select %p771, %s21, 1
        %s773 = smul.addr %s772, 4
        %s774 = scalar_lea.vmem %s7, %s773
      $region64: #{unet_forward.18} parent=59 // pred_fallthru
        _
      // Predicated region
      $region65: #{unet_forward.18} parent=59 // pred_check
        %p775 = pneg %p237
      $region66: #{unet_forward.18} parent=59 // pred_check_branch
        %777 = sbr.rel (%p775) target = $region68
      $region67: #{unet_forward.18} parent=59 // pred_region
        %p778 = scmp.lt.s32.totalorder %s21, 1
        %s779 = scalar_select %p778, %s21, 1
        %s780 = smul.addr %s779, 4
        %s781 = scalar_lea.vmem %s8, %s780
      $region68: #{unet_forward.18} parent=59 // pred_fallthru
        _
    $region60: #{unet_forward.18} parent=5 // pred_fallthru
      _
  $region6: #{unet_forward.18} parent=0 // loop_footer
    %s19 = sadd.s32 1, %s15
  $region7: #{unet_forward.18} parent=0 // loop_footer_branch
    %14 = sbr.rel target = $region3
  $region8: #{unet_forward.18} parent=0 // loop_exit
    _

// kernel: unet_forward.19
$region0: #{unet_forward.19}
  #allocation0 [shape = 'u32[]', space=smem, size = 0x4, offset = 0x4, fixed_abs, tag = 'smem constant byte address 0x4 - core index']
  #allocation1 [shape = 'u32[144,128]{1,0:T(1,128)}', space=vmem, size = 0x12000, scoped, tag = 'internal scratch']
  %s0 = inlined_call_operand.vmem [shape: bf16[2,8,256], index: 0, kind: input, shape index: {}]
  %s1 = inlined_call_operand.vmem [shape: bf16[2,8,256], index: 1, kind: input, shape index: {}]
  %s2 = inlined_call_operand.vmem [shape: bf16[256,128], index: 2, kind: input, shape index: {}]
  %s3 = inlined_call_operand.vmem [shape: bf16[256,128], index: 3, kind: input, shape index: {}]
  %s4 = inlined_call_operand.vmem [shape: f32[1,128], index: 4, kind: input, shape index: {}]
  %s5 = inlined_call_operand.vmem [shape: f32[2,8,128], index: 5, kind: input, shape index: {}]
  %s6 = inlined_call_operand.vmem [shape: f32[2,8,128], index: 6, kind: input, shape index: {}]
  %s7 = inlined_call_operand.vmem [shape: f32[2,8,128], index: 7, kind: output, shape index: {0}]
  %s8 = inlined_call_operand.vmem [shape: f32[2,8,128], index: 8, kind: output, shape index: {1}]
  %9 = xla_tuple %s7, %s8
  %s10 = sld [smem:[#allocation0]]
  $region69: #{unet_forward.19} parent=0
    _
  %s12 = ssub.s32 1, %s10
  %s13 = scalar_select 0, %s12, %s10
  loop: start=0, step=1, limit=4
  $region2: #{unet_forward.19} parent=0 // loop_pre_header
    _
  $region3: #{unet_forward.19} parent=0 // loop_header
    %s15 = sphi 0, %s19
    %p16 = scmp.ge.s32.totalorder %s15, 4
    %s25 = sphi 0, %s27
    %s28 = sphi 0, %s25
    %s29 = sphi 0, %s28
    %s45 = sphi 0, %s29
    %s51 = sphi 0, %s53
    %s54 = sphi 0, %s51
    %s55 = sphi 0, %s54
    %s71 = sphi 0, %s55
    %s75 = sphi 0, %s75
    %s77 = sphi 0, %s75
    %s78 = sphi 0, %s77
    %s92 = sphi 0, %s78
    %s96 = sphi 0, %s96
    %s98 = sphi 0, %s96
    %s99 = sphi 0, %s98
    %s113 = sphi 0, %s99
    %s117 = sphi 0, %s117
    %s119 = sphi 0, %s117
    %s120 = sphi 0, %s119
    %s134 = sphi 0, %s120
    %s140 = sphi 0, %s142
    %s143 = sphi 0, %s140
    %s144 = sphi 0, %s143
    %s160 = sphi 0, %s144
    %s166 = sphi 0, %s168
    %s169 = sphi 0, %s166
    %s170 = sphi 0, %s169
    %s186 = sphi 0, %s170
    %s192 = sphi 0, %s194
    %s195 = sphi 0, %s192
    %s196 = sphi 0, %s195
    %s212 = sphi 0, %s196
    %s218 = sphi 0, %s220
    %s221 = sphi 0, %s218
    %s222 = sphi 0, %s221
    %s238 = sphi 0, %s222
  $region4: #{unet_forward.19} parent=0 // loop_header_branch
    %18 = sbr.rel (%p16) target = $region8
  $region5: #{unet_forward.19} parent=0 // loop_body
    %s20 = ssub.s32 %s15, 1
    %s21 = ssub.s32 %s15, 2
    %s22 = sadd.s32 %s15, 1
    %s23 = ssub.s32 %s15, %s22
    %p24 = scmp.eq.s32.totalorder %s23, 0
    %s26 = sadd.s32 %s25, 1
    %s27 = scalar_select %p24, %s25, %s26
    %p30 = pneg %p24
    %p31 = scmp.eq.s32.totalorder %s15, 1
    %p32 = por %p30, %p31
    %p33 = scmp.ne.s32.totalorder %s25, %s28
    %p34 = scmp.eq.s32.totalorder %s15, 0
    %p35 = por %p33, %p34
    %p36 = scmp.ne.s32.totalorder %s25, %s28
    %p37 = scmp.eq.s32.totalorder %s20, 1
    %p38 = por %p36, %p37
    %p39 = scmp.ne.s32.totalorder %s28, %s29
    %p40 = scmp.eq.s32.totalorder %s20, 0
    %p41 = por %p39, %p40
    %p42 = scmp.ne.s32.totalorder %s28, %s29
    %p43 = scmp.eq.s32.totalorder %s21, 1
    %p44 = por %p42, %p43
    %p46 = scmp.ne.s32.totalorder %s29, %s45
    %p47 = scmp.eq.s32.totalorder %s21, 0
    %p48 = por %p46, %p47
    %s49 = ssub.s32 %s15, %s22
    %p50 = scmp.eq.s32.totalorder %s49, 0
    %s52 = sadd.s32 %s51, 1
    %s53 = scalar_select %p50, %s51, %s52
    %p56 = pneg %p50
    %p57 = scmp.eq.s32.totalorder %s15, 1
    %p58 = por %p56, %p57
    %p59 = scmp.ne.s32.totalorder %s51, %s54
    %p60 = scmp.eq.s32.totalorder %s15, 0
    %p61 = por %p59, %p60
    %p62 = scmp.ne.s32.totalorder %s51, %s54
    %p63 = scmp.eq.s32.totalorder %s20, 1
    %p64 = por %p62, %p63
    %p65 = scmp.ne.s32.totalorder %s54, %s55
    %p66 = scmp.eq.s32.totalorder %s20, 0
    %p67 = por %p65, %p66
    %p68 = scmp.ne.s32.totalorder %s54, %s55
    %p69 = scmp.eq.s32.totalorder %s21, 1
    %p70 = por %p68, %p69
    %p72 = scmp.ne.s32.totalorder %s55, %s71
    %p73 = scmp.eq.s32.totalorder %s21, 0
    %p74 = por %p72, %p73
    %s76 = sadd.s32 %s75, 1
    %p79 = scmp.eq.s32.totalorder %s15, 1
    %p80 = scmp.ne.s32.totalorder %s75, %s77
    %p81 = scmp.eq.s32.totalorder %s15, 0
    %p82 = por %p80, %p81
    %p83 = scmp.ne.s32.totalorder %s75, %s77
    %p84 = scmp.eq.s32.totalorder %s20, 1
    %p85 = por %p83, %p84
    %p86 = scmp.ne.s32.totalorder %s77, %s78
    %p87 = scmp.eq.s32.totalorder %s20, 0
    %p88 = por %p86, %p87
    %p89 = scmp.ne.s32.totalorder %s77, %s78
    %p90 = scmp.eq.s32.totalorder %s21, 1
    %p91 = por %p89, %p90
    %p93 = scmp.ne.s32.totalorder %s78, %s92
    %p94 = scmp.eq.s32.totalorder %s21, 0
    %p95 = por %p93, %p94
    %s97 = sadd.s32 %s96, 1
    %p100 = scmp.eq.s32.totalorder %s15, 1
    %p101 = scmp.ne.s32.totalorder %s96, %s98
    %p102 = scmp.eq.s32.totalorder %s15, 0
    %p103 = por %p101, %p102
    %p104 = scmp.ne.s32.totalorder %s96, %s98
    %p105 = scmp.eq.s32.totalorder %s20, 1
    %p106 = por %p104, %p105
    %p107 = scmp.ne.s32.totalorder %s98, %s99
    %p108 = scmp.eq.s32.totalorder %s20, 0
    %p109 = por %p107, %p108
    %p110 = scmp.ne.s32.totalorder %s98, %s99
    %p111 = scmp.eq.s32.totalorder %s21, 1
    %p112 = por %p110, %p111
    %p114 = scmp.ne.s32.totalorder %s99, %s113
    %p115 = scmp.eq.s32.totalorder %s21, 0
    %p116 = por %p114, %p115
    %s118 = sadd.s32 %s117, 1
    %p121 = scmp.eq.s32.totalorder %s15, 1
    %p122 = scmp.ne.s32.totalorder %s117, %s119
    %p123 = scmp.eq.s32.totalorder %s15, 0
    %p124 = por %p122, %p123
    %p125 = scmp.ne.s32.totalorder %s117, %s119
    %p126 = scmp.eq.s32.totalorder %s20, 1
    %p127 = por %p125, %p126
    %p128 = scmp.ne.s32.totalorder %s119, %s120
    %p129 = scmp.eq.s32.totalorder %s20, 0
    %p130 = por %p128, %p129
    %p131 = scmp.ne.s32.totalorder %s119, %s120
    %p132 = scmp.eq.s32.totalorder %s21, 1
    %p133 = por %p131, %p132
    %p135 = scmp.ne.s32.totalorder %s120, %s134
    %p136 = scmp.eq.s32.totalorder %s21, 0
    %p137 = por %p135, %p136
    %s138 = ssub.s32 %s15, %s22
    %p139 = scmp.eq.s32.totalorder %s138, 0
    %s141 = sadd.s32 %s140, 1
    %s142 = scalar_select %p139, %s140, %s141
    %p145 = pneg %p139
    %p146 = scmp.eq.s32.totalorder %s15, 1
    %p147 = por %p145, %p146
    %p148 = scmp.ne.s32.totalorder %s140, %s143
    %p149 = scmp.eq.s32.totalorder %s15, 0
    %p150 = por %p148, %p149
    %p151 = scmp.ne.s32.totalorder %s140, %s143
    %p152 = scmp.eq.s32.totalorder %s20, 1
    %p153 = por %p151, %p152
    %p154 = scmp.ne.s32.totalorder %s143, %s144
    %p155 = scmp.eq.s32.totalorder %s20, 0
    %p156 = por %p154, %p155
    %p157 = scmp.ne.s32.totalorder %s143, %s144
    %p158 = scmp.eq.s32.totalorder %s21, 1
    %p159 = por %p157, %p158
    %p161 = scmp.ne.s32.totalorder %s144, %s160
    %p162 = scmp.eq.s32.totalorder %s21, 0
    %p163 = por %p161, %p162
    %s164 = ssub.s32 %s15, %s22
    %p165 = scmp.eq.s32.totalorder %s164, 0
    %s167 = sadd.s32 %s166, 1
    %s168 = scalar_select %p165, %s166, %s167
    %p171 = pneg %p165
    %p172 = scmp.eq.s32.totalorder %s15, 1
    %p173 = por %p171, %p172
    %p174 = scmp.ne.s32.totalorder %s166, %s169
    %p175 = scmp.eq.s32.totalorder %s15, 0
    %p176 = por %p174, %p175
    %p177 = scmp.ne.s32.totalorder %s166, %s169
    %p178 = scmp.eq.s32.totalorder %s20, 1
    %p179 = por %p177, %p178
    %p180 = scmp.ne.s32.totalorder %s169, %s170
    %p181 = scmp.eq.s32.totalorder %s20, 0
    %p182 = por %p180, %p181
    %p183 = scmp.ne.s32.totalorder %s169, %s170
    %p184 = scmp.eq.s32.totalorder %s21, 1
    %p185 = por %p183, %p184
    %p187 = scmp.ne.s32.totalorder %s170, %s186
    %p188 = scmp.eq.s32.totalorder %s21, 0
    %p189 = por %p187, %p188
    %s190 = ssub.s32 %s15, %s22
    %p191 = scmp.eq.s32.totalorder %s190, 0
    %s193 = sadd.s32 %s192, 1
    %s194 = scalar_select %p191, %s192, %s193
    %p197 = pneg %p191
    %p198 = scmp.eq.s32.totalorder %s15, 1
    %p199 = por %p197, %p198
    %p200 = scmp.ne.s32.totalorder %s192, %s195
    %p201 = scmp.eq.s32.totalorder %s15, 0
    %p202 = por %p200, %p201
    %p203 = scmp.ne.s32.totalorder %s192, %s195
    %p204 = scmp.eq.s32.totalorder %s20, 1
    %p205 = por %p203, %p204
    %p206 = scmp.ne.s32.totalorder %s195, %s196
    %p207 = scmp.eq.s32.totalorder %s20, 0
    %p208 = por %p206, %p207
    %p209 = scmp.ne.s32.totalorder %s195, %s196
    %p210 = scmp.eq.s32.totalorder %s21, 1
    %p211 = por %p209, %p210
    %p213 = scmp.ne.s32.totalorder %s196, %s212
    %p214 = scmp.eq.s32.totalorder %s21, 0
    %p215 = por %p213, %p214
    %s216 = ssub.s32 %s15, %s22
    %p217 = scmp.eq.s32.totalorder %s216, 0
    %s219 = sadd.s32 %s218, 1
    %s220 = scalar_select %p217, %s218, %s219
    %p223 = pneg %p217
    %p224 = scmp.eq.s32.totalorder %s15, 1
    %p225 = por %p223, %p224
    %p226 = scmp.ne.s32.totalorder %s218, %s221
    %p227 = scmp.eq.s32.totalorder %s15, 0
    %p228 = por %p226, %p227
    %p229 = scmp.ne.s32.totalorder %s218, %s221
    %p230 = scmp.eq.s32.totalorder %s20, 1
    %p231 = por %p229, %p230
    %p232 = scmp.ne.s32.totalorder %s221, %s222
    %p233 = scmp.eq.s32.totalorder %s20, 0
    %p234 = por %p232, %p233
    %p235 = scmp.ne.s32.totalorder %s221, %s222
    %p236 = scmp.eq.s32.totalorder %s21, 1
    %p237 = por %p235, %p236
    %p239 = scmp.ne.s32.totalorder %s222, %s238
    %p240 = scmp.eq.s32.totalorder %s21, 0
    %p241 = por %p239, %p240
    %p242 = scmp.le.s32.totalorder 1, %s15
    %p243 = scmp.lt.s32.totalorder %s15, 3
    %p244 = pnand %p242, %p243
    %p245 = pneg %p244
    // Predicated region
    $region9: #{unet_forward.19} parent=5 // pred_check
      _
    $region10: #{unet_forward.19} parent=5 // pred_check_branch
      %247 = sbr.rel (%p244) target = $region12
    $region11: #{unet_forward.19} parent=5 // pred_region
      %s248 = ssub.s32 %s15, 1
      // Predicated region
      $region13: #{unet_forward.19} parent=11 // pred_check
        %p249 = pneg %p88
      $region14: #{unet_forward.19} parent=11 // pred_check_branch
        %251 = sbr.rel (%p249) target = $region16
      $region15: #{unet_forward.19} parent=11 // pred_region
        _
      $region16: #{unet_forward.19} parent=11 // pred_fallthru
        _
      // Predicated region
      $region17: #{unet_forward.19} parent=11 // pred_check
        %p252 = pneg %p109
      $region18: #{unet_forward.19} parent=11 // pred_check_branch
        %254 = sbr.rel (%p252) target = $region20
      $region19: #{unet_forward.19} parent=11 // pred_region
        _
      $region20: #{unet_forward.19} parent=11 // pred_fallthru
        _
      // Predicated region
      $region21: #{unet_forward.19} parent=11 // pred_check
        %p255 = pneg %p130
      $region22: #{unet_forward.19} parent=11 // pred_check_branch
        %257 = sbr.rel (%p255) target = $region24
      $region23: #{unet_forward.19} parent=11 // pred_region
        _
      $region24: #{unet_forward.19} parent=11 // pred_fallthru
        _
    $region12: #{unet_forward.19} parent=5 // pred_fallthru
      _
    %p258 = scmp.lt.s32.totalorder %s15, 2
    // Predicated region
    $region25: #{unet_forward.19} parent=5 // pred_check
      %p259 = pneg %p258
    $region26: #{unet_forward.19} parent=5 // pred_check_branch
      %261 = sbr.rel (%p259) target = $region28
    $region27: #{unet_forward.19} parent=5 // pred_region
      // Predicated region
      $region29: #{unet_forward.19} parent=27 // pred_check
        %p262 = pneg %p35
      $region30: #{unet_forward.19} parent=27 // pred_check_branch
        %264 = sbr.rel (%p262) target = $region32
      $region31: #{unet_forward.19} parent=27 // pred_region
        %p265 = scmp.lt.s32.totalorder %s15, 1
        %s266 = scalar_select %p265, %s15, 1
        %s267 = smul.addr %s266, 2
        %s268 = smul.addr %s267, 4
        %s269 = scalar_lea.vmem %s0, %s268
      $region32: #{unet_forward.19} parent=27 // pred_fallthru
        _
      // Predicated region
      $region33: #{unet_forward.19} parent=27 // pred_check
        %p270 = pneg %p61
      $region34: #{unet_forward.19} parent=27 // pred_check_branch
        %272 = sbr.rel (%p270) target = $region36
      $region35: #{unet_forward.19} parent=27 // pred_region
        %p273 = scmp.lt.s32.totalorder %s15, 1
        %s274 = scalar_select %p273, %s15, 1
        %s275 = smul.addr %s274, 2
        %s276 = smul.addr %s275, 4
        %s277 = scalar_lea.vmem %s1, %s276
      $region36: #{unet_forward.19} parent=27 // pred_fallthru
        _
      // Predicated region
      $region37: #{unet_forward.19} parent=27 // pred_check
        %p278 = pneg %p150
      $region38: #{unet_forward.19} parent=27 // pred_check_branch
        %280 = sbr.rel (%p278) target = $region40
      $region39: #{unet_forward.19} parent=27 // pred_region
        %p281 = scmp.lt.s32.totalorder %s15, 1
        %s282 = scalar_select %p281, %s15, 1
        %s283 = smul.addr %s282, 8
        %s284 = scalar_lea.vmem %s5, %s283
      $region40: #{unet_forward.19} parent=27 // pred_fallthru
        _
      // Predicated region
      $region41: #{unet_forward.19} parent=27 // pred_check
        %p285 = pneg %p176
      $region42: #{unet_forward.19} parent=27 // pred_check_branch
        %287 = sbr.rel (%p285) target = $region44
      $region43: #{unet_forward.19} parent=27 // pred_region
        %p288 = scmp.lt.s32.totalorder %s15, 1
        %s289 = scalar_select %p288, %s15, 1
        %s290 = smul.addr %s289, 8
        %s291 = scalar_lea.vmem %s6, %s290
      $region44: #{unet_forward.19} parent=27 // pred_fallthru
        _
    $region28: #{unet_forward.19} parent=5 // pred_fallthru
      _
    %p292 = scmp.le.s32.totalorder 1, %s15
    %p293 = scmp.lt.s32.totalorder %s15, 3
    %p294 = pnand %p292, %p293
    %p295 = pneg %p294
    // Predicated region
    $region45: #{unet_forward.19} parent=5 // pred_check
      _
    $region46: #{unet_forward.19} parent=5 // pred_check_branch
      %297 = sbr.rel (%p294) target = $region48
    $region47: #{unet_forward.19} parent=5 // pred_region
      %s298 = ssub.s32 %s15, 1
      %p299 = scmp.lt.s32.totalorder %s20, 1
      %s300 = scalar_select %p299, %s20, 1
      %s301 = smul.addr %s300, 2
      %s302 = smul.addr %s301, 4
      %s303 = scalar_lea.vmem %s0, %s302
      %p304 = pneg %p41
      %p305 = pneg %p38
      %p306 = scmp.lt.s32.totalorder %s20, 1
      %s307 = scalar_select %p306, %s20, 1
      %s308 = smul.addr %s307, 2
      %s309 = smul.addr %s308, 4
      %s310 = scalar_lea.vmem %s1, %s309
      %p311 = pneg %p67
      %p312 = pneg %p64
      %p313 = pneg %p88
      %p314 = pneg %p85
      %p315 = pneg %p109
      %p316 = pneg %p106
      %p317 = pneg %p130
      %p318 = pneg %p127
      %p319 = scmp.lt.s32.totalorder %s20, 1
      %s320 = scalar_select %p319, %s20, 1
      %s321 = smul.addr %s320, 8
      %s322 = scalar_lea.vmem %s5, %s321
      %p323 = pneg %p156
      %p324 = pneg %p153
      %p325 = scmp.lt.s32.totalorder %s20, 1
      %s326 = scalar_select %p325, %s20, 1
      %s327 = smul.addr %s326, 8
      %s328 = scalar_lea.vmem %s6, %s327
      %p329 = pneg %p182
      %p330 = pneg %p179
      %p331 = pneg %p208
      %p332 = pneg %p205
      %p333 = scmp.lt.s32.totalorder %s20, 1
      %s334 = scalar_select %p333, %s20, 1
      %s335 = smul.addr %s334, 8
      %s336 = scalar_lea.vmem %s7, %s335
      %p337 = pneg %p234
      %p338 = pneg %p231
      %p339 = scmp.lt.s32.totalorder %s20, 1
      %s340 = scalar_select %p339, %s20, 1
      %s341 = smul.addr %s340, 8
      %s342 = scalar_lea.vmem %s8, %s341
      %p343 = scmp.lt.s32.totalorder %s20, 1
      %s344 = scalar_select %p343, %s20, 1
      %s345 = smul.addr %s344, 2
      %s346 = smul.addr %s345, 4
      %s347 = scalar_lea.vmem %s0, %s346
      %p348 = scmp.lt.s32.totalorder %s20, 1
      %s349 = scalar_select %p348, %s20, 1
      %s350 = smul.addr %s349, 2
      %s351 = smul.addr %s350, 4
      %s352 = scalar_lea.vmem %s1, %s351
      %p353 = scmp.lt.s32.totalorder %s20, 1
      %s354 = scalar_select %p353, %s20, 1
      %s355 = smul.addr %s354, 8
      %s356 = scalar_lea.vmem %s5, %s355
      %p357 = scmp.lt.s32.totalorder %s20, 1
      %s358 = scalar_select %p357, %s20, 1
      %s359 = smul.addr %s358, 8
      %s360 = scalar_lea.vmem %s6, %s359
      %p361 = scmp.lt.s32.totalorder %s20, 1
      %s362 = scalar_select %p361, %s20, 1
      %s363 = smul.addr %s362, 8
      %s364 = scalar_lea.vmem %s7, %s363
      %p365 = scmp.lt.s32.totalorder %s20, 1
      %s366 = scalar_select %p365, %s20, 1
      %s367 = smul.addr %s366, 8
      %s368 = scalar_lea.vmem %s8, %s367
      %v370 = vld [vmem:[%s347] sm:$0xff]
      %v371 = vld [vmem:[%s2] sm:$0xf]
      %v372 = vld [vmem:[%s2 + $0x4] sm:$0xf]
      %v373 = vld [vmem:[%s2 + $0x8] sm:$0xf]
      %v374 = vld [vmem:[%s2 + $0xc] sm:$0xf]
      %v375 = vld [vmem:[%s2 + $0x10] sm:$0xf]
      %v376 = vld [vmem:[%s2 + $0x14] sm:$0xf]
      %v377 = vld [vmem:[%s2 + $0x18] sm:$0xf]
      %v378 = vld [vmem:[%s2 + $0x1c] sm:$0xf]
      %v379 = vld [vmem:[%s2 + $0x20] sm:$0xf]
      %v380 = vld [vmem:[%s2 + $0x24] sm:$0xf]
      %v381 = vld [vmem:[%s2 + $0x28] sm:$0xf]
      %v382 = vld [vmem:[%s2 + $0x2c] sm:$0xf]
      %v383 = vld [vmem:[%s2 + $0x30] sm:$0xf]
      %v384 = vld [vmem:[%s2 + $0x34] sm:$0xf]
      %v385 = vld [vmem:[%s2 + $0x38] sm:$0xf]
      %v386 = vld [vmem:[%s2 + $0x3c] sm:$0xf]
      %v387 = vld [vmem:[%s2 + $0x40] sm:$0xf]
      %v388 = vld [vmem:[%s2 + $0x44] sm:$0xf]
      %v389 = vld [vmem:[%s2 + $0x48] sm:$0xf]
      %v390 = vld [vmem:[%s2 + $0x4c] sm:$0xf]
      %v391 = vld [vmem:[%s2 + $0x50] sm:$0xf]
      %v392 = vld [vmem:[%s2 + $0x54] sm:$0xf]
      %v393 = vld [vmem:[%s2 + $0x58] sm:$0xf]
      %v394 = vld [vmem:[%s2 + $0x5c] sm:$0xf]
      %v395 = vld [vmem:[%s2 + $0x60] sm:$0xf]
      %v396 = vld [vmem:[%s2 + $0x64] sm:$0xf]
      %v397 = vld [vmem:[%s2 + $0x68] sm:$0xf]
      %v398 = vld [vmem:[%s2 + $0x6c] sm:$0xf]
      %v399 = vld [vmem:[%s2 + $0x70] sm:$0xf]
      %v400 = vld [vmem:[%s2 + $0x74] sm:$0xf]
      %v401 = vld [vmem:[%s2 + $0x78] sm:$0xf]
      %v402 = vld [vmem:[%s2 + $0x7c] sm:$0xf]
      %v403 = vld [vmem:[%s4] sm:$0x1]
      %v405 = vlaneseq
      %v406 = vshrl.u32 %v405, 7
      %v407 = vsub.s32 0, %v406
      %v408 = vrot.slane %v403, %v407
      %v411 = vunpack.c.l.b16 %v370
      %v412 = vunpack.c.h.b16 %v370
      %v413 = vpack.c.b16 %v411, %v411
      %v414 = vpack.c.b16 %v412, %v412
      %v449 = vunpack.c.l.b16 %v371
      %v450 = vunpack.c.l.b16 %v372
      %v451 = vunpack.c.l.b16 %v373
      %v452 = vunpack.c.l.b16 %v374
      %v453 = vunpack.c.l.b16 %v375
      %v454 = vunpack.c.l.b16 %v376
      %v455 = vunpack.c.l.b16 %v377
      %v456 = vunpack.c.l.b16 %v378
      %v457 = vunpack.c.l.b16 %v379
      %v458 = vunpack.c.l.b16 %v380
      %v459 = vunpack.c.l.b16 %v381
      %v460 = vunpack.c.l.b16 %v382
      %v461 = vunpack.c.l.b16 %v383
      %v462 = vunpack.c.l.b16 %v384
      %v463 = vunpack.c.l.b16 %v385
      %v464 = vunpack.c.l.b16 %v386
      %v465 = vunpack.c.l.b16 %v387
      %v466 = vunpack.c.l.b16 %v388
      %v467 = vunpack.c.l.b16 %v389
      %v468 = vunpack.c.l.b16 %v390
      %v469 = vunpack.c.l.b16 %v391
      %v470 = vunpack.c.l.b16 %v392
      %v471 = vunpack.c.l.b16 %v393
      %v472 = vunpack.c.l.b16 %v394
      %v473 = vunpack.c.l.b16 %v395
      %v474 = vunpack.c.l.b16 %v396
      %v475 = vunpack.c.l.b16 %v397
      %v476 = vunpack.c.l.b16 %v398
      %v477 = vunpack.c.l.b16 %v399
      %v478 = vunpack.c.l.b16 %v400
      %v479 = vunpack.c.l.b16 %v401
      %v480 = vunpack.c.l.b16 %v402
      %v481 = vpack.c.b16 %v450, %v449
      %v482 = vpack.c.b16 %v452, %v451
      %v483 = vpack.c.b16 %v454, %v453
      %v484 = vpack.c.b16 %v456, %v455
      %v485 = vpack.c.b16 %v458, %v457
      %v486 = vpack.c.b16 %v460, %v459
      %v487 = vpack.c.b16 %v462, %v461
      %v488 = vpack.c.b16 %v464, %v463
      %v489 = vpack.c.b16 %v466, %v465
      %v490 = vpack.c.b16 %v468, %v467
      %v491 = vpack.c.b16 %v470, %v469
      %v492 = vpack.c.b16 %v472, %v471
      %v493 = vpack.c.b16 %v474, %v473
      %v494 = vpack.c.b16 %v476, %v475
      %v495 = vpack.c.b16 %v478, %v477
      %v496 = vpack.c.b16 %v480, %v479
      %513 = vmatprep.subr.bf16.mxu0 0
      %514 = vmatpush1.bf16.msra.mxu0 %v481
      %515 = vmatprep.subr.bf16.mxu0 0
      %516 = vmatpush1.bf16.msra.mxu0 %v482
      %517 = vmatprep.subr.bf16.mxu0 0
      %518 = vmatpush1.bf16.msra.mxu0 %v483
      %519 = vmatprep.subr.bf16.mxu0 0
      %520 = vmatpush1.bf16.msra.mxu0 %v484
      %521 = vmatprep.subr.bf16.mxu0 0
      %522 = vmatpush1.bf16.msra.mxu0 %v485
      %523 = vmatprep.subr.bf16.mxu0 0
      %524 = vmatpush1.bf16.msra.mxu0 %v486
      %525 = vmatprep.subr.bf16.mxu0 0
      %526 = vmatpush1.bf16.msra.mxu0 %v487
      %527 = vmatprep.subr.bf16.mxu0 0
      %528 = vmatpush1.bf16.msra.mxu0 %v488
      %529 = vmatprep.subr.bf16.mxu0 0
      %530 = vmatpush1.bf16.msra.mxu0 %v489
      %531 = vmatprep.subr.bf16.mxu0 0
      %532 = vmatpush1.bf16.msra.mxu0 %v490
      %533 = vmatprep.subr.bf16.mxu0 0
      %534 = vmatpush1.bf16.msra.mxu0 %v491
      %535 = vmatprep.subr.bf16.mxu0 0
      %536 = vmatpush1.bf16.msra.mxu0 %v492
      %537 = vmatprep.subr.bf16.mxu0 0
      %538 = vmatpush1.bf16.msra.mxu0 %v493
      %539 = vmatprep.subr.bf16.mxu0 0
      %540 = vmatpush1.bf16.msra.mxu0 %v494
      %541 = vmatprep.subr.bf16.mxu0 0
      %542 = vmatpush1.bf16.msra.mxu0 %v495
      %543 = vmatprep.subr.bf16.mxu0 0
      %544 = vmatpush1.bf16.msra.mxu0 %v496
      %545 = vmatprep.mubr.bf16.mxu0 %v414
      %546 = vmatmul.mubr.bf16.gmra.mrb[0].mxu0 %v413
      %v547 = vpop.f32.mrb[0].mxu0
      %v548 = vadd.f32 %v408, %v547
      %v549 = vpop.f32.mrb[0].mxu0
      %v550 = vpop.f32.mrb[0].mxu0
      %v551 = vpop.f32.mrb[0].mxu0
      %552 = vdwg.mxu0
      %v553 = vld [vmem:[%s352] sm:$0xff]
      %v554 = vld [vmem:[%s3] sm:$0xf]
      %v555 = vld [vmem:[%s3 + $0x4] sm:$0xf]
      %v556 = vld [vmem:[%s3 + $0x8] sm:$0xf]
      %v557 = vld [vmem:[%s3 + $0xc] sm:$0xf]
      %v558 = vld [vmem:[%s3 + $0x10] sm:$0xf]
      %v559 = vld [vmem:[%s3 + $0x14] sm:$0xf]
      %v560 = vld [vmem:[%s3 + $0x18] sm:$0xf]
      %v561 = vld [vmem:[%s3 + $0x1c] sm:$0xf]
      %v562 = vld [vmem:[%s3 + $0x20] sm:$0xf]
      %v563 = vld [vmem:[%s3 + $0x24] sm:$0xf]
      %v564 = vld [vmem:[%s3 + $0x28] sm:$0xf]
      %v565 = vld [vmem:[%s3 + $0x2c] sm:$0xf]
      %v566 = vld [vmem:[%s3 + $0x30] sm:$0xf]
      %v567 = vld [vmem:[%s3 + $0x34] sm:$0xf]
      %v568 = vld [vmem:[%s3 + $0x38] sm:$0xf]
      %v569 = vld [vmem:[%s3 + $0x3c] sm:$0xf]
      %v570 = vld [vmem:[%s3 + $0x40] sm:$0xf]
      %v571 = vld [vmem:[%s3 + $0x44] sm:$0xf]
      %v572 = vld [vmem:[%s3 + $0x48] sm:$0xf]
      %v573 = vld [vmem:[%s3 + $0x4c] sm:$0xf]
      %v574 = vld [vmem:[%s3 + $0x50] sm:$0xf]
      %v575 = vld [vmem:[%s3 + $0x54] sm:$0xf]
      %v576 = vld [vmem:[%s3 + $0x58] sm:$0xf]
      %v577 = vld [vmem:[%s3 + $0x5c] sm:$0xf]
      %v578 = vld [vmem:[%s3 + $0x60] sm:$0xf]
      %v579 = vld [vmem:[%s3 + $0x64] sm:$0xf]
      %v580 = vld [vmem:[%s3 + $0x68] sm:$0xf]
      %v581 = vld [vmem:[%s3 + $0x6c] sm:$0xf]
      %v582 = vld [vmem:[%s3 + $0x70] sm:$0xf]
      %v583 = vld [vmem:[%s3 + $0x74] sm:$0xf]
      %v584 = vld [vmem:[%s3 + $0x78] sm:$0xf]
      %v585 = vld [vmem:[%s3 + $0x7c] sm:$0xf]
      %v587 = vunpack.c.l.b16 %v553
      %v588 = vunpack.c.h.b16 %v553
      %v589 = vpack.c.b16 %v587, %v587
      %v590 = vpack.c.b16 %v588, %v588
      %v625 = vunpack.c.l.b16 %v554
      %v626 = vunpack.c.l.b16 %v555
      %v627 = vunpack.c.l.b16 %v556
      %v628 = vunpack.c.l.b16 %v557
      %v629 = vunpack.c.l.b16 %v558
      %v630 = vunpack.c.l.b16 %v559
      %v631 = vunpack.c.l.b16 %v560
      %v632 = vunpack.c.l.b16 %v561
      %v633 = vunpack.c.l.b16 %v562
      %v634 = vunpack.c.l.b16 %v563
      %v635 = vunpack.c.l.b16 %v564
      %v636 = vunpack.c.l.b16 %v565
      %v637 = vunpack.c.l.b16 %v566
      %v638 = vunpack.c.l.b16 %v567
      %v639 = vunpack.c.l.b16 %v568
      %v640 = vunpack.c.l.b16 %v569
      %v641 = vunpack.c.l.b16 %v570
      %v642 = vunpack.c.l.b16 %v571
      %v643 = vunpack.c.l.b16 %v572
      %v644 = vunpack.c.l.b16 %v573
      %v645 = vunpack.c.l.b16 %v574
      %v646 = vunpack.c.l.b16 %v575
      %v647 = vunpack.c.l.b16 %v576
      %v648 = vunpack.c.l.b16 %v577
      %v649 = vunpack.c.l.b16 %v578
      %v650 = vunpack.c.l.b16 %v579
      %v651 = vunpack.c.l.b16 %v580
      %v652 = vunpack.c.l.b16 %v581
      %v653 = vunpack.c.l.b16 %v582
      %v654 = vunpack.c.l.b16 %v583
      %v655 = vunpack.c.l.b16 %v584
      %v656 = vunpack.c.l.b16 %v585
      %v657 = vpack.c.b16 %v626, %v625
      %v658 = vpack.c.b16 %v628, %v627
      %v659 = vpack.c.b16 %v630, %v629
      %v660 = vpack.c.b16 %v632, %v631
      %v661 = vpack.c.b16 %v634, %v633
      %v662 = vpack.c.b16 %v636, %v635
      %v663 = vpack.c.b16 %v638, %v637
      %v664 = vpack.c.b16 %v640, %v639
      %v665 = vpack.c.b16 %v642, %v641
      %v666 = vpack.c.b16 %v644, %v643
      %v667 = vpack.c.b16 %v646, %v645
      %v668 = vpack.c.b16 %v648, %v647
      %v669 = vpack.c.b16 %v650, %v649
      %v670 = vpack.c.b16 %v652, %v651
      %v671 = vpack.c.b16 %v654, %v653
      %v672 = vpack.c.b16 %v656, %v655
      %689 = vmatprep.subr.bf16.mxu0 0
      %690 = vmatpush1.bf16.msra.mxu0 %v657
      %691 = vmatprep.subr.bf16.mxu0 0
      %692 = vmatpush1.bf16.msra.mxu0 %v658
      %693 = vmatprep.subr.bf16.mxu0 0
      %694 = vmatpush1.bf16.msra.mxu0 %v659
      %695 = vmatprep.subr.bf16.mxu0 0
      %696 = vmatpush1.bf16.msra.mxu0 %v660
      %697 = vmatprep.subr.bf16.mxu0 0
      %698 = vmatpush1.bf16.msra.mxu0 %v661
      %699 = vmatprep.subr.bf16.mxu0 0
      %700 = vmatpush1.bf16.msra.mxu0 %v662
      %701 = vmatprep.subr.bf16.mxu0 0
      %702 = vmatpush1.bf16.msra.mxu0 %v663
      %703 = vmatprep.subr.bf16.mxu0 0
      %704 = vmatpush1.bf16.msra.mxu0 %v664
      %705 = vmatprep.subr.bf16.mxu0 0
      %706 = vmatpush1.bf16.msra.mxu0 %v665
      %707 = vmatprep.subr.bf16.mxu0 0
      %708 = vmatpush1.bf16.msra.mxu0 %v666
      %709 = vmatprep.subr.bf16.mxu0 0
      %710 = vmatpush1.bf16.msra.mxu0 %v667
      %711 = vmatprep.subr.bf16.mxu0 0
      %712 = vmatpush1.bf16.msra.mxu0 %v668
      %713 = vmatprep.subr.bf16.mxu0 0
      %714 = vmatpush1.bf16.msra.mxu0 %v669
      %715 = vmatprep.subr.bf16.mxu0 0
      %716 = vmatpush1.bf16.msra.mxu0 %v670
      %717 = vmatprep.subr.bf16.mxu0 0
      %718 = vmatpush1.bf16.msra.mxu0 %v671
      %719 = vmatprep.subr.bf16.mxu0 0
      %720 = vmatpush1.bf16.msra.mxu0 %v672
      %721 = vmatprep.mubr.bf16.mxu0 %v590
      %722 = vmatmul.mubr.bf16.gmra.mrb[0].mxu0 %v589
      %v723 = vpop.f32.mrb[0].mxu0
      %v724 = vadd.f32 %v408, %v723
      %v725 = vpop.f32.mrb[0].mxu0
      %v726 = vpop.f32.mrb[0].mxu0
      %v727 = vpop.f32.mrb[0].mxu0
      %728 = vdwg.mxu0
      %vm729 = vcmp.ge.f32.partialorder %v548, 0.0
      %v730 = vmul.f32 %v548, 0.2
      %v731 = vsel %vm729, %v548, %v730
      %vm732 = vcmp.ge.f32.partialorder %v724, 0.0
      %v733 = vmul.f32 %v724, 0.2
      %v734 = vsel %vm732, %v724, %v733
      %v735 = vld [vmem:[%s356] sm:$0xff]
      %v736 = vadd.f32 %v731, %v735
      %737 = vst [vmem:[%s364] sm:$0xff] %v736
      %v738 = vld [vmem:[%s360] sm:$0xff]
      %v739 = vadd.f32 %v734, %v738
      %740 = vst [vmem:[%s368] sm:$0xff] %v739
      %p741 = scmp.lt.s32.totalorder %s20, 1
      %s742 = scalar_select %p741, %s20, 1
      %s743 = smul.addr %s742, 8
      %s744 = scalar_lea.vmem %s7, %s743
      %p745 = scmp.lt.s32.totalorder %s20, 1
      %s746 = scalar_select %p745, %s20, 1
      %s747 = smul.addr %s746, 8
      %s748 = scalar_lea.vmem %s8, %s747
      // Predicated region
      $region49: #{unet_forward.19} parent=47 // pred_check
        %p749 = pneg %p205
      $region50: #{unet_forward.19} parent=47 // pred_check_branch
        %751 = sbr.rel (%p749) target = $region52
      $region51: #{unet_forward.19} parent=47 // pred_region
        _
      $region52: #{unet_forward.19} parent=47 // pred_fallthru
        _
      // Predicated region
      $region53: #{unet_forward.19} parent=47 // pred_check
        %p752 = pneg %p231
      $region54: #{unet_forward.19} parent=47 // pred_check_branch
        %754 = sbr.rel (%p752) target = $region56
      $region55: #{unet_forward.19} parent=47 // pred_region
        _
      $region56: #{unet_forward.19} parent=47 // pred_fallthru
        _
    $region48: #{unet_forward.19} parent=5 // pred_fallthru
      _
    %p755 = scmp.le.s32.totalorder 2, %s15
    // Predicated region
    $region57: #{unet_forward.19} parent=5 // pred_check
      %p756 = pneg %p755
    $region58: #{unet_forward.19} parent=5 // pred_check_branch
      %758 = sbr.rel (%p756) target = $region60
    $region59: #{unet_forward.19} parent=5 // pred_region
      %s759 = ssub.s32 %s15, 2
      // Predicated region
      $region61: #{unet_forward.19} parent=59 // pred_check
        %p760 = pneg %p211
      $region62: #{unet_forward.19} parent=59 // pred_check_branch
        %762 = sbr.rel (%p760) target = $region64
      $region63: #{unet_forward.19} parent=59 // pred_region
        %p763 = scmp.lt.s32.totalorder %s21, 1
        %s764 = scalar_select %p763, %s21, 1
        %s765 = smul.addr %s764, 8
        %s766 = scalar_lea.vmem %s7, %s765
      $region64: #{unet_forward.19} parent=59 // pred_fallthru
        _
      // Predicated region
      $region65: #{unet_forward.19} parent=59 // pred_check
        %p767 = pneg %p237
      $region66: #{unet_forward.19} parent=59 // pred_check_branch
        %769 = sbr.rel (%p767) target = $region68
      $region67: #{unet_forward.19} parent=59 // pred_region
        %p770 = scmp.lt.s32.totalorder %s21, 1
        %s771 = scalar_select %p770, %s21, 1
        %s772 = smul.addr %s771, 8
        %s773 = scalar_lea.vmem %s8, %s772
      $region68: #{unet_forward.19} parent=59 // pred_fallthru
        _
    $region60: #{unet_forward.19} parent=5 // pred_fallthru
      _
  $region6: #{unet_forward.19} parent=0 // loop_footer
    %s19 = sadd.s32 1, %s15
  $region7: #{unet_forward.19} parent=0 // loop_footer_branch
    %14 = sbr.rel target = $region3
  $region8: #{unet_forward.19} parent=0 // loop_exit
    _

// kernel: unet_forward.20
$region0: #{unet_forward.20}
  #allocation0 [shape = 'u32[]', space=smem, size = 0x4, offset = 0x4, fixed_abs, tag = 'smem constant byte address 0x4 - core index']
  #allocation1 [shape = 'u32[144,128]{1,0:T(1,128)}', space=vmem, size = 0x12000, scoped, tag = 'internal scratch']
  %s0 = inlined_call_operand.vmem [shape: bf16[2,16,256], index: 0, kind: input, shape index: {}]
  %s1 = inlined_call_operand.vmem [shape: bf16[2,16,256], index: 1, kind: input, shape index: {}]
  %s2 = inlined_call_operand.vmem [shape: bf16[256,128], index: 2, kind: input, shape index: {}]
  %s3 = inlined_call_operand.vmem [shape: bf16[256,128], index: 3, kind: input, shape index: {}]
  %s4 = inlined_call_operand.vmem [shape: f32[1,128], index: 4, kind: input, shape index: {}]
  %s5 = inlined_call_operand.vmem [shape: f32[2,16,128], index: 5, kind: input, shape index: {}]
  %s6 = inlined_call_operand.vmem [shape: f32[2,16,128], index: 6, kind: input, shape index: {}]
  %s7 = inlined_call_operand.vmem [shape: f32[2,16,128], index: 7, kind: output, shape index: {0}]
  %s8 = inlined_call_operand.vmem [shape: f32[2,16,128], index: 8, kind: output, shape index: {1}]
  %9 = xla_tuple %s7, %s8
  %s10 = sld [smem:[#allocation0]]
  $region69: #{unet_forward.20} parent=0
    _
  %s12 = ssub.s32 1, %s10
  %s13 = scalar_select 0, %s12, %s10
  loop: start=0, step=1, limit=4
  $region2: #{unet_forward.20} parent=0 // loop_pre_header
    _
  $region3: #{unet_forward.20} parent=0 // loop_header
    %s15 = sphi 0, %s19
    %p16 = scmp.ge.s32.totalorder %s15, 4
    %s25 = sphi 0, %s27
    %s28 = sphi 0, %s25
    %s29 = sphi 0, %s28
    %s45 = sphi 0, %s29
    %s51 = sphi 0, %s53
    %s54 = sphi 0, %s51
    %s55 = sphi 0, %s54
    %s71 = sphi 0, %s55
    %s75 = sphi 0, %s75
    %s77 = sphi 0, %s75
    %s78 = sphi 0, %s77
    %s92 = sphi 0, %s78
    %s96 = sphi 0, %s96
    %s98 = sphi 0, %s96
    %s99 = sphi 0, %s98
    %s113 = sphi 0, %s99
    %s117 = sphi 0, %s117
    %s119 = sphi 0, %s117
    %s120 = sphi 0, %s119
    %s134 = sphi 0, %s120
    %s140 = sphi 0, %s142
    %s143 = sphi 0, %s140
    %s144 = sphi 0, %s143
    %s160 = sphi 0, %s144
    %s166 = sphi 0, %s168
    %s169 = sphi 0, %s166
    %s170 = sphi 0, %s169
    %s186 = sphi 0, %s170
    %s192 = sphi 0, %s194
    %s195 = sphi 0, %s192
    %s196 = sphi 0, %s195
    %s212 = sphi 0, %s196
    %s218 = sphi 0, %s220
    %s221 = sphi 0, %s218
    %s222 = sphi 0, %s221
    %s238 = sphi 0, %s222
  $region4: #{unet_forward.20} parent=0 // loop_header_branch
    %18 = sbr.rel (%p16) target = $region8
  $region5: #{unet_forward.20} parent=0 // loop_body
    %s20 = ssub.s32 %s15, 1
    %s21 = ssub.s32 %s15, 2
    %s22 = sadd.s32 %s15, 1
    %s23 = ssub.s32 %s15, %s22
    %p24 = scmp.eq.s32.totalorder %s23, 0
    %s26 = sadd.s32 %s25, 1
    %s27 = scalar_select %p24, %s25, %s26
    %p30 = pneg %p24
    %p31 = scmp.eq.s32.totalorder %s15, 1
    %p32 = por %p30, %p31
    %p33 = scmp.ne.s32.totalorder %s25, %s28
    %p34 = scmp.eq.s32.totalorder %s15, 0
    %p35 = por %p33, %p34
    %p36 = scmp.ne.s32.totalorder %s25, %s28
    %p37 = scmp.eq.s32.totalorder %s20, 1
    %p38 = por %p36, %p37
    %p39 = scmp.ne.s32.totalorder %s28, %s29
    %p40 = scmp.eq.s32.totalorder %s20, 0
    %p41 = por %p39, %p40
    %p42 = scmp.ne.s32.totalorder %s28, %s29
    %p43 = scmp.eq.s32.totalorder %s21, 1
    %p44 = por %p42, %p43
    %p46 = scmp.ne.s32.totalorder %s29, %s45
    %p47 = scmp.eq.s32.totalorder %s21, 0
    %p48 = por %p46, %p47
    %s49 = ssub.s32 %s15, %s22
    %p50 = scmp.eq.s32.totalorder %s49, 0
    %s52 = sadd.s32 %s51, 1
    %s53 = scalar_select %p50, %s51, %s52
    %p56 = pneg %p50
    %p57 = scmp.eq.s32.totalorder %s15, 1
    %p58 = por %p56, %p57
    %p59 = scmp.ne.s32.totalorder %s51, %s54
    %p60 = scmp.eq.s32.totalorder %s15, 0
    %p61 = por %p59, %p60
    %p62 = scmp.ne.s32.totalorder %s51, %s54
    %p63 = scmp.eq.s32.totalorder %s20, 1
    %p64 = por %p62, %p63
    %p65 = scmp.ne.s32.totalorder %s54, %s55
    %p66 = scmp.eq.s32.totalorder %s20, 0
    %p67 = por %p65, %p66
    %p68 = scmp.ne.s32.totalorder %s54, %s55
    %p69 = scmp.eq.s32.totalorder %s21, 1
    %p70 = por %p68, %p69
    %p72 = scmp.ne.s32.totalorder %s55, %s71
    %p73 = scmp.eq.s32.totalorder %s21, 0
    %p74 = por %p72, %p73
    %s76 = sadd.s32 %s75, 1
    %p79 = scmp.eq.s32.totalorder %s15, 1
    %p80 = scmp.ne.s32.totalorder %s75, %s77
    %p81 = scmp.eq.s32.totalorder %s15, 0
    %p82 = por %p80, %p81
    %p83 = scmp.ne.s32.totalorder %s75, %s77
    %p84 = scmp.eq.s32.totalorder %s20, 1
    %p85 = por %p83, %p84
    %p86 = scmp.ne.s32.totalorder %s77, %s78
    %p87 = scmp.eq.s32.totalorder %s20, 0
    %p88 = por %p86, %p87
    %p89 = scmp.ne.s32.totalorder %s77, %s78
    %p90 = scmp.eq.s32.totalorder %s21, 1
    %p91 = por %p89, %p90
    %p93 = scmp.ne.s32.totalorder %s78, %s92
    %p94 = scmp.eq.s32.totalorder %s21, 0
    %p95 = por %p93, %p94
    %s97 = sadd.s32 %s96, 1
    %p100 = scmp.eq.s32.totalorder %s15, 1
    %p101 = scmp.ne.s32.totalorder %s96, %s98
    %p102 = scmp.eq.s32.totalorder %s15, 0
    %p103 = por %p101, %p102
    %p104 = scmp.ne.s32.totalorder %s96, %s98
    %p105 = scmp.eq.s32.totalorder %s20, 1
    %p106 = por %p104, %p105
    %p107 = scmp.ne.s32.totalorder %s98, %s99
    %p108 = scmp.eq.s32.totalorder %s20, 0
    %p109 = por %p107, %p108
    %p110 = scmp.ne.s32.totalorder %s98, %s99
    %p111 = scmp.eq.s32.totalorder %s21, 1
    %p112 = por %p110, %p111
    %p114 = scmp.ne.s32.totalorder %s99, %s113
    %p115 = scmp.eq.s32.totalorder %s21, 0
    %p116 = por %p114, %p115
    %s118 = sadd.s32 %s117, 1
    %p121 = scmp.eq.s32.totalorder %s15, 1
    %p122 = scmp.ne.s32.totalorder %s117, %s119
    %p123 = scmp.eq.s32.totalorder %s15, 0
    %p124 = por %p122, %p123
    %p125 = scmp.ne.s32.totalorder %s117, %s119
    %p126 = scmp.eq.s32.totalorder %s20, 1
    %p127 = por %p125, %p126
    %p128 = scmp.ne.s32.totalorder %s119, %s120
    %p129 = scmp.eq.s32.totalorder %s20, 0
    %p130 = por %p128, %p129
    %p131 = scmp.ne.s32.totalorder %s119, %s120
    %p132 = scmp.eq.s32.totalorder %s21, 1
    %p133 = por %p131, %p132
    %p135 = scmp.ne.s32.totalorder %s120, %s134
    %p136 = scmp.eq.s32.totalorder %s21, 0
    %p137 = por %p135, %p136
    %s138 = ssub.s32 %s15, %s22
    %p139 = scmp.eq.s32.totalorder %s138, 0
    %s141 = sadd.s32 %s140, 1
    %s142 = scalar_select %p139, %s140, %s141
    %p145 = pneg %p139
    %p146 = scmp.eq.s32.totalorder %s15, 1
    %p147 = por %p145, %p146
    %p148 = scmp.ne.s32.totalorder %s140, %s143
    %p149 = scmp.eq.s32.totalorder %s15, 0
    %p150 = por %p148, %p149
    %p151 = scmp.ne.s32.totalorder %s140, %s143
    %p152 = scmp.eq.s32.totalorder %s20, 1
    %p153 = por %p151, %p152
    %p154 = scmp.ne.s32.totalorder %s143, %s144
    %p155 = scmp.eq.s32.totalorder %s20, 0
    %p156 = por %p154, %p155
    %p157 = scmp.ne.s32.totalorder %s143, %s144
    %p158 = scmp.eq.s32.totalorder %s21, 1
    %p159 = por %p157, %p158
    %p161 = scmp.ne.s32.totalorder %s144, %s160
    %p162 = scmp.eq.s32.totalorder %s21, 0
    %p163 = por %p161, %p162
    %s164 = ssub.s32 %s15, %s22
    %p165 = scmp.eq.s32.totalorder %s164, 0
    %s167 = sadd.s32 %s166, 1
    %s168 = scalar_select %p165, %s166, %s167
    %p171 = pneg %p165
    %p172 = scmp.eq.s32.totalorder %s15, 1
    %p173 = por %p171, %p172
    %p174 = scmp.ne.s32.totalorder %s166, %s169
    %p175 = scmp.eq.s32.totalorder %s15, 0
    %p176 = por %p174, %p175
    %p177 = scmp.ne.s32.totalorder %s166, %s169
    %p178 = scmp.eq.s32.totalorder %s20, 1
    %p179 = por %p177, %p178
    %p180 = scmp.ne.s32.totalorder %s169, %s170
    %p181 = scmp.eq.s32.totalorder %s20, 0
    %p182 = por %p180, %p181
    %p183 = scmp.ne.s32.totalorder %s169, %s170
    %p184 = scmp.eq.s32.totalorder %s21, 1
    %p185 = por %p183, %p184
    %p187 = scmp.ne.s32.totalorder %s170, %s186
    %p188 = scmp.eq.s32.totalorder %s21, 0
    %p189 = por %p187, %p188
    %s190 = ssub.s32 %s15, %s22
    %p191 = scmp.eq.s32.totalorder %s190, 0
    %s193 = sadd.s32 %s192, 1
    %s194 = scalar_select %p191, %s192, %s193
    %p197 = pneg %p191
    %p198 = scmp.eq.s32.totalorder %s15, 1
    %p199 = por %p197, %p198
    %p200 = scmp.ne.s32.totalorder %s192, %s195
    %p201 = scmp.eq.s32.totalorder %s15, 0
    %p202 = por %p200, %p201
    %p203 = scmp.ne.s32.totalorder %s192, %s195
    %p204 = scmp.eq.s32.totalorder %s20, 1
    %p205 = por %p203, %p204
    %p206 = scmp.ne.s32.totalorder %s195, %s196
    %p207 = scmp.eq.s32.totalorder %s20, 0
    %p208 = por %p206, %p207
    %p209 = scmp.ne.s32.totalorder %s195, %s196
    %p210 = scmp.eq.s32.totalorder %s21, 1
    %p211 = por %p209, %p210
    %p213 = scmp.ne.s32.totalorder %s196, %s212
    %p214 = scmp.eq.s32.totalorder %s21, 0
    %p215 = por %p213, %p214
    %s216 = ssub.s32 %s15, %s22
    %p217 = scmp.eq.s32.totalorder %s216, 0
    %s219 = sadd.s32 %s218, 1
    %s220 = scalar_select %p217, %s218, %s219
    %p223 = pneg %p217
    %p224 = scmp.eq.s32.totalorder %s15, 1
    %p225 = por %p223, %p224
    %p226 = scmp.ne.s32.totalorder %s218, %s221
    %p227 = scmp.eq.s32.totalorder %s15, 0
    %p228 = por %p226, %p227
    %p229 = scmp.ne.s32.totalorder %s218, %s221
    %p230 = scmp.eq.s32.totalorder %s20, 1
    %p231 = por %p229, %p230
    %p232 = scmp.ne.s32.totalorder %s221, %s222
    %p233 = scmp.eq.s32.totalorder %s20, 0
    %p234 = por %p232, %p233
    %p235 = scmp.ne.s32.totalorder %s221, %s222
    %p236 = scmp.eq.s32.totalorder %s21, 1
    %p237 = por %p235, %p236
    %p239 = scmp.ne.s32.totalorder %s222, %s238
    %p240 = scmp.eq.s32.totalorder %s21, 0
    %p241 = por %p239, %p240
    %p242 = scmp.le.s32.totalorder 1, %s15
    %p243 = scmp.lt.s32.totalorder %s15, 3
    %p244 = pnand %p242, %p243
    %p245 = pneg %p244
    // Predicated region
    $region9: #{unet_forward.20} parent=5 // pred_check
      _
    $region10: #{unet_forward.20} parent=5 // pred_check_branch
      %247 = sbr.rel (%p244) target = $region12
    $region11: #{unet_forward.20} parent=5 // pred_region
      %s248 = ssub.s32 %s15, 1
      // Predicated region
      $region13: #{unet_forward.20} parent=11 // pred_check
        %p249 = pneg %p88
      $region14: #{unet_forward.20} parent=11 // pred_check_branch
        %251 = sbr.rel (%p249) target = $region16
      $region15: #{unet_forward.20} parent=11 // pred_region
        _
      $region16: #{unet_forward.20} parent=11 // pred_fallthru
        _
      // Predicated region
      $region17: #{unet_forward.20} parent=11 // pred_check
        %p252 = pneg %p109
      $region18: #{unet_forward.20} parent=11 // pred_check_branch
        %254 = sbr.rel (%p252) target = $region20
      $region19: #{unet_forward.20} parent=11 // pred_region
        _
      $region20: #{unet_forward.20} parent=11 // pred_fallthru
        _
      // Predicated region
      $region21: #{unet_forward.20} parent=11 // pred_check
        %p255 = pneg %p130
      $region22: #{unet_forward.20} parent=11 // pred_check_branch
        %257 = sbr.rel (%p255) target = $region24
      $region23: #{unet_forward.20} parent=11 // pred_region
        _
      $region24: #{unet_forward.20} parent=11 // pred_fallthru
        _
    $region12: #{unet_forward.20} parent=5 // pred_fallthru
      _
    %p258 = scmp.lt.s32.totalorder %s15, 2
    // Predicated region
    $region25: #{unet_forward.20} parent=5 // pred_check
      %p259 = pneg %p258
    $region26: #{unet_forward.20} parent=5 // pred_check_branch
      %261 = sbr.rel (%p259) target = $region28
    $region27: #{unet_forward.20} parent=5 // pred_region
      // Predicated region
      $region29: #{unet_forward.20} parent=27 // pred_check
        %p262 = pneg %p35
      $region30: #{unet_forward.20} parent=27 // pred_check_branch
        %264 = sbr.rel (%p262) target = $region32
      $region31: #{unet_forward.20} parent=27 // pred_region
        %p265 = scmp.lt.s32.totalorder %s15, 1
        %s266 = scalar_select %p265, %s15, 1
        %s267 = smul.addr %s266, 4
        %s268 = smul.addr %s267, 4
        %s269 = scalar_lea.vmem %s0, %s268
      $region32: #{unet_forward.20} parent=27 // pred_fallthru
        _
      // Predicated region
      $region33: #{unet_forward.20} parent=27 // pred_check
        %p270 = pneg %p61
      $region34: #{unet_forward.20} parent=27 // pred_check_branch
        %272 = sbr.rel (%p270) target = $region36
      $region35: #{unet_forward.20} parent=27 // pred_region
        %p273 = scmp.lt.s32.totalorder %s15, 1
        %s274 = scalar_select %p273, %s15, 1
        %s275 = smul.addr %s274, 4
        %s276 = smul.addr %s275, 4
        %s277 = scalar_lea.vmem %s1, %s276
      $region36: #{unet_forward.20} parent=27 // pred_fallthru
        _
      // Predicated region
      $region37: #{unet_forward.20} parent=27 // pred_check
        %p278 = pneg %p150
      $region38: #{unet_forward.20} parent=27 // pred_check_branch
        %280 = sbr.rel (%p278) target = $region40
      $region39: #{unet_forward.20} parent=27 // pred_region
        %p281 = scmp.lt.s32.totalorder %s15, 1
        %s282 = scalar_select %p281, %s15, 1
        %s283 = smul.addr %s282, 2
        %s284 = smul.addr %s283, 8
        %s285 = scalar_lea.vmem %s5, %s284
      $region40: #{unet_forward.20} parent=27 // pred_fallthru
        _
      // Predicated region
      $region41: #{unet_forward.20} parent=27 // pred_check
        %p286 = pneg %p176
      $region42: #{unet_forward.20} parent=27 // pred_check_branch
        %288 = sbr.rel (%p286) target = $region44
      $region43: #{unet_forward.20} parent=27 // pred_region
        %p289 = scmp.lt.s32.totalorder %s15, 1
        %s290 = scalar_select %p289, %s15, 1
        %s291 = smul.addr %s290, 2
        %s292 = smul.addr %s291, 8
        %s293 = scalar_lea.vmem %s6, %s292
      $region44: #{unet_forward.20} parent=27 // pred_fallthru
        _
    $region28: #{unet_forward.20} parent=5 // pred_fallthru
      _
    %p294 = scmp.le.s32.totalorder 1, %s15
    %p295 = scmp.lt.s32.totalorder %s15, 3
    %p296 = pnand %p294, %p295
    %p297 = pneg %p296
    // Predicated region
    $region45: #{unet_forward.20} parent=5 // pred_check
      _
    $region46: #{unet_forward.20} parent=5 // pred_check_branch
      %299 = sbr.rel (%p296) target = $region48
    $region47: #{unet_forward.20} parent=5 // pred_region
      %s300 = ssub.s32 %s15, 1
      %p301 = scmp.lt.s32.totalorder %s20, 1
      %s302 = scalar_select %p301, %s20, 1
      %s303 = smul.addr %s302, 4
      %s304 = smul.addr %s303, 4
      %s305 = scalar_lea.vmem %s0, %s304
      %p306 = pneg %p41
      %p307 = pneg %p38
      %p308 = scmp.lt.s32.totalorder %s20, 1
      %s309 = scalar_select %p308, %s20, 1
      %s310 = smul.addr %s309, 4
      %s311 = smul.addr %s310, 4
      %s312 = scalar_lea.vmem %s1, %s311
      %p313 = pneg %p67
      %p314 = pneg %p64
      %p315 = pneg %p88
      %p316 = pneg %p85
      %p317 = pneg %p109
      %p318 = pneg %p106
      %p319 = pneg %p130
      %p320 = pneg %p127
      %p321 = scmp.lt.s32.totalorder %s20, 1
      %s322 = scalar_select %p321, %s20, 1
      %s323 = smul.addr %s322, 2
      %s324 = smul.addr %s323, 8
      %s325 = scalar_lea.vmem %s5, %s324
      %p326 = pneg %p156
      %p327 = pneg %p153
      %p328 = scmp.lt.s32.totalorder %s20, 1
      %s329 = scalar_select %p328, %s20, 1
      %s330 = smul.addr %s329, 2
      %s331 = smul.addr %s330, 8
      %s332 = scalar_lea.vmem %s6, %s331
      %p333 = pneg %p182
      %p334 = pneg %p179
      %p335 = pneg %p208
      %p336 = pneg %p205
      %p337 = scmp.lt.s32.totalorder %s20, 1
      %s338 = scalar_select %p337, %s20, 1
      %s339 = smul.addr %s338, 2
      %s340 = smul.addr %s339, 8
      %s341 = scalar_lea.vmem %s7, %s340
      %p342 = pneg %p234
      %p343 = pneg %p231
      %p344 = scmp.lt.s32.totalorder %s20, 1
      %s345 = scalar_select %p344, %s20, 1
      %s346 = smul.addr %s345, 2
      %s347 = smul.addr %s346, 8
      %s348 = scalar_lea.vmem %s8, %s347
      %p349 = scmp.lt.s32.totalorder %s20, 1
      %s350 = scalar_select %p349, %s20, 1
      %s351 = smul.addr %s350, 4
      %s352 = smul.addr %s351, 4
      %s353 = scalar_lea.vmem %s0, %s352
      %p354 = scmp.lt.s32.totalorder %s20, 1
      %s355 = scalar_select %p354, %s20, 1
      %s356 = smul.addr %s355, 4
      %s357 = smul.addr %s356, 4
      %s358 = scalar_lea.vmem %s1, %s357
      %p359 = scmp.lt.s32.totalorder %s20, 1
      %s360 = scalar_select %p359, %s20, 1
      %s361 = smul.addr %s360, 2
      %s362 = smul.addr %s361, 8
      %s363 = scalar_lea.vmem %s5, %s362
      %p364 = scmp.lt.s32.totalorder %s20, 1
      %s365 = scalar_select %p364, %s20, 1
      %s366 = smul.addr %s365, 2
      %s367 = smul.addr %s366, 8
      %s368 = scalar_lea.vmem %s6, %s367
      %p369 = scmp.lt.s32.totalorder %s20, 1
      %s370 = scalar_select %p369, %s20, 1
      %s371 = smul.addr %s370, 2
      %s372 = smul.addr %s371, 8
      %s373 = scalar_lea.vmem %s7, %s372
      %p374 = scmp.lt.s32.totalorder %s20, 1
      %s375 = scalar_select %p374, %s20, 1
      %s376 = smul.addr %s375, 2
      %s377 = smul.addr %s376, 8
      %s378 = scalar_lea.vmem %s8, %s377
      %v380 = vld [vmem:[%s353] sm:$0xff]
      %v381 = vld [vmem:[%s353 + $0x8] sm:$0xff]
      %v382 = vld [vmem:[%s2] sm:$0xf]
      %v383 = vld [vmem:[%s2 + $0x4] sm:$0xf]
      %v384 = vld [vmem:[%s2 + $0x8] sm:$0xf]
      %v385 = vld [vmem:[%s2 + $0xc] sm:$0xf]
      %v386 = vld [vmem:[%s2 + $0x10] sm:$0xf]
      %v387 = vld [vmem:[%s2 + $0x14] sm:$0xf]
      %v388 = vld [vmem:[%s2 + $0x18] sm:$0xf]
      %v389 = vld [vmem:[%s2 + $0x1c] sm:$0xf]
      %v390 = vld [vmem:[%s2 + $0x20] sm:$0xf]
      %v391 = vld [vmem:[%s2 + $0x24] sm:$0xf]
      %v392 = vld [vmem:[%s2 + $0x28] sm:$0xf]
      %v393 = vld [vmem:[%s2 + $0x2c] sm:$0xf]
      %v394 = vld [vmem:[%s2 + $0x30] sm:$0xf]
      %v395 = vld [vmem:[%s2 + $0x34] sm:$0xf]
      %v396 = vld [vmem:[%s2 + $0x38] sm:$0xf]
      %v397 = vld [vmem:[%s2 + $0x3c] sm:$0xf]
      %v398 = vld [vmem:[%s2 + $0x40] sm:$0xf]
      %v399 = vld [vmem:[%s2 + $0x44] sm:$0xf]
      %v400 = vld [vmem:[%s2 + $0x48] sm:$0xf]
      %v401 = vld [vmem:[%s2 + $0x4c] sm:$0xf]
      %v402 = vld [vmem:[%s2 + $0x50] sm:$0xf]
      %v403 = vld [vmem:[%s2 + $0x54] sm:$0xf]
      %v404 = vld [vmem:[%s2 + $0x58] sm:$0xf]
      %v405 = vld [vmem:[%s2 + $0x5c] sm:$0xf]
      %v406 = vld [vmem:[%s2 + $0x60] sm:$0xf]
      %v407 = vld [vmem:[%s2 + $0x64] sm:$0xf]
      %v408 = vld [vmem:[%s2 + $0x68] sm:$0xf]
      %v409 = vld [vmem:[%s2 + $0x6c] sm:$0xf]
      %v410 = vld [vmem:[%s2 + $0x70] sm:$0xf]
      %v411 = vld [vmem:[%s2 + $0x74] sm:$0xf]
      %v412 = vld [vmem:[%s2 + $0x78] sm:$0xf]
      %v413 = vld [vmem:[%s2 + $0x7c] sm:$0xf]
      %v414 = vld [vmem:[%s4] sm:$0x1]
      %v416 = vlaneseq
      %v417 = vshrl.u32 %v416, 7
      %v418 = vsub.s32 0, %v417
      %v419 = vrot.slane %v414, %v418
      %v423 = vunpack.c.l.b16 %v380
      %v424 = vunpack.c.h.b16 %v380
      %v425 = vunpack.c.l.b16 %v381
      %v426 = vunpack.c.h.b16 %v381
      %v427 = vpack.c.b16 %v425, %v423
      %v428 = vpack.c.b16 %v426, %v424
      %v463 = vunpack.c.l.b16 %v382
      %v464 = vunpack.c.l.b16 %v383
      %v465 = vunpack.c.l.b16 %v384
      %v466 = vunpack.c.l.b16 %v385
      %v467 = vunpack.c.l.b16 %v386
      %v468 = vunpack.c.l.b16 %v387
      %v469 = vunpack.c.l.b16 %v388
      %v470 = vunpack.c.l.b16 %v389
      %v471 = vunpack.c.l.b16 %v390
      %v472 = vunpack.c.l.b16 %v391
      %v473 = vunpack.c.l.b16 %v392
      %v474 = vunpack.c.l.b16 %v393
      %v475 = vunpack.c.l.b16 %v394
      %v476 = vunpack.c.l.b16 %v395
      %v477 = vunpack.c.l.b16 %v396
      %v478 = vunpack.c.l.b16 %v397
      %v479 = vunpack.c.l.b16 %v398
      %v480 = vunpack.c.l.b16 %v399
      %v481 = vunpack.c.l.b16 %v400
      %v482 = vunpack.c.l.b16 %v401
      %v483 = vunpack.c.l.b16 %v402
      %v484 = vunpack.c.l.b16 %v403
      %v485 = vunpack.c.l.b16 %v404
      %v486 = vunpack.c.l.b16 %v405
      %v487 = vunpack.c.l.b16 %v406
      %v488 = vunpack.c.l.b16 %v407
      %v489 = vunpack.c.l.b16 %v408
      %v490 = vunpack.c.l.b16 %v409
      %v491 = vunpack.c.l.b16 %v410
      %v492 = vunpack.c.l.b16 %v411
      %v493 = vunpack.c.l.b16 %v412
      %v494 = vunpack.c.l.b16 %v413
      %v495 = vpack.c.b16 %v464, %v463
      %v496 = vpack.c.b16 %v466, %v465
      %v497 = vpack.c.b16 %v468, %v467
      %v498 = vpack.c.b16 %v470, %v469
      %v499 = vpack.c.b16 %v472, %v471
      %v500 = vpack.c.b16 %v474, %v473
      %v501 = vpack.c.b16 %v476, %v475
      %v502 = vpack.c.b16 %v478, %v477
      %v503 = vpack.c.b16 %v480, %v479
      %v504 = vpack.c.b16 %v482, %v481
      %v505 = vpack.c.b16 %v484, %v483
      %v506 = vpack.c.b16 %v486, %v485
      %v507 = vpack.c.b16 %v488, %v487
      %v508 = vpack.c.b16 %v490, %v489
      %v509 = vpack.c.b16 %v492, %v491
      %v510 = vpack.c.b16 %v494, %v493
      %527 = vmatprep.subr.bf16.mxu0 0
      %528 = vmatpush1.bf16.msra.mxu0 %v495
      %529 = vmatprep.subr.bf16.mxu0 0
      %530 = vmatpush1.bf16.msra.mxu0 %v496
      %531 = vmatprep.subr.bf16.mxu0 0
      %532 = vmatpush1.bf16.msra.mxu0 %v497
      %533 = vmatprep.subr.bf16.mxu0 0
      %534 = vmatpush1.bf16.msra.mxu0 %v498
      %535 = vmatprep.subr.bf16.mxu0 0
      %536 = vmatpush1.bf16.msra.mxu0 %v499
      %537 = vmatprep.subr.bf16.mxu0 0
      %538 = vmatpush1.bf16.msra.mxu0 %v500
      %539 = vmatprep.subr.bf16.mxu0 0
      %540 = vmatpush1.bf16.msra.mxu0 %v501
      %541 = vmatprep.subr.bf16.mxu0 0
      %542 = vmatpush1.bf16.msra.mxu0 %v502
      %543 = vmatprep.subr.bf16.mxu0 0
      %544 = vmatpush1.bf16.msra.mxu0 %v503
      %545 = vmatprep.subr.bf16.mxu0 0
      %546 = vmatpush1.bf16.msra.mxu0 %v504
      %547 = vmatprep.subr.bf16.mxu0 0
      %548 = vmatpush1.bf16.msra.mxu0 %v505
      %549 = vmatprep.subr.bf16.mxu0 0
      %550 = vmatpush1.bf16.msra.mxu0 %v506
      %551 = vmatprep.subr.bf16.mxu0 0
      %552 = vmatpush1.bf16.msra.mxu0 %v507
      %553 = vmatprep.subr.bf16.mxu0 0
      %554 = vmatpush1.bf16.msra.mxu0 %v508
      %555 = vmatprep.subr.bf16.mxu0 0
      %556 = vmatpush1.bf16.msra.mxu0 %v509
      %557 = vmatprep.subr.bf16.mxu0 0
      %558 = vmatpush1.bf16.msra.mxu0 %v510
      %559 = vmatprep.mubr.bf16.mxu0 %v428
      %560 = vmatmul.mubr.bf16.gmra.mrb[0].mxu0 %v427
      %v561 = vpop.f32.mrb[0].mxu0
      %v562 = vadd.f32 %v419, %v561
      %v563 = vpop.f32.mrb[0].mxu0
      %v564 = vpop.f32.mrb[0].mxu0
      %v565 = vadd.f32 %v419, %v564
      %v566 = vpop.f32.mrb[0].mxu0
      %567 = vdwg.mxu0
      %v568 = vld [vmem:[%s358] sm:$0xff]
      %v569 = vld [vmem:[%s358 + $0x8] sm:$0xff]
      %v570 = vld [vmem:[%s3] sm:$0xf]
      %v571 = vld [vmem:[%s3 + $0x4] sm:$0xf]
      %v572 = vld [vmem:[%s3 + $0x8] sm:$0xf]
      %v573 = vld [vmem:[%s3 + $0xc] sm:$0xf]
      %v574 = vld [vmem:[%s3 + $0x10] sm:$0xf]
      %v575 = vld [vmem:[%s3 + $0x14] sm:$0xf]
      %v576 = vld [vmem:[%s3 + $0x18] sm:$0xf]
      %v577 = vld [vmem:[%s3 + $0x1c] sm:$0xf]
      %v578 = vld [vmem:[%s3 + $0x20] sm:$0xf]
      %v579 = vld [vmem:[%s3 + $0x24] sm:$0xf]
      %v580 = vld [vmem:[%s3 + $0x28] sm:$0xf]
      %v581 = vld [vmem:[%s3 + $0x2c] sm:$0xf]
      %v582 = vld [vmem:[%s3 + $0x30] sm:$0xf]
      %v583 = vld [vmem:[%s3 + $0x34] sm:$0xf]
      %v584 = vld [vmem:[%s3 + $0x38] sm:$0xf]
      %v585 = vld [vmem:[%s3 + $0x3c] sm:$0xf]
      %v586 = vld [vmem:[%s3 + $0x40] sm:$0xf]
      %v587 = vld [vmem:[%s3 + $0x44] sm:$0xf]
      %v588 = vld [vmem:[%s3 + $0x48] sm:$0xf]
      %v589 = vld [vmem:[%s3 + $0x4c] sm:$0xf]
      %v590 = vld [vmem:[%s3 + $0x50] sm:$0xf]
      %v591 = vld [vmem:[%s3 + $0x54] sm:$0xf]
      %v592 = vld [vmem:[%s3 + $0x58] sm:$0xf]
      %v593 = vld [vmem:[%s3 + $0x5c] sm:$0xf]
      %v594 = vld [vmem:[%s3 + $0x60] sm:$0xf]
      %v595 = vld [vmem:[%s3 + $0x64] sm:$0xf]
      %v596 = vld [vmem:[%s3 + $0x68] sm:$0xf]
      %v597 = vld [vmem:[%s3 + $0x6c] sm:$0xf]
      %v598 = vld [vmem:[%s3 + $0x70] sm:$0xf]
      %v599 = vld [vmem:[%s3 + $0x74] sm:$0xf]
      %v600 = vld [vmem:[%s3 + $0x78] sm:$0xf]
      %v601 = vld [vmem:[%s3 + $0x7c] sm:$0xf]
      %v604 = vunpack.c.l.b16 %v568
      %v605 = vunpack.c.h.b16 %v568
      %v606 = vunpack.c.l.b16 %v569
      %v607 = vunpack.c.h.b16 %v569
      %v608 = vpack.c.b16 %v606, %v604
      %v609 = vpack.c.b16 %v607, %v605
      %v644 = vunpack.c.l.b16 %v570
      %v645 = vunpack.c.l.b16 %v571
      %v646 = vunpack.c.l.b16 %v572
      %v647 = vunpack.c.l.b16 %v573
      %v648 = vunpack.c.l.b16 %v574
      %v649 = vunpack.c.l.b16 %v575
      %v650 = vunpack.c.l.b16 %v576
      %v651 = vunpack.c.l.b16 %v577
      %v652 = vunpack.c.l.b16 %v578
      %v653 = vunpack.c.l.b16 %v579
      %v654 = vunpack.c.l.b16 %v580
      %v655 = vunpack.c.l.b16 %v581
      %v656 = vunpack.c.l.b16 %v582
      %v657 = vunpack.c.l.b16 %v583
      %v658 = vunpack.c.l.b16 %v584
      %v659 = vunpack.c.l.b16 %v585
      %v660 = vunpack.c.l.b16 %v586
      %v661 = vunpack.c.l.b16 %v587
      %v662 = vunpack.c.l.b16 %v588
      %v663 = vunpack.c.l.b16 %v589
      %v664 = vunpack.c.l.b16 %v590
      %v665 = vunpack.c.l.b16 %v591
      %v666 = vunpack.c.l.b16 %v592
      %v667 = vunpack.c.l.b16 %v593
      %v668 = vunpack.c.l.b16 %v594
      %v669 = vunpack.c.l.b16 %v595
      %v670 = vunpack.c.l.b16 %v596
      %v671 = vunpack.c.l.b16 %v597
      %v672 = vunpack.c.l.b16 %v598
      %v673 = vunpack.c.l.b16 %v599
      %v674 = vunpack.c.l.b16 %v600
      %v675 = vunpack.c.l.b16 %v601
      %v676 = vpack.c.b16 %v645, %v644
      %v677 = vpack.c.b16 %v647, %v646
      %v678 = vpack.c.b16 %v649, %v648
      %v679 = vpack.c.b16 %v651, %v650
      %v680 = vpack.c.b16 %v653, %v652
      %v681 = vpack.c.b16 %v655, %v654
      %v682 = vpack.c.b16 %v657, %v656
      %v683 = vpack.c.b16 %v659, %v658
      %v684 = vpack.c.b16 %v661, %v660
      %v685 = vpack.c.b16 %v663, %v662
      %v686 = vpack.c.b16 %v665, %v664
      %v687 = vpack.c.b16 %v667, %v666
      %v688 = vpack.c.b16 %v669, %v668
      %v689 = vpack.c.b16 %v671, %v670
      %v690 = vpack.c.b16 %v673, %v672
      %v691 = vpack.c.b16 %v675, %v674
      %708 = vmatprep.subr.bf16.mxu0 0
      %709 = vmatpush1.bf16.msra.mxu0 %v676
      %710 = vmatprep.subr.bf16.mxu0 0
      %711 = vmatpush1.bf16.msra.mxu0 %v677
      %712 = vmatprep.subr.bf16.mxu0 0
      %713 = vmatpush1.bf16.msra.mxu0 %v678
      %714 = vmatprep.subr.bf16.mxu0 0
      %715 = vmatpush1.bf16.msra.mxu0 %v679
      %716 = vmatprep.subr.bf16.mxu0 0
      %717 = vmatpush1.bf16.msra.mxu0 %v680
      %718 = vmatprep.subr.bf16.mxu0 0
      %719 = vmatpush1.bf16.msra.mxu0 %v681
      %720 = vmatprep.subr.bf16.mxu0 0
      %721 = vmatpush1.bf16.msra.mxu0 %v682
      %722 = vmatprep.subr.bf16.mxu0 0
      %723 = vmatpush1.bf16.msra.mxu0 %v683
      %724 = vmatprep.subr.bf16.mxu0 0
      %725 = vmatpush1.bf16.msra.mxu0 %v684
      %726 = vmatprep.subr.bf16.mxu0 0
      %727 = vmatpush1.bf16.msra.mxu0 %v685
      %728 = vmatprep.subr.bf16.mxu0 0
      %729 = vmatpush1.bf16.msra.mxu0 %v686
      %730 = vmatprep.subr.bf16.mxu0 0
      %731 = vmatpush1.bf16.msra.mxu0 %v687
      %732 = vmatprep.subr.bf16.mxu0 0
      %733 = vmatpush1.bf16.msra.mxu0 %v688
      %734 = vmatprep.subr.bf16.mxu0 0
      %735 = vmatpush1.bf16.msra.mxu0 %v689
      %736 = vmatprep.subr.bf16.mxu0 0
      %737 = vmatpush1.bf16.msra.mxu0 %v690
      %738 = vmatprep.subr.bf16.mxu0 0
      %739 = vmatpush1.bf16.msra.mxu0 %v691
      %740 = vmatprep.mubr.bf16.mxu0 %v609
      %741 = vmatmul.mubr.bf16.gmra.mrb[0].mxu0 %v608
      %v742 = vpop.f32.mrb[0].mxu0
      %v743 = vadd.f32 %v419, %v742
      %v744 = vpop.f32.mrb[0].mxu0
      %v745 = vpop.f32.mrb[0].mxu0
      %v746 = vadd.f32 %v419, %v745
      %v747 = vpop.f32.mrb[0].mxu0
      %748 = vdwg.mxu0
      %vm749 = vcmp.ge.f32.partialorder %v562, 0.0
      %vm750 = vcmp.ge.f32.partialorder %v565, 0.0
      %v751 = vmul.f32 %v562, 0.2
      %v752 = vmul.f32 %v565, 0.2
      %v753 = vsel %vm749, %v562, %v751
      %v754 = vsel %vm750, %v565, %v752
      %vm755 = vcmp.ge.f32.partialorder %v743, 0.0
      %vm756 = vcmp.ge.f32.partialorder %v746, 0.0
      %v757 = vmul.f32 %v743, 0.2
      %v758 = vmul.f32 %v746, 0.2
      %v759 = vsel %vm755, %v743, %v757
      %v760 = vsel %vm756, %v746, %v758
      %v761 = vld [vmem:[%s363] sm:$0xff]
      %v762 = vld [vmem:[%s363 + $0x8] sm:$0xff]
      %v763 = vadd.f32 %v753, %v761
      %v764 = vadd.f32 %v754, %v762
      %765 = vst [vmem:[%s373] sm:$0xff] %v763
      %766 = vst [vmem:[%s373 + $0x8] sm:$0xff] %v764
      %v767 = vld [vmem:[%s368] sm:$0xff]
      %v768 = vld [vmem:[%s368 + $0x8] sm:$0xff]
      %v769 = vadd.f32 %v759, %v767
      %v770 = vadd.f32 %v760, %v768
      %771 = vst [vmem:[%s378] sm:$0xff] %v769
      %772 = vst [vmem:[%s378 + $0x8] sm:$0xff] %v770
      %p773 = scmp.lt.s32.totalorder %s20, 1
      %s774 = scalar_select %p773, %s20, 1
      %s775 = smul.addr %s774, 2
      %s776 = smul.addr %s775, 8
      %s777 = scalar_lea.vmem %s7, %s776
      %p778 = scmp.lt.s32.totalorder %s20, 1
      %s779 = scalar_select %p778, %s20, 1
      %s780 = smul.addr %s779, 2
      %s781 = smul.addr %s780, 8
      %s782 = scalar_lea.vmem %s8, %s781
      // Predicated region
      $region49: #{unet_forward.20} parent=47 // pred_check
        %p783 = pneg %p205
      $region50: #{unet_forward.20} parent=47 // pred_check_branch
        %785 = sbr.rel (%p783) target = $region52
      $region51: #{unet_forward.20} parent=47 // pred_region
        _
      $region52: #{unet_forward.20} parent=47 // pred_fallthru
        _
      // Predicated region
      $region53: #{unet_forward.20} parent=47 // pred_check
        %p786 = pneg %p231
      $region54: #{unet_forward.20} parent=47 // pred_check_branch
        %788 = sbr.rel (%p786) target = $region56
      $region55: #{unet_forward.20} parent=47 // pred_region
        _
      $region56: #{unet_forward.20} parent=47 // pred_fallthru
        _
    $region48: #{unet_forward.20} parent=5 // pred_fallthru
      _
    %p789 = scmp.le.s32.totalorder 2, %s15
    // Predicated region
    $region57: #{unet_forward.20} parent=5 // pred_check
      %p790 = pneg %p789
    $region58: #{unet_forward.20} parent=5 // pred_check_branch
      %792 = sbr.rel (%p790) target = $region60
    $region59: #{unet_forward.20} parent=5 // pred_region
      %s793 = ssub.s32 %s15, 2
      // Predicated region
      $region61: #{unet_forward.20} parent=59 // pred_check
        %p794 = pneg %p211
      $region62: #{unet_forward.20} parent=59 // pred_check_branch
        %796 = sbr.rel (%p794) target = $region64
      $region63: #{unet_forward.20} parent=59 // pred_region
        %p797 = scmp.lt.s32.totalorder %s21, 1
        %s798 = scalar_select %p797, %s21, 1
        %s799 = smul.addr %s798, 2
        %s800 = smul.addr %s799, 8
        %s801 = scalar_lea.vmem %s7, %s800
      $region64: #{unet_forward.20} parent=59 // pred_fallthru
        _
      // Predicated region
      $region65: #{unet_forward.20} parent=59 // pred_check
        %p802 = pneg %p237
      $region66: #{unet_forward.20} parent=59 // pred_check_branch
        %804 = sbr.rel (%p802) target = $region68
      $region67: #{unet_forward.20} parent=59 // pred_region
        %p805 = scmp.lt.s32.totalorder %s21, 1
        %s806 = scalar_select %p805, %s21, 1
        %s807 = smul.addr %s806, 2
        %s808 = smul.addr %s807, 8
        %s809 = scalar_lea.vmem %s8, %s808
      $region68: #{unet_forward.20} parent=59 // pred_fallthru
        _
    $region60: #{unet_forward.20} parent=5 // pred_fallthru
      _
  $region6: #{unet_forward.20} parent=0 // loop_footer
    %s19 = sadd.s32 1, %s15
  $region7: #{unet_forward.20} parent=0 // loop_footer_branch
    %14 = sbr.rel target = $region3
  $region8: #{unet_forward.20} parent=0 // loop_exit
    _

// kernel: unet_forward.21
$region0: #{unet_forward.21}
  #allocation0 [shape = 'u32[]', space=smem, size = 0x4, offset = 0x4, fixed_abs, tag = 'smem constant byte address 0x4 - core index']
  #allocation1 [shape = 'u32[144,128]{1,0:T(1,128)}', space=vmem, size = 0x12000, scoped, tag = 'internal scratch']
  %s0 = inlined_call_operand.vmem [shape: bf16[2,32,256], index: 0, kind: input, shape index: {}]
  %s1 = inlined_call_operand.vmem [shape: bf16[2,32,256], index: 1, kind: input, shape index: {}]
  %s2 = inlined_call_operand.vmem [shape: bf16[256,128], index: 2, kind: input, shape index: {}]
  %s3 = inlined_call_operand.vmem [shape: bf16[256,128], index: 3, kind: input, shape index: {}]
  %s4 = inlined_call_operand.vmem [shape: f32[1,128], index: 4, kind: input, shape index: {}]
  %s5 = inlined_call_operand.vmem [shape: f32[2,32,128], index: 5, kind: input, shape index: {}]
  %s6 = inlined_call_operand.vmem [shape: f32[2,32,128], index: 6, kind: input, shape index: {}]
  %s7 = inlined_call_operand.vmem [shape: f32[2,32,128], index: 7, kind: output, shape index: {0}]
  %s8 = inlined_call_operand.vmem [shape: f32[2,32,128], index: 8, kind: output, shape index: {1}]
  %9 = xla_tuple %s7, %s8
  %s10 = sld [smem:[#allocation0]]
  $region69: #{unet_forward.21} parent=0
    _
  %s12 = ssub.s32 1, %s10
  %s13 = scalar_select 0, %s12, %s10
  loop: start=0, step=1, limit=4
  $region2: #{unet_forward.21} parent=0 // loop_pre_header
    _
  $region3: #{unet_forward.21} parent=0 // loop_header
    %s15 = sphi 0, %s19
    %p16 = scmp.ge.s32.totalorder %s15, 4
    %s25 = sphi 0, %s27
    %s28 = sphi 0, %s25
    %s29 = sphi 0, %s28
    %s45 = sphi 0, %s29
    %s51 = sphi 0, %s53
    %s54 = sphi 0, %s51
    %s55 = sphi 0, %s54
    %s71 = sphi 0, %s55
    %s75 = sphi 0, %s75
    %s77 = sphi 0, %s75
    %s78 = sphi 0, %s77
    %s92 = sphi 0, %s78
    %s96 = sphi 0, %s96
    %s98 = sphi 0, %s96
    %s99 = sphi 0, %s98
    %s113 = sphi 0, %s99
    %s117 = sphi 0, %s117
    %s119 = sphi 0, %s117
    %s120 = sphi 0, %s119
    %s134 = sphi 0, %s120
    %s140 = sphi 0, %s142
    %s143 = sphi 0, %s140
    %s144 = sphi 0, %s143
    %s160 = sphi 0, %s144
    %s166 = sphi 0, %s168
    %s169 = sphi 0, %s166
    %s170 = sphi 0, %s169
    %s186 = sphi 0, %s170
    %s192 = sphi 0, %s194
    %s195 = sphi 0, %s192
    %s196 = sphi 0, %s195
    %s212 = sphi 0, %s196
    %s218 = sphi 0, %s220
    %s221 = sphi 0, %s218
    %s222 = sphi 0, %s221
    %s238 = sphi 0, %s222
  $region4: #{unet_forward.21} parent=0 // loop_header_branch
    %18 = sbr.rel (%p16) target = $region8
  $region5: #{unet_forward.21} parent=0 // loop_body
    %s20 = ssub.s32 %s15, 1
    %s21 = ssub.s32 %s15, 2
    %s22 = sadd.s32 %s15, 1
    %s23 = ssub.s32 %s15, %s22
    %p24 = scmp.eq.s32.totalorder %s23, 0
    %s26 = sadd.s32 %s25, 1
    %s27 = scalar_select %p24, %s25, %s26
    %p30 = pneg %p24
    %p31 = scmp.eq.s32.totalorder %s15, 1
    %p32 = por %p30, %p31
    %p33 = scmp.ne.s32.totalorder %s25, %s28
    %p34 = scmp.eq.s32.totalorder %s15, 0
    %p35 = por %p33, %p34
    %p36 = scmp.ne.s32.totalorder %s25, %s28
    %p37 = scmp.eq.s32.totalorder %s20, 1
    %p38 = por %p36, %p37
    %p39 = scmp.ne.s32.totalorder %s28, %s29
    %p40 = scmp.eq.s32.totalorder %s20, 0
    %p41 = por %p39, %p40
    %p42 = scmp.ne.s32.totalorder %s28, %s29
    %p43 = scmp.eq.s32.totalorder %s21, 1
    %p44 = por %p42, %p43
    %p46 = scmp.ne.s32.totalorder %s29, %s45
    %p47 = scmp.eq.s32.totalorder %s21, 0
    %p48 = por %p46, %p47
    %s49 = ssub.s32 %s15, %s22
    %p50 = scmp.eq.s32.totalorder %s49, 0
    %s52 = sadd.s32 %s51, 1
    %s53 = scalar_select %p50, %s51, %s52
    %p56 = pneg %p50
    %p57 = scmp.eq.s32.totalorder %s15, 1
    %p58 = por %p56, %p57
    %p59 = scmp.ne.s32.totalorder %s51, %s54
    %p60 = scmp.eq.s32.totalorder %s15, 0
    %p61 = por %p59, %p60
    %p62 = scmp.ne.s32.totalorder %s51, %s54
    %p63 = scmp.eq.s32.totalorder %s20, 1
    %p64 = por %p62, %p63
    %p65 = scmp.ne.s32.totalorder %s54, %s55
    %p66 = scmp.eq.s32.totalorder %s20, 0
    %p67 = por %p65, %p66
    %p68 = scmp.ne.s32.totalorder %s54, %s55
    %p69 = scmp.eq.s32.totalorder %s21, 1
    %p70 = por %p68, %p69
    %p72 = scmp.ne.s32.totalorder %s55, %s71
    %p73 = scmp.eq.s32.totalorder %s21, 0
    %p74 = por %p72, %p73
    %s76 = sadd.s32 %s75, 1
    %p79 = scmp.eq.s32.totalorder %s15, 1
    %p80 = scmp.ne.s32.totalorder %s75, %s77
    %p81 = scmp.eq.s32.totalorder %s15, 0
    %p82 = por %p80, %p81
    %p83 = scmp.ne.s32.totalorder %s75, %s77
    %p84 = scmp.eq.s32.totalorder %s20, 1
    %p85 = por %p83, %p84
    %p86 = scmp.ne.s32.totalorder %s77, %s78
    %p87 = scmp.eq.s32.totalorder %s20, 0
    %p88 = por %p86, %p87
    %p89 = scmp.ne.s32.totalorder %s77, %s78
    %p90 = scmp.eq.s32.totalorder %s21, 1
    %p91 = por %p89, %p90
    %p93 = scmp.ne.s32.totalorder %s78, %s92
    %p94 = scmp.eq.s32.totalorder %s21, 0
    %p95 = por %p93, %p94
    %s97 = sadd.s32 %s96, 1
    %p100 = scmp.eq.s32.totalorder %s15, 1
    %p101 = scmp.ne.s32.totalorder %s96, %s98
    %p102 = scmp.eq.s32.totalorder %s15, 0
    %p103 = por %p101, %p102
    %p104 = scmp.ne.s32.totalorder %s96, %s98
    %p105 = scmp.eq.s32.totalorder %s20, 1
    %p106 = por %p104, %p105
    %p107 = scmp.ne.s32.totalorder %s98, %s99
    %p108 = scmp.eq.s32.totalorder %s20, 0
    %p109 = por %p107, %p108
    %p110 = scmp.ne.s32.totalorder %s98, %s99
    %p111 = scmp.eq.s32.totalorder %s21, 1
    %p112 = por %p110, %p111
    %p114 = scmp.ne.s32.totalorder %s99, %s113
    %p115 = scmp.eq.s32.totalorder %s21, 0
    %p116 = por %p114, %p115
    %s118 = sadd.s32 %s117, 1
    %p121 = scmp.eq.s32.totalorder %s15, 1
    %p122 = scmp.ne.s32.totalorder %s117, %s119
    %p123 = scmp.eq.s32.totalorder %s15, 0
    %p124 = por %p122, %p123
    %p125 = scmp.ne.s32.totalorder %s117, %s119
    %p126 = scmp.eq.s32.totalorder %s20, 1
    %p127 = por %p125, %p126
    %p128 = scmp.ne.s32.totalorder %s119, %s120
    %p129 = scmp.eq.s32.totalorder %s20, 0
    %p130 = por %p128, %p129
    %p131 = scmp.ne.s32.totalorder %s119, %s120
    %p132 = scmp.eq.s32.totalorder %s21, 1
    %p133 = por %p131, %p132
    %p135 = scmp.ne.s32.totalorder %s120, %s134
    %p136 = scmp.eq.s32.totalorder %s21, 0
    %p137 = por %p135, %p136
    %s138 = ssub.s32 %s15, %s22
    %p139 = scmp.eq.s32.totalorder %s138, 0
    %s141 = sadd.s32 %s140, 1
    %s142 = scalar_select %p139, %s140, %s141
    %p145 = pneg %p139
    %p146 = scmp.eq.s32.totalorder %s15, 1
    %p147 = por %p145, %p146
    %p148 = scmp.ne.s32.totalorder %s140, %s143
    %p149 = scmp.eq.s32.totalorder %s15, 0
    %p150 = por %p148, %p149
    %p151 = scmp.ne.s32.totalorder %s140, %s143
    %p152 = scmp.eq.s32.totalorder %s20, 1
    %p153 = por %p151, %p152
    %p154 = scmp.ne.s32.totalorder %s143, %s144
    %p155 = scmp.eq.s32.totalorder %s20, 0
    %p156 = por %p154, %p155
    %p157 = scmp.ne.s32.totalorder %s143, %s144
    %p158 = scmp.eq.s32.totalorder %s21, 1
    %p159 = por %p157, %p158
    %p161 = scmp.ne.s32.totalorder %s144, %s160
    %p162 = scmp.eq.s32.totalorder %s21, 0
    %p163 = por %p161, %p162
    %s164 = ssub.s32 %s15, %s22
    %p165 = scmp.eq.s32.totalorder %s164, 0
    %s167 = sadd.s32 %s166, 1
    %s168 = scalar_select %p165, %s166, %s167
    %p171 = pneg %p165
    %p172 = scmp.eq.s32.totalorder %s15, 1
    %p173 = por %p171, %p172
    %p174 = scmp.ne.s32.totalorder %s166, %s169
    %p175 = scmp.eq.s32.totalorder %s15, 0
    %p176 = por %p174, %p175
    %p177 = scmp.ne.s32.totalorder %s166, %s169
    %p178 = scmp.eq.s32.totalorder %s20, 1
    %p179 = por %p177, %p178
    %p180 = scmp.ne.s32.totalorder %s169, %s170
    %p181 = scmp.eq.s32.totalorder %s20, 0
    %p182 = por %p180, %p181
    %p183 = scmp.ne.s32.totalorder %s169, %s170
    %p184 = scmp.eq.s32.totalorder %s21, 1
    %p185 = por %p183, %p184
    %p187 = scmp.ne.s32.totalorder %s170, %s186
    %p188 = scmp.eq.s32.totalorder %s21, 0
    %p189 = por %p187, %p188
    %s190 = ssub.s32 %s15, %s22
    %p191 = scmp.eq.s32.totalorder %s190, 0
    %s193 = sadd.s32 %s192, 1
    %s194 = scalar_select %p191, %s192, %s193
    %p197 = pneg %p191
    %p198 = scmp.eq.s32.totalorder %s15, 1
    %p199 = por %p197, %p198
    %p200 = scmp.ne.s32.totalorder %s192, %s195
    %p201 = scmp.eq.s32.totalorder %s15, 0
    %p202 = por %p200, %p201
    %p203 = scmp.ne.s32.totalorder %s192, %s195
    %p204 = scmp.eq.s32.totalorder %s20, 1
    %p205 = por %p203, %p204
    %p206 = scmp.ne.s32.totalorder %s195, %s196
    %p207 = scmp.eq.s32.totalorder %s20, 0
    %p208 = por %p206, %p207
    %p209 = scmp.ne.s32.totalorder %s195, %s196
    %p210 = scmp.eq.s32.totalorder %s21, 1
    %p211 = por %p209, %p210
    %p213 = scmp.ne.s32.totalorder %s196, %s212
    %p214 = scmp.eq.s32.totalorder %s21, 0
    %p215 = por %p213, %p214
    %s216 = ssub.s32 %s15, %s22
    %p217 = scmp.eq.s32.totalorder %s216, 0
    %s219 = sadd.s32 %s218, 1
    %s220 = scalar_select %p217, %s218, %s219
    %p223 = pneg %p217
    %p224 = scmp.eq.s32.totalorder %s15, 1
    %p225 = por %p223, %p224
    %p226 = scmp.ne.s32.totalorder %s218, %s221
    %p227 = scmp.eq.s32.totalorder %s15, 0
    %p228 = por %p226, %p227
    %p229 = scmp.ne.s32.totalorder %s218, %s221
    %p230 = scmp.eq.s32.totalorder %s20, 1
    %p231 = por %p229, %p230
    %p232 = scmp.ne.s32.totalorder %s221, %s222
    %p233 = scmp.eq.s32.totalorder %s20, 0
    %p234 = por %p232, %p233
    %p235 = scmp.ne.s32.totalorder %s221, %s222
    %p236 = scmp.eq.s32.totalorder %s21, 1
    %p237 = por %p235, %p236
    %p239 = scmp.ne.s32.totalorder %s222, %s238
    %p240 = scmp.eq.s32.totalorder %s21, 0
    %p241 = por %p239, %p240
    %p242 = scmp.le.s32.totalorder 1, %s15
    %p243 = scmp.lt.s32.totalorder %s15, 3
    %p244 = pnand %p242, %p243
    %p245 = pneg %p244
    // Predicated region
    $region9: #{unet_forward.21} parent=5 // pred_check
      _
    $region10: #{unet_forward.21} parent=5 // pred_check_branch
      %247 = sbr.rel (%p244) target = $region12
    $region11: #{unet_forward.21} parent=5 // pred_region
      %s248 = ssub.s32 %s15, 1
      // Predicated region
      $region13: #{unet_forward.21} parent=11 // pred_check
        %p249 = pneg %p88
      $region14: #{unet_forward.21} parent=11 // pred_check_branch
        %251 = sbr.rel (%p249) target = $region16
      $region15: #{unet_forward.21} parent=11 // pred_region
        _
      $region16: #{unet_forward.21} parent=11 // pred_fallthru
        _
      // Predicated region
      $region17: #{unet_forward.21} parent=11 // pred_check
        %p252 = pneg %p109
      $region18: #{unet_forward.21} parent=11 // pred_check_branch
        %254 = sbr.rel (%p252) target = $region20
      $region19: #{unet_forward.21} parent=11 // pred_region
        _
      $region20: #{unet_forward.21} parent=11 // pred_fallthru
        _
      // Predicated region
      $region21: #{unet_forward.21} parent=11 // pred_check
        %p255 = pneg %p130
      $region22: #{unet_forward.21} parent=11 // pred_check_branch
        %257 = sbr.rel (%p255) target = $region24
      $region23: #{unet_forward.21} parent=11 // pred_region
        _
      $region24: #{unet_forward.21} parent=11 // pred_fallthru
        _
    $region12: #{unet_forward.21} parent=5 // pred_fallthru
      _
    %p258 = scmp.lt.s32.totalorder %s15, 2
    // Predicated region
    $region25: #{unet_forward.21} parent=5 // pred_check
      %p259 = pneg %p258
    $region26: #{unet_forward.21} parent=5 // pred_check_branch
      %261 = sbr.rel (%p259) target = $region28
    $region27: #{unet_forward.21} parent=5 // pred_region
      // Predicated region
      $region29: #{unet_forward.21} parent=27 // pred_check
        %p262 = pneg %p35
      $region30: #{unet_forward.21} parent=27 // pred_check_branch
        %264 = sbr.rel (%p262) target = $region32
      $region31: #{unet_forward.21} parent=27 // pred_region
        %p265 = scmp.lt.s32.totalorder %s15, 1
        %s266 = scalar_select %p265, %s15, 1
        %s267 = smul.addr %s266, 8
        %s268 = smul.addr %s267, 4
        %s269 = scalar_lea.vmem %s0, %s268
      $region32: #{unet_forward.21} parent=27 // pred_fallthru
        _
      // Predicated region
      $region33: #{unet_forward.21} parent=27 // pred_check
        %p270 = pneg %p61
      $region34: #{unet_forward.21} parent=27 // pred_check_branch
        %272 = sbr.rel (%p270) target = $region36
      $region35: #{unet_forward.21} parent=27 // pred_region
        %p273 = scmp.lt.s32.totalorder %s15, 1
        %s274 = scalar_select %p273, %s15, 1
        %s275 = smul.addr %s274, 8
        %s276 = smul.addr %s275, 4
        %s277 = scalar_lea.vmem %s1, %s276
      $region36: #{unet_forward.21} parent=27 // pred_fallthru
        _
      // Predicated region
      $region37: #{unet_forward.21} parent=27 // pred_check
        %p278 = pneg %p150
      $region38: #{unet_forward.21} parent=27 // pred_check_branch
        %280 = sbr.rel (%p278) target = $region40
      $region39: #{unet_forward.21} parent=27 // pred_region
        %p281 = scmp.lt.s32.totalorder %s15, 1
        %s282 = scalar_select %p281, %s15, 1
        %s283 = smul.addr %s282, 4
        %s284 = smul.addr %s283, 8
        %s285 = scalar_lea.vmem %s5, %s284
      $region40: #{unet_forward.21} parent=27 // pred_fallthru
        _
      // Predicated region
      $region41: #{unet_forward.21} parent=27 // pred_check
        %p286 = pneg %p176
      $region42: #{unet_forward.21} parent=27 // pred_check_branch
        %288 = sbr.rel (%p286) target = $region44
      $region43: #{unet_forward.21} parent=27 // pred_region
        %p289 = scmp.lt.s32.totalorder %s15, 1
        %s290 = scalar_select %p289, %s15, 1
        %s291 = smul.addr %s290, 4
        %s292 = smul.addr %s291, 8
        %s293 = scalar_lea.vmem %s6, %s292
      $region44: #{unet_forward.21} parent=27 // pred_fallthru
        _
    $region28: #{unet_forward.21} parent=5 // pred_fallthru
      _
    %p294 = scmp.le.s32.totalorder 1, %s15
    %p295 = scmp.lt.s32.totalorder %s15, 3
    %p296 = pnand %p294, %p295
    %p297 = pneg %p296
    // Predicated region
    $region45: #{unet_forward.21} parent=5 // pred_check
      _
    $region46: #{unet_forward.21} parent=5 // pred_check_branch
      %299 = sbr.rel (%p296) target = $region48
    $region47: #{unet_forward.21} parent=5 // pred_region
      %s300 = ssub.s32 %s15, 1
      %p301 = scmp.lt.s32.totalorder %s20, 1
      %s302 = scalar_select %p301, %s20, 1
      %s303 = smul.addr %s302, 8
      %s304 = smul.addr %s303, 4
      %s305 = scalar_lea.vmem %s0, %s304
      %p306 = pneg %p41
      %p307 = pneg %p38
      %p308 = scmp.lt.s32.totalorder %s20, 1
      %s309 = scalar_select %p308, %s20, 1
      %s310 = smul.addr %s309, 8
      %s311 = smul.addr %s310, 4
      %s312 = scalar_lea.vmem %s1, %s311
      %p313 = pneg %p67
      %p314 = pneg %p64
      %p315 = pneg %p88
      %p316 = pneg %p85
      %p317 = pneg %p109
      %p318 = pneg %p106
      %p319 = pneg %p130
      %p320 = pneg %p127
      %p321 = scmp.lt.s32.totalorder %s20, 1
      %s322 = scalar_select %p321, %s20, 1
      %s323 = smul.addr %s322, 4
      %s324 = smul.addr %s323, 8
      %s325 = scalar_lea.vmem %s5, %s324
      %p326 = pneg %p156
      %p327 = pneg %p153
      %p328 = scmp.lt.s32.totalorder %s20, 1
      %s329 = scalar_select %p328, %s20, 1
      %s330 = smul.addr %s329, 4
      %s331 = smul.addr %s330, 8
      %s332 = scalar_lea.vmem %s6, %s331
      %p333 = pneg %p182
      %p334 = pneg %p179
      %p335 = pneg %p208
      %p336 = pneg %p205
      %p337 = scmp.lt.s32.totalorder %s20, 1
      %s338 = scalar_select %p337, %s20, 1
      %s339 = smul.addr %s338, 4
      %s340 = smul.addr %s339, 8
      %s341 = scalar_lea.vmem %s7, %s340
      %p342 = pneg %p234
      %p343 = pneg %p231
      %p344 = scmp.lt.s32.totalorder %s20, 1
      %s345 = scalar_select %p344, %s20, 1
      %s346 = smul.addr %s345, 4
      %s347 = smul.addr %s346, 8
      %s348 = scalar_lea.vmem %s8, %s347
      %p349 = scmp.lt.s32.totalorder %s20, 1
      %s350 = scalar_select %p349, %s20, 1
      %s351 = smul.addr %s350, 8
      %s352 = smul.addr %s351, 4
      %s353 = scalar_lea.vmem %s0, %s352
      %p354 = scmp.lt.s32.totalorder %s20, 1
      %s355 = scalar_select %p354, %s20, 1
      %s356 = smul.addr %s355, 8
      %s357 = smul.addr %s356, 4
      %s358 = scalar_lea.vmem %s1, %s357
      %p359 = scmp.lt.s32.totalorder %s20, 1
      %s360 = scalar_select %p359, %s20, 1
      %s361 = smul.addr %s360, 4
      %s362 = smul.addr %s361, 8
      %s363 = scalar_lea.vmem %s5, %s362
      %p364 = scmp.lt.s32.totalorder %s20, 1
      %s365 = scalar_select %p364, %s20, 1
      %s366 = smul.addr %s365, 4
      %s367 = smul.addr %s366, 8
      %s368 = scalar_lea.vmem %s6, %s367
      %p369 = scmp.lt.s32.totalorder %s20, 1
      %s370 = scalar_select %p369, %s20, 1
      %s371 = smul.addr %s370, 4
      %s372 = smul.addr %s371, 8
      %s373 = scalar_lea.vmem %s7, %s372
      %p374 = scmp.lt.s32.totalorder %s20, 1
      %s375 = scalar_select %p374, %s20, 1
      %s376 = smul.addr %s375, 4
      %s377 = smul.addr %s376, 8
      %s378 = scalar_lea.vmem %s8, %s377
      %v380 = vld [vmem:[%s353] sm:$0xff]
      %v381 = vld [vmem:[%s353 + $0x8] sm:$0xff]
      %v382 = vld [vmem:[%s353 + $0x10] sm:$0xff]
      %v383 = vld [vmem:[%s353 + $0x18] sm:$0xff]
      %v384 = vld [vmem:[%s2] sm:$0xf]
      %v385 = vld [vmem:[%s2 + $0x4] sm:$0xf]
      %v386 = vld [vmem:[%s2 + $0x8] sm:$0xf]
      %v387 = vld [vmem:[%s2 + $0xc] sm:$0xf]
      %v388 = vld [vmem:[%s2 + $0x10] sm:$0xf]
      %v389 = vld [vmem:[%s2 + $0x14] sm:$0xf]
      %v390 = vld [vmem:[%s2 + $0x18] sm:$0xf]
      %v391 = vld [vmem:[%s2 + $0x1c] sm:$0xf]
      %v392 = vld [vmem:[%s2 + $0x20] sm:$0xf]
      %v393 = vld [vmem:[%s2 + $0x24] sm:$0xf]
      %v394 = vld [vmem:[%s2 + $0x28] sm:$0xf]
      %v395 = vld [vmem:[%s2 + $0x2c] sm:$0xf]
      %v396 = vld [vmem:[%s2 + $0x30] sm:$0xf]
      %v397 = vld [vmem:[%s2 + $0x34] sm:$0xf]
      %v398 = vld [vmem:[%s2 + $0x38] sm:$0xf]
      %v399 = vld [vmem:[%s2 + $0x3c] sm:$0xf]
      %v400 = vld [vmem:[%s2 + $0x40] sm:$0xf]
      %v401 = vld [vmem:[%s2 + $0x44] sm:$0xf]
      %v402 = vld [vmem:[%s2 + $0x48] sm:$0xf]
      %v403 = vld [vmem:[%s2 + $0x4c] sm:$0xf]
      %v404 = vld [vmem:[%s2 + $0x50] sm:$0xf]
      %v405 = vld [vmem:[%s2 + $0x54] sm:$0xf]
      %v406 = vld [vmem:[%s2 + $0x58] sm:$0xf]
      %v407 = vld [vmem:[%s2 + $0x5c] sm:$0xf]
      %v408 = vld [vmem:[%s2 + $0x60] sm:$0xf]
      %v409 = vld [vmem:[%s2 + $0x64] sm:$0xf]
      %v410 = vld [vmem:[%s2 + $0x68] sm:$0xf]
      %v411 = vld [vmem:[%s2 + $0x6c] sm:$0xf]
      %v412 = vld [vmem:[%s2 + $0x70] sm:$0xf]
      %v413 = vld [vmem:[%s2 + $0x74] sm:$0xf]
      %v414 = vld [vmem:[%s2 + $0x78] sm:$0xf]
      %v415 = vld [vmem:[%s2 + $0x7c] sm:$0xf]
      %v416 = vld [vmem:[%s4] sm:$0x1]
      %v418 = vlaneseq
      %v419 = vshrl.u32 %v418, 7
      %v420 = vsub.s32 0, %v419
      %v421 = vrot.slane %v416, %v420
      %v427 = vunpack.c.l.b16 %v380
      %v428 = vunpack.c.h.b16 %v380
      %v429 = vunpack.c.l.b16 %v381
      %v430 = vunpack.c.h.b16 %v381
      %v431 = vunpack.c.l.b16 %v382
      %v432 = vunpack.c.h.b16 %v382
      %v433 = vunpack.c.l.b16 %v383
      %v434 = vunpack.c.h.b16 %v383
      %v435 = vpack.c.b16 %v429, %v427
      %v436 = vpack.c.b16 %v430, %v428
      %v437 = vpack.c.b16 %v433, %v431
      %v438 = vpack.c.b16 %v434, %v432
      %v475 = vunpack.c.l.b16 %v384
      %v476 = vunpack.c.l.b16 %v385
      %v477 = vunpack.c.l.b16 %v386
      %v478 = vunpack.c.l.b16 %v387
      %v479 = vunpack.c.l.b16 %v388
      %v480 = vunpack.c.l.b16 %v389
      %v481 = vunpack.c.l.b16 %v390
      %v482 = vunpack.c.l.b16 %v391
      %v483 = vunpack.c.l.b16 %v392
      %v484 = vunpack.c.l.b16 %v393
      %v485 = vunpack.c.l.b16 %v394
      %v486 = vunpack.c.l.b16 %v395
      %v487 = vunpack.c.l.b16 %v396
      %v488 = vunpack.c.l.b16 %v397
      %v489 = vunpack.c.l.b16 %v398
      %v490 = vunpack.c.l.b16 %v399
      %v491 = vunpack.c.l.b16 %v400
      %v492 = vunpack.c.l.b16 %v401
      %v493 = vunpack.c.l.b16 %v402
      %v494 = vunpack.c.l.b16 %v403
      %v495 = vunpack.c.l.b16 %v404
      %v496 = vunpack.c.l.b16 %v405
      %v497 = vunpack.c.l.b16 %v406
      %v498 = vunpack.c.l.b16 %v407
      %v499 = vunpack.c.l.b16 %v408
      %v500 = vunpack.c.l.b16 %v409
      %v501 = vunpack.c.l.b16 %v410
      %v502 = vunpack.c.l.b16 %v411
      %v503 = vunpack.c.l.b16 %v412
      %v504 = vunpack.c.l.b16 %v413
      %v505 = vunpack.c.l.b16 %v414
      %v506 = vunpack.c.l.b16 %v415
      %v507 = vpack.c.b16 %v476, %v475
      %v508 = vpack.c.b16 %v478, %v477
      %v509 = vpack.c.b16 %v480, %v479
      %v510 = vpack.c.b16 %v482, %v481
      %v511 = vpack.c.b16 %v484, %v483
      %v512 = vpack.c.b16 %v486, %v485
      %v513 = vpack.c.b16 %v488, %v487
      %v514 = vpack.c.b16 %v490, %v489
      %v515 = vpack.c.b16 %v492, %v491
      %v516 = vpack.c.b16 %v494, %v493
      %v517 = vpack.c.b16 %v496, %v495
      %v518 = vpack.c.b16 %v498, %v497
      %v519 = vpack.c.b16 %v500, %v499
      %v520 = vpack.c.b16 %v502, %v501
      %v521 = vpack.c.b16 %v504, %v503
      %v522 = vpack.c.b16 %v506, %v505
      %539 = vmatprep.subr.bf16.mxu0 0
      %540 = vmatpush1.bf16.msra.mxu0 %v507
      %541 = vmatprep.subr.bf16.mxu0 0
      %542 = vmatpush1.bf16.msra.mxu0 %v508
      %543 = vmatprep.subr.bf16.mxu0 0
      %544 = vmatpush1.bf16.msra.mxu0 %v509
      %545 = vmatprep.subr.bf16.mxu0 0
      %546 = vmatpush1.bf16.msra.mxu0 %v510
      %547 = vmatprep.subr.bf16.mxu0 0
      %548 = vmatpush1.bf16.msra.mxu0 %v511
      %549 = vmatprep.subr.bf16.mxu0 0
      %550 = vmatpush1.bf16.msra.mxu0 %v512
      %551 = vmatprep.subr.bf16.mxu0 0
      %552 = vmatpush1.bf16.msra.mxu0 %v513
      %553 = vmatprep.subr.bf16.mxu0 0
      %554 = vmatpush1.bf16.msra.mxu0 %v514
      %555 = vmatprep.subr.bf16.mxu0 0
      %556 = vmatpush1.bf16.msra.mxu0 %v515
      %557 = vmatprep.subr.bf16.mxu0 0
      %558 = vmatpush1.bf16.msra.mxu0 %v516
      %559 = vmatprep.subr.bf16.mxu0 0
      %560 = vmatpush1.bf16.msra.mxu0 %v517
      %561 = vmatprep.subr.bf16.mxu0 0
      %562 = vmatpush1.bf16.msra.mxu0 %v518
      %563 = vmatprep.subr.bf16.mxu0 0
      %564 = vmatpush1.bf16.msra.mxu0 %v519
      %565 = vmatprep.subr.bf16.mxu0 0
      %566 = vmatpush1.bf16.msra.mxu0 %v520
      %567 = vmatprep.subr.bf16.mxu0 0
      %568 = vmatpush1.bf16.msra.mxu0 %v521
      %569 = vmatprep.subr.bf16.mxu0 0
      %570 = vmatpush1.bf16.msra.mxu0 %v522
      %571 = vmatprep.mubr.bf16.mxu0 %v436
      %572 = vmatmul.mubr.bf16.gmra.mrb[0].mxu0 %v435
      %v573 = vpop.f32.mrb[0].mxu0
      %v574 = vadd.f32 %v421, %v573
      %v575 = vpop.f32.mrb[0].mxu0
      %v576 = vpop.f32.mrb[0].mxu0
      %v577 = vadd.f32 %v421, %v576
      %v578 = vpop.f32.mrb[0].mxu0
      %579 = vmatprep.mubr.bf16.mxu0 %v438
      %580 = vmatmul.mubr.bf16.gmra.mrb[0].mxu0 %v437
      %v581 = vpop.f32.mrb[0].mxu0
      %v582 = vadd.f32 %v421, %v581
      %v583 = vpop.f32.mrb[0].mxu0
      %v584 = vpop.f32.mrb[0].mxu0
      %v585 = vadd.f32 %v421, %v584
      %v586 = vpop.f32.mrb[0].mxu0
      %587 = vdwg.mxu0
      %v588 = vld [vmem:[%s358] sm:$0xff]
      %v589 = vld [vmem:[%s358 + $0x8] sm:$0xff]
      %v590 = vld [vmem:[%s358 + $0x10] sm:$0xff]
      %v591 = vld [vmem:[%s358 + $0x18] sm:$0xff]
      %v592 = vld [vmem:[%s3] sm:$0xf]
      %v593 = vld [vmem:[%s3 + $0x4] sm:$0xf]
      %v594 = vld [vmem:[%s3 + $0x8] sm:$0xf]
      %v595 = vld [vmem:[%s3 + $0xc] sm:$0xf]
      %v596 = vld [vmem:[%s3 + $0x10] sm:$0xf]
      %v597 = vld [vmem:[%s3 + $0x14] sm:$0xf]
      %v598 = vld [vmem:[%s3 + $0x18] sm:$0xf]
      %v599 = vld [vmem:[%s3 + $0x1c] sm:$0xf]
      %v600 = vld [vmem:[%s3 + $0x20] sm:$0xf]
      %v601 = vld [vmem:[%s3 + $0x24] sm:$0xf]
      %v602 = vld [vmem:[%s3 + $0x28] sm:$0xf]
      %v603 = vld [vmem:[%s3 + $0x2c] sm:$0xf]
      %v604 = vld [vmem:[%s3 + $0x30] sm:$0xf]
      %v605 = vld [vmem:[%s3 + $0x34] sm:$0xf]
      %v606 = vld [vmem:[%s3 + $0x38] sm:$0xf]
      %v607 = vld [vmem:[%s3 + $0x3c] sm:$0xf]
      %v608 = vld [vmem:[%s3 + $0x40] sm:$0xf]
      %v609 = vld [vmem:[%s3 + $0x44] sm:$0xf]
      %v610 = vld [vmem:[%s3 + $0x48] sm:$0xf]
      %v611 = vld [vmem:[%s3 + $0x4c] sm:$0xf]
      %v612 = vld [vmem:[%s3 + $0x50] sm:$0xf]
      %v613 = vld [vmem:[%s3 + $0x54] sm:$0xf]
      %v614 = vld [vmem:[%s3 + $0x58] sm:$0xf]
      %v615 = vld [vmem:[%s3 + $0x5c] sm:$0xf]
      %v616 = vld [vmem:[%s3 + $0x60] sm:$0xf]
      %v617 = vld [vmem:[%s3 + $0x64] sm:$0xf]
      %v618 = vld [vmem:[%s3 + $0x68] sm:$0xf]
      %v619 = vld [vmem:[%s3 + $0x6c] sm:$0xf]
      %v620 = vld [vmem:[%s3 + $0x70] sm:$0xf]
      %v621 = vld [vmem:[%s3 + $0x74] sm:$0xf]
      %v622 = vld [vmem:[%s3 + $0x78] sm:$0xf]
      %v623 = vld [vmem:[%s3 + $0x7c] sm:$0xf]
      %v628 = vunpack.c.l.b16 %v588
      %v629 = vunpack.c.h.b16 %v588
      %v630 = vunpack.c.l.b16 %v589
      %v631 = vunpack.c.h.b16 %v589
      %v632 = vunpack.c.l.b16 %v590
      %v633 = vunpack.c.h.b16 %v590
      %v634 = vunpack.c.l.b16 %v591
      %v635 = vunpack.c.h.b16 %v591
      %v636 = vpack.c.b16 %v630, %v628
      %v637 = vpack.c.b16 %v631, %v629
      %v638 = vpack.c.b16 %v634, %v632
      %v639 = vpack.c.b16 %v635, %v633
      %v676 = vunpack.c.l.b16 %v592
      %v677 = vunpack.c.l.b16 %v593
      %v678 = vunpack.c.l.b16 %v594
      %v679 = vunpack.c.l.b16 %v595
      %v680 = vunpack.c.l.b16 %v596
      %v681 = vunpack.c.l.b16 %v597
      %v682 = vunpack.c.l.b16 %v598
      %v683 = vunpack.c.l.b16 %v599
      %v684 = vunpack.c.l.b16 %v600
      %v685 = vunpack.c.l.b16 %v601
      %v686 = vunpack.c.l.b16 %v602
      %v687 = vunpack.c.l.b16 %v603
      %v688 = vunpack.c.l.b16 %v604
      %v689 = vunpack.c.l.b16 %v605
      %v690 = vunpack.c.l.b16 %v606
      %v691 = vunpack.c.l.b16 %v607
      %v692 = vunpack.c.l.b16 %v608
      %v693 = vunpack.c.l.b16 %v609
      %v694 = vunpack.c.l.b16 %v610
      %v695 = vunpack.c.l.b16 %v611
      %v696 = vunpack.c.l.b16 %v612
      %v697 = vunpack.c.l.b16 %v613
      %v698 = vunpack.c.l.b16 %v614
      %v699 = vunpack.c.l.b16 %v615
      %v700 = vunpack.c.l.b16 %v616
      %v701 = vunpack.c.l.b16 %v617
      %v702 = vunpack.c.l.b16 %v618
      %v703 = vunpack.c.l.b16 %v619
      %v704 = vunpack.c.l.b16 %v620
      %v705 = vunpack.c.l.b16 %v621
      %v706 = vunpack.c.l.b16 %v622
      %v707 = vunpack.c.l.b16 %v623
      %v708 = vpack.c.b16 %v677, %v676
      %v709 = vpack.c.b16 %v679, %v678
      %v710 = vpack.c.b16 %v681, %v680
      %v711 = vpack.c.b16 %v683, %v682
      %v712 = vpack.c.b16 %v685, %v684
      %v713 = vpack.c.b16 %v687, %v686
      %v714 = vpack.c.b16 %v689, %v688
      %v715 = vpack.c.b16 %v691, %v690
      %v716 = vpack.c.b16 %v693, %v692
      %v717 = vpack.c.b16 %v695, %v694
      %v718 = vpack.c.b16 %v697, %v696
      %v719 = vpack.c.b16 %v699, %v698
      %v720 = vpack.c.b16 %v701, %v700
      %v721 = vpack.c.b16 %v703, %v702
      %v722 = vpack.c.b16 %v705, %v704
      %v723 = vpack.c.b16 %v707, %v706
      %740 = vmatprep.subr.bf16.mxu0 0
      %741 = vmatpush1.bf16.msra.mxu0 %v708
      %742 = vmatprep.subr.bf16.mxu0 0
      %743 = vmatpush1.bf16.msra.mxu0 %v709
      %744 = vmatprep.subr.bf16.mxu0 0
      %745 = vmatpush1.bf16.msra.mxu0 %v710
      %746 = vmatprep.subr.bf16.mxu0 0
      %747 = vmatpush1.bf16.msra.mxu0 %v711
      %748 = vmatprep.subr.bf16.mxu0 0
      %749 = vmatpush1.bf16.msra.mxu0 %v712
      %750 = vmatprep.subr.bf16.mxu0 0
      %751 = vmatpush1.bf16.msra.mxu0 %v713
      %752 = vmatprep.subr.bf16.mxu0 0
      %753 = vmatpush1.bf16.msra.mxu0 %v714
      %754 = vmatprep.subr.bf16.mxu0 0
      %755 = vmatpush1.bf16.msra.mxu0 %v715
      %756 = vmatprep.subr.bf16.mxu0 0
      %757 = vmatpush1.bf16.msra.mxu0 %v716
      %758 = vmatprep.subr.bf16.mxu0 0
      %759 = vmatpush1.bf16.msra.mxu0 %v717
      %760 = vmatprep.subr.bf16.mxu0 0
      %761 = vmatpush1.bf16.msra.mxu0 %v718
      %762 = vmatprep.subr.bf16.mxu0 0
      %763 = vmatpush1.bf16.msra.mxu0 %v719
      %764 = vmatprep.subr.bf16.mxu0 0
      %765 = vmatpush1.bf16.msra.mxu0 %v720
      %766 = vmatprep.subr.bf16.mxu0 0
      %767 = vmatpush1.bf16.msra.mxu0 %v721
      %768 = vmatprep.subr.bf16.mxu0 0
      %769 = vmatpush1.bf16.msra.mxu0 %v722
      %770 = vmatprep.subr.bf16.mxu0 0
      %771 = vmatpush1.bf16.msra.mxu0 %v723
      %772 = vmatprep.mubr.bf16.mxu0 %v637
      %773 = vmatmul.mubr.bf16.gmra.mrb[0].mxu0 %v636
      %v774 = vpop.f32.mrb[0].mxu0
      %v775 = vadd.f32 %v421, %v774
      %v776 = vpop.f32.mrb[0].mxu0
      %v777 = vpop.f32.mrb[0].mxu0
      %v778 = vadd.f32 %v421, %v777
      %v779 = vpop.f32.mrb[0].mxu0
      %780 = vmatprep.mubr.bf16.mxu0 %v639
      %781 = vmatmul.mubr.bf16.gmra.mrb[0].mxu0 %v638
      %v782 = vpop.f32.mrb[0].mxu0
      %v783 = vadd.f32 %v421, %v782
      %v784 = vpop.f32.mrb[0].mxu0
      %v785 = vpop.f32.mrb[0].mxu0
      %v786 = vadd.f32 %v421, %v785
      %v787 = vpop.f32.mrb[0].mxu0
      %788 = vdwg.mxu0
      %vm789 = vcmp.ge.f32.partialorder %v574, 0.0
      %vm790 = vcmp.ge.f32.partialorder %v577, 0.0
      %vm791 = vcmp.ge.f32.partialorder %v582, 0.0
      %vm792 = vcmp.ge.f32.partialorder %v585, 0.0
      %v793 = vmul.f32 %v574, 0.2
      %v794 = vmul.f32 %v577, 0.2
      %v795 = vmul.f32 %v582, 0.2
      %v796 = vmul.f32 %v585, 0.2
      %v797 = vsel %vm789, %v574, %v793
      %v798 = vsel %vm790, %v577, %v794
      %v799 = vsel %vm791, %v582, %v795
      %v800 = vsel %vm792, %v585, %v796
      %vm801 = vcmp.ge.f32.partialorder %v775, 0.0
      %vm802 = vcmp.ge.f32.partialorder %v778, 0.0
      %vm803 = vcmp.ge.f32.partialorder %v783, 0.0
      %vm804 = vcmp.ge.f32.partialorder %v786, 0.0
      %v805 = vmul.f32 %v775, 0.2
      %v806 = vmul.f32 %v778, 0.2
      %v807 = vmul.f32 %v783, 0.2
      %v808 = vmul.f32 %v786, 0.2
      %v809 = vsel %vm801, %v775, %v805
      %v810 = vsel %vm802, %v778, %v806
      %v811 = vsel %vm803, %v783, %v807
      %v812 = vsel %vm804, %v786, %v808
      %v813 = vld [vmem:[%s363] sm:$0xff]
      %v814 = vld [vmem:[%s363 + $0x8] sm:$0xff]
      %v815 = vld [vmem:[%s363 + $0x10] sm:$0xff]
      %v816 = vld [vmem:[%s363 + $0x18] sm:$0xff]
      %v817 = vadd.f32 %v797, %v813
      %v818 = vadd.f32 %v798, %v814
      %v819 = vadd.f32 %v799, %v815
      %v820 = vadd.f32 %v800, %v816
      %821 = vst [vmem:[%s373] sm:$0xff] %v817
      %822 = vst [vmem:[%s373 + $0x8] sm:$0xff] %v818
      %823 = vst [vmem:[%s373 + $0x10] sm:$0xff] %v819
      %824 = vst [vmem:[%s373 + $0x18] sm:$0xff] %v820
      %v825 = vld [vmem:[%s368] sm:$0xff]
      %v826 = vld [vmem:[%s368 + $0x8] sm:$0xff]
      %v827 = vld [vmem:[%s368 + $0x10] sm:$0xff]
      %v828 = vld [vmem:[%s368 + $0x18] sm:$0xff]
      %v829 = vadd.f32 %v809, %v825
      %v830 = vadd.f32 %v810, %v826
      %v831 = vadd.f32 %v811, %v827
      %v832 = vadd.f32 %v812, %v828
      %833 = vst [vmem:[%s378] sm:$0xff] %v829
      %834 = vst [vmem:[%s378 + $0x8] sm:$0xff] %v830
      %835 = vst [vmem:[%s378 + $0x10] sm:$0xff] %v831
      %836 = vst [vmem:[%s378 + $0x18] sm:$0xff] %v832
      %p837 = scmp.lt.s32.totalorder %s20, 1
      %s838 = scalar_select %p837, %s20, 1
      %s839 = smul.addr %s838, 4
      %s840 = smul.addr %s839, 8
      %s841 = scalar_lea.vmem %s7, %s840
      %p842 = scmp.lt.s32.totalorder %s20, 1
      %s843 = scalar_select %p842, %s20, 1
      %s844 = smul.addr %s843, 4
      %s845 = smul.addr %s844, 8
      %s846 = scalar_lea.vmem %s8, %s845
      // Predicated region
      $region49: #{unet_forward.21} parent=47 // pred_check
        %p847 = pneg %p205
      $region50: #{unet_forward.21} parent=47 // pred_check_branch
        %849 = sbr.rel (%p847) target = $region52
      $region51: #{unet_forward.21} parent=47 // pred_region
        _
      $region52: #{unet_forward.21} parent=47 // pred_fallthru
        _
      // Predicated region
      $region53: #{unet_forward.21} parent=47 // pred_check
        %p850 = pneg %p231
      $region54: #{unet_forward.21} parent=47 // pred_check_branch
        %852 = sbr.rel (%p850) target = $region56
      $region55: #{unet_forward.21} parent=47 // pred_region
        _
      $region56: #{unet_forward.21} parent=47 // pred_fallthru
        _
    $region48: #{unet_forward.21} parent=5 // pred_fallthru
      _
    %p853 = scmp.le.s32.totalorder 2, %s15
    // Predicated region
    $region57: #{unet_forward.21} parent=5 // pred_check
      %p854 = pneg %p853
    $region58: #{unet_forward.21} parent=5 // pred_check_branch
      %856 = sbr.rel (%p854) target = $region60
    $region59: #{unet_forward.21} parent=5 // pred_region
      %s857 = ssub.s32 %s15, 2
      // Predicated region
      $region61: #{unet_forward.21} parent=59 // pred_check
        %p858 = pneg %p211
      $region62: #{unet_forward.21} parent=59 // pred_check_branch
        %860 = sbr.rel (%p858) target = $region64
      $region63: #{unet_forward.21} parent=59 // pred_region
        %p861 = scmp.lt.s32.totalorder %s21, 1
        %s862 = scalar_select %p861, %s21, 1
        %s863 = smul.addr %s862, 4
        %s864 = smul.addr %s863, 8
        %s865 = scalar_lea.vmem %s7, %s864
      $region64: #{unet_forward.21} parent=59 // pred_fallthru
        _
      // Predicated region
      $region65: #{unet_forward.21} parent=59 // pred_check
        %p866 = pneg %p237
      $region66: #{unet_forward.21} parent=59 // pred_check_branch
        %868 = sbr.rel (%p866) target = $region68
      $region67: #{unet_forward.21} parent=59 // pred_region
        %p869 = scmp.lt.s32.totalorder %s21, 1
        %s870 = scalar_select %p869, %s21, 1
        %s871 = smul.addr %s870, 4
        %s872 = smul.addr %s871, 8
        %s873 = scalar_lea.vmem %s8, %s872
      $region68: #{unet_forward.21} parent=59 // pred_fallthru
        _
    $region60: #{unet_forward.21} parent=5 // pred_fallthru
      _
  $region6: #{unet_forward.21} parent=0 // loop_footer
    %s19 = sadd.s32 1, %s15
  $region7: #{unet_forward.21} parent=0 // loop_footer_branch
    %14 = sbr.rel target = $region3
  $region8: #{unet_forward.21} parent=0 // loop_exit
    _

// kernel: unet_forward.23
$region0: #{unet_forward.23}
  #allocation0 [shape = 'u32[]', space=smem, size = 0x4, offset = 0x4, fixed_abs, tag = 'smem constant byte address 0x4 - core index']
  #allocation1 [shape = 'u32[144,128]{1,0:T(1,128)}', space=vmem, size = 0x12000, scoped, tag = 'internal scratch']
  %s0 = inlined_call_operand.vmem [shape: bf16[2,128,128], index: 0, kind: input, shape index: {}]
  %s1 = inlined_call_operand.vmem [shape: bf16[128,512], index: 1, kind: input, shape index: {}]
  %s2 = inlined_call_operand.vmem [shape: f32[1,512], index: 2, kind: input, shape index: {}]
  %s3 = inlined_call_operand.vmem [shape: f32[2,128,512], index: 3, kind: output, shape index: {}]
  %s4 = sld [smem:[#allocation0]]
  $region45: #{unet_forward.23} parent=0
    _
  %s6 = ssub.s32 1, %s4
  %s7 = scalar_select 0, %s6, %s4
  loop: start=0, step=1, limit=4
  $region2: #{unet_forward.23} parent=0 // loop_pre_header
    _
  $region3: #{unet_forward.23} parent=0 // loop_header
    %s9 = sphi 0, %s13
    %p10 = scmp.ge.s32.totalorder %s9, 4
    %s19 = sphi 0, %s21
    %s22 = sphi 0, %s19
    %s23 = sphi 0, %s22
    %s39 = sphi 0, %s23
    %s43 = sphi 0, %s43
    %s45 = sphi 0, %s43
    %s46 = sphi 0, %s45
    %s60 = sphi 0, %s46
    %s64 = sphi 0, %s64
    %s66 = sphi 0, %s64
    %s67 = sphi 0, %s66
    %s81 = sphi 0, %s67
    %s87 = sphi 0, %s89
    %s90 = sphi 0, %s87
    %s91 = sphi 0, %s90
    %s107 = sphi 0, %s91
  $region4: #{unet_forward.23} parent=0 // loop_header_branch
    %12 = sbr.rel (%p10) target = $region8
  $region5: #{unet_forward.23} parent=0 // loop_body
    %s14 = ssub.s32 %s9, 1
    %s15 = ssub.s32 %s9, 2
    %s16 = sadd.s32 %s9, 1
    %s17 = ssub.s32 %s9, %s16
    %p18 = scmp.eq.s32.totalorder %s17, 0
    %s20 = sadd.s32 %s19, 1
    %s21 = scalar_select %p18, %s19, %s20
    %p24 = pneg %p18
    %p25 = scmp.eq.s32.totalorder %s9, 1
    %p26 = por %p24, %p25
    %p27 = scmp.ne.s32.totalorder %s19, %s22
    %p28 = scmp.eq.s32.totalorder %s9, 0
    %p29 = por %p27, %p28
    %p30 = scmp.ne.s32.totalorder %s19, %s22
    %p31 = scmp.eq.s32.totalorder %s14, 1
    %p32 = por %p30, %p31
    %p33 = scmp.ne.s32.totalorder %s22, %s23
    %p34 = scmp.eq.s32.totalorder %s14, 0
    %p35 = por %p33, %p34
    %p36 = scmp.ne.s32.totalorder %s22, %s23
    %p37 = scmp.eq.s32.totalorder %s15, 1
    %p38 = por %p36, %p37
    %p40 = scmp.ne.s32.totalorder %s23, %s39
    %p41 = scmp.eq.s32.totalorder %s15, 0
    %p42 = por %p40, %p41
    %s44 = sadd.s32 %s43, 1
    %p47 = scmp.eq.s32.totalorder %s9, 1
    %p48 = scmp.ne.s32.totalorder %s43, %s45
    %p49 = scmp.eq.s32.totalorder %s9, 0
    %p50 = por %p48, %p49
    %p51 = scmp.ne.s32.totalorder %s43, %s45
    %p52 = scmp.eq.s32.totalorder %s14, 1
    %p53 = por %p51, %p52
    %p54 = scmp.ne.s32.totalorder %s45, %s46
    %p55 = scmp.eq.s32.totalorder %s14, 0
    %p56 = por %p54, %p55
    %p57 = scmp.ne.s32.totalorder %s45, %s46
    %p58 = scmp.eq.s32.totalorder %s15, 1
    %p59 = por %p57, %p58
    %p61 = scmp.ne.s32.totalorder %s46, %s60
    %p62 = scmp.eq.s32.totalorder %s15, 0
    %p63 = por %p61, %p62
    %s65 = sadd.s32 %s64, 1
    %p68 = scmp.eq.s32.totalorder %s9, 1
    %p69 = scmp.ne.s32.totalorder %s64, %s66
    %p70 = scmp.eq.s32.totalorder %s9, 0
    %p71 = por %p69, %p70
    %p72 = scmp.ne.s32.totalorder %s64, %s66
    %p73 = scmp.eq.s32.totalorder %s14, 1
    %p74 = por %p72, %p73
    %p75 = scmp.ne.s32.totalorder %s66, %s67
    %p76 = scmp.eq.s32.totalorder %s14, 0
    %p77 = por %p75, %p76
    %p78 = scmp.ne.s32.totalorder %s66, %s67
    %p79 = scmp.eq.s32.totalorder %s15, 1
    %p80 = por %p78, %p79
    %p82 = scmp.ne.s32.totalorder %s67, %s81
    %p83 = scmp.eq.s32.totalorder %s15, 0
    %p84 = por %p82, %p83
    %s85 = ssub.s32 %s9, %s16
    %p86 = scmp.eq.s32.totalorder %s85, 0
    %s88 = sadd.s32 %s87, 1
    %s89 = scalar_select %p86, %s87, %s88
    %p92 = pneg %p86
    %p93 = scmp.eq.s32.totalorder %s9, 1
    %p94 = por %p92, %p93
    %p95 = scmp.ne.s32.totalorder %s87, %s90
    %p96 = scmp.eq.s32.totalorder %s9, 0
    %p97 = por %p95, %p96
    %p98 = scmp.ne.s32.totalorder %s87, %s90
    %p99 = scmp.eq.s32.totalorder %s14, 1
    %p100 = por %p98, %p99
    %p101 = scmp.ne.s32.totalorder %s90, %s91
    %p102 = scmp.eq.s32.totalorder %s14, 0
    %p103 = por %p101, %p102
    %p104 = scmp.ne.s32.totalorder %s90, %s91
    %p105 = scmp.eq.s32.totalorder %s15, 1
    %p106 = por %p104, %p105
    %p108 = scmp.ne.s32.totalorder %s91, %s107
    %p109 = scmp.eq.s32.totalorder %s15, 0
    %p110 = por %p108, %p109
    %p111 = scmp.le.s32.totalorder 1, %s9
    %p112 = scmp.lt.s32.totalorder %s9, 3
    %p113 = pnand %p111, %p112
    %p114 = pneg %p113
    // Predicated region
    $region9: #{unet_forward.23} parent=5 // pred_check
      _
    $region10: #{unet_forward.23} parent=5 // pred_check_branch
      %116 = sbr.rel (%p113) target = $region12
    $region11: #{unet_forward.23} parent=5 // pred_region
      %s117 = ssub.s32 %s9, 1
      // Predicated region
      $region13: #{unet_forward.23} parent=11 // pred_check
        %p118 = pneg %p56
      $region14: #{unet_forward.23} parent=11 // pred_check_branch
        %120 = sbr.rel (%p118) target = $region16
      $region15: #{unet_forward.23} parent=11 // pred_region
        _
      $region16: #{unet_forward.23} parent=11 // pred_fallthru
        _
      // Predicated region
      $region17: #{unet_forward.23} parent=11 // pred_check
        %p121 = pneg %p77
      $region18: #{unet_forward.23} parent=11 // pred_check_branch
        %123 = sbr.rel (%p121) target = $region20
      $region19: #{unet_forward.23} parent=11 // pred_region
        _
      $region20: #{unet_forward.23} parent=11 // pred_fallthru
        _
    $region12: #{unet_forward.23} parent=5 // pred_fallthru
      _
    %p124 = scmp.lt.s32.totalorder %s9, 2
    // Predicated region
    $region21: #{unet_forward.23} parent=5 // pred_check
      %p125 = pneg %p124
    $region22: #{unet_forward.23} parent=5 // pred_check_branch
      %127 = sbr.rel (%p125) target = $region24
    $region23: #{unet_forward.23} parent=5 // pred_region
      // Predicated region
      $region25: #{unet_forward.23} parent=23 // pred_check
        %p128 = pneg %p29
      $region26: #{unet_forward.23} parent=23 // pred_check_branch
        %130 = sbr.rel (%p128) target = $region28
      $region27: #{unet_forward.23} parent=23 // pred_region
        %p131 = scmp.lt.s32.totalorder %s9, 1
        %s132 = scalar_select %p131, %s9, 1
        %s133 = smul.addr %s132, 16
        %s134 = smul.addr %s133, 4
        %s135 = scalar_lea.vmem %s0, %s134
      $region28: #{unet_forward.23} parent=23 // pred_fallthru
        _
    $region24: #{unet_forward.23} parent=5 // pred_fallthru
      _
    %p136 = scmp.le.s32.totalorder 1, %s9
    %p137 = scmp.lt.s32.totalorder %s9, 3
    %p138 = pnand %p136, %p137
    %p139 = pneg %p138
    // Predicated region
    $region29: #{unet_forward.23} parent=5 // pred_check
      _
    $region30: #{unet_forward.23} parent=5 // pred_check_branch
      %141 = sbr.rel (%p138) target = $region32
    $region31: #{unet_forward.23} parent=5 // pred_region
      %s142 = ssub.s32 %s9, 1
      %p143 = scmp.lt.s32.totalorder %s14, 1
      %s144 = scalar_select %p143, %s14, 1
      %s145 = smul.addr %s144, 16
      %s146 = smul.addr %s145, 4
      %s147 = scalar_lea.vmem %s0, %s146
      %p148 = pneg %p35
      %p149 = pneg %p32
      %p150 = pneg %p56
      %p151 = pneg %p53
      %p152 = pneg %p77
      %p153 = pneg %p74
      %p154 = pneg %p103
      %p155 = pneg %p100
      %p156 = scmp.lt.s32.totalorder %s14, 1
      %s157 = scalar_select %p156, %s14, 1
      %s158 = smul.addr %s157, 64
      %s159 = smul.addr %s158, 8
      %s160 = scalar_lea.vmem %s3, %s159
      %p161 = scmp.lt.s32.totalorder %s14, 1
      %s162 = scalar_select %p161, %s14, 1
      %s163 = smul.addr %s162, 16
      %s164 = smul.addr %s163, 4
      %s165 = scalar_lea.vmem %s0, %s164
      %p166 = scmp.lt.s32.totalorder %s14, 1
      %s167 = scalar_select %p166, %s14, 1
      %s168 = smul.addr %s167, 64
      %s169 = smul.addr %s168, 8
      %s170 = scalar_lea.vmem %s3, %s169
      %v172 = vld [vmem:[%s165] sm:$0xf]
      %v173 = vld [vmem:[%s165 + $0x4] sm:$0xf]
      %v174 = vld [vmem:[%s165 + $0x8] sm:$0xf]
      %v175 = vld [vmem:[%s165 + $0xc] sm:$0xf]
      %v176 = vld [vmem:[%s165 + $0x10] sm:$0xf]
      %v177 = vld [vmem:[%s165 + $0x14] sm:$0xf]
      %v178 = vld [vmem:[%s165 + $0x18] sm:$0xf]
      %v179 = vld [vmem:[%s165 + $0x1c] sm:$0xf]
      %v180 = vld [vmem:[%s165 + $0x20] sm:$0xf]
      %v181 = vld [vmem:[%s165 + $0x24] sm:$0xf]
      %v182 = vld [vmem:[%s165 + $0x28] sm:$0xf]
      %v183 = vld [vmem:[%s165 + $0x2c] sm:$0xf]
      %v184 = vld [vmem:[%s165 + $0x30] sm:$0xf]
      %v185 = vld [vmem:[%s165 + $0x34] sm:$0xf]
      %v186 = vld [vmem:[%s165 + $0x38] sm:$0xf]
      %v187 = vld [vmem:[%s165 + $0x3c] sm:$0xf]
      %v188 = vld [vmem:[%s1] sm:$0xff]
      %v189 = vld [vmem:[%s1 + $0x8] sm:$0xff]
      %v190 = vld [vmem:[%s1 + $0x10] sm:$0xff]
      %v191 = vld [vmem:[%s1 + $0x18] sm:$0xff]
      %v192 = vld [vmem:[%s1 + $0x20] sm:$0xff]
      %v193 = vld [vmem:[%s1 + $0x28] sm:$0xff]
      %v194 = vld [vmem:[%s1 + $0x30] sm:$0xff]
      %v195 = vld [vmem:[%s1 + $0x38] sm:$0xff]
      %v196 = vld [vmem:[%s1 + $0x40] sm:$0xff]
      %v197 = vld [vmem:[%s1 + $0x48] sm:$0xff]
      %v198 = vld [vmem:[%s1 + $0x50] sm:$0xff]
      %v199 = vld [vmem:[%s1 + $0x58] sm:$0xff]
      %v200 = vld [vmem:[%s1 + $0x60] sm:$0xff]
      %v201 = vld [vmem:[%s1 + $0x68] sm:$0xff]
      %v202 = vld [vmem:[%s1 + $0x70] sm:$0xff]
      %v203 = vld [vmem:[%s1 + $0x78] sm:$0xff]
      %v204 = vld [vmem:[%s1 + $0x80] sm:$0xff]
      %v205 = vld [vmem:[%s1 + $0x88] sm:$0xff]
      %v206 = vld [vmem:[%s1 + $0x90] sm:$0xff]
      %v207 = vld [vmem:[%s1 + $0x98] sm:$0xff]
      %v208 = vld [vmem:[%s1 + $0xa0] sm:$0xff]
      %v209 = vld [vmem:[%s1 + $0xa8] sm:$0xff]
      %v210 = vld [vmem:[%s1 + $0xb0] sm:$0xff]
      %v211 = vld [vmem:[%s1 + $0xb8] sm:$0xff]
      %v212 = vld [vmem:[%s1 + $0xc0] sm:$0xff]
      %v213 = vld [vmem:[%s1 + $0xc8] sm:$0xff]
      %v214 = vld [vmem:[%s1 + $0xd0] sm:$0xff]
      %v215 = vld [vmem:[%s1 + $0xd8] sm:$0xff]
      %v216 = vld [vmem:[%s1 + $0xe0] sm:$0xff]
      %v217 = vld [vmem:[%s1 + $0xe8] sm:$0xff]
      %v218 = vld [vmem:[%s1 + $0xf0] sm:$0xff]
      %v219 = vld [vmem:[%s1 + $0xf8] sm:$0xff]
      %v220 = vld [vmem:[%s2] sm:$0xf]
      %v222 = vlaneseq
      %v223 = vshrl.u32 %v222, 7
      %v224 = vsub.s32 0, %v223
      %v225 = vrot.slane %v220, %v224
      %v226 = vlaneseq
      %v227 = vshrl.u32 %v226, 7
      %v228 = vsub.s32 1, %v227
      %v229 = vrot.slane %v220, %v228
      %v230 = vlaneseq
      %v231 = vshrl.u32 %v230, 7
      %v232 = vsub.s32 2, %v231
      %v233 = vrot.slane %v220, %v232
      %v234 = vlaneseq
      %v235 = vshrl.u32 %v234, 7
      %v236 = vsub.s32 3, %v235
      %v237 = vrot.slane %v220, %v236
      %v258 = vunpack.c.l.b16 %v172
      %v259 = vunpack.c.l.b16 %v173
      %v260 = vunpack.c.l.b16 %v174
      %v261 = vunpack.c.l.b16 %v175
      %v262 = vunpack.c.l.b16 %v176
      %v263 = vunpack.c.l.b16 %v177
      %v264 = vunpack.c.l.b16 %v178
      %v265 = vunpack.c.l.b16 %v179
      %v266 = vunpack.c.l.b16 %v180
      %v267 = vunpack.c.l.b16 %v181
      %v268 = vunpack.c.l.b16 %v182
      %v269 = vunpack.c.l.b16 %v183
      %v270 = vunpack.c.l.b16 %v184
      %v271 = vunpack.c.l.b16 %v185
      %v272 = vunpack.c.l.b16 %v186
      %v273 = vunpack.c.l.b16 %v187
      %v274 = vpack.c.b16 %v259, %v258
      %v275 = vpack.c.b16 %v261, %v260
      %v276 = vpack.c.b16 %v263, %v262
      %v277 = vpack.c.b16 %v265, %v264
      %v278 = vpack.c.b16 %v267, %v266
      %v279 = vpack.c.b16 %v269, %v268
      %v280 = vpack.c.b16 %v271, %v270
      %v281 = vpack.c.b16 %v273, %v272
      %v322 = vunpack.c.l.b16 %v188
      %v323 = vunpack.c.h.b16 %v188
      %v324 = vunpack.c.l.b16 %v189
      %v325 = vunpack.c.h.b16 %v189
      %v326 = vunpack.c.l.b16 %v190
      %v327 = vunpack.c.h.b16 %v190
      %v328 = vunpack.c.l.b16 %v191
      %v329 = vunpack.c.h.b16 %v191
      %v330 = vunpack.c.l.b16 %v192
      %v331 = vunpack.c.h.b16 %v192
      %v332 = vunpack.c.l.b16 %v193
      %v333 = vunpack.c.h.b16 %v193
      %v334 = vunpack.c.l.b16 %v194
      %v335 = vunpack.c.h.b16 %v194
      %v336 = vunpack.c.l.b16 %v195
      %v337 = vunpack.c.h.b16 %v195
      %v338 = vunpack.c.l.b16 %v196
      %v339 = vunpack.c.h.b16 %v196
      %v340 = vunpack.c.l.b16 %v197
      %v341 = vunpack.c.h.b16 %v197
      %v342 = vunpack.c.l.b16 %v198
      %v343 = vunpack.c.h.b16 %v198
      %v344 = vunpack.c.l.b16 %v199
      %v345 = vunpack.c.h.b16 %v199
      %v346 = vunpack.c.l.b16 %v200
      %v347 = vunpack.c.h.b16 %v200
      %v348 = vunpack.c.l.b16 %v201
      %v349 = vunpack.c.h.b16 %v201
      %v350 = vunpack.c.l.b16 %v202
      %v351 = vunpack.c.h.b16 %v202
      %v352 = vunpack.c.l.b16 %v203
      %v353 = vunpack.c.h.b16 %v203
      %v354 = vunpack.c.l.b16 %v204
      %v355 = vunpack.c.h.b16 %v204
      %v356 = vunpack.c.l.b16 %v205
      %v357 = vunpack.c.h.b16 %v205
      %v358 = vunpack.c.l.b16 %v206
      %v359 = vunpack.c.h.b16 %v206
      %v360 = vunpack.c.l.b16 %v207
      %v361 = vunpack.c.h.b16 %v207
      %v362 = vunpack.c.l.b16 %v208
      %v363 = vunpack.c.h.b16 %v208
      %v364 = vunpack.c.l.b16 %v209
      %v365 = vunpack.c.h.b16 %v209
      %v366 = vunpack.c.l.b16 %v210
      %v367 = vunpack.c.h.b16 %v210
      %v368 = vunpack.c.l.b16 %v211
      %v369 = vunpack.c.h.b16 %v211
      %v370 = vunpack.c.l.b16 %v212
      %v371 = vunpack.c.h.b16 %v212
      %v372 = vunpack.c.l.b16 %v213
      %v373 = vunpack.c.h.b16 %v213
      %v374 = vunpack.c.l.b16 %v214
      %v375 = vunpack.c.h.b16 %v214
      %v376 = vunpack.c.l.b16 %v215
      %v377 = vunpack.c.h.b16 %v215
      %v378 = vunpack.c.l.b16 %v216
      %v379 = vunpack.c.h.b16 %v216
      %v380 = vunpack.c.l.b16 %v217
      %v381 = vunpack.c.h.b16 %v217
      %v382 = vunpack.c.l.b16 %v218
      %v383 = vunpack.c.h.b16 %v218
      %v384 = vunpack.c.l.b16 %v219
      %v385 = vunpack.c.h.b16 %v219
      %v386 = vpack.c.b16 %v326, %v322
      %v387 = vpack.c.b16 %v327, %v323
      %v388 = vpack.c.b16 %v328, %v324
      %v389 = vpack.c.b16 %v329, %v325
      %v390 = vpack.c.b16 %v334, %v330
      %v391 = vpack.c.b16 %v335, %v331
      %v392 = vpack.c.b16 %v336, %v332
      %v393 = vpack.c.b16 %v337, %v333
      %v394 = vpack.c.b16 %v342, %v338
      %v395 = vpack.c.b16 %v343, %v339
      %v396 = vpack.c.b16 %v344, %v340
      %v397 = vpack.c.b16 %v345, %v341
      %v398 = vpack.c.b16 %v350, %v346
      %v399 = vpack.c.b16 %v351, %v347
      %v400 = vpack.c.b16 %v352, %v348
      %v401 = vpack.c.b16 %v353, %v349
      %v402 = vpack.c.b16 %v358, %v354
      %v403 = vpack.c.b16 %v359, %v355
      %v404 = vpack.c.b16 %v360, %v356
      %v405 = vpack.c.b16 %v361, %v357
      %v406 = vpack.c.b16 %v366, %v362
      %v407 = vpack.c.b16 %v367, %v363
      %v408 = vpack.c.b16 %v368, %v364
      %v409 = vpack.c.b16 %v369, %v365
      %v410 = vpack.c.b16 %v374, %v370
      %v411 = vpack.c.b16 %v375, %v371
      %v412 = vpack.c.b16 %v376, %v372
      %v413 = vpack.c.b16 %v377, %v373
      %v414 = vpack.c.b16 %v382, %v378
      %v415 = vpack.c.b16 %v383, %v379
      %v416 = vpack.c.b16 %v384, %v380
      %v417 = vpack.c.b16 %v385, %v381
      %450 = vmatprep.subr.bf16.mxu0 %v387
      %451 = vmatpush1.bf16.msra.mxu0 %v386
      %452 = vmatprep.subr.bf16.mxu0 %v391
      %453 = vmatpush1.bf16.msra.mxu0 %v390
      %454 = vmatprep.subr.bf16.mxu0 %v395
      %455 = vmatpush1.bf16.msra.mxu0 %v394
      %456 = vmatprep.subr.bf16.mxu0 %v399
      %457 = vmatpush1.bf16.msra.mxu0 %v398
      %458 = vmatprep.subr.bf16.mxu0 %v403
      %459 = vmatpush1.bf16.msra.mxu0 %v402
      %460 = vmatprep.subr.bf16.mxu0 %v407
      %461 = vmatpush1.bf16.msra.mxu0 %v406
      %462 = vmatprep.subr.bf16.mxu0 %v411
      %463 = vmatpush1.bf16.msra.mxu0 %v410
      %464 = vmatprep.subr.bf16.mxu0 %v415
      %465 = vmatpush1.bf16.msra.mxu0 %v414
      %466 = vmatprep.subr.bf16.mxu0 0
      %467 = vmatpush1.bf16.msra.mxu0 0
      %468 = vmatprep.subr.bf16.mxu0 0
      %469 = vmatpush1.bf16.msra.mxu0 0
      %470 = vmatprep.subr.bf16.mxu0 0
      %471 = vmatpush1.bf16.msra.mxu0 0
      %472 = vmatprep.subr.bf16.mxu0 0
      %473 = vmatpush1.bf16.msra.mxu0 0
      %474 = vmatprep.subr.bf16.mxu0 0
      %475 = vmatpush1.bf16.msra.mxu0 0
      %476 = vmatprep.subr.bf16.mxu0 0
      %477 = vmatpush1.bf16.msra.mxu0 0
      %478 = vmatprep.subr.bf16.mxu0 0
      %479 = vmatpush1.bf16.msra.mxu0 0
      %480 = vmatprep.subr.bf16.mxu0 0
      %481 = vmatpush1.bf16.msra.mxu0 0
      %482 = vmatprep.mubr.bf16.mxu0 0
      %483 = vmatmul.mubr.bf16.gmra.mrb[0].mxu0 %v274
      %v484 = vpop.f32.mrb[0].mxu0
      %v485 = vadd.f32 %v225, %v484
      %v486 = vpop.f32.mrb[0].mxu0
      %v487 = vadd.f32 %v229, %v486
      %v488 = vpop.f32.mrb[0].mxu0
      %v489 = vadd.f32 %v225, %v488
      %v490 = vpop.f32.mrb[0].mxu0
      %v491 = vadd.f32 %v229, %v490
      %492 = vmatprep.mubr.bf16.mxu0 0
      %493 = vmatmul.mubr.bf16.gmra.mrb[0].mxu0 %v275
      %v494 = vpop.f32.mrb[0].mxu0
      %v495 = vadd.f32 %v225, %v494
      %v496 = vpop.f32.mrb[0].mxu0
      %v497 = vadd.f32 %v229, %v496
      %v498 = vpop.f32.mrb[0].mxu0
      %v499 = vadd.f32 %v225, %v498
      %v500 = vpop.f32.mrb[0].mxu0
      %v501 = vadd.f32 %v229, %v500
      %502 = vmatprep.mubr.bf16.mxu0 0
      %503 = vmatmul.mubr.bf16.gmra.mrb[0].mxu0 %v276
      %v504 = vpop.f32.mrb[0].mxu0
      %v505 = vadd.f32 %v225, %v504
      %v506 = vpop.f32.mrb[0].mxu0
      %v507 = vadd.f32 %v229, %v506
      %v508 = vpop.f32.mrb[0].mxu0
      %v509 = vadd.f32 %v225, %v508
      %v510 = vpop.f32.mrb[0].mxu0
      %v511 = vadd.f32 %v229, %v510
      %512 = vmatprep.mubr.bf16.mxu0 0
      %513 = vmatmul.mubr.bf16.gmra.mrb[0].mxu0 %v277
      %v514 = vpop.f32.mrb[0].mxu0
      %v515 = vadd.f32 %v225, %v514
      %v516 = vpop.f32.mrb[0].mxu0
      %v517 = vadd.f32 %v229, %v516
      %v518 = vpop.f32.mrb[0].mxu0
      %v519 = vadd.f32 %v225, %v518
      %v520 = vpop.f32.mrb[0].mxu0
      %v521 = vadd.f32 %v229, %v520
      %522 = vmatprep.mubr.bf16.mxu0 0
      %523 = vmatmul.mubr.bf16.gmra.mrb[0].mxu0 %v278
      %v524 = vpop.f32.mrb[0].mxu0
      %v525 = vadd.f32 %v225, %v524
      %v526 = vpop.f32.mrb[0].mxu0
      %v527 = vadd.f32 %v229, %v526
      %v528 = vpop.f32.mrb[0].mxu0
      %v529 = vadd.f32 %v225, %v528
      %v530 = vpop.f32.mrb[0].mxu0
      %v531 = vadd.f32 %v229, %v530
      %532 = vmatprep.mubr.bf16.mxu0 0
      %533 = vmatmul.mubr.bf16.gmra.mrb[0].mxu0 %v279
      %v534 = vpop.f32.mrb[0].mxu0
      %v535 = vadd.f32 %v225, %v534
      %v536 = vpop.f32.mrb[0].mxu0
      %v537 = vadd.f32 %v229, %v536
      %v538 = vpop.f32.mrb[0].mxu0
      %v539 = vadd.f32 %v225, %v538
      %v540 = vpop.f32.mrb[0].mxu0
      %v541 = vadd.f32 %v229, %v540
      %542 = vmatprep.mubr.bf16.mxu0 0
      %543 = vmatmul.mubr.bf16.gmra.mrb[0].mxu0 %v280
      %v544 = vpop.f32.mrb[0].mxu0
      %v545 = vadd.f32 %v225, %v544
      %v546 = vpop.f32.mrb[0].mxu0
      %v547 = vadd.f32 %v229, %v546
      %v548 = vpop.f32.mrb[0].mxu0
      %v549 = vadd.f32 %v225, %v548
      %v550 = vpop.f32.mrb[0].mxu0
      %v551 = vadd.f32 %v229, %v550
      %552 = vmatprep.mubr.bf16.mxu0 0
      %553 = vmatmul.mubr.bf16.gmra.mrb[0].mxu0 %v281
      %v554 = vpop.f32.mrb[0].mxu0
      %v555 = vadd.f32 %v225, %v554
      %v556 = vpop.f32.mrb[0].mxu0
      %v557 = vadd.f32 %v229, %v556
      %v558 = vpop.f32.mrb[0].mxu0
      %v559 = vadd.f32 %v225, %v558
      %v560 = vpop.f32.mrb[0].mxu0
      %v561 = vadd.f32 %v229, %v560
      %562 = vdwg.mxu0
      %563 = vmatprep.subr.bf16.mxu0 %v389
      %564 = vmatpush1.bf16.msra.mxu0 %v388
      %565 = vmatprep.subr.bf16.mxu0 %v393
      %566 = vmatpush1.bf16.msra.mxu0 %v392
      %567 = vmatprep.subr.bf16.mxu0 %v397
      %568 = vmatpush1.bf16.msra.mxu0 %v396
      %569 = vmatprep.subr.bf16.mxu0 %v401
      %570 = vmatpush1.bf16.msra.mxu0 %v400
      %571 = vmatprep.subr.bf16.mxu0 %v405
      %572 = vmatpush1.bf16.msra.mxu0 %v404
      %573 = vmatprep.subr.bf16.mxu0 %v409
      %574 = vmatpush1.bf16.msra.mxu0 %v408
      %575 = vmatprep.subr.bf16.mxu0 %v413
      %576 = vmatpush1.bf16.msra.mxu0 %v412
      %577 = vmatprep.subr.bf16.mxu0 %v417
      %578 = vmatpush1.bf16.msra.mxu0 %v416
      %579 = vmatprep.subr.bf16.mxu0 0
      %580 = vmatpush1.bf16.msra.mxu0 0
      %581 = vmatprep.subr.bf16.mxu0 0
      %582 = vmatpush1.bf16.msra.mxu0 0
      %583 = vmatprep.subr.bf16.mxu0 0
      %584 = vmatpush1.bf16.msra.mxu0 0
      %585 = vmatprep.subr.bf16.mxu0 0
      %586 = vmatpush1.bf16.msra.mxu0 0
      %587 = vmatprep.subr.bf16.mxu0 0
      %588 = vmatpush1.bf16.msra.mxu0 0
      %589 = vmatprep.subr.bf16.mxu0 0
      %590 = vmatpush1.bf16.msra.mxu0 0
      %591 = vmatprep.subr.bf16.mxu0 0
      %592 = vmatpush1.bf16.msra.mxu0 0
      %593 = vmatprep.subr.bf16.mxu0 0
      %594 = vmatpush1.bf16.msra.mxu0 0
      %595 = vmatprep.mubr.bf16.mxu0 0
      %596 = vmatmul.mubr.bf16.gmra.mrb[0].mxu0 %v274
      %v597 = vpop.f32.mrb[0].mxu0
      %v598 = vadd.f32 %v233, %v597
      %v599 = vpop.f32.mrb[0].mxu0
      %v600 = vadd.f32 %v237, %v599
      %v601 = vpop.f32.mrb[0].mxu0
      %v602 = vadd.f32 %v233, %v601
      %v603 = vpop.f32.mrb[0].mxu0
      %v604 = vadd.f32 %v237, %v603
      %605 = vmatprep.mubr.bf16.mxu0 0
      %606 = vmatmul.mubr.bf16.gmra.mrb[0].mxu0 %v275
      %v607 = vpop.f32.mrb[0].mxu0
      %v608 = vadd.f32 %v233, %v607
      %v609 = vpop.f32.mrb[0].mxu0
      %v610 = vadd.f32 %v237, %v609
      %v611 = vpop.f32.mrb[0].mxu0
      %v612 = vadd.f32 %v233, %v611
      %v613 = vpop.f32.mrb[0].mxu0
      %v614 = vadd.f32 %v237, %v613
      %615 = vmatprep.mubr.bf16.mxu0 0
      %616 = vmatmul.mubr.bf16.gmra.mrb[0].mxu0 %v276
      %v617 = vpop.f32.mrb[0].mxu0
      %v618 = vadd.f32 %v233, %v617
      %v619 = vpop.f32.mrb[0].mxu0
      %v620 = vadd.f32 %v237, %v619
      %v621 = vpop.f32.mrb[0].mxu0
      %v622 = vadd.f32 %v233, %v621
      %v623 = vpop.f32.mrb[0].mxu0
      %v624 = vadd.f32 %v237, %v623
      %625 = vmatprep.mubr.bf16.mxu0 0
      %626 = vmatmul.mubr.bf16.gmra.mrb[0].mxu0 %v277
      %v627 = vpop.f32.mrb[0].mxu0
      %v628 = vadd.f32 %v233, %v627
      %v629 = vpop.f32.mrb[0].mxu0
      %v630 = vadd.f32 %v237, %v629
      %v631 = vpop.f32.mrb[0].mxu0
      %v632 = vadd.f32 %v233, %v631
      %v633 = vpop.f32.mrb[0].mxu0
      %v634 = vadd.f32 %v237, %v633
      %635 = vmatprep.mubr.bf16.mxu0 0
      %636 = vmatmul.mubr.bf16.gmra.mrb[0].mxu0 %v278
      %v637 = vpop.f32.mrb[0].mxu0
      %v638 = vadd.f32 %v233, %v637
      %v639 = vpop.f32.mrb[0].mxu0
      %v640 = vadd.f32 %v237, %v639
      %v641 = vpop.f32.mrb[0].mxu0
      %v642 = vadd.f32 %v233, %v641
      %v643 = vpop.f32.mrb[0].mxu0
      %v644 = vadd.f32 %v237, %v643
      %645 = vmatprep.mubr.bf16.mxu0 0
      %646 = vmatmul.mubr.bf16.gmra.mrb[0].mxu0 %v279
      %v647 = vpop.f32.mrb[0].mxu0
      %v648 = vadd.f32 %v233, %v647
      %v649 = vpop.f32.mrb[0].mxu0
      %v650 = vadd.f32 %v237, %v649
      %v651 = vpop.f32.mrb[0].mxu0
      %v652 = vadd.f32 %v233, %v651
      %v653 = vpop.f32.mrb[0].mxu0
      %v654 = vadd.f32 %v237, %v653
      %655 = vmatprep.mubr.bf16.mxu0 0
      %656 = vmatmul.mubr.bf16.gmra.mrb[0].mxu0 %v280
      %v657 = vpop.f32.mrb[0].mxu0
      %v658 = vadd.f32 %v233, %v657
      %v659 = vpop.f32.mrb[0].mxu0
      %v660 = vadd.f32 %v237, %v659
      %v661 = vpop.f32.mrb[0].mxu0
      %v662 = vadd.f32 %v233, %v661
      %v663 = vpop.f32.mrb[0].mxu0
      %v664 = vadd.f32 %v237, %v663
      %665 = vmatprep.mubr.bf16.mxu0 0
      %666 = vmatmul.mubr.bf16.gmra.mrb[0].mxu0 %v281
      %v667 = vpop.f32.mrb[0].mxu0
      %v668 = vadd.f32 %v233, %v667
      %v669 = vpop.f32.mrb[0].mxu0
      %v670 = vadd.f32 %v237, %v669
      %v671 = vpop.f32.mrb[0].mxu0
      %v672 = vadd.f32 %v233, %v671
      %v673 = vpop.f32.mrb[0].mxu0
      %v674 = vadd.f32 %v237, %v673
      %675 = vdwg.mxu0
      %676 = vst [vmem:[%s170] sm:$0xff] %v485
      %677 = vst [vmem:[%s170 + $0x8] sm:$0xff] %v487
      %678 = vst [vmem:[%s170 + $0x10] sm:$0xff] %v598
      %679 = vst [vmem:[%s170 + $0x18] sm:$0xff] %v600
      %680 = vst [vmem:[%s170 + $0x20] sm:$0xff] %v489
      %681 = vst [vmem:[%s170 + $0x28] sm:$0xff] %v491
      %682 = vst [vmem:[%s170 + $0x30] sm:$0xff] %v602
      %683 = vst [vmem:[%s170 + $0x38] sm:$0xff] %v604
      %684 = vst [vmem:[%s170 + $0x40] sm:$0xff] %v495
      %685 = vst [vmem:[%s170 + $0x48] sm:$0xff] %v497
      %686 = vst [vmem:[%s170 + $0x50] sm:$0xff] %v608
      %687 = vst [vmem:[%s170 + $0x58] sm:$0xff] %v610
      %688 = vst [vmem:[%s170 + $0x60] sm:$0xff] %v499
      %689 = vst [vmem:[%s170 + $0x68] sm:$0xff] %v501
      %690 = vst [vmem:[%s170 + $0x70] sm:$0xff] %v612
      %691 = vst [vmem:[%s170 + $0x78] sm:$0xff] %v614
      %692 = vst [vmem:[%s170 + $0x80] sm:$0xff] %v505
      %693 = vst [vmem:[%s170 + $0x88] sm:$0xff] %v507
      %694 = vst [vmem:[%s170 + $0x90] sm:$0xff] %v618
      %695 = vst [vmem:[%s170 + $0x98] sm:$0xff] %v620
      %696 = vst [vmem:[%s170 + $0xa0] sm:$0xff] %v509
      %697 = vst [vmem:[%s170 + $0xa8] sm:$0xff] %v511
      %698 = vst [vmem:[%s170 + $0xb0] sm:$0xff] %v622
      %699 = vst [vmem:[%s170 + $0xb8] sm:$0xff] %v624
      %700 = vst [vmem:[%s170 + $0xc0] sm:$0xff] %v515
      %701 = vst [vmem:[%s170 + $0xc8] sm:$0xff] %v517
      %702 = vst [vmem:[%s170 + $0xd0] sm:$0xff] %v628
      %703 = vst [vmem:[%s170 + $0xd8] sm:$0xff] %v630
      %704 = vst [vmem:[%s170 + $0xe0] sm:$0xff] %v519
      %705 = vst [vmem:[%s170 + $0xe8] sm:$0xff] %v521
      %706 = vst [vmem:[%s170 + $0xf0] sm:$0xff] %v632
      %707 = vst [vmem:[%s170 + $0xf8] sm:$0xff] %v634
      %708 = vst [vmem:[%s170 + $0x100] sm:$0xff] %v525
      %709 = vst [vmem:[%s170 + $0x108] sm:$0xff] %v527
      %710 = vst [vmem:[%s170 + $0x110] sm:$0xff] %v638
      %711 = vst [vmem:[%s170 + $0x118] sm:$0xff] %v640
      %712 = vst [vmem:[%s170 + $0x120] sm:$0xff] %v529
      %713 = vst [vmem:[%s170 + $0x128] sm:$0xff] %v531
      %714 = vst [vmem:[%s170 + $0x130] sm:$0xff] %v642
      %715 = vst [vmem:[%s170 + $0x138] sm:$0xff] %v644
      %716 = vst [vmem:[%s170 + $0x140] sm:$0xff] %v535
      %717 = vst [vmem:[%s170 + $0x148] sm:$0xff] %v537
      %718 = vst [vmem:[%s170 + $0x150] sm:$0xff] %v648
      %719 = vst [vmem:[%s170 + $0x158] sm:$0xff] %v650
      %720 = vst [vmem:[%s170 + $0x160] sm:$0xff] %v539
      %721 = vst [vmem:[%s170 + $0x168] sm:$0xff] %v541
      %722 = vst [vmem:[%s170 + $0x170] sm:$0xff] %v652
      %723 = vst [vmem:[%s170 + $0x178] sm:$0xff] %v654
      %724 = vst [vmem:[%s170 + $0x180] sm:$0xff] %v545
      %725 = vst [vmem:[%s170 + $0x188] sm:$0xff] %v547
      %726 = vst [vmem:[%s170 + $0x190] sm:$0xff] %v658
      %727 = vst [vmem:[%s170 + $0x198] sm:$0xff] %v660
      %728 = vst [vmem:[%s170 + $0x1a0] sm:$0xff] %v549
      %729 = vst [vmem:[%s170 + $0x1a8] sm:$0xff] %v551
      %730 = vst [vmem:[%s170 + $0x1b0] sm:$0xff] %v662
      %731 = vst [vmem:[%s170 + $0x1b8] sm:$0xff] %v664
      %732 = vst [vmem:[%s170 + $0x1c0] sm:$0xff] %v555
      %733 = vst [vmem:[%s170 + $0x1c8] sm:$0xff] %v557
      %734 = vst [vmem:[%s170 + $0x1d0] sm:$0xff] %v668
      %735 = vst [vmem:[%s170 + $0x1d8] sm:$0xff] %v670
      %736 = vst [vmem:[%s170 + $0x1e0] sm:$0xff] %v559
      %737 = vst [vmem:[%s170 + $0x1e8] sm:$0xff] %v561
      %738 = vst [vmem:[%s170 + $0x1f0] sm:$0xff] %v672
      %739 = vst [vmem:[%s170 + $0x1f8] sm:$0xff] %v674
      %p740 = scmp.lt.s32.totalorder %s14, 1
      %s741 = scalar_select %p740, %s14, 1
      %s742 = smul.addr %s741, 64
      %s743 = smul.addr %s742, 8
      %s744 = scalar_lea.vmem %s3, %s743
      // Predicated region
      $region33: #{unet_forward.23} parent=31 // pred_check
        %p745 = pneg %p100
      $region34: #{unet_forward.23} parent=31 // pred_check_branch
        %747 = sbr.rel (%p745) target = $region36
      $region35: #{unet_forward.23} parent=31 // pred_region
        _
      $region36: #{unet_forward.23} parent=31 // pred_fallthru
        _
    $region32: #{unet_forward.23} parent=5 // pred_fallthru
      _
    %p748 = scmp.le.s32.totalorder 2, %s9
    // Predicated region
    $region37: #{unet_forward.23} parent=5 // pred_check
      %p749 = pneg %p748
    $region38: #{unet_forward.23} parent=5 // pred_check_branch
      %751 = sbr.rel (%p749) target = $region40
    $region39: #{unet_forward.23} parent=5 // pred_region
      %s752 = ssub.s32 %s9, 2
      // Predicated region
      $region41: #{unet_forward.23} parent=39 // pred_check
        %p753 = pneg %p106
      $region42: #{unet_forward.23} parent=39 // pred_check_branch
        %755 = sbr.rel (%p753) target = $region44
      $region43: #{unet_forward.23} parent=39 // pred_region
        %p756 = scmp.lt.s32.totalorder %s15, 1
        %s757 = scalar_select %p756, %s15, 1
        %s758 = smul.addr %s757, 64
        %s759 = smul.addr %s758, 8
        %s760 = scalar_lea.vmem %s3, %s759
      $region44: #{unet_forward.23} parent=39 // pred_fallthru
        _
    $region40: #{unet_forward.23} parent=5 // pred_fallthru
      _
  $region6: #{unet_forward.23} parent=0 // loop_footer
    %s13 = sadd.s32 1, %s9
  $region7: #{unet_forward.23} parent=0 // loop_footer_branch
    %8 = sbr.rel target = $region3
  $region8: #{unet_forward.23} parent=0 // loop_exit
    _

// kernel: unet_forward.22
$region0: #{unet_forward.22}
  #allocation0 [shape = 'u32[]', space=smem, size = 0x4, offset = 0x4, fixed_abs, tag = 'smem constant byte address 0x4 - core index']
  #allocation1 [shape = 'u32[144,128]{1,0:T(1,128)}', space=vmem, size = 0x12000, scoped, tag = 'internal scratch']
  %s0 = inlined_call_operand.vmem [shape: bf16[2,64,256], index: 0, kind: input, shape index: {}]
  %s1 = inlined_call_operand.vmem [shape: bf16[2,64,256], index: 1, kind: input, shape index: {}]
  %s2 = inlined_call_operand.vmem [shape: bf16[256,128], index: 2, kind: input, shape index: {}]
  %s3 = inlined_call_operand.vmem [shape: bf16[256,128], index: 3, kind: input, shape index: {}]
  %s4 = inlined_call_operand.vmem [shape: f32[1,128], index: 4, kind: input, shape index: {}]
  %s5 = inlined_call_operand.vmem [shape: f32[2,64,128], index: 5, kind: output, shape index: {0}]
  %s6 = inlined_call_operand.vmem [shape: f32[2,64,128], index: 6, kind: output, shape index: {1}]
  %7 = xla_tuple %s5, %s6
  %s8 = sld [smem:[#allocation0]]
  $region61: #{unet_forward.22} parent=0
    _
  %s10 = ssub.s32 1, %s8
  %s11 = scalar_select 0, %s10, %s8
  loop: start=0, step=1, limit=4
  $region2: #{unet_forward.22} parent=0 // loop_pre_header
    _
  $region3: #{unet_forward.22} parent=0 // loop_header
    %s13 = sphi 0, %s17
    %p14 = scmp.ge.s32.totalorder %s13, 4
    %s23 = sphi 0, %s25
    %s26 = sphi 0, %s23
    %s27 = sphi 0, %s26
    %s43 = sphi 0, %s27
    %s49 = sphi 0, %s51
    %s52 = sphi 0, %s49
    %s53 = sphi 0, %s52
    %s69 = sphi 0, %s53
    %s73 = sphi 0, %s73
    %s75 = sphi 0, %s73
    %s76 = sphi 0, %s75
    %s90 = sphi 0, %s76
    %s94 = sphi 0, %s94
    %s96 = sphi 0, %s94
    %s97 = sphi 0, %s96
    %s111 = sphi 0, %s97
    %s115 = sphi 0, %s115
    %s117 = sphi 0, %s115
    %s118 = sphi 0, %s117
    %s132 = sphi 0, %s118
    %s138 = sphi 0, %s140
    %s141 = sphi 0, %s138
    %s142 = sphi 0, %s141
    %s158 = sphi 0, %s142
    %s164 = sphi 0, %s166
    %s167 = sphi 0, %s164
    %s168 = sphi 0, %s167
    %s184 = sphi 0, %s168
  $region4: #{unet_forward.22} parent=0 // loop_header_branch
    %16 = sbr.rel (%p14) target = $region8
  $region5: #{unet_forward.22} parent=0 // loop_body
    %s18 = ssub.s32 %s13, 1
    %s19 = ssub.s32 %s13, 2
    %s20 = sadd.s32 %s13, 1
    %s21 = ssub.s32 %s13, %s20
    %p22 = scmp.eq.s32.totalorder %s21, 0
    %s24 = sadd.s32 %s23, 1
    %s25 = scalar_select %p22, %s23, %s24
    %p28 = pneg %p22
    %p29 = scmp.eq.s32.totalorder %s13, 1
    %p30 = por %p28, %p29
    %p31 = scmp.ne.s32.totalorder %s23, %s26
    %p32 = scmp.eq.s32.totalorder %s13, 0
    %p33 = por %p31, %p32
    %p34 = scmp.ne.s32.totalorder %s23, %s26
    %p35 = scmp.eq.s32.totalorder %s18, 1
    %p36 = por %p34, %p35
    %p37 = scmp.ne.s32.totalorder %s26, %s27
    %p38 = scmp.eq.s32.totalorder %s18, 0
    %p39 = por %p37, %p38
    %p40 = scmp.ne.s32.totalorder %s26, %s27
    %p41 = scmp.eq.s32.totalorder %s19, 1
    %p42 = por %p40, %p41
    %p44 = scmp.ne.s32.totalorder %s27, %s43
    %p45 = scmp.eq.s32.totalorder %s19, 0
    %p46 = por %p44, %p45
    %s47 = ssub.s32 %s13, %s20
    %p48 = scmp.eq.s32.totalorder %s47, 0
    %s50 = sadd.s32 %s49, 1
    %s51 = scalar_select %p48, %s49, %s50
    %p54 = pneg %p48
    %p55 = scmp.eq.s32.totalorder %s13, 1
    %p56 = por %p54, %p55
    %p57 = scmp.ne.s32.totalorder %s49, %s52
    %p58 = scmp.eq.s32.totalorder %s13, 0
    %p59 = por %p57, %p58
    %p60 = scmp.ne.s32.totalorder %s49, %s52
    %p61 = scmp.eq.s32.totalorder %s18, 1
    %p62 = por %p60, %p61
    %p63 = scmp.ne.s32.totalorder %s52, %s53
    %p64 = scmp.eq.s32.totalorder %s18, 0
    %p65 = por %p63, %p64
    %p66 = scmp.ne.s32.totalorder %s52, %s53
    %p67 = scmp.eq.s32.totalorder %s19, 1
    %p68 = por %p66, %p67
    %p70 = scmp.ne.s32.totalorder %s53, %s69
    %p71 = scmp.eq.s32.totalorder %s19, 0
    %p72 = por %p70, %p71
    %s74 = sadd.s32 %s73, 1
    %p77 = scmp.eq.s32.totalorder %s13, 1
    %p78 = scmp.ne.s32.totalorder %s73, %s75
    %p79 = scmp.eq.s32.totalorder %s13, 0
    %p80 = por %p78, %p79
    %p81 = scmp.ne.s32.totalorder %s73, %s75
    %p82 = scmp.eq.s32.totalorder %s18, 1
    %p83 = por %p81, %p82
    %p84 = scmp.ne.s32.totalorder %s75, %s76
    %p85 = scmp.eq.s32.totalorder %s18, 0
    %p86 = por %p84, %p85
    %p87 = scmp.ne.s32.totalorder %s75, %s76
    %p88 = scmp.eq.s32.totalorder %s19, 1
    %p89 = por %p87, %p88
    %p91 = scmp.ne.s32.totalorder %s76, %s90
    %p92 = scmp.eq.s32.totalorder %s19, 0
    %p93 = por %p91, %p92
    %s95 = sadd.s32 %s94, 1
    %p98 = scmp.eq.s32.totalorder %s13, 1
    %p99 = scmp.ne.s32.totalorder %s94, %s96
    %p100 = scmp.eq.s32.totalorder %s13, 0
    %p101 = por %p99, %p100
    %p102 = scmp.ne.s32.totalorder %s94, %s96
    %p103 = scmp.eq.s32.totalorder %s18, 1
    %p104 = por %p102, %p103
    %p105 = scmp.ne.s32.totalorder %s96, %s97
    %p106 = scmp.eq.s32.totalorder %s18, 0
    %p107 = por %p105, %p106
    %p108 = scmp.ne.s32.totalorder %s96, %s97
    %p109 = scmp.eq.s32.totalorder %s19, 1
    %p110 = por %p108, %p109
    %p112 = scmp.ne.s32.totalorder %s97, %s111
    %p113 = scmp.eq.s32.totalorder %s19, 0
    %p114 = por %p112, %p113
    %s116 = sadd.s32 %s115, 1
    %p119 = scmp.eq.s32.totalorder %s13, 1
    %p120 = scmp.ne.s32.totalorder %s115, %s117
    %p121 = scmp.eq.s32.totalorder %s13, 0
    %p122 = por %p120, %p121
    %p123 = scmp.ne.s32.totalorder %s115, %s117
    %p124 = scmp.eq.s32.totalorder %s18, 1
    %p125 = por %p123, %p124
    %p126 = scmp.ne.s32.totalorder %s117, %s118
    %p127 = scmp.eq.s32.totalorder %s18, 0
    %p128 = por %p126, %p127
    %p129 = scmp.ne.s32.totalorder %s117, %s118
    %p130 = scmp.eq.s32.totalorder %s19, 1
    %p131 = por %p129, %p130
    %p133 = scmp.ne.s32.totalorder %s118, %s132
    %p134 = scmp.eq.s32.totalorder %s19, 0
    %p135 = por %p133, %p134
    %s136 = ssub.s32 %s13, %s20
    %p137 = scmp.eq.s32.totalorder %s136, 0
    %s139 = sadd.s32 %s138, 1
    %s140 = scalar_select %p137, %s138, %s139
    %p143 = pneg %p137
    %p144 = scmp.eq.s32.totalorder %s13, 1
    %p145 = por %p143, %p144
    %p146 = scmp.ne.s32.totalorder %s138, %s141
    %p147 = scmp.eq.s32.totalorder %s13, 0
    %p148 = por %p146, %p147
    %p149 = scmp.ne.s32.totalorder %s138, %s141
    %p150 = scmp.eq.s32.totalorder %s18, 1
    %p151 = por %p149, %p150
    %p152 = scmp.ne.s32.totalorder %s141, %s142
    %p153 = scmp.eq.s32.totalorder %s18, 0
    %p154 = por %p152, %p153
    %p155 = scmp.ne.s32.totalorder %s141, %s142
    %p156 = scmp.eq.s32.totalorder %s19, 1
    %p157 = por %p155, %p156
    %p159 = scmp.ne.s32.totalorder %s142, %s158
    %p160 = scmp.eq.s32.totalorder %s19, 0
    %p161 = por %p159, %p160
    %s162 = ssub.s32 %s13, %s20
    %p163 = scmp.eq.s32.totalorder %s162, 0
    %s165 = sadd.s32 %s164, 1
    %s166 = scalar_select %p163, %s164, %s165
    %p169 = pneg %p163
    %p170 = scmp.eq.s32.totalorder %s13, 1
    %p171 = por %p169, %p170
    %p172 = scmp.ne.s32.totalorder %s164, %s167
    %p173 = scmp.eq.s32.totalorder %s13, 0
    %p174 = por %p172, %p173
    %p175 = scmp.ne.s32.totalorder %s164, %s167
    %p176 = scmp.eq.s32.totalorder %s18, 1
    %p177 = por %p175, %p176
    %p178 = scmp.ne.s32.totalorder %s167, %s168
    %p179 = scmp.eq.s32.totalorder %s18, 0
    %p180 = por %p178, %p179
    %p181 = scmp.ne.s32.totalorder %s167, %s168
    %p182 = scmp.eq.s32.totalorder %s19, 1
    %p183 = por %p181, %p182
    %p185 = scmp.ne.s32.totalorder %s168, %s184
    %p186 = scmp.eq.s32.totalorder %s19, 0
    %p187 = por %p185, %p186
    %p188 = scmp.le.s32.totalorder 1, %s13
    %p189 = scmp.lt.s32.totalorder %s13, 3
    %p190 = pnand %p188, %p189
    %p191 = pneg %p190
    // Predicated region
    $region9: #{unet_forward.22} parent=5 // pred_check
      _
    $region10: #{unet_forward.22} parent=5 // pred_check_branch
      %193 = sbr.rel (%p190) target = $region12
    $region11: #{unet_forward.22} parent=5 // pred_region
      %s194 = ssub.s32 %s13, 1
      // Predicated region
      $region13: #{unet_forward.22} parent=11 // pred_check
        %p195 = pneg %p86
      $region14: #{unet_forward.22} parent=11 // pred_check_branch
        %197 = sbr.rel (%p195) target = $region16
      $region15: #{unet_forward.22} parent=11 // pred_region
        _
      $region16: #{unet_forward.22} parent=11 // pred_fallthru
        _
      // Predicated region
      $region17: #{unet_forward.22} parent=11 // pred_check
        %p198 = pneg %p107
      $region18: #{unet_forward.22} parent=11 // pred_check_branch
        %200 = sbr.rel (%p198) target = $region20
      $region19: #{unet_forward.22} parent=11 // pred_region
        _
      $region20: #{unet_forward.22} parent=11 // pred_fallthru
        _
      // Predicated region
      $region21: #{unet_forward.22} parent=11 // pred_check
        %p201 = pneg %p128
      $region22: #{unet_forward.22} parent=11 // pred_check_branch
        %203 = sbr.rel (%p201) target = $region24
      $region23: #{unet_forward.22} parent=11 // pred_region
        _
      $region24: #{unet_forward.22} parent=11 // pred_fallthru
        _
    $region12: #{unet_forward.22} parent=5 // pred_fallthru
      _
    %p204 = scmp.lt.s32.totalorder %s13, 2
    // Predicated region
    $region25: #{unet_forward.22} parent=5 // pred_check
      %p205 = pneg %p204
    $region26: #{unet_forward.22} parent=5 // pred_check_branch
      %207 = sbr.rel (%p205) target = $region28
    $region27: #{unet_forward.22} parent=5 // pred_region
      // Predicated region
      $region29: #{unet_forward.22} parent=27 // pred_check
        %p208 = pneg %p33
      $region30: #{unet_forward.22} parent=27 // pred_check_branch
        %210 = sbr.rel (%p208) target = $region32
      $region31: #{unet_forward.22} parent=27 // pred_region
        %p211 = scmp.lt.s32.totalorder %s13, 1
        %s212 = scalar_select %p211, %s13, 1
        %s213 = smul.addr %s212, 16
        %s214 = smul.addr %s213, 4
        %s215 = scalar_lea.vmem %s0, %s214
      $region32: #{unet_forward.22} parent=27 // pred_fallthru
        _
      // Predicated region
      $region33: #{unet_forward.22} parent=27 // pred_check
        %p216 = pneg %p59
      $region34: #{unet_forward.22} parent=27 // pred_check_branch
        %218 = sbr.rel (%p216) target = $region36
      $region35: #{unet_forward.22} parent=27 // pred_region
        %p219 = scmp.lt.s32.totalorder %s13, 1
        %s220 = scalar_select %p219, %s13, 1
        %s221 = smul.addr %s220, 16
        %s222 = smul.addr %s221, 4
        %s223 = scalar_lea.vmem %s1, %s222
      $region36: #{unet_forward.22} parent=27 // pred_fallthru
        _
    $region28: #{unet_forward.22} parent=5 // pred_fallthru
      _
    %p224 = scmp.le.s32.totalorder 1, %s13
    %p225 = scmp.lt.s32.totalorder %s13, 3
    %p226 = pnand %p224, %p225
    %p227 = pneg %p226
    // Predicated region
    $region37: #{unet_forward.22} parent=5 // pred_check
      _
    $region38: #{unet_forward.22} parent=5 // pred_check_branch
      %229 = sbr.rel (%p226) target = $region40
    $region39: #{unet_forward.22} parent=5 // pred_region
      %s230 = ssub.s32 %s13, 1
      %p231 = scmp.lt.s32.totalorder %s18, 1
      %s232 = scalar_select %p231, %s18, 1
      %s233 = smul.addr %s232, 16
      %s234 = smul.addr %s233, 4
      %s235 = scalar_lea.vmem %s0, %s234
      %p236 = pneg %p39
      %p237 = pneg %p36
      %p238 = scmp.lt.s32.totalorder %s18, 1
      %s239 = scalar_select %p238, %s18, 1
      %s240 = smul.addr %s239, 16
      %s241 = smul.addr %s240, 4
      %s242 = scalar_lea.vmem %s1, %s241
      %p243 = pneg %p65
      %p244 = pneg %p62
      %p245 = pneg %p86
      %p246 = pneg %p83
      %p247 = pneg %p107
      %p248 = pneg %p104
      %p249 = pneg %p128
      %p250 = pneg %p125
      %p251 = pneg %p154
      %p252 = pneg %p151
      %p253 = scmp.lt.s32.totalorder %s18, 1
      %s254 = scalar_select %p253, %s18, 1
      %s255 = smul.addr %s254, 8
      %s256 = smul.addr %s255, 8
      %s257 = scalar_lea.vmem %s5, %s256
      %p258 = pneg %p180
      %p259 = pneg %p177
      %p260 = scmp.lt.s32.totalorder %s18, 1
      %s261 = scalar_select %p260, %s18, 1
      %s262 = smul.addr %s261, 8
      %s263 = smul.addr %s262, 8
      %s264 = scalar_lea.vmem %s6, %s263
      %p265 = scmp.lt.s32.totalorder %s18, 1
      %s266 = scalar_select %p265, %s18, 1
      %s267 = smul.addr %s266, 16
      %s268 = smul.addr %s267, 4
      %s269 = scalar_lea.vmem %s0, %s268
      %p270 = scmp.lt.s32.totalorder %s18, 1
      %s271 = scalar_select %p270, %s18, 1
      %s272 = smul.addr %s271, 16
      %s273 = smul.addr %s272, 4
      %s274 = scalar_lea.vmem %s1, %s273
      %p275 = scmp.lt.s32.totalorder %s18, 1
      %s276 = scalar_select %p275, %s18, 1
      %s277 = smul.addr %s276, 8
      %s278 = smul.addr %s277, 8
      %s279 = scalar_lea.vmem %s5, %s278
      %p280 = scmp.lt.s32.totalorder %s18, 1
      %s281 = scalar_select %p280, %s18, 1
      %s282 = smul.addr %s281, 8
      %s283 = smul.addr %s282, 8
      %s284 = scalar_lea.vmem %s6, %s283
      %v286 = vld [vmem:[%s269] sm:$0xff]
      %v287 = vld [vmem:[%s269 + $0x8] sm:$0xff]
      %v288 = vld [vmem:[%s269 + $0x10] sm:$0xff]
      %v289 = vld [vmem:[%s269 + $0x18] sm:$0xff]
      %v290 = vld [vmem:[%s269 + $0x20] sm:$0xff]
      %v291 = vld [vmem:[%s269 + $0x28] sm:$0xff]
      %v292 = vld [vmem:[%s269 + $0x30] sm:$0xff]
      %v293 = vld [vmem:[%s269 + $0x38] sm:$0xff]
      %v294 = vld [vmem:[%s2] sm:$0xf]
      %v295 = vld [vmem:[%s2 + $0x4] sm:$0xf]
      %v296 = vld [vmem:[%s2 + $0x8] sm:$0xf]
      %v297 = vld [vmem:[%s2 + $0xc] sm:$0xf]
      %v298 = vld [vmem:[%s2 + $0x10] sm:$0xf]
      %v299 = vld [vmem:[%s2 + $0x14] sm:$0xf]
      %v300 = vld [vmem:[%s2 + $0x18] sm:$0xf]
      %v301 = vld [vmem:[%s2 + $0x1c] sm:$0xf]
      %v302 = vld [vmem:[%s2 + $0x20] sm:$0xf]
      %v303 = vld [vmem:[%s2 + $0x24] sm:$0xf]
      %v304 = vld [vmem:[%s2 + $0x28] sm:$0xf]
      %v305 = vld [vmem:[%s2 + $0x2c] sm:$0xf]
      %v306 = vld [vmem:[%s2 + $0x30] sm:$0xf]
      %v307 = vld [vmem:[%s2 + $0x34] sm:$0xf]
      %v308 = vld [vmem:[%s2 + $0x38] sm:$0xf]
      %v309 = vld [vmem:[%s2 + $0x3c] sm:$0xf]
      %v310 = vld [vmem:[%s2 + $0x40] sm:$0xf]
      %v311 = vld [vmem:[%s2 + $0x44] sm:$0xf]
      %v312 = vld [vmem:[%s2 + $0x48] sm:$0xf]
      %v313 = vld [vmem:[%s2 + $0x4c] sm:$0xf]
      %v314 = vld [vmem:[%s2 + $0x50] sm:$0xf]
      %v315 = vld [vmem:[%s2 + $0x54] sm:$0xf]
      %v316 = vld [vmem:[%s2 + $0x58] sm:$0xf]
      %v317 = vld [vmem:[%s2 + $0x5c] sm:$0xf]
      %v318 = vld [vmem:[%s2 + $0x60] sm:$0xf]
      %v319 = vld [vmem:[%s2 + $0x64] sm:$0xf]
      %v320 = vld [vmem:[%s2 + $0x68] sm:$0xf]
      %v321 = vld [vmem:[%s2 + $0x6c] sm:$0xf]
      %v322 = vld [vmem:[%s2 + $0x70] sm:$0xf]
      %v323 = vld [vmem:[%s2 + $0x74] sm:$0xf]
      %v324 = vld [vmem:[%s2 + $0x78] sm:$0xf]
      %v325 = vld [vmem:[%s2 + $0x7c] sm:$0xf]
      %v326 = vld [vmem:[%s4] sm:$0x1]
      %v328 = vlaneseq
      %v329 = vshrl.u32 %v328, 7
      %v330 = vsub.s32 0, %v329
      %v331 = vrot.slane %v326, %v330
      %v341 = vunpack.c.l.b16 %v286
      %v342 = vunpack.c.h.b16 %v286
      %v343 = vunpack.c.l.b16 %v287
      %v344 = vunpack.c.h.b16 %v287
      %v345 = vunpack.c.l.b16 %v288
      %v346 = vunpack.c.h.b16 %v288
      %v347 = vunpack.c.l.b16 %v289
      %v348 = vunpack.c.h.b16 %v289
      %v349 = vunpack.c.l.b16 %v290
      %v350 = vunpack.c.h.b16 %v290
      %v351 = vunpack.c.l.b16 %v291
      %v352 = vunpack.c.h.b16 %v291
      %v353 = vunpack.c.l.b16 %v292
      %v354 = vunpack.c.h.b16 %v292
      %v355 = vunpack.c.l.b16 %v293
      %v356 = vunpack.c.h.b16 %v293
      %v357 = vpack.c.b16 %v343, %v341
      %v358 = vpack.c.b16 %v344, %v342
      %v359 = vpack.c.b16 %v347, %v345
      %v360 = vpack.c.b16 %v348, %v346
      %v361 = vpack.c.b16 %v351, %v349
      %v362 = vpack.c.b16 %v352, %v350
      %v363 = vpack.c.b16 %v355, %v353
      %v364 = vpack.c.b16 %v356, %v354
      %v405 = vunpack.c.l.b16 %v294
      %v406 = vunpack.c.l.b16 %v295
      %v407 = vunpack.c.l.b16 %v296
      %v408 = vunpack.c.l.b16 %v297
      %v409 = vunpack.c.l.b16 %v298
      %v410 = vunpack.c.l.b16 %v299
      %v411 = vunpack.c.l.b16 %v300
      %v412 = vunpack.c.l.b16 %v301
      %v413 = vunpack.c.l.b16 %v302
      %v414 = vunpack.c.l.b16 %v303
      %v415 = vunpack.c.l.b16 %v304
      %v416 = vunpack.c.l.b16 %v305
      %v417 = vunpack.c.l.b16 %v306
      %v418 = vunpack.c.l.b16 %v307
      %v419 = vunpack.c.l.b16 %v308
      %v420 = vunpack.c.l.b16 %v309
      %v421 = vunpack.c.l.b16 %v310
      %v422 = vunpack.c.l.b16 %v311
      %v423 = vunpack.c.l.b16 %v312
      %v424 = vunpack.c.l.b16 %v313
      %v425 = vunpack.c.l.b16 %v314
      %v426 = vunpack.c.l.b16 %v315
      %v427 = vunpack.c.l.b16 %v316
      %v428 = vunpack.c.l.b16 %v317
      %v429 = vunpack.c.l.b16 %v318
      %v430 = vunpack.c.l.b16 %v319
      %v431 = vunpack.c.l.b16 %v320
      %v432 = vunpack.c.l.b16 %v321
      %v433 = vunpack.c.l.b16 %v322
      %v434 = vunpack.c.l.b16 %v323
      %v435 = vunpack.c.l.b16 %v324
      %v436 = vunpack.c.l.b16 %v325
      %v437 = vpack.c.b16 %v406, %v405
      %v438 = vpack.c.b16 %v408, %v407
      %v439 = vpack.c.b16 %v410, %v409
      %v440 = vpack.c.b16 %v412, %v411
      %v441 = vpack.c.b16 %v414, %v413
      %v442 = vpack.c.b16 %v416, %v415
      %v443 = vpack.c.b16 %v418, %v417
      %v444 = vpack.c.b16 %v420, %v419
      %v445 = vpack.c.b16 %v422, %v421
      %v446 = vpack.c.b16 %v424, %v423
      %v447 = vpack.c.b16 %v426, %v425
      %v448 = vpack.c.b16 %v428, %v427
      %v449 = vpack.c.b16 %v430, %v429
      %v450 = vpack.c.b16 %v432, %v431
      %v451 = vpack.c.b16 %v434, %v433
      %v452 = vpack.c.b16 %v436, %v435
      %469 = vmatprep.subr.bf16.mxu0 0
      %470 = vmatpush1.bf16.msra.mxu0 %v437
      %471 = vmatprep.subr.bf16.mxu0 0
      %472 = vmatpush1.bf16.msra.mxu0 %v438
      %473 = vmatprep.subr.bf16.mxu0 0
      %474 = vmatpush1.bf16.msra.mxu0 %v439
      %475 = vmatprep.subr.bf16.mxu0 0
      %476 = vmatpush1.bf16.msra.mxu0 %v440
      %477 = vmatprep.subr.bf16.mxu0 0
      %478 = vmatpush1.bf16.msra.mxu0 %v441
      %479 = vmatprep.subr.bf16.mxu0 0
      %480 = vmatpush1.bf16.msra.mxu0 %v442
      %481 = vmatprep.subr.bf16.mxu0 0
      %482 = vmatpush1.bf16.msra.mxu0 %v443
      %483 = vmatprep.subr.bf16.mxu0 0
      %484 = vmatpush1.bf16.msra.mxu0 %v444
      %485 = vmatprep.subr.bf16.mxu0 0
      %486 = vmatpush1.bf16.msra.mxu0 %v445
      %487 = vmatprep.subr.bf16.mxu0 0
      %488 = vmatpush1.bf16.msra.mxu0 %v446
      %489 = vmatprep.subr.bf16.mxu0 0
      %490 = vmatpush1.bf16.msra.mxu0 %v447
      %491 = vmatprep.subr.bf16.mxu0 0
      %492 = vmatpush1.bf16.msra.mxu0 %v448
      %493 = vmatprep.subr.bf16.mxu0 0
      %494 = vmatpush1.bf16.msra.mxu0 %v449
      %495 = vmatprep.subr.bf16.mxu0 0
      %496 = vmatpush1.bf16.msra.mxu0 %v450
      %497 = vmatprep.subr.bf16.mxu0 0
      %498 = vmatpush1.bf16.msra.mxu0 %v451
      %499 = vmatprep.subr.bf16.mxu0 0
      %500 = vmatpush1.bf16.msra.mxu0 %v452
      %501 = vmatprep.mubr.bf16.mxu0 %v358
      %502 = vmatmul.mubr.bf16.gmra.mrb[0].mxu0 %v357
      %v503 = vpop.f32.mrb[0].mxu0
      %v504 = vadd.f32 %v331, %v503
      %v505 = vpop.f32.mrb[0].mxu0
      %v506 = vpop.f32.mrb[0].mxu0
      %v507 = vadd.f32 %v331, %v506
      %v508 = vpop.f32.mrb[0].mxu0
      %509 = vmatprep.mubr.bf16.mxu0 %v360
      %510 = vmatmul.mubr.bf16.gmra.mrb[0].mxu0 %v359
      %v511 = vpop.f32.mrb[0].mxu0
      %v512 = vadd.f32 %v331, %v511
      %v513 = vpop.f32.mrb[0].mxu0
      %v514 = vpop.f32.mrb[0].mxu0
      %v515 = vadd.f32 %v331, %v514
      %v516 = vpop.f32.mrb[0].mxu0
      %517 = vmatprep.mubr.bf16.mxu0 %v362
      %518 = vmatmul.mubr.bf16.gmra.mrb[0].mxu0 %v361
      %v519 = vpop.f32.mrb[0].mxu0
      %v520 = vadd.f32 %v331, %v519
      %v521 = vpop.f32.mrb[0].mxu0
      %v522 = vpop.f32.mrb[0].mxu0
      %v523 = vadd.f32 %v331, %v522
      %v524 = vpop.f32.mrb[0].mxu0
      %525 = vmatprep.mubr.bf16.mxu0 %v364
      %526 = vmatmul.mubr.bf16.gmra.mrb[0].mxu0 %v363
      %v527 = vpop.f32.mrb[0].mxu0
      %v528 = vadd.f32 %v331, %v527
      %v529 = vpop.f32.mrb[0].mxu0
      %v530 = vpop.f32.mrb[0].mxu0
      %v531 = vadd.f32 %v331, %v530
      %v532 = vpop.f32.mrb[0].mxu0
      %533 = vdwg.mxu0
      %v534 = vld [vmem:[%s274] sm:$0xff]
      %v535 = vld [vmem:[%s274 + $0x8] sm:$0xff]
      %v536 = vld [vmem:[%s274 + $0x10] sm:$0xff]
      %v537 = vld [vmem:[%s274 + $0x18] sm:$0xff]
      %v538 = vld [vmem:[%s274 + $0x20] sm:$0xff]
      %v539 = vld [vmem:[%s274 + $0x28] sm:$0xff]
      %v540 = vld [vmem:[%s274 + $0x30] sm:$0xff]
      %v541 = vld [vmem:[%s274 + $0x38] sm:$0xff]
      %v542 = vld [vmem:[%s3] sm:$0xf]
      %v543 = vld [vmem:[%s3 + $0x4] sm:$0xf]
      %v544 = vld [vmem:[%s3 + $0x8] sm:$0xf]
      %v545 = vld [vmem:[%s3 + $0xc] sm:$0xf]
      %v546 = vld [vmem:[%s3 + $0x10] sm:$0xf]
      %v547 = vld [vmem:[%s3 + $0x14] sm:$0xf]
      %v548 = vld [vmem:[%s3 + $0x18] sm:$0xf]
      %v549 = vld [vmem:[%s3 + $0x1c] sm:$0xf]
      %v550 = vld [vmem:[%s3 + $0x20] sm:$0xf]
      %v551 = vld [vmem:[%s3 + $0x24] sm:$0xf]
      %v552 = vld [vmem:[%s3 + $0x28] sm:$0xf]
      %v553 = vld [vmem:[%s3 + $0x2c] sm:$0xf]
      %v554 = vld [vmem:[%s3 + $0x30] sm:$0xf]
      %v555 = vld [vmem:[%s3 + $0x34] sm:$0xf]
      %v556 = vld [vmem:[%s3 + $0x38] sm:$0xf]
      %v557 = vld [vmem:[%s3 + $0x3c] sm:$0xf]
      %v558 = vld [vmem:[%s3 + $0x40] sm:$0xf]
      %v559 = vld [vmem:[%s3 + $0x44] sm:$0xf]
      %v560 = vld [vmem:[%s3 + $0x48] sm:$0xf]
      %v561 = vld [vmem:[%s3 + $0x4c] sm:$0xf]
      %v562 = vld [vmem:[%s3 + $0x50] sm:$0xf]
      %v563 = vld [vmem:[%s3 + $0x54] sm:$0xf]
      %v564 = vld [vmem:[%s3 + $0x58] sm:$0xf]
      %v565 = vld [vmem:[%s3 + $0x5c] sm:$0xf]
      %v566 = vld [vmem:[%s3 + $0x60] sm:$0xf]
      %v567 = vld [vmem:[%s3 + $0x64] sm:$0xf]
      %v568 = vld [vmem:[%s3 + $0x68] sm:$0xf]
      %v569 = vld [vmem:[%s3 + $0x6c] sm:$0xf]
      %v570 = vld [vmem:[%s3 + $0x70] sm:$0xf]
      %v571 = vld [vmem:[%s3 + $0x74] sm:$0xf]
      %v572 = vld [vmem:[%s3 + $0x78] sm:$0xf]
      %v573 = vld [vmem:[%s3 + $0x7c] sm:$0xf]
      %v582 = vunpack.c.l.b16 %v534
      %v583 = vunpack.c.h.b16 %v534
      %v584 = vunpack.c.l.b16 %v535
      %v585 = vunpack.c.h.b16 %v535
      %v586 = vunpack.c.l.b16 %v536
      %v587 = vunpack.c.h.b16 %v536
      %v588 = vunpack.c.l.b16 %v537
      %v589 = vunpack.c.h.b16 %v537
      %v590 = vunpack.c.l.b16 %v538
      %v591 = vunpack.c.h.b16 %v538
      %v592 = vunpack.c.l.b16 %v539
      %v593 = vunpack.c.h.b16 %v539
      %v594 = vunpack.c.l.b16 %v540
      %v595 = vunpack.c.h.b16 %v540
      %v596 = vunpack.c.l.b16 %v541
      %v597 = vunpack.c.h.b16 %v541
      %v598 = vpack.c.b16 %v584, %v582
      %v599 = vpack.c.b16 %v585, %v583
      %v600 = vpack.c.b16 %v588, %v586
      %v601 = vpack.c.b16 %v589, %v587
      %v602 = vpack.c.b16 %v592, %v590
      %v603 = vpack.c.b16 %v593, %v591
      %v604 = vpack.c.b16 %v596, %v594
      %v605 = vpack.c.b16 %v597, %v595
      %v646 = vunpack.c.l.b16 %v542
      %v647 = vunpack.c.l.b16 %v543
      %v648 = vunpack.c.l.b16 %v544
      %v649 = vunpack.c.l.b16 %v545
      %v650 = vunpack.c.l.b16 %v546
      %v651 = vunpack.c.l.b16 %v547
      %v652 = vunpack.c.l.b16 %v548
      %v653 = vunpack.c.l.b16 %v549
      %v654 = vunpack.c.l.b16 %v550
      %v655 = vunpack.c.l.b16 %v551
      %v656 = vunpack.c.l.b16 %v552
      %v657 = vunpack.c.l.b16 %v553
      %v658 = vunpack.c.l.b16 %v554
      %v659 = vunpack.c.l.b16 %v555
      %v660 = vunpack.c.l.b16 %v556
      %v661 = vunpack.c.l.b16 %v557
      %v662 = vunpack.c.l.b16 %v558
      %v663 = vunpack.c.l.b16 %v559
      %v664 = vunpack.c.l.b16 %v560
      %v665 = vunpack.c.l.b16 %v561
      %v666 = vunpack.c.l.b16 %v562
      %v667 = vunpack.c.l.b16 %v563
      %v668 = vunpack.c.l.b16 %v564
      %v669 = vunpack.c.l.b16 %v565
      %v670 = vunpack.c.l.b16 %v566
      %v671 = vunpack.c.l.b16 %v567
      %v672 = vunpack.c.l.b16 %v568
      %v673 = vunpack.c.l.b16 %v569
      %v674 = vunpack.c.l.b16 %v570
      %v675 = vunpack.c.l.b16 %v571
      %v676 = vunpack.c.l.b16 %v572
      %v677 = vunpack.c.l.b16 %v573
      %v678 = vpack.c.b16 %v647, %v646
      %v679 = vpack.c.b16 %v649, %v648
      %v680 = vpack.c.b16 %v651, %v650
      %v681 = vpack.c.b16 %v653, %v652
      %v682 = vpack.c.b16 %v655, %v654
      %v683 = vpack.c.b16 %v657, %v656
      %v684 = vpack.c.b16 %v659, %v658
      %v685 = vpack.c.b16 %v661, %v660
      %v686 = vpack.c.b16 %v663, %v662
      %v687 = vpack.c.b16 %v665, %v664
      %v688 = vpack.c.b16 %v667, %v666
      %v689 = vpack.c.b16 %v669, %v668
      %v690 = vpack.c.b16 %v671, %v670
      %v691 = vpack.c.b16 %v673, %v672
      %v692 = vpack.c.b16 %v675, %v674
      %v693 = vpack.c.b16 %v677, %v676
      %710 = vmatprep.subr.bf16.mxu0 0
      %711 = vmatpush1.bf16.msra.mxu0 %v678
      %712 = vmatprep.subr.bf16.mxu0 0
      %713 = vmatpush1.bf16.msra.mxu0 %v679
      %714 = vmatprep.subr.bf16.mxu0 0
      %715 = vmatpush1.bf16.msra.mxu0 %v680
      %716 = vmatprep.subr.bf16.mxu0 0
      %717 = vmatpush1.bf16.msra.mxu0 %v681
      %718 = vmatprep.subr.bf16.mxu0 0
      %719 = vmatpush1.bf16.msra.mxu0 %v682
      %720 = vmatprep.subr.bf16.mxu0 0
      %721 = vmatpush1.bf16.msra.mxu0 %v683
      %722 = vmatprep.subr.bf16.mxu0 0
      %723 = vmatpush1.bf16.msra.mxu0 %v684
      %724 = vmatprep.subr.bf16.mxu0 0
      %725 = vmatpush1.bf16.msra.mxu0 %v685
      %726 = vmatprep.subr.bf16.mxu0 0
      %727 = vmatpush1.bf16.msra.mxu0 %v686
      %728 = vmatprep.subr.bf16.mxu0 0
      %729 = vmatpush1.bf16.msra.mxu0 %v687
      %730 = vmatprep.subr.bf16.mxu0 0
      %731 = vmatpush1.bf16.msra.mxu0 %v688
      %732 = vmatprep.subr.bf16.mxu0 0
      %733 = vmatpush1.bf16.msra.mxu0 %v689
      %734 = vmatprep.subr.bf16.mxu0 0
      %735 = vmatpush1.bf16.msra.mxu0 %v690
      %736 = vmatprep.subr.bf16.mxu0 0
      %737 = vmatpush1.bf16.msra.mxu0 %v691
      %738 = vmatprep.subr.bf16.mxu0 0
      %739 = vmatpush1.bf16.msra.mxu0 %v692
      %740 = vmatprep.subr.bf16.mxu0 0
      %741 = vmatpush1.bf16.msra.mxu0 %v693
      %742 = vmatprep.mubr.bf16.mxu0 %v599
      %743 = vmatmul.mubr.bf16.gmra.mrb[0].mxu0 %v598
      %v744 = vpop.f32.mrb[0].mxu0
      %v745 = vadd.f32 %v331, %v744
      %v746 = vpop.f32.mrb[0].mxu0
      %v747 = vpop.f32.mrb[0].mxu0
      %v748 = vadd.f32 %v331, %v747
      %v749 = vpop.f32.mrb[0].mxu0
      %750 = vmatprep.mubr.bf16.mxu0 %v601
      %751 = vmatmul.mubr.bf16.gmra.mrb[0].mxu0 %v600
      %v752 = vpop.f32.mrb[0].mxu0
      %v753 = vadd.f32 %v331, %v752
      %v754 = vpop.f32.mrb[0].mxu0
      %v755 = vpop.f32.mrb[0].mxu0
      %v756 = vadd.f32 %v331, %v755
      %v757 = vpop.f32.mrb[0].mxu0
      %758 = vmatprep.mubr.bf16.mxu0 %v603
      %759 = vmatmul.mubr.bf16.gmra.mrb[0].mxu0 %v602
      %v760 = vpop.f32.mrb[0].mxu0
      %v761 = vadd.f32 %v331, %v760
      %v762 = vpop.f32.mrb[0].mxu0
      %v763 = vpop.f32.mrb[0].mxu0
      %v764 = vadd.f32 %v331, %v763
      %v765 = vpop.f32.mrb[0].mxu0
      %766 = vmatprep.mubr.bf16.mxu0 %v605
      %767 = vmatmul.mubr.bf16.gmra.mrb[0].mxu0 %v604
      %v768 = vpop.f32.mrb[0].mxu0
      %v769 = vadd.f32 %v331, %v768
      %v770 = vpop.f32.mrb[0].mxu0
      %v771 = vpop.f32.mrb[0].mxu0
      %v772 = vadd.f32 %v331, %v771
      %v773 = vpop.f32.mrb[0].mxu0
      %774 = vdwg.mxu0
      %vm775 = vcmp.ge.f32.partialorder %v504, 0.0
      %vm776 = vcmp.ge.f32.partialorder %v507, 0.0
      %vm777 = vcmp.ge.f32.partialorder %v512, 0.0
      %vm778 = vcmp.ge.f32.partialorder %v515, 0.0
      %vm779 = vcmp.ge.f32.partialorder %v520, 0.0
      %vm780 = vcmp.ge.f32.partialorder %v523, 0.0
      %vm781 = vcmp.ge.f32.partialorder %v528, 0.0
      %vm782 = vcmp.ge.f32.partialorder %v531, 0.0
      %v783 = vmul.f32 %v504, 0.2
      %v784 = vmul.f32 %v507, 0.2
      %v785 = vmul.f32 %v512, 0.2
      %v786 = vmul.f32 %v515, 0.2
      %v787 = vmul.f32 %v520, 0.2
      %v788 = vmul.f32 %v523, 0.2
      %v789 = vmul.f32 %v528, 0.2
      %v790 = vmul.f32 %v531, 0.2
      %v791 = vsel %vm775, %v504, %v783
      %v792 = vsel %vm776, %v507, %v784
      %v793 = vsel %vm777, %v512, %v785
      %v794 = vsel %vm778, %v515, %v786
      %v795 = vsel %vm779, %v520, %v787
      %v796 = vsel %vm780, %v523, %v788
      %v797 = vsel %vm781, %v528, %v789
      %v798 = vsel %vm782, %v531, %v790
      %799 = vst [vmem:[%s279] sm:$0xff] %v791
      %800 = vst [vmem:[%s279 + $0x8] sm:$0xff] %v792
      %801 = vst [vmem:[%s279 + $0x10] sm:$0xff] %v793
      %802 = vst [vmem:[%s279 + $0x18] sm:$0xff] %v794
      %803 = vst [vmem:[%s279 + $0x20] sm:$0xff] %v795
      %804 = vst [vmem:[%s279 + $0x28] sm:$0xff] %v796
      %805 = vst [vmem:[%s279 + $0x30] sm:$0xff] %v797
      %806 = vst [vmem:[%s279 + $0x38] sm:$0xff] %v798
      %vm807 = vcmp.ge.f32.partialorder %v745, 0.0
      %vm808 = vcmp.ge.f32.partialorder %v748, 0.0
      %vm809 = vcmp.ge.f32.partialorder %v753, 0.0
      %vm810 = vcmp.ge.f32.partialorder %v756, 0.0
      %vm811 = vcmp.ge.f32.partialorder %v761, 0.0
      %vm812 = vcmp.ge.f32.partialorder %v764, 0.0
      %vm813 = vcmp.ge.f32.partialorder %v769, 0.0
      %vm814 = vcmp.ge.f32.partialorder %v772, 0.0
      %v815 = vmul.f32 %v745, 0.2
      %v816 = vmul.f32 %v748, 0.2
      %v817 = vmul.f32 %v753, 0.2
      %v818 = vmul.f32 %v756, 0.2
      %v819 = vmul.f32 %v761, 0.2
      %v820 = vmul.f32 %v764, 0.2
      %v821 = vmul.f32 %v769, 0.2
      %v822 = vmul.f32 %v772, 0.2
      %v823 = vsel %vm807, %v745, %v815
      %v824 = vsel %vm808, %v748, %v816
      %v825 = vsel %vm809, %v753, %v817
      %v826 = vsel %vm810, %v756, %v818
      %v827 = vsel %vm811, %v761, %v819
      %v828 = vsel %vm812, %v764, %v820
      %v829 = vsel %vm813, %v769, %v821
      %v830 = vsel %vm814, %v772, %v822
      %831 = vst [vmem:[%s284] sm:$0xff] %v823
      %832 = vst [vmem:[%s284 + $0x8] sm:$0xff] %v824
      %833 = vst [vmem:[%s284 + $0x10] sm:$0xff] %v825
      %834 = vst [vmem:[%s284 + $0x18] sm:$0xff] %v826
      %835 = vst [vmem:[%s284 + $0x20] sm:$0xff] %v827
      %836 = vst [vmem:[%s284 + $0x28] sm:$0xff] %v828
      %837 = vst [vmem:[%s284 + $0x30] sm:$0xff] %v829
      %838 = vst [vmem:[%s284 + $0x38] sm:$0xff] %v830
      %p839 = scmp.lt.s32.totalorder %s18, 1
      %s840 = scalar_select %p839, %s18, 1
      %s841 = smul.addr %s840, 8
      %s842 = smul.addr %s841, 8
      %s843 = scalar_lea.vmem %s5, %s842
      %p844 = scmp.lt.s32.totalorder %s18, 1
      %s845 = scalar_select %p844, %s18, 1
      %s846 = smul.addr %s845, 8
      %s847 = smul.addr %s846, 8
      %s848 = scalar_lea.vmem %s6, %s847
      // Predicated region
      $region41: #{unet_forward.22} parent=39 // pred_check
        %p849 = pneg %p151
      $region42: #{unet_forward.22} parent=39 // pred_check_branch
        %851 = sbr.rel (%p849) target = $region44
      $region43: #{unet_forward.22} parent=39 // pred_region
        _
      $region44: #{unet_forward.22} parent=39 // pred_fallthru
        _
      // Predicated region
      $region45: #{unet_forward.22} parent=39 // pred_check
        %p852 = pneg %p177
      $region46: #{unet_forward.22} parent=39 // pred_check_branch
        %854 = sbr.rel (%p852) target = $region48
      $region47: #{unet_forward.22} parent=39 // pred_region
        _
      $region48: #{unet_forward.22} parent=39 // pred_fallthru
        _
    $region40: #{unet_forward.22} parent=5 // pred_fallthru
      _
    %p855 = scmp.le.s32.totalorder 2, %s13
    // Predicated region
    $region49: #{unet_forward.22} parent=5 // pred_check
      %p856 = pneg %p855
    $region50: #{unet_forward.22} parent=5 // pred_check_branch
      %858 = sbr.rel (%p856) target = $region52
    $region51: #{unet_forward.22} parent=5 // pred_region
      %s859 = ssub.s32 %s13, 2
      // Predicated region
      $region53: #{unet_forward.22} parent=51 // pred_check
        %p860 = pneg %p157
      $region54: #{unet_forward.22} parent=51 // pred_check_branch
        %862 = sbr.rel (%p860) target = $region56
      $region55: #{unet_forward.22} parent=51 // pred_region
        %p863 = scmp.lt.s32.totalorder %s19, 1
        %s864 = scalar_select %p863, %s19, 1
        %s865 = smul.addr %s864, 8
        %s866 = smul.addr %s865, 8
        %s867 = scalar_lea.vmem %s5, %s866
      $region56: #{unet_forward.22} parent=51 // pred_fallthru
        _
      // Predicated region
      $region57: #{unet_forward.22} parent=51 // pred_check
        %p868 = pneg %p183
      $region58: #{unet_forward.22} parent=51 // pred_check_branch
        %870 = sbr.rel (%p868) target = $region60
      $region59: #{unet_forward.22} parent=51 // pred_region
        %p871 = scmp.lt.s32.totalorder %s19, 1
        %s872 = scalar_select %p871, %s19, 1
        %s873 = smul.addr %s872, 8
        %s874 = smul.addr %s873, 8
        %s875 = scalar_lea.vmem %s6, %s874
      $region60: #{unet_forward.22} parent=51 // pred_fallthru
        _
    $region52: #{unet_forward.22} parent=5 // pred_fallthru
      _
  $region6: #{unet_forward.22} parent=0 // loop_footer
    %s17 = sadd.s32 1, %s13
  $region7: #{unet_forward.22} parent=0 // loop_footer_branch
    %12 = sbr.rel target = $region3
  $region8: #{unet_forward.22} parent=0 // loop_exit
    _

</llo_original>
